<compile_context>
chip_gen: v6e
topology: v6e:2x2x1
jax: 0.10.0
libtpu: 0.0.40
codegen_flags: <defaults>
</compile_context>

<pallas_src>
import functools
import math

import numpy as np
import jax
import jax.numpy as jnp
from jax.experimental import pallas as pl
from jax.experimental.pallas import tpu as pltpu


# ------------------------------ geometry helpers -----------------------------

def conv_out(h, k, s):
    return (h - k) // s + 1


def build_selection(B, H, W, KH, KW, stride, out_rows_b_major=True):
    """One-hot spatial gather matrices for channels-last im2col done in-kernel.

    S[k, r, q] = 1 selects, for kernel offset k=(kh,kw) and output row r, the
    input row q of a (B*H*W, C) channels-last activation matrix.
    """
    OH, OW = conv_out(H, KH, stride), conv_out(W, KW, stride)
    S = np.zeros((KH * KW, B * OH * OW, B * H * W), np.float32)
    for k in range(KH * KW):
        kh, kw = divmod(k, KW)
        for b in range(B):
            for pidx in range(OH * OW):
                oh, ow = divmod(pidx, OW)
                r = b * OH * OW + pidx if out_rows_b_major else pidx * B + b
                q = (stride * oh + kh) * W + (stride * ow + kw)
                S[k, r, b * H * W + q] = 1.0
    return jnp.asarray(S)


# ------------------------------ the fused kernel ------------------------------

def _rainbow_fused_kernel(cols1_ref, cw1_ref, cb1_ref,
                          s2_ref, cw2_ref, cb2_ref,
                          s3_ref, cw3_ref, cb3_ref,
                          wh1_ref, bh1_ref, wh2_ref, bh2_ref,
                          o_ref, *, B, A, T):
    f32 = jnp.float32

    def gemm_bias_relu(lhs, w_ref, b_ref):
        y = jnp.dot(lhs, w_ref[...], preferred_element_type=f32) + b_ref[...]
        return jnp.maximum(y, 0.0)

    # conv1 (1/255 folded into cw1): (B*OH1*OW1, KH*KW*Cin) @ (KH*KW*Cin, 32)
    act1 = gemm_bias_relu(cols1_ref[...], cw1_ref, cb1_ref)          # rows (b, p1), lanes c

    # conv2: in-kernel im2col via one-hot spatial gathers (exact), one 512-wide GEMM
    cols2 = jnp.concatenate(
        [jnp.dot(s2_ref[k], act1, preferred_element_type=f32)
         for k in range(s2_ref.shape[0])], axis=-1)                  # (B*OH2*OW2, 16*32)
    act2 = gemm_bias_relu(cols2, cw2_ref, cb2_ref)                   # rows (b, p2), lanes c

    # conv3: same; output rows ordered (p3, b) so spatial positions are the leading axis
    cols3 = jnp.concatenate(
        [jnp.dot(s3_ref[k], act2, preferred_element_type=f32)
         for k in range(s3_ref.shape[0])], axis=-1)                  # (npos*B, 9*64)
    act3 = gemm_bias_relu(cols3, cw3_ref, cb3_ref)                   # (npos*B, A)

    # features: (B, npos*A) with lane order (p3, c) -- matches the permuted head weights
    npos = act3.shape[0] // B
    act3 = act3.reshape(npos, B, A)
    feats = jnp.concatenate([act3[pp] for pp in range(npos)], axis=-1)

    # dueling head: two lane-dense matmuls ([value | advantage] concat / block-diagonal)
    hidden = gemm_bias_relu(feats, wh1_ref, bh1_ref)                 # (B, 1024)
    out2 = (jnp.dot(hidden, wh2_ref[...], preferred_element_type=f32)
            + bh2_ref[...])                                          # (B, T + A*T)

    val = out2[:, :T]                                                # (B, T)
    adv = [out2[:, T + a * T: T + (a + 1) * T] for a in range(A)]    # A x (B, T)
    adv_mean = adv[0]
    for a in range(1, A):
        adv_mean = adv_mean + adv[a]
    adv_mean = adv_mean * (1.0 / A)

    probs = []
    for a in range(A):
        q = val + adv[a] - adv_mean
        q = q - jnp.max(q, axis=-1, keepdims=True)
        e = jnp.exp(q)
        probs.append(e / jnp.sum(e, axis=-1, keepdims=True))         # exact divide

    o_ref[...] = jnp.concatenate(probs, axis=-1)                     # one lane-dense (B, A*T) store


# --------------------------- wrapper / param preparation ---------------------

def _full_spec(shape):
    n = len(shape)
    return pl.BlockSpec(shape, lambda i: (0,) * n)


def prepare_params(p, B, HW, num_actions, num_atoms):
    """One-time weight preprocessing (hoisted out of the per-call path)."""
    A, T = num_actions, num_atoms
    H1 = conv_out(HW, 8, 4)
    H2 = conv_out(H1, 4, 2)
    H3 = conv_out(H2, 3, 1)
    npos = H3 * H3

    prep = {}
    # conv weights as (KH*KW*Cin, Cout) channels-last GEMM matrices; fold 1/255 into conv1.
    prep["cw1"] = p["conv1_w"].transpose(2, 3, 1, 0).reshape(-1, p["conv1_w"].shape[0]) / 255.0
    prep["cb1"] = p["conv1_b"].reshape(1, -1)
    prep["cw2"] = p["conv2_w"].transpose(2, 3, 1, 0).reshape(-1, p["conv2_w"].shape[0])
    prep["cb2"] = p["conv2_b"].reshape(1, -1)
    prep["cw3"] = p["conv3_w"].transpose(2, 3, 1, 0).reshape(-1, p["conv3_w"].shape[0])
    prep["cb3"] = p["conv3_b"].reshape(1, -1)
    # one-hot spatial gather matrices for the in-kernel conv2 / conv3 im2col
    prep["S2"] = build_selection(B, H1, H1, 4, 4, 2, out_rows_b_major=True)
    prep["S3"] = build_selection(B, H2, H2, 3, 3, 1, out_rows_b_major=False)
    # head layer 1: permute feature columns from torch (c, p3) order to ours (p3, c),
    # and concatenate the value / advantage streams into one (feat, 1024) RHS.
    wv1 = p["v1_w"].reshape(512, A, npos).transpose(2, 1, 0).reshape(npos * A, 512)
    wa1 = p["a1_w"].reshape(512, A, npos).transpose(2, 1, 0).reshape(npos * A, 512)
    prep["wh1"] = jnp.concatenate([wv1, wa1], axis=1)                       # (feat, 1024)
    prep["bh1"] = jnp.concatenate([p["v1_b"], p["a1_b"]]).reshape(1, -1)    # (1, 1024)
    # head layer 2: block-diagonal [value | advantage] -> one (1024, T + A*T) matmul
    wh2 = jnp.zeros((1024, T + A * T), jnp.float32)
    wh2 = wh2.at[:512, :T].set(p["v2_w"].T)
    wh2 = wh2.at[512:, T:].set(p["a2_w"].T)
    prep["wh2"] = wh2
    prep["bh2"] = jnp.concatenate([p["v2_b"], p["a2_b"]]).reshape(1, -1)    # (1, T + A*T)
    return prep


def rainbow_forward(x, prep, *, num_actions, num_atoms):
    """Per-call path: NHWC + conv1 im2col (input glue) + ONE fused Pallas kernel."""
    B, C, H, W = x.shape
    A, T = num_actions, num_atoms
    KH = KW = 8
    stride = 4
    OH, OW = conv_out(H, KH, stride), conv_out(W, KW, stride)

    xh = jnp.transpose(x, (0, 2, 3, 1))                              # NHWC: channels -> lanes
    patches = [
        xh[:, kh:kh + (OH - 1) * stride + 1:stride,
           kw:kw + (OW - 1) * stride + 1:stride, :]
        for kh in range(KH) for kw in range(KW)
    ]
    cols1 = jnp.concatenate(patches, axis=-1).reshape(B * OH * OW, KH * KW * C)

    args = (cols1, prep["cw1"], prep["cb1"],
            prep["S2"], prep["cw2"], prep["cb2"],
            prep["S3"], prep["cw3"], prep["cb3"],
            prep["wh1"], prep["bh1"], prep["wh2"], prep["bh2"])

    out = pl.pallas_call(
        functools.partial(_rainbow_fused_kernel, B=B, A=A, T=T),
        out_shape=jax.ShapeDtypeStruct((B, A * T), jnp.float32),
        grid=(1,),
        in_specs=[_full_spec(a.shape) for a in args],
        out_specs=_full_spec((B, A * T)),
        compiler_params=pltpu.CompilerParams(dimension_semantics=("arbitrary",)),
    )(*args)
    return out.reshape(B, A, T)                                      # wrapper glue


# -------------------- deterministic parameter construction -------------------

def conv_params(key, cout, cin, k):
    k1, k2 = jax.random.split(key)
    bound = 1.0 / math.sqrt(cin * k * k)
    w = jax.random.uniform(k1, (cout, cin, k, k), jnp.float32, -bound, bound)
    b = jax.random.uniform(k2, (cout,), jnp.float32, -bound, bound)
    return w, b


def _scale_noise(key, n):
    z = jax.random.normal(key, (n,), jnp.float32)
    return jnp.sign(z) * jnp.sqrt(jnp.abs(z))


def noisy_linear_params(key, in_f, out_f, std_init=0.4):
    # training-mode NoisyLinear: effective weight = mu + sigma * eps (factorized noise)
    k1, k2, k3, k4, k5 = jax.random.split(key, 5)
    mu_range = 1.0 / math.sqrt(in_f)
    w_mu = jax.random.uniform(k1, (out_f, in_f), jnp.float32, -mu_range, mu_range)
    w_sigma = jnp.full((out_f, in_f), std_init / math.sqrt(in_f), jnp.float32)
    b_mu = jax.random.uniform(k2, (out_f,), jnp.float32, -mu_range, mu_range)
    b_sigma = jnp.full((out_f,), std_init / math.sqrt(out_f), jnp.float32)
    eps_in, eps_out = _scale_noise(k3, in_f), _scale_noise(k4, out_f)
    w = w_mu + w_sigma * jnp.outer(eps_out, eps_in)
    b = b_mu + b_sigma * _scale_noise(k5, out_f)
    return w, b


# ------------------------------- pure-JAX reference ---------------------------

def reference_forward(x, p, num_actions, num_atoms):
    B = x.shape[0]
    y = x / 255.0
    for name, s in [("conv1", 4), ("conv2", 2), ("conv3", 1)]:
        w, b = p[name + "_w"], p[name + "_b"]
        y = jax.lax.conv_general_dilated(y, w, (s, s), "VALID",
                                         dimension_numbers=("NCHW", "OIHW", "NCHW"))
        y = jnp.maximum(y + b[None, :, None, None], 0.0)
    feats = y.reshape(B, -1)
    v = jnp.maximum(feats @ p["v1_w"].T + p["v1_b"], 0.0)
    v = v @ p["v2_w"].T + p["v2_b"]
    a = jnp.maximum(feats @ p["a1_w"].T + p["a1_b"], 0.0)
    a = a @ p["a2_w"].T + p["a2_b"]
    a = a.reshape(B, num_actions, num_atoms)
    q = v[:, None, :] + a - a.mean(axis=1, keepdims=True)
    return jax.nn.softmax(q, axis=-1)


# --------------------------------- main ---------------------------------------

if __name__ == "__main__":
    B, C, HW = 2, 4, 52                 # 52 -> 12 -> 5 -> 3 through the conv stack
    num_actions, num_atoms = 6, 51
    H3 = conv_out(conv_out(conv_out(HW, 8, 4), 4, 2), 3, 1)
    feat_size = num_actions * H3 * H3   # feature_size() of the torch module

    key = jax.random.PRNGKey(0)
    keys = jax.random.split(key, 8)
    p = {}
    p["conv1_w"], p["conv1_b"] = conv_params(keys[0], 32, C, 8)
    p["conv2_w"], p["conv2_b"] = conv_params(keys[1], 64, 32, 4)
    p["conv3_w"], p["conv3_b"] = conv_params(keys[2], num_actions, 64, 3)
    p["v1_w"], p["v1_b"] = noisy_linear_params(keys[3], feat_size, 512)
    p["v2_w"], p["v2_b"] = noisy_linear_params(keys[4], 512, num_atoms)
    p["a1_w"], p["a1_b"] = noisy_linear_params(keys[5], feat_size, 512)
    p["a2_w"], p["a2_b"] = noisy_linear_params(keys[6], 512, num_atoms * num_actions)

    x = jax.random.uniform(keys[7], (B, C, HW, HW), jnp.float32, 0.0, 255.0)

    prep = prepare_params(p, B, HW, num_actions, num_atoms)   # one-time weight prep
    fwd = jax.jit(functools.partial(rainbow_forward,
                                    num_actions=num_actions, num_atoms=num_atoms))

    out = jax.block_until_ready(fwd(x, prep))

    ref = reference_forward(x, p, num_actions, num_atoms)
    assert out.shape == (B, num_actions, num_atoms)
    max_err = float(jnp.max(jnp.abs(out - ref)))
    assert jnp.allclose(out, ref, atol=2e-4, rtol=2e-4), max_err
    assert jnp.allclose(jnp.sum(out, axis=-1), 1.0, atol=1e-4)
    print("KERNEL_OK")
</pallas_src>

<mosaic_0001>
module attributes {stable_mosaic.version = 11 : i64} {
  func.func @_rainbow_fused_kernel(%arg0: i32, %arg1: memref<288x256xf32, #tpu.memory_space<vmem>>, %arg2: memref<256x32xf32, #tpu.memory_space<vmem>>, %arg3: memref<1x32xf32, #tpu.memory_space<vmem>>, %arg4: memref<16x50x288xf32, #tpu.memory_space<vmem>>, %arg5: memref<512x64xf32, #tpu.memory_space<vmem>>, %arg6: memref<1x64xf32, #tpu.memory_space<vmem>>, %arg7: memref<9x18x50xf32, #tpu.memory_space<vmem>>, %arg8: memref<576x6xf32, #tpu.memory_space<vmem>>, %arg9: memref<1x6xf32, #tpu.memory_space<vmem>>, %arg10: memref<54x1024xf32, #tpu.memory_space<vmem>>, %arg11: memref<1x1024xf32, #tpu.memory_space<vmem>>, %arg12: memref<1024x357xf32, #tpu.memory_space<vmem>>, %arg13: memref<1x357xf32, #tpu.memory_space<vmem>>, %arg14: memref<2x306xf32, #tpu.memory_space<vmem>>) attributes {dimension_semantics = [#tpu.dimension_semantics<arbitrary>], iteration_bounds = array<i64: 1>, scalar_prefetch = 0 : i64, scratch_operands = 0 : i64, tpu.core_type = #tpu.core_type<tc>, window_params = [{pipeline_mode = #tpu.pipeline_mode<synchronous>, transform_indices = @transform_0, window_bounds = array<i64: 288, 256>}, {pipeline_mode = #tpu.pipeline_mode<synchronous>, transform_indices = @transform_1, window_bounds = array<i64: 256, 32>}, {pipeline_mode = #tpu.pipeline_mode<synchronous>, transform_indices = @transform_2, window_bounds = array<i64: 1, 32>}, {pipeline_mode = #tpu.pipeline_mode<synchronous>, transform_indices = @transform_3, window_bounds = array<i64: 16, 50, 288>}, {pipeline_mode = #tpu.pipeline_mode<synchronous>, transform_indices = @transform_4, window_bounds = array<i64: 512, 64>}, {pipeline_mode = #tpu.pipeline_mode<synchronous>, transform_indices = @transform_5, window_bounds = array<i64: 1, 64>}, {pipeline_mode = #tpu.pipeline_mode<synchronous>, transform_indices = @transform_6, window_bounds = array<i64: 9, 18, 50>}, {pipeline_mode = #tpu.pipeline_mode<synchronous>, transform_indices = @transform_7, window_bounds = array<i64: 576, 6>}, {pipeline_mode = #tpu.pipeline_mode<synchronous>, transform_indices = @transform_8, window_bounds = array<i64: 1, 6>}, {pipeline_mode = #tpu.pipeline_mode<synchronous>, transform_indices = @transform_9, window_bounds = array<i64: 54, 1024>}, {pipeline_mode = #tpu.pipeline_mode<synchronous>, transform_indices = @transform_10, window_bounds = array<i64: 1, 1024>}, {pipeline_mode = #tpu.pipeline_mode<synchronous>, transform_indices = @transform_11, window_bounds = array<i64: 1024, 357>}, {pipeline_mode = #tpu.pipeline_mode<synchronous>, transform_indices = @transform_12, window_bounds = array<i64: 1, 357>}, {pipeline_mode = #tpu.pipeline_mode<synchronous>, transform_indices = @transform_13, window_bounds = array<i64: 2, 306>}]} {
    %c0 = arith.constant 0 : index
    %c0_0 = arith.constant 0 : index
    %0 = vector.load %arg1[%c0, %c0_0] : memref<288x256xf32, #tpu.memory_space<vmem>>, vector<288x256xf32>
    %c0_1 = arith.constant 0 : index
    %c0_2 = arith.constant 0 : index
    %1 = vector.load %arg2[%c0_1, %c0_2] : memref<256x32xf32, #tpu.memory_space<vmem>>, vector<256x32xf32>
    %cst = arith.constant dense<0.000000e+00> : vector<288x32xf32>
    %2 = tpu.matmul %0, %1, %cst {dimension_numbers = #tpu.dot_dimension_numbers<[1], [0], [0], [1], [0, 0, 1, 1], [], []>} : vector<288x256xf32>, vector<256x32xf32>, vector<288x32xf32> -> vector<288x32xf32>
    %c0_3 = arith.constant 0 : index
    %c0_4 = arith.constant 0 : index
    %3 = vector.load %arg3[%c0_3, %c0_4] : memref<1x32xf32, #tpu.memory_space<vmem>>, vector<1x32xf32>
    %4 = vector.broadcast %3 : vector<1x32xf32> to vector<288x32xf32>
    %5 = arith.addf %2, %4 : vector<288x32xf32>
    %cst_5 = arith.constant 0.000000e+00 : f32
    %6 = vector.broadcast %cst_5 : f32 to vector<288x32xf32>
    %7 = arith.maximumf %5, %6 : vector<288x32xf32>
    %c0_6 = arith.constant 0 : index
    %c0_7 = arith.constant 0 : index
    %c0_8 = arith.constant 0 : index
    %8 = vector.load %arg4[%c0_6, %c0_7, %c0_8] : memref<16x50x288xf32, #tpu.memory_space<vmem>>, vector<1x50x288xf32>
    %9 = vector.shape_cast %8 : vector<1x50x288xf32> to vector<50x288xf32>
    %cst_9 = arith.constant dense<0.000000e+00> : vector<50x32xf32>
    %10 = tpu.matmul %9, %7, %cst_9 {dimension_numbers = #tpu.dot_dimension_numbers<[1], [0], [0], [1], [0, 0, 1, 1], [], []>} : vector<50x288xf32>, vector<288x32xf32>, vector<50x32xf32> -> vector<50x32xf32>
    %c1 = arith.constant 1 : index
    %c0_10 = arith.constant 0 : index
    %c0_11 = arith.constant 0 : index
    %11 = vector.load %arg4[%c1, %c0_10, %c0_11] : memref<16x50x288xf32, #tpu.memory_space<vmem>>, vector<1x50x288xf32>
    %12 = vector.shape_cast %11 : vector<1x50x288xf32> to vector<50x288xf32>
    %cst_12 = arith.constant dense<0.000000e+00> : vector<50x32xf32>
    %13 = tpu.matmul %12, %7, %cst_12 {dimension_numbers = #tpu.dot_dimension_numbers<[1], [0], [0], [1], [0, 0, 1, 1], [], []>} : vector<50x288xf32>, vector<288x32xf32>, vector<50x32xf32> -> vector<50x32xf32>
    %c2 = arith.constant 2 : index
    %c0_13 = arith.constant 0 : index
    %c0_14 = arith.constant 0 : index
    %14 = vector.load %arg4[%c2, %c0_13, %c0_14] : memref<16x50x288xf32, #tpu.memory_space<vmem>>, vector<1x50x288xf32>
    %15 = vector.shape_cast %14 : vector<1x50x288xf32> to vector<50x288xf32>
    %cst_15 = arith.constant dense<0.000000e+00> : vector<50x32xf32>
    %16 = tpu.matmul %15, %7, %cst_15 {dimension_numbers = #tpu.dot_dimension_numbers<[1], [0], [0], [1], [0, 0, 1, 1], [], []>} : vector<50x288xf32>, vector<288x32xf32>, vector<50x32xf32> -> vector<50x32xf32>
    %c3 = arith.constant 3 : index
    %c0_16 = arith.constant 0 : index
    %c0_17 = arith.constant 0 : index
    %17 = vector.load %arg4[%c3, %c0_16, %c0_17] : memref<16x50x288xf32, #tpu.memory_space<vmem>>, vector<1x50x288xf32>
    %18 = vector.shape_cast %17 : vector<1x50x288xf32> to vector<50x288xf32>
    %cst_18 = arith.constant dense<0.000000e+00> : vector<50x32xf32>
    %19 = tpu.matmul %18, %7, %cst_18 {dimension_numbers = #tpu.dot_dimension_numbers<[1], [0], [0], [1], [0, 0, 1, 1], [], []>} : vector<50x288xf32>, vector<288x32xf32>, vector<50x32xf32> -> vector<50x32xf32>
    %c4 = arith.constant 4 : index
    %c0_19 = arith.constant 0 : index
    %c0_20 = arith.constant 0 : index
    %20 = vector.load %arg4[%c4, %c0_19, %c0_20] : memref<16x50x288xf32, #tpu.memory_space<vmem>>, vector<1x50x288xf32>
    %21 = vector.shape_cast %20 : vector<1x50x288xf32> to vector<50x288xf32>
    %cst_21 = arith.constant dense<0.000000e+00> : vector<50x32xf32>
    %22 = tpu.matmul %21, %7, %cst_21 {dimension_numbers = #tpu.dot_dimension_numbers<[1], [0], [0], [1], [0, 0, 1, 1], [], []>} : vector<50x288xf32>, vector<288x32xf32>, vector<50x32xf32> -> vector<50x32xf32>
    %c5 = arith.constant 5 : index
    %c0_22 = arith.constant 0 : index
    %c0_23 = arith.constant 0 : index
    %23 = vector.load %arg4[%c5, %c0_22, %c0_23] : memref<16x50x288xf32, #tpu.memory_space<vmem>>, vector<1x50x288xf32>
    %24 = vector.shape_cast %23 : vector<1x50x288xf32> to vector<50x288xf32>
    %cst_24 = arith.constant dense<0.000000e+00> : vector<50x32xf32>
    %25 = tpu.matmul %24, %7, %cst_24 {dimension_numbers = #tpu.dot_dimension_numbers<[1], [0], [0], [1], [0, 0, 1, 1], [], []>} : vector<50x288xf32>, vector<288x32xf32>, vector<50x32xf32> -> vector<50x32xf32>
    %c6 = arith.constant 6 : index
    %c0_25 = arith.constant 0 : index
    %c0_26 = arith.constant 0 : index
    %26 = vector.load %arg4[%c6, %c0_25, %c0_26] : memref<16x50x288xf32, #tpu.memory_space<vmem>>, vector<1x50x288xf32>
    %27 = vector.shape_cast %26 : vector<1x50x288xf32> to vector<50x288xf32>
    %cst_27 = arith.constant dense<0.000000e+00> : vector<50x32xf32>
    %28 = tpu.matmul %27, %7, %cst_27 {dimension_numbers = #tpu.dot_dimension_numbers<[1], [0], [0], [1], [0, 0, 1, 1], [], []>} : vector<50x288xf32>, vector<288x32xf32>, vector<50x32xf32> -> vector<50x32xf32>
    %c7 = arith.constant 7 : index
    %c0_28 = arith.constant 0 : index
    %c0_29 = arith.constant 0 : index
    %29 = vector.load %arg4[%c7, %c0_28, %c0_29] : memref<16x50x288xf32, #tpu.memory_space<vmem>>, vector<1x50x288xf32>
    %30 = vector.shape_cast %29 : vector<1x50x288xf32> to vector<50x288xf32>
    %cst_30 = arith.constant dense<0.000000e+00> : vector<50x32xf32>
    %31 = tpu.matmul %30, %7, %cst_30 {dimension_numbers = #tpu.dot_dimension_numbers<[1], [0], [0], [1], [0, 0, 1, 1], [], []>} : vector<50x288xf32>, vector<288x32xf32>, vector<50x32xf32> -> vector<50x32xf32>
    %c8 = arith.constant 8 : index
    %c0_31 = arith.constant 0 : index
    %c0_32 = arith.constant 0 : index
    %32 = vector.load %arg4[%c8, %c0_31, %c0_32] : memref<16x50x288xf32, #tpu.memory_space<vmem>>, vector<1x50x288xf32>
    %33 = vector.shape_cast %32 : vector<1x50x288xf32> to vector<50x288xf32>
    %cst_33 = arith.constant dense<0.000000e+00> : vector<50x32xf32>
    %34 = tpu.matmul %33, %7, %cst_33 {dimension_numbers = #tpu.dot_dimension_numbers<[1], [0], [0], [1], [0, 0, 1, 1], [], []>} : vector<50x288xf32>, vector<288x32xf32>, vector<50x32xf32> -> vector<50x32xf32>
    %c9 = arith.constant 9 : index
    %c0_34 = arith.constant 0 : index
    %c0_35 = arith.constant 0 : index
    %35 = vector.load %arg4[%c9, %c0_34, %c0_35] : memref<16x50x288xf32, #tpu.memory_space<vmem>>, vector<1x50x288xf32>
    %36 = vector.shape_cast %35 : vector<1x50x288xf32> to vector<50x288xf32>
    %cst_36 = arith.constant dense<0.000000e+00> : vector<50x32xf32>
    %37 = tpu.matmul %36, %7, %cst_36 {dimension_numbers = #tpu.dot_dimension_numbers<[1], [0], [0], [1], [0, 0, 1, 1], [], []>} : vector<50x288xf32>, vector<288x32xf32>, vector<50x32xf32> -> vector<50x32xf32>
    %c10 = arith.constant 10 : index
    %c0_37 = arith.constant 0 : index
    %c0_38 = arith.constant 0 : index
    %38 = vector.load %arg4[%c10, %c0_37, %c0_38] : memref<16x50x288xf32, #tpu.memory_space<vmem>>, vector<1x50x288xf32>
    %39 = vector.shape_cast %38 : vector<1x50x288xf32> to vector<50x288xf32>
    %cst_39 = arith.constant dense<0.000000e+00> : vector<50x32xf32>
    %40 = tpu.matmul %39, %7, %cst_39 {dimension_numbers = #tpu.dot_dimension_numbers<[1], [0], [0], [1], [0, 0, 1, 1], [], []>} : vector<50x288xf32>, vector<288x32xf32>, vector<50x32xf32> -> vector<50x32xf32>
    %c11 = arith.constant 11 : index
    %c0_40 = arith.constant 0 : index
    %c0_41 = arith.constant 0 : index
    %41 = vector.load %arg4[%c11, %c0_40, %c0_41] : memref<16x50x288xf32, #tpu.memory_space<vmem>>, vector<1x50x288xf32>
    %42 = vector.shape_cast %41 : vector<1x50x288xf32> to vector<50x288xf32>
    %cst_42 = arith.constant dense<0.000000e+00> : vector<50x32xf32>
    %43 = tpu.matmul %42, %7, %cst_42 {dimension_numbers = #tpu.dot_dimension_numbers<[1], [0], [0], [1], [0, 0, 1, 1], [], []>} : vector<50x288xf32>, vector<288x32xf32>, vector<50x32xf32> -> vector<50x32xf32>
    %c12 = arith.constant 12 : index
    %c0_43 = arith.constant 0 : index
    %c0_44 = arith.constant 0 : index
    %44 = vector.load %arg4[%c12, %c0_43, %c0_44] : memref<16x50x288xf32, #tpu.memory_space<vmem>>, vector<1x50x288xf32>
    %45 = vector.shape_cast %44 : vector<1x50x288xf32> to vector<50x288xf32>
    %cst_45 = arith.constant dense<0.000000e+00> : vector<50x32xf32>
    %46 = tpu.matmul %45, %7, %cst_45 {dimension_numbers = #tpu.dot_dimension_numbers<[1], [0], [0], [1], [0, 0, 1, 1], [], []>} : vector<50x288xf32>, vector<288x32xf32>, vector<50x32xf32> -> vector<50x32xf32>
    %c13 = arith.constant 13 : index
    %c0_46 = arith.constant 0 : index
    %c0_47 = arith.constant 0 : index
    %47 = vector.load %arg4[%c13, %c0_46, %c0_47] : memref<16x50x288xf32, #tpu.memory_space<vmem>>, vector<1x50x288xf32>
    %48 = vector.shape_cast %47 : vector<1x50x288xf32> to vector<50x288xf32>
    %cst_48 = arith.constant dense<0.000000e+00> : vector<50x32xf32>
    %49 = tpu.matmul %48, %7, %cst_48 {dimension_numbers = #tpu.dot_dimension_numbers<[1], [0], [0], [1], [0, 0, 1, 1], [], []>} : vector<50x288xf32>, vector<288x32xf32>, vector<50x32xf32> -> vector<50x32xf32>
    %c14 = arith.constant 14 : index
    %c0_49 = arith.constant 0 : index
    %c0_50 = arith.constant 0 : index
    %50 = vector.load %arg4[%c14, %c0_49, %c0_50] : memref<16x50x288xf32, #tpu.memory_space<vmem>>, vector<1x50x288xf32>
    %51 = vector.shape_cast %50 : vector<1x50x288xf32> to vector<50x288xf32>
    %cst_51 = arith.constant dense<0.000000e+00> : vector<50x32xf32>
    %52 = tpu.matmul %51, %7, %cst_51 {dimension_numbers = #tpu.dot_dimension_numbers<[1], [0], [0], [1], [0, 0, 1, 1], [], []>} : vector<50x288xf32>, vector<288x32xf32>, vector<50x32xf32> -> vector<50x32xf32>
    %c15 = arith.constant 15 : index
    %c0_52 = arith.constant 0 : index
    %c0_53 = arith.constant 0 : index
    %53 = vector.load %arg4[%c15, %c0_52, %c0_53] : memref<16x50x288xf32, #tpu.memory_space<vmem>>, vector<1x50x288xf32>
    %54 = vector.shape_cast %53 : vector<1x50x288xf32> to vector<50x288xf32>
    %cst_54 = arith.constant dense<0.000000e+00> : vector<50x32xf32>
    %55 = tpu.matmul %54, %7, %cst_54 {dimension_numbers = #tpu.dot_dimension_numbers<[1], [0], [0], [1], [0, 0, 1, 1], [], []>} : vector<50x288xf32>, vector<288x32xf32>, vector<50x32xf32> -> vector<50x32xf32>
    %56 = tpu.concatenate %10, %13, %16, %19, %22, %25, %28, %31, %34, %37, %40, %43, %46, %49, %52, %55 in 1 : vector<50x32xf32>, vector<50x32xf32>, vector<50x32xf32>, vector<50x32xf32>, vector<50x32xf32>, vector<50x32xf32>, vector<50x32xf32>, vector<50x32xf32>, vector<50x32xf32>, vector<50x32xf32>, vector<50x32xf32>, vector<50x32xf32>, vector<50x32xf32>, vector<50x32xf32>, vector<50x32xf32>, vector<50x32xf32> -> vector<50x512xf32>
    %c0_55 = arith.constant 0 : index
    %c0_56 = arith.constant 0 : index
    %57 = vector.load %arg5[%c0_55, %c0_56] : memref<512x64xf32, #tpu.memory_space<vmem>>, vector<512x64xf32>
    %cst_57 = arith.constant dense<0.000000e+00> : vector<50x64xf32>
    %58 = tpu.matmul %56, %57, %cst_57 {dimension_numbers = #tpu.dot_dimension_numbers<[1], [0], [0], [1], [0, 0, 1, 1], [], []>} : vector<50x512xf32>, vector<512x64xf32>, vector<50x64xf32> -> vector<50x64xf32>
    %c0_58 = arith.constant 0 : index
    %c0_59 = arith.constant 0 : index
    %59 = vector.load %arg6[%c0_58, %c0_59] : memref<1x64xf32, #tpu.memory_space<vmem>>, vector<1x64xf32>
    %60 = vector.broadcast %59 : vector<1x64xf32> to vector<50x64xf32>
    %61 = arith.addf %58, %60 : vector<50x64xf32>
    %cst_60 = arith.constant 0.000000e+00 : f32
    %62 = vector.broadcast %cst_60 : f32 to vector<50x64xf32>
    %63 = arith.maximumf %61, %62 : vector<50x64xf32>
    %c0_61 = arith.constant 0 : index
    %c0_62 = arith.constant 0 : index
    %c0_63 = arith.constant 0 : index
    %64 = vector.load %arg7[%c0_61, %c0_62, %c0_63] : memref<9x18x50xf32, #tpu.memory_space<vmem>>, vector<1x18x50xf32>
    %65 = vector.shape_cast %64 : vector<1x18x50xf32> to vector<18x50xf32>
    %cst_64 = arith.constant dense<0.000000e+00> : vector<18x64xf32>
    %66 = tpu.matmul %65, %63, %cst_64 {dimension_numbers = #tpu.dot_dimension_numbers<[1], [0], [0], [1], [0, 0, 1, 1], [], []>} : vector<18x50xf32>, vector<50x64xf32>, vector<18x64xf32> -> vector<18x64xf32>
    %c1_65 = arith.constant 1 : index
    %c0_66 = arith.constant 0 : index
    %c0_67 = arith.constant 0 : index
    %67 = vector.load %arg7[%c1_65, %c0_66, %c0_67] : memref<9x18x50xf32, #tpu.memory_space<vmem>>, vector<1x18x50xf32>
    %68 = vector.shape_cast %67 : vector<1x18x50xf32> to vector<18x50xf32>
    %cst_68 = arith.constant dense<0.000000e+00> : vector<18x64xf32>
    %69 = tpu.matmul %68, %63, %cst_68 {dimension_numbers = #tpu.dot_dimension_numbers<[1], [0], [0], [1], [0, 0, 1, 1], [], []>} : vector<18x50xf32>, vector<50x64xf32>, vector<18x64xf32> -> vector<18x64xf32>
    %c2_69 = arith.constant 2 : index
    %c0_70 = arith.constant 0 : index
    %c0_71 = arith.constant 0 : index
    %70 = vector.load %arg7[%c2_69, %c0_70, %c0_71] : memref<9x18x50xf32, #tpu.memory_space<vmem>>, vector<1x18x50xf32>
    %71 = vector.shape_cast %70 : vector<1x18x50xf32> to vector<18x50xf32>
    %cst_72 = arith.constant dense<0.000000e+00> : vector<18x64xf32>
    %72 = tpu.matmul %71, %63, %cst_72 {dimension_numbers = #tpu.dot_dimension_numbers<[1], [0], [0], [1], [0, 0, 1, 1], [], []>} : vector<18x50xf32>, vector<50x64xf32>, vector<18x64xf32> -> vector<18x64xf32>
    %c3_73 = arith.constant 3 : index
    %c0_74 = arith.constant 0 : index
    %c0_75 = arith.constant 0 : index
    %73 = vector.load %arg7[%c3_73, %c0_74, %c0_75] : memref<9x18x50xf32, #tpu.memory_space<vmem>>, vector<1x18x50xf32>
    %74 = vector.shape_cast %73 : vector<1x18x50xf32> to vector<18x50xf32>
    %cst_76 = arith.constant dense<0.000000e+00> : vector<18x64xf32>
    %75 = tpu.matmul %74, %63, %cst_76 {dimension_numbers = #tpu.dot_dimension_numbers<[1], [0], [0], [1], [0, 0, 1, 1], [], []>} : vector<18x50xf32>, vector<50x64xf32>, vector<18x64xf32> -> vector<18x64xf32>
    %c4_77 = arith.constant 4 : index
    %c0_78 = arith.constant 0 : index
    %c0_79 = arith.constant 0 : index
    %76 = vector.load %arg7[%c4_77, %c0_78, %c0_79] : memref<9x18x50xf32, #tpu.memory_space<vmem>>, vector<1x18x50xf32>
    %77 = vector.shape_cast %76 : vector<1x18x50xf32> to vector<18x50xf32>
    %cst_80 = arith.constant dense<0.000000e+00> : vector<18x64xf32>
    %78 = tpu.matmul %77, %63, %cst_80 {dimension_numbers = #tpu.dot_dimension_numbers<[1], [0], [0], [1], [0, 0, 1, 1], [], []>} : vector<18x50xf32>, vector<50x64xf32>, vector<18x64xf32> -> vector<18x64xf32>
    %c5_81 = arith.constant 5 : index
    %c0_82 = arith.constant 0 : index
    %c0_83 = arith.constant 0 : index
    %79 = vector.load %arg7[%c5_81, %c0_82, %c0_83] : memref<9x18x50xf32, #tpu.memory_space<vmem>>, vector<1x18x50xf32>
    %80 = vector.shape_cast %79 : vector<1x18x50xf32> to vector<18x50xf32>
    %cst_84 = arith.constant dense<0.000000e+00> : vector<18x64xf32>
    %81 = tpu.matmul %80, %63, %cst_84 {dimension_numbers = #tpu.dot_dimension_numbers<[1], [0], [0], [1], [0, 0, 1, 1], [], []>} : vector<18x50xf32>, vector<50x64xf32>, vector<18x64xf32> -> vector<18x64xf32>
    %c6_85 = arith.constant 6 : index
    %c0_86 = arith.constant 0 : index
    %c0_87 = arith.constant 0 : index
    %82 = vector.load %arg7[%c6_85, %c0_86, %c0_87] : memref<9x18x50xf32, #tpu.memory_space<vmem>>, vector<1x18x50xf32>
    %83 = vector.shape_cast %82 : vector<1x18x50xf32> to vector<18x50xf32>
    %cst_88 = arith.constant dense<0.000000e+00> : vector<18x64xf32>
    %84 = tpu.matmul %83, %63, %cst_88 {dimension_numbers = #tpu.dot_dimension_numbers<[1], [0], [0], [1], [0, 0, 1, 1], [], []>} : vector<18x50xf32>, vector<50x64xf32>, vector<18x64xf32> -> vector<18x64xf32>
    %c7_89 = arith.constant 7 : index
    %c0_90 = arith.constant 0 : index
    %c0_91 = arith.constant 0 : index
    %85 = vector.load %arg7[%c7_89, %c0_90, %c0_91] : memref<9x18x50xf32, #tpu.memory_space<vmem>>, vector<1x18x50xf32>
    %86 = vector.shape_cast %85 : vector<1x18x50xf32> to vector<18x50xf32>
    %cst_92 = arith.constant dense<0.000000e+00> : vector<18x64xf32>
    %87 = tpu.matmul %86, %63, %cst_92 {dimension_numbers = #tpu.dot_dimension_numbers<[1], [0], [0], [1], [0, 0, 1, 1], [], []>} : vector<18x50xf32>, vector<50x64xf32>, vector<18x64xf32> -> vector<18x64xf32>
    %c8_93 = arith.constant 8 : index
    %c0_94 = arith.constant 0 : index
    %c0_95 = arith.constant 0 : index
    %88 = vector.load %arg7[%c8_93, %c0_94, %c0_95] : memref<9x18x50xf32, #tpu.memory_space<vmem>>, vector<1x18x50xf32>
    %89 = vector.shape_cast %88 : vector<1x18x50xf32> to vector<18x50xf32>
    %cst_96 = arith.constant dense<0.000000e+00> : vector<18x64xf32>
    %90 = tpu.matmul %89, %63, %cst_96 {dimension_numbers = #tpu.dot_dimension_numbers<[1], [0], [0], [1], [0, 0, 1, 1], [], []>} : vector<18x50xf32>, vector<50x64xf32>, vector<18x64xf32> -> vector<18x64xf32>
    %91 = tpu.concatenate %66, %69, %72, %75, %78, %81, %84, %87, %90 in 1 : vector<18x64xf32>, vector<18x64xf32>, vector<18x64xf32>, vector<18x64xf32>, vector<18x64xf32>, vector<18x64xf32>, vector<18x64xf32>, vector<18x64xf32>, vector<18x64xf32> -> vector<18x576xf32>
    %c0_97 = arith.constant 0 : index
    %c0_98 = arith.constant 0 : index
    %92 = vector.load %arg8[%c0_97, %c0_98] : memref<576x6xf32, #tpu.memory_space<vmem>>, vector<576x6xf32>
    %cst_99 = arith.constant dense<0.000000e+00> : vector<18x6xf32>
    %93 = tpu.matmul %91, %92, %cst_99 {dimension_numbers = #tpu.dot_dimension_numbers<[1], [0], [0], [1], [0, 0, 1, 1], [], []>} : vector<18x576xf32>, vector<576x6xf32>, vector<18x6xf32> -> vector<18x6xf32>
    %c0_100 = arith.constant 0 : index
    %c0_101 = arith.constant 0 : index
    %94 = vector.load %arg9[%c0_100, %c0_101] : memref<1x6xf32, #tpu.memory_space<vmem>>, vector<1x6xf32>
    %95 = vector.broadcast %94 : vector<1x6xf32> to vector<18x6xf32>
    %96 = arith.addf %93, %95 : vector<18x6xf32>
    %cst_102 = arith.constant 0.000000e+00 : f32
    %97 = vector.broadcast %cst_102 : f32 to vector<18x6xf32>
    %98 = arith.maximumf %96, %97 : vector<18x6xf32>
    %99 = vector.shape_cast %98 : vector<18x6xf32> to vector<9x2x6xf32>
    %100 = vector.extract_strided_slice %99 {offsets = [0, 0, 0], sizes = [1, 2, 6], strides = [1, 1, 1]} : vector<9x2x6xf32> to vector<1x2x6xf32>
    %101 = vector.shape_cast %100 : vector<1x2x6xf32> to vector<2x6xf32>
    %102 = vector.extract_strided_slice %99 {offsets = [1, 0, 0], sizes = [1, 2, 6], strides = [1, 1, 1]} : vector<9x2x6xf32> to vector<1x2x6xf32>
    %103 = vector.shape_cast %102 : vector<1x2x6xf32> to vector<2x6xf32>
    %104 = vector.extract_strided_slice %99 {offsets = [2, 0, 0], sizes = [1, 2, 6], strides = [1, 1, 1]} : vector<9x2x6xf32> to vector<1x2x6xf32>
    %105 = vector.shape_cast %104 : vector<1x2x6xf32> to vector<2x6xf32>
    %106 = vector.extract_strided_slice %99 {offsets = [3, 0, 0], sizes = [1, 2, 6], strides = [1, 1, 1]} : vector<9x2x6xf32> to vector<1x2x6xf32>
    %107 = vector.shape_cast %106 : vector<1x2x6xf32> to vector<2x6xf32>
    %108 = vector.extract_strided_slice %99 {offsets = [4, 0, 0], sizes = [1, 2, 6], strides = [1, 1, 1]} : vector<9x2x6xf32> to vector<1x2x6xf32>
    %109 = vector.shape_cast %108 : vector<1x2x6xf32> to vector<2x6xf32>
    %110 = vector.extract_strided_slice %99 {offsets = [5, 0, 0], sizes = [1, 2, 6], strides = [1, 1, 1]} : vector<9x2x6xf32> to vector<1x2x6xf32>
    %111 = vector.shape_cast %110 : vector<1x2x6xf32> to vector<2x6xf32>
    %112 = vector.extract_strided_slice %99 {offsets = [6, 0, 0], sizes = [1, 2, 6], strides = [1, 1, 1]} : vector<9x2x6xf32> to vector<1x2x6xf32>
    %113 = vector.shape_cast %112 : vector<1x2x6xf32> to vector<2x6xf32>
    %114 = vector.extract_strided_slice %99 {offsets = [7, 0, 0], sizes = [1, 2, 6], strides = [1, 1, 1]} : vector<9x2x6xf32> to vector<1x2x6xf32>
    %115 = vector.shape_cast %114 : vector<1x2x6xf32> to vector<2x6xf32>
    %116 = vector.extract_strided_slice %99 {offsets = [8, 0, 0], sizes = [1, 2, 6], strides = [1, 1, 1]} : vector<9x2x6xf32> to vector<1x2x6xf32>
    %117 = vector.shape_cast %116 : vector<1x2x6xf32> to vector<2x6xf32>
    %118 = tpu.concatenate %101, %103, %105, %107, %109, %111, %113, %115, %117 in 1 : vector<2x6xf32>, vector<2x6xf32>, vector<2x6xf32>, vector<2x6xf32>, vector<2x6xf32>, vector<2x6xf32>, vector<2x6xf32>, vector<2x6xf32>, vector<2x6xf32> -> vector<2x54xf32>
    %c0_103 = arith.constant 0 : index
    %c0_104 = arith.constant 0 : index
    %119 = vector.load %arg10[%c0_103, %c0_104] : memref<54x1024xf32, #tpu.memory_space<vmem>>, vector<54x1024xf32>
    %cst_105 = arith.constant dense<0.000000e+00> : vector<2x1024xf32>
    %120 = tpu.matmul %118, %119, %cst_105 {dimension_numbers = #tpu.dot_dimension_numbers<[1], [0], [0], [1], [0, 0, 1, 1], [], []>} : vector<2x54xf32>, vector<54x1024xf32>, vector<2x1024xf32> -> vector<2x1024xf32>
    %c0_106 = arith.constant 0 : index
    %c0_107 = arith.constant 0 : index
    %121 = vector.load %arg11[%c0_106, %c0_107] : memref<1x1024xf32, #tpu.memory_space<vmem>>, vector<1x1024xf32>
    %122 = vector.broadcast %121 : vector<1x1024xf32> to vector<2x1024xf32>
    %123 = arith.addf %120, %122 : vector<2x1024xf32>
    %cst_108 = arith.constant 0.000000e+00 : f32
    %124 = vector.broadcast %cst_108 : f32 to vector<2x1024xf32>
    %125 = arith.maximumf %123, %124 : vector<2x1024xf32>
    %c0_109 = arith.constant 0 : index
    %c0_110 = arith.constant 0 : index
    %126 = vector.load %arg12[%c0_109, %c0_110] : memref<1024x357xf32, #tpu.memory_space<vmem>>, vector<1024x357xf32>
    %cst_111 = arith.constant dense<0.000000e+00> : vector<2x357xf32>
    %127 = tpu.matmul %125, %126, %cst_111 {dimension_numbers = #tpu.dot_dimension_numbers<[1], [0], [0], [1], [0, 0, 1, 1], [], []>} : vector<2x1024xf32>, vector<1024x357xf32>, vector<2x357xf32> -> vector<2x357xf32>
    %c0_112 = arith.constant 0 : index
    %c0_113 = arith.constant 0 : index
    %128 = vector.load %arg13[%c0_112, %c0_113] : memref<1x357xf32, #tpu.memory_space<vmem>>, vector<1x357xf32>
    %129 = vector.broadcast %128 : vector<1x357xf32> to vector<2x357xf32>
    %130 = arith.addf %127, %129 : vector<2x357xf32>
    %131 = vector.extract_strided_slice %130 {offsets = [0, 0], sizes = [2, 51], strides = [1, 1]} : vector<2x357xf32> to vector<2x51xf32>
    %132 = vector.extract_strided_slice %130 {offsets = [0, 51], sizes = [2, 51], strides = [1, 1]} : vector<2x357xf32> to vector<2x51xf32>
    %133 = vector.extract_strided_slice %130 {offsets = [0, 102], sizes = [2, 51], strides = [1, 1]} : vector<2x357xf32> to vector<2x51xf32>
    %134 = vector.extract_strided_slice %130 {offsets = [0, 153], sizes = [2, 51], strides = [1, 1]} : vector<2x357xf32> to vector<2x51xf32>
    %135 = vector.extract_strided_slice %130 {offsets = [0, 204], sizes = [2, 51], strides = [1, 1]} : vector<2x357xf32> to vector<2x51xf32>
    %136 = vector.extract_strided_slice %130 {offsets = [0, 255], sizes = [2, 51], strides = [1, 1]} : vector<2x357xf32> to vector<2x51xf32>
    %137 = vector.extract_strided_slice %130 {offsets = [0, 306], sizes = [2, 51], strides = [1, 1]} : vector<2x357xf32> to vector<2x51xf32>
    %138 = arith.addf %132, %133 : vector<2x51xf32>
    %139 = arith.addf %138, %134 : vector<2x51xf32>
    %140 = arith.addf %139, %135 : vector<2x51xf32>
    %141 = arith.addf %140, %136 : vector<2x51xf32>
    %142 = arith.addf %141, %137 : vector<2x51xf32>
    %cst_114 = arith.constant 0.166666672 : f32
    %143 = vector.broadcast %cst_114 : f32 to vector<2x51xf32>
    %144 = arith.mulf %142, %143 : vector<2x51xf32>
    %145 = arith.addf %131, %132 : vector<2x51xf32>
    %146 = arith.subf %145, %144 : vector<2x51xf32>
    %cst_115 = arith.constant dense<0xFF800000> : vector<2xf32>
    %147 = vector.multi_reduction <maximumf>, %146, %cst_115 [1] : vector<2x51xf32> to vector<2xf32>
    %148 = vector.shape_cast %147 : vector<2xf32> to vector<2x1xf32>
    %149 = vector.broadcast %148 : vector<2x1xf32> to vector<2x51xf32>
    %150 = arith.subf %146, %149 : vector<2x51xf32>
    %151 = math.exp %150 : vector<2x51xf32>
    %cst_116 = arith.constant dense<0.000000e+00> : vector<2xf32>
    %152 = vector.multi_reduction <add>, %151, %cst_116 [1] : vector<2x51xf32> to vector<2xf32>
    %153 = vector.shape_cast %152 : vector<2xf32> to vector<2x1xf32>
    %154 = vector.broadcast %153 : vector<2x1xf32> to vector<2x51xf32>
    %155 = arith.divf %151, %154 : vector<2x51xf32>
    %156 = arith.addf %131, %133 : vector<2x51xf32>
    %157 = arith.subf %156, %144 : vector<2x51xf32>
    %cst_117 = arith.constant dense<0xFF800000> : vector<2xf32>
    %158 = vector.multi_reduction <maximumf>, %157, %cst_117 [1] : vector<2x51xf32> to vector<2xf32>
    %159 = vector.shape_cast %158 : vector<2xf32> to vector<2x1xf32>
    %160 = vector.broadcast %159 : vector<2x1xf32> to vector<2x51xf32>
    %161 = arith.subf %157, %160 : vector<2x51xf32>
    %162 = math.exp %161 : vector<2x51xf32>
    %cst_118 = arith.constant dense<0.000000e+00> : vector<2xf32>
    %163 = vector.multi_reduction <add>, %162, %cst_118 [1] : vector<2x51xf32> to vector<2xf32>
    %164 = vector.shape_cast %163 : vector<2xf32> to vector<2x1xf32>
    %165 = vector.broadcast %164 : vector<2x1xf32> to vector<2x51xf32>
    %166 = arith.divf %162, %165 : vector<2x51xf32>
    %167 = arith.addf %131, %134 : vector<2x51xf32>
    %168 = arith.subf %167, %144 : vector<2x51xf32>
    %cst_119 = arith.constant dense<0xFF800000> : vector<2xf32>
    %169 = vector.multi_reduction <maximumf>, %168, %cst_119 [1] : vector<2x51xf32> to vector<2xf32>
    %170 = vector.shape_cast %169 : vector<2xf32> to vector<2x1xf32>
    %171 = vector.broadcast %170 : vector<2x1xf32> to vector<2x51xf32>
    %172 = arith.subf %168, %171 : vector<2x51xf32>
    %173 = math.exp %172 : vector<2x51xf32>
    %cst_120 = arith.constant dense<0.000000e+00> : vector<2xf32>
    %174 = vector.multi_reduction <add>, %173, %cst_120 [1] : vector<2x51xf32> to vector<2xf32>
    %175 = vector.shape_cast %174 : vector<2xf32> to vector<2x1xf32>
    %176 = vector.broadcast %175 : vector<2x1xf32> to vector<2x51xf32>
    %177 = arith.divf %173, %176 : vector<2x51xf32>
    %178 = arith.addf %131, %135 : vector<2x51xf32>
    %179 = arith.subf %178, %144 : vector<2x51xf32>
    %cst_121 = arith.constant dense<0xFF800000> : vector<2xf32>
    %180 = vector.multi_reduction <maximumf>, %179, %cst_121 [1] : vector<2x51xf32> to vector<2xf32>
    %181 = vector.shape_cast %180 : vector<2xf32> to vector<2x1xf32>
    %182 = vector.broadcast %181 : vector<2x1xf32> to vector<2x51xf32>
    %183 = arith.subf %179, %182 : vector<2x51xf32>
    %184 = math.exp %183 : vector<2x51xf32>
    %cst_122 = arith.constant dense<0.000000e+00> : vector<2xf32>
    %185 = vector.multi_reduction <add>, %184, %cst_122 [1] : vector<2x51xf32> to vector<2xf32>
    %186 = vector.shape_cast %185 : vector<2xf32> to vector<2x1xf32>
    %187 = vector.broadcast %186 : vector<2x1xf32> to vector<2x51xf32>
    %188 = arith.divf %184, %187 : vector<2x51xf32>
    %189 = arith.addf %131, %136 : vector<2x51xf32>
    %190 = arith.subf %189, %144 : vector<2x51xf32>
    %cst_123 = arith.constant dense<0xFF800000> : vector<2xf32>
    %191 = vector.multi_reduction <maximumf>, %190, %cst_123 [1] : vector<2x51xf32> to vector<2xf32>
    %192 = vector.shape_cast %191 : vector<2xf32> to vector<2x1xf32>
    %193 = vector.broadcast %192 : vector<2x1xf32> to vector<2x51xf32>
    %194 = arith.subf %190, %193 : vector<2x51xf32>
    %195 = math.exp %194 : vector<2x51xf32>
    %cst_124 = arith.constant dense<0.000000e+00> : vector<2xf32>
    %196 = vector.multi_reduction <add>, %195, %cst_124 [1] : vector<2x51xf32> to vector<2xf32>
    %197 = vector.shape_cast %196 : vector<2xf32> to vector<2x1xf32>
    %198 = vector.broadcast %197 : vector<2x1xf32> to vector<2x51xf32>
    %199 = arith.divf %195, %198 : vector<2x51xf32>
    %200 = arith.addf %131, %137 : vector<2x51xf32>
    %201 = arith.subf %200, %144 : vector<2x51xf32>
    %cst_125 = arith.constant dense<0xFF800000> : vector<2xf32>
    %202 = vector.multi_reduction <maximumf>, %201, %cst_125 [1] : vector<2x51xf32> to vector<2xf32>
    %203 = vector.shape_cast %202 : vector<2xf32> to vector<2x1xf32>
    %204 = vector.broadcast %203 : vector<2x1xf32> to vector<2x51xf32>
    %205 = arith.subf %201, %204 : vector<2x51xf32>
    %206 = math.exp %205 : vector<2x51xf32>
    %cst_126 = arith.constant dense<0.000000e+00> : vector<2xf32>
    %207 = vector.multi_reduction <add>, %206, %cst_126 [1] : vector<2x51xf32> to vector<2xf32>
    %208 = vector.shape_cast %207 : vector<2xf32> to vector<2x1xf32>
    %209 = vector.broadcast %208 : vector<2x1xf32> to vector<2x51xf32>
    %210 = arith.divf %206, %209 : vector<2x51xf32>
    %211 = tpu.concatenate %155, %166, %177, %188, %199, %210 in 1 : vector<2x51xf32>, vector<2x51xf32>, vector<2x51xf32>, vector<2x51xf32>, vector<2x51xf32>, vector<2x51xf32> -> vector<2x306xf32>
    %c0_127 = arith.constant 0 : index
    %c0_128 = arith.constant 0 : index
    %212 = vector.load %arg14[%c0_127, %c0_128] : memref<2x306xf32, #tpu.memory_space<vmem>>, vector<2x306xf32>
    tpu.vector_store %arg14[%c0_127, %c0_128], %211 {strides = array<i32>} : memref<2x306xf32, #tpu.memory_space<vmem>>, vector<2x306xf32>,
    return
  }
  func.func @transform_0(%arg0: i32) -> (i32, i32) {
    %c0_i32 = arith.constant 0 : i32
    %c0_i32_0 = arith.constant 0 : i32
    %c0_i32_1 = arith.constant 0 : i32
    return %c0_i32, %c0_i32_0 : i32, i32
  }
  func.func @transform_1(%arg0: i32) -> (i32, i32) {
    %c0_i32 = arith.constant 0 : i32
    %c0_i32_0 = arith.constant 0 : i32
    %c0_i32_1 = arith.constant 0 : i32
    return %c0_i32, %c0_i32_0 : i32, i32
  }
  func.func @transform_2(%arg0: i32) -> (i32, i32) {
    %c0_i32 = arith.constant 0 : i32
    %c0_i32_0 = arith.constant 0 : i32
    %c0_i32_1 = arith.constant 0 : i32
    return %c0_i32, %c0_i32_0 : i32, i32
  }
  func.func @transform_3(%arg0: i32) -> (i32, i32, i32) {
    %c0_i32 = arith.constant 0 : i32
    %c0_i32_0 = arith.constant 0 : i32
    %c0_i32_1 = arith.constant 0 : i32
    %c0_i32_2 = arith.constant 0 : i32
    return %c0_i32, %c0_i32_0, %c0_i32_1 : i32, i32, i32
  }
  func.func @transform_4(%arg0: i32) -> (i32, i32) {
    %c0_i32 = arith.constant 0 : i32
    %c0_i32_0 = arith.constant 0 : i32
    %c0_i32_1 = arith.constant 0 : i32
    return %c0_i32, %c0_i32_0 : i32, i32
  }
  func.func @transform_5(%arg0: i32) -> (i32, i32) {
    %c0_i32 = arith.constant 0 : i32
    %c0_i32_0 = arith.constant 0 : i32
    %c0_i32_1 = arith.constant 0 : i32
    return %c0_i32, %c0_i32_0 : i32, i32
  }
  func.func @transform_6(%arg0: i32) -> (i32, i32, i32) {
    %c0_i32 = arith.constant 0 : i32
    %c0_i32_0 = arith.constant 0 : i32
    %c0_i32_1 = arith.constant 0 : i32
    %c0_i32_2 = arith.constant 0 : i32
    return %c0_i32, %c0_i32_0, %c0_i32_1 : i32, i32, i32
  }
  func.func @transform_7(%arg0: i32) -> (i32, i32) {
    %c0_i32 = arith.constant 0 : i32
    %c0_i32_0 = arith.constant 0 : i32
    %c0_i32_1 = arith.constant 0 : i32
    return %c0_i32, %c0_i32_0 : i32, i32
  }
  func.func @transform_8(%arg0: i32) -> (i32, i32) {
    %c0_i32 = arith.constant 0 : i32
    %c0_i32_0 = arith.constant 0 : i32
    %c0_i32_1 = arith.constant 0 : i32
    return %c0_i32, %c0_i32_0 : i32, i32
  }
  func.func @transform_9(%arg0: i32) -> (i32, i32) {
    %c0_i32 = arith.constant 0 : i32
    %c0_i32_0 = arith.constant 0 : i32
    %c0_i32_1 = arith.constant 0 : i32
    return %c0_i32, %c0_i32_0 : i32, i32
  }
  func.func @transform_10(%arg0: i32) -> (i32, i32) {
    %c0_i32 = arith.constant 0 : i32
    %c0_i32_0 = arith.constant 0 : i32
    %c0_i32_1 = arith.constant 0 : i32
    return %c0_i32, %c0_i32_0 : i32, i32
  }
  func.func @transform_11(%arg0: i32) -> (i32, i32) {
    %c0_i32 = arith.constant 0 : i32
    %c0_i32_0 = arith.constant 0 : i32
    %c0_i32_1 = arith.constant 0 : i32
    return %c0_i32, %c0_i32_0 : i32, i32
  }
  func.func @transform_12(%arg0: i32) -> (i32, i32) {
    %c0_i32 = arith.constant 0 : i32
    %c0_i32_0 = arith.constant 0 : i32
    %c0_i32_1 = arith.constant 0 : i32
    return %c0_i32, %c0_i32_0 : i32, i32
  }
  func.func @transform_13(%arg0: i32) -> (i32, i32) {
    %c0_i32 = arith.constant 0 : i32
    %c0_i32_0 = arith.constant 0 : i32
    %c0_i32_1 = arith.constant 0 : i32
    return %c0_i32, %c0_i32_0 : i32, i32
  }
}

</mosaic_0001>

<llo_original>
// kernel: rainbow_forward.1
$region0: #{rainbow_forward.1}
  #allocation0 [shape = 'u32[]', space=smem, size = 0x4, offset = 0x4, fixed_abs, tag = 'smem constant byte address 0x4 - core index']
  #allocation1 [shape = 'u32[144,128]{1,0:T(1,128)}', space=vmem, size = 0x12000, scoped, tag = 'internal scratch']
  %s0 = inlined_call_operand.vmem [shape: f32[288,256], index: 0, kind: input, shape index: {}]
  %s1 = inlined_call_operand.vmem [shape: f32[256,32], index: 1, kind: input, shape index: {}]
  %s2 = inlined_call_operand.vmem [shape: f32[1,32], index: 2, kind: input, shape index: {}]
  %s3 = inlined_call_operand.vmem [shape: f32[16,50,288], index: 3, kind: input, shape index: {}]
  %s4 = inlined_call_operand.vmem [shape: f32[512,64], index: 4, kind: input, shape index: {}]
  %s5 = inlined_call_operand.vmem [shape: f32[1,64], index: 5, kind: input, shape index: {}]
  %s6 = inlined_call_operand.vmem [shape: f32[9,18,50], index: 6, kind: input, shape index: {}]
  %s7 = inlined_call_operand.vmem [shape: f32[576,6], index: 7, kind: input, shape index: {}]
  %s8 = inlined_call_operand.vmem [shape: f32[1,6], index: 8, kind: input, shape index: {}]
  %s9 = inlined_call_operand.vmem [shape: f32[54,1024], index: 9, kind: input, shape index: {}]
  %s10 = inlined_call_operand.vmem [shape: f32[1,1024], index: 10, kind: input, shape index: {}]
  %s11 = inlined_call_operand.vmem [shape: f32[1024,357], index: 11, kind: input, shape index: {}]
  %s12 = inlined_call_operand.vmem [shape: f32[1,357], index: 12, kind: input, shape index: {}]
  %s13 = inlined_call_operand.vmem [shape: f32[2,306], index: 13, kind: output, shape index: {}]
  %s14 = sld [smem:[#allocation0]]
  $region62: #{rainbow_forward.1} parent=0
    _
  %s16 = ssub.s32 1, %s14
  %s17 = scalar_select 0, %s16, %s14
  // Predicated region
  $region2: #{rainbow_forward.1} parent=0 // pred_check
    _
  $region3: #{rainbow_forward.1} parent=0 // pred_check_branch
    %19 = sbr.rel (0) target = $region5
  $region4: #{rainbow_forward.1} parent=0 // pred_region
    _
  $region5: #{rainbow_forward.1} parent=0 // pred_fallthru
    _
  // Predicated region
  $region6: #{rainbow_forward.1} parent=0 // pred_check
    _
  $region7: #{rainbow_forward.1} parent=0 // pred_check_branch
    %21 = sbr.rel (0) target = $region9
  $region8: #{rainbow_forward.1} parent=0 // pred_region
    _
  $region9: #{rainbow_forward.1} parent=0 // pred_fallthru
    _
  // Predicated region
  $region10: #{rainbow_forward.1} parent=0 // pred_check
    _
  $region11: #{rainbow_forward.1} parent=0 // pred_check_branch
    %23 = sbr.rel (0) target = $region13
  $region12: #{rainbow_forward.1} parent=0 // pred_region
    _
  $region13: #{rainbow_forward.1} parent=0 // pred_fallthru
    _
  // Predicated region
  $region14: #{rainbow_forward.1} parent=0 // pred_check
    _
  $region15: #{rainbow_forward.1} parent=0 // pred_check_branch
    %25 = sbr.rel (0) target = $region17
  $region16: #{rainbow_forward.1} parent=0 // pred_region
    _
  $region17: #{rainbow_forward.1} parent=0 // pred_fallthru
    _
  // Predicated region
  $region18: #{rainbow_forward.1} parent=0 // pred_check
    _
  $region19: #{rainbow_forward.1} parent=0 // pred_check_branch
    %27 = sbr.rel (0) target = $region21
  $region20: #{rainbow_forward.1} parent=0 // pred_region
    _
  $region21: #{rainbow_forward.1} parent=0 // pred_fallthru
    _
  // Predicated region
  $region22: #{rainbow_forward.1} parent=0 // pred_check
    _
  $region23: #{rainbow_forward.1} parent=0 // pred_check_branch
    %29 = sbr.rel (0) target = $region25
  $region24: #{rainbow_forward.1} parent=0 // pred_region
    _
  $region25: #{rainbow_forward.1} parent=0 // pred_fallthru
    _
  // Predicated region
  $region26: #{rainbow_forward.1} parent=0 // pred_check
    _
  $region27: #{rainbow_forward.1} parent=0 // pred_check_branch
    %31 = sbr.rel (0) target = $region29
  $region28: #{rainbow_forward.1} parent=0 // pred_region
    _
  $region29: #{rainbow_forward.1} parent=0 // pred_fallthru
    _
  // Predicated region
  $region30: #{rainbow_forward.1} parent=0 // pred_check
    _
  $region31: #{rainbow_forward.1} parent=0 // pred_check_branch
    %33 = sbr.rel (0) target = $region33
  $region32: #{rainbow_forward.1} parent=0 // pred_region
    _
  $region33: #{rainbow_forward.1} parent=0 // pred_fallthru
    _
  // Predicated region
  $region34: #{rainbow_forward.1} parent=0 // pred_check
    _
  $region35: #{rainbow_forward.1} parent=0 // pred_check_branch
    %35 = sbr.rel (0) target = $region37
  $region36: #{rainbow_forward.1} parent=0 // pred_region
    _
  $region37: #{rainbow_forward.1} parent=0 // pred_fallthru
    _
  // Predicated region
  $region38: #{rainbow_forward.1} parent=0 // pred_check
    _
  $region39: #{rainbow_forward.1} parent=0 // pred_check_branch
    %37 = sbr.rel (0) target = $region41
  $region40: #{rainbow_forward.1} parent=0 // pred_region
    _
  $region41: #{rainbow_forward.1} parent=0 // pred_fallthru
    _
  // Predicated region
  $region42: #{rainbow_forward.1} parent=0 // pred_check
    _
  $region43: #{rainbow_forward.1} parent=0 // pred_check_branch
    %39 = sbr.rel (0) target = $region45
  $region44: #{rainbow_forward.1} parent=0 // pred_region
    _
  $region45: #{rainbow_forward.1} parent=0 // pred_fallthru
    _
  // Predicated region
  $region46: #{rainbow_forward.1} parent=0 // pred_check
    _
  $region47: #{rainbow_forward.1} parent=0 // pred_check_branch
    %41 = sbr.rel (0) target = $region49
  $region48: #{rainbow_forward.1} parent=0 // pred_region
    _
  $region49: #{rainbow_forward.1} parent=0 // pred_fallthru
    _
  // Predicated region
  $region50: #{rainbow_forward.1} parent=0 // pred_check
    _
  $region51: #{rainbow_forward.1} parent=0 // pred_check_branch
    %43 = sbr.rel (0) target = $region53
  $region52: #{rainbow_forward.1} parent=0 // pred_region
    _
  $region53: #{rainbow_forward.1} parent=0 // pred_fallthru
    _
  %v44 = vld [vmem:[%s0] sm:$0xff]
  %v45 = vld [vmem:[%s0 + $0x8] sm:$0xff]
  %v46 = vld [vmem:[%s0 + $0x10] sm:$0xff]
  %v47 = vld [vmem:[%s0 + $0x18] sm:$0xff]
  %v48 = vld [vmem:[%s0 + $0x20] sm:$0xff]
  %v49 = vld [vmem:[%s0 + $0x28] sm:$0xff]
  %v50 = vld [vmem:[%s0 + $0x30] sm:$0xff]
  %v51 = vld [vmem:[%s0 + $0x38] sm:$0xff]
  %v52 = vld [vmem:[%s0 + $0x40] sm:$0xff]
  %v53 = vld [vmem:[%s0 + $0x48] sm:$0xff]
  %v54 = vld [vmem:[%s0 + $0x50] sm:$0xff]
  %v55 = vld [vmem:[%s0 + $0x58] sm:$0xff]
  %v56 = vld [vmem:[%s0 + $0x60] sm:$0xff]
  %v57 = vld [vmem:[%s0 + $0x68] sm:$0xff]
  %v58 = vld [vmem:[%s0 + $0x70] sm:$0xff]
  %v59 = vld [vmem:[%s0 + $0x78] sm:$0xff]
  %v60 = vld [vmem:[%s0 + $0x80] sm:$0xff]
  %v61 = vld [vmem:[%s0 + $0x88] sm:$0xff]
  %v62 = vld [vmem:[%s0 + $0x90] sm:$0xff]
  %v63 = vld [vmem:[%s0 + $0x98] sm:$0xff]
  %v64 = vld [vmem:[%s0 + $0xa0] sm:$0xff]
  %v65 = vld [vmem:[%s0 + $0xa8] sm:$0xff]
  %v66 = vld [vmem:[%s0 + $0xb0] sm:$0xff]
  %v67 = vld [vmem:[%s0 + $0xb8] sm:$0xff]
  %v68 = vld [vmem:[%s0 + $0xc0] sm:$0xff]
  %v69 = vld [vmem:[%s0 + $0xc8] sm:$0xff]
  %v70 = vld [vmem:[%s0 + $0xd0] sm:$0xff]
  %v71 = vld [vmem:[%s0 + $0xd8] sm:$0xff]
  %v72 = vld [vmem:[%s0 + $0xe0] sm:$0xff]
  %v73 = vld [vmem:[%s0 + $0xe8] sm:$0xff]
  %v74 = vld [vmem:[%s0 + $0xf0] sm:$0xff]
  %v75 = vld [vmem:[%s0 + $0xf8] sm:$0xff]
  %v76 = vld [vmem:[%s0 + $0x100] sm:$0xff]
  %v77 = vld [vmem:[%s0 + $0x108] sm:$0xff]
  %v78 = vld [vmem:[%s0 + $0x110] sm:$0xff]
  %v79 = vld [vmem:[%s0 + $0x118] sm:$0xff]
  %v80 = vld [vmem:[%s0 + $0x120] sm:$0xff]
  %v81 = vld [vmem:[%s0 + $0x128] sm:$0xff]
  %v82 = vld [vmem:[%s0 + $0x130] sm:$0xff]
  %v83 = vld [vmem:[%s0 + $0x138] sm:$0xff]
  %v84 = vld [vmem:[%s0 + $0x140] sm:$0xff]
  %v85 = vld [vmem:[%s0 + $0x148] sm:$0xff]
  %v86 = vld [vmem:[%s0 + $0x150] sm:$0xff]
  %v87 = vld [vmem:[%s0 + $0x158] sm:$0xff]
  %v88 = vld [vmem:[%s0 + $0x160] sm:$0xff]
  %v89 = vld [vmem:[%s0 + $0x168] sm:$0xff]
  %v90 = vld [vmem:[%s0 + $0x170] sm:$0xff]
  %v91 = vld [vmem:[%s0 + $0x178] sm:$0xff]
  %v92 = vld [vmem:[%s0 + $0x180] sm:$0xff]
  %v93 = vld [vmem:[%s0 + $0x188] sm:$0xff]
  %v94 = vld [vmem:[%s0 + $0x190] sm:$0xff]
  %v95 = vld [vmem:[%s0 + $0x198] sm:$0xff]
  %v96 = vld [vmem:[%s0 + $0x1a0] sm:$0xff]
  %v97 = vld [vmem:[%s0 + $0x1a8] sm:$0xff]
  %v98 = vld [vmem:[%s0 + $0x1b0] sm:$0xff]
  %v99 = vld [vmem:[%s0 + $0x1b8] sm:$0xff]
  %v100 = vld [vmem:[%s0 + $0x1c0] sm:$0xff]
  %v101 = vld [vmem:[%s0 + $0x1c8] sm:$0xff]
  %v102 = vld [vmem:[%s0 + $0x1d0] sm:$0xff]
  %v103 = vld [vmem:[%s0 + $0x1d8] sm:$0xff]
  %v104 = vld [vmem:[%s0 + $0x1e0] sm:$0xff]
  %v105 = vld [vmem:[%s0 + $0x1e8] sm:$0xff]
  %v106 = vld [vmem:[%s0 + $0x1f0] sm:$0xff]
  %v107 = vld [vmem:[%s0 + $0x1f8] sm:$0xff]
  %v108 = vld [vmem:[%s0 + $0x200] sm:$0xff]
  %v109 = vld [vmem:[%s0 + $0x208] sm:$0xff]
  %v110 = vld [vmem:[%s0 + $0x210] sm:$0xff]
  %v111 = vld [vmem:[%s0 + $0x218] sm:$0xff]
  %v112 = vld [vmem:[%s0 + $0x220] sm:$0xff]
  %v113 = vld [vmem:[%s0 + $0x228] sm:$0xff]
  %v114 = vld [vmem:[%s0 + $0x230] sm:$0xff]
  %v115 = vld [vmem:[%s0 + $0x238] sm:$0xff]
  %v116 = vld [vmem:[%s1] sm:$0xff]
  %v117 = vld [vmem:[%s1 + $0x8] sm:$0xff]
  %v118 = vld [vmem:[%s1 + $0x10] sm:$0xff]
  %v119 = vld [vmem:[%s1 + $0x18] sm:$0xff]
  %v120 = vld [vmem:[%s1 + $0x20] sm:$0xff]
  %v121 = vld [vmem:[%s1 + $0x28] sm:$0xff]
  %v122 = vld [vmem:[%s1 + $0x30] sm:$0xff]
  %v123 = vld [vmem:[%s1 + $0x38] sm:$0xff]
  %v124 = vld [vmem:[%s1 + $0x40] sm:$0xff]
  %v125 = vld [vmem:[%s1 + $0x48] sm:$0xff]
  %v126 = vld [vmem:[%s1 + $0x50] sm:$0xff]
  %v127 = vld [vmem:[%s1 + $0x58] sm:$0xff]
  %v128 = vld [vmem:[%s1 + $0x60] sm:$0xff]
  %v129 = vld [vmem:[%s1 + $0x68] sm:$0xff]
  %v130 = vld [vmem:[%s1 + $0x70] sm:$0xff]
  %v131 = vld [vmem:[%s1 + $0x78] sm:$0xff]
  %v132 = vld [vmem:[%s1 + $0x80] sm:$0xff]
  %v133 = vld [vmem:[%s1 + $0x88] sm:$0xff]
  %v134 = vld [vmem:[%s1 + $0x90] sm:$0xff]
  %v135 = vld [vmem:[%s1 + $0x98] sm:$0xff]
  %v136 = vld [vmem:[%s1 + $0xa0] sm:$0xff]
  %v137 = vld [vmem:[%s1 + $0xa8] sm:$0xff]
  %v138 = vld [vmem:[%s1 + $0xb0] sm:$0xff]
  %v139 = vld [vmem:[%s1 + $0xb8] sm:$0xff]
  %v140 = vld [vmem:[%s1 + $0xc0] sm:$0xff]
  %v141 = vld [vmem:[%s1 + $0xc8] sm:$0xff]
  %v142 = vld [vmem:[%s1 + $0xd0] sm:$0xff]
  %v143 = vld [vmem:[%s1 + $0xd8] sm:$0xff]
  %v144 = vld [vmem:[%s1 + $0xe0] sm:$0xff]
  %v145 = vld [vmem:[%s1 + $0xe8] sm:$0xff]
  %v146 = vld [vmem:[%s1 + $0xf0] sm:$0xff]
  %v147 = vld [vmem:[%s1 + $0xf8] sm:$0xff]
  %v148 = vld [vmem:[%s2] sm:$0x1]
  %v150 = vlaneseq
  %v151 = vshrl.u32 %v150, 7
  %v152 = vsub.s32 0, %v151
  %v153 = vrot.slane %v148, %v152
  %155 = vmatprep.subr.mxu0 0.0
  %156 = vmatpush1.msra.mxu0 %v131
  %157 = vmatprep.subr.mxu0 0.0
  %158 = vmatpush1.msra.mxu0 %v130
  %159 = vmatprep.subr.mxu0 0.0
  %160 = vmatpush1.msra.mxu0 %v129
  %161 = vmatprep.subr.mxu0 0.0
  %162 = vmatpush1.msra.mxu0 %v128
  %163 = vmatprep.subr.mxu0 0.0
  %164 = vmatpush1.msra.mxu0 %v127
  %165 = vmatprep.subr.mxu0 0.0
  %166 = vmatpush1.msra.mxu0 %v126
  %167 = vmatprep.subr.mxu0 0.0
  %168 = vmatpush1.msra.mxu0 %v125
  %169 = vmatprep.subr.mxu0 0.0
  %170 = vmatpush1.msra.mxu0 %v124
  %171 = vmatprep.subr.mxu0 0.0
  %172 = vmatpush1.msra.mxu0 %v123
  %173 = vmatprep.subr.mxu0 0.0
  %174 = vmatpush1.msra.mxu0 %v122
  %175 = vmatprep.subr.mxu0 0.0
  %176 = vmatpush1.msra.mxu0 %v121
  %177 = vmatprep.subr.mxu0 0.0
  %178 = vmatpush1.msra.mxu0 %v120
  %179 = vmatprep.subr.mxu0 0.0
  %180 = vmatpush1.msra.mxu0 %v119
  %181 = vmatprep.subr.mxu0 0.0
  %182 = vmatpush1.msra.mxu0 %v118
  %183 = vmatprep.subr.mxu0 0.0
  %184 = vmatpush1.msra.mxu0 %v117
  %185 = vmatprep.subr.mxu0 0.0
  %186 = vmatpush1.msra.mxu0 %v116
  %187 = vmatprep.subr.mxu0 0.0
  %188 = vmatpush2.msra.mxu0 %v147
  %189 = vmatprep.subr.mxu0 0.0
  %190 = vmatpush2.msra.mxu0 %v146
  %191 = vmatprep.subr.mxu0 0.0
  %192 = vmatpush2.msra.mxu0 %v145
  %193 = vmatprep.subr.mxu0 0.0
  %194 = vmatpush2.msra.mxu0 %v144
  %195 = vmatprep.subr.mxu0 0.0
  %196 = vmatpush2.msra.mxu0 %v143
  %197 = vmatprep.subr.mxu0 0.0
  %198 = vmatpush2.msra.mxu0 %v142
  %199 = vmatprep.subr.mxu0 0.0
  %200 = vmatpush2.msra.mxu0 %v141
  %201 = vmatprep.subr.mxu0 0.0
  %202 = vmatpush2.msra.mxu0 %v140
  %203 = vmatprep.subr.mxu0 0.0
  %204 = vmatpush2.msra.mxu0 %v139
  %205 = vmatprep.subr.mxu0 0.0
  %206 = vmatpush2.msra.mxu0 %v138
  %207 = vmatprep.subr.mxu0 0.0
  %208 = vmatpush2.msra.mxu0 %v137
  %209 = vmatprep.subr.mxu0 0.0
  %210 = vmatpush2.msra.mxu0 %v136
  %211 = vmatprep.subr.mxu0 0.0
  %212 = vmatpush2.msra.mxu0 %v135
  %213 = vmatprep.subr.mxu0 0.0
  %214 = vmatpush2.msra.mxu0 %v134
  %215 = vmatprep.subr.mxu0 0.0
  %216 = vmatpush2.msra.mxu0 %v133
  %217 = vmatprep.subr.mxu0 0.0
  %218 = vmatpush2.msra.mxu0 %v132
  %219 = vmatprep.mubr.f32.mxu0 %v45
  %220 = vmatmul.mubr.f32.gmra.mxu0 %v44
  %v221 = vpop.f32.mrf.mxu0
  %v222 = vadd.f32 %v153, %v221
  %v223 = vpop.f32.mrf.mxu0
  %224 = vmatprep.mubr.f32.mxu0 %v47
  %225 = vmatmul.mubr.f32.gmra.mxu0 %v46
  %v226 = vpop.f32.mrf.mxu0
  %v227 = vadd.f32 %v153, %v226
  %v228 = vpop.f32.mrf.mxu0
  %229 = vmatprep.mubr.f32.mxu0 %v49
  %230 = vmatmul.mubr.f32.gmra.mxu0 %v48
  %v231 = vpop.f32.mrf.mxu0
  %v232 = vadd.f32 %v153, %v231
  %v233 = vpop.f32.mrf.mxu0
  %234 = vmatprep.mubr.f32.mxu0 %v51
  %235 = vmatmul.mubr.f32.gmra.mxu0 %v50
  %v236 = vpop.f32.mrf.mxu0
  %v237 = vadd.f32 %v153, %v236
  %v238 = vpop.f32.mrf.mxu0
  %239 = vmatprep.mubr.f32.mxu0 %v53
  %240 = vmatmul.mubr.f32.gmra.mxu0 %v52
  %v241 = vpop.f32.mrf.mxu0
  %v242 = vadd.f32 %v153, %v241
  %v243 = vpop.f32.mrf.mxu0
  %244 = vmatprep.mubr.f32.mxu0 %v55
  %245 = vmatmul.mubr.f32.gmra.mxu0 %v54
  %v246 = vpop.f32.mrf.mxu0
  %v247 = vadd.f32 %v153, %v246
  %v248 = vpop.f32.mrf.mxu0
  %249 = vmatprep.mubr.f32.mxu0 %v57
  %250 = vmatmul.mubr.f32.gmra.mxu0 %v56
  %v251 = vpop.f32.mrf.mxu0
  %v252 = vadd.f32 %v153, %v251
  %v253 = vpop.f32.mrf.mxu0
  %254 = vmatprep.mubr.f32.mxu0 %v59
  %255 = vmatmul.mubr.f32.gmra.mxu0 %v58
  %v256 = vpop.f32.mrf.mxu0
  %v257 = vadd.f32 %v153, %v256
  %v258 = vpop.f32.mrf.mxu0
  %259 = vmatprep.mubr.f32.mxu0 %v61
  %260 = vmatmul.mubr.f32.gmra.mxu0 %v60
  %v261 = vpop.f32.mrf.mxu0
  %v262 = vadd.f32 %v153, %v261
  %v263 = vpop.f32.mrf.mxu0
  %264 = vmatprep.mubr.f32.mxu0 %v63
  %265 = vmatmul.mubr.f32.gmra.mxu0 %v62
  %v266 = vpop.f32.mrf.mxu0
  %v267 = vadd.f32 %v153, %v266
  %v268 = vpop.f32.mrf.mxu0
  %269 = vmatprep.mubr.f32.mxu0 %v65
  %270 = vmatmul.mubr.f32.gmra.mxu0 %v64
  %v271 = vpop.f32.mrf.mxu0
  %v272 = vadd.f32 %v153, %v271
  %v273 = vpop.f32.mrf.mxu0
  %274 = vmatprep.mubr.f32.mxu0 %v67
  %275 = vmatmul.mubr.f32.gmra.mxu0 %v66
  %v276 = vpop.f32.mrf.mxu0
  %v277 = vadd.f32 %v153, %v276
  %v278 = vpop.f32.mrf.mxu0
  %279 = vmatprep.mubr.f32.mxu0 %v69
  %280 = vmatmul.mubr.f32.gmra.mxu0 %v68
  %v281 = vpop.f32.mrf.mxu0
  %v282 = vadd.f32 %v153, %v281
  %v283 = vpop.f32.mrf.mxu0
  %284 = vmatprep.mubr.f32.mxu0 %v71
  %285 = vmatmul.mubr.f32.gmra.mxu0 %v70
  %v286 = vpop.f32.mrf.mxu0
  %v287 = vadd.f32 %v153, %v286
  %v288 = vpop.f32.mrf.mxu0
  %289 = vmatprep.mubr.f32.mxu0 %v73
  %290 = vmatmul.mubr.f32.gmra.mxu0 %v72
  %v291 = vpop.f32.mrf.mxu0
  %v292 = vadd.f32 %v153, %v291
  %v293 = vpop.f32.mrf.mxu0
  %294 = vmatprep.mubr.f32.mxu0 %v75
  %295 = vmatmul.mubr.f32.gmra.mxu0 %v74
  %v296 = vpop.f32.mrf.mxu0
  %v297 = vadd.f32 %v153, %v296
  %v298 = vpop.f32.mrf.mxu0
  %299 = vmatprep.mubr.f32.mxu0 %v77
  %300 = vmatmul.mubr.f32.gmra.mxu0 %v76
  %v301 = vpop.f32.mrf.mxu0
  %v302 = vadd.f32 %v153, %v301
  %v303 = vpop.f32.mrf.mxu0
  %304 = vmatprep.mubr.f32.mxu0 %v79
  %305 = vmatmul.mubr.f32.gmra.mxu0 %v78
  %v306 = vpop.f32.mrf.mxu0
  %v307 = vadd.f32 %v153, %v306
  %v308 = vpop.f32.mrf.mxu0
  %309 = vmatprep.mubr.f32.mxu0 %v81
  %310 = vmatmul.mubr.f32.gmra.mxu0 %v80
  %v311 = vpop.f32.mrf.mxu0
  %v312 = vadd.f32 %v153, %v311
  %v313 = vpop.f32.mrf.mxu0
  %314 = vmatprep.mubr.f32.mxu0 %v83
  %315 = vmatmul.mubr.f32.gmra.mxu0 %v82
  %v316 = vpop.f32.mrf.mxu0
  %v317 = vadd.f32 %v153, %v316
  %v318 = vpop.f32.mrf.mxu0
  %319 = vmatprep.mubr.f32.mxu0 %v85
  %320 = vmatmul.mubr.f32.gmra.mxu0 %v84
  %v321 = vpop.f32.mrf.mxu0
  %v322 = vadd.f32 %v153, %v321
  %v323 = vpop.f32.mrf.mxu0
  %324 = vmatprep.mubr.f32.mxu0 %v87
  %325 = vmatmul.mubr.f32.gmra.mxu0 %v86
  %v326 = vpop.f32.mrf.mxu0
  %v327 = vadd.f32 %v153, %v326
  %v328 = vpop.f32.mrf.mxu0
  %329 = vmatprep.mubr.f32.mxu0 %v89
  %330 = vmatmul.mubr.f32.gmra.mxu0 %v88
  %v331 = vpop.f32.mrf.mxu0
  %v332 = vadd.f32 %v153, %v331
  %v333 = vpop.f32.mrf.mxu0
  %334 = vmatprep.mubr.f32.mxu0 %v91
  %335 = vmatmul.mubr.f32.gmra.mxu0 %v90
  %v336 = vpop.f32.mrf.mxu0
  %v337 = vadd.f32 %v153, %v336
  %v338 = vpop.f32.mrf.mxu0
  %339 = vmatprep.mubr.f32.mxu0 %v93
  %340 = vmatmul.mubr.f32.gmra.mxu0 %v92
  %v341 = vpop.f32.mrf.mxu0
  %v342 = vadd.f32 %v153, %v341
  %v343 = vpop.f32.mrf.mxu0
  %344 = vmatprep.mubr.f32.mxu0 %v95
  %345 = vmatmul.mubr.f32.gmra.mxu0 %v94
  %v346 = vpop.f32.mrf.mxu0
  %v347 = vadd.f32 %v153, %v346
  %v348 = vpop.f32.mrf.mxu0
  %349 = vmatprep.mubr.f32.mxu0 %v97
  %350 = vmatmul.mubr.f32.gmra.mxu0 %v96
  %v351 = vpop.f32.mrf.mxu0
  %v352 = vadd.f32 %v153, %v351
  %v353 = vpop.f32.mrf.mxu0
  %354 = vmatprep.mubr.f32.mxu0 %v99
  %355 = vmatmul.mubr.f32.gmra.mxu0 %v98
  %v356 = vpop.f32.mrf.mxu0
  %v357 = vadd.f32 %v153, %v356
  %v358 = vpop.f32.mrf.mxu0
  %359 = vmatprep.mubr.f32.mxu0 %v101
  %360 = vmatmul.mubr.f32.gmra.mxu0 %v100
  %v361 = vpop.f32.mrf.mxu0
  %v362 = vadd.f32 %v153, %v361
  %v363 = vpop.f32.mrf.mxu0
  %364 = vmatprep.mubr.f32.mxu0 %v103
  %365 = vmatmul.mubr.f32.gmra.mxu0 %v102
  %v366 = vpop.f32.mrf.mxu0
  %v367 = vadd.f32 %v153, %v366
  %v368 = vpop.f32.mrf.mxu0
  %369 = vmatprep.mubr.f32.mxu0 %v105
  %370 = vmatmul.mubr.f32.gmra.mxu0 %v104
  %v371 = vpop.f32.mrf.mxu0
  %v372 = vadd.f32 %v153, %v371
  %v373 = vpop.f32.mrf.mxu0
  %374 = vmatprep.mubr.f32.mxu0 %v107
  %375 = vmatmul.mubr.f32.gmra.mxu0 %v106
  %v376 = vpop.f32.mrf.mxu0
  %v377 = vadd.f32 %v153, %v376
  %v378 = vpop.f32.mrf.mxu0
  %379 = vmatprep.mubr.f32.mxu0 %v109
  %380 = vmatmul.mubr.f32.gmra.mxu0 %v108
  %v381 = vpop.f32.mrf.mxu0
  %v382 = vadd.f32 %v153, %v381
  %v383 = vpop.f32.mrf.mxu0
  %384 = vmatprep.mubr.f32.mxu0 %v111
  %385 = vmatmul.mubr.f32.gmra.mxu0 %v110
  %v386 = vpop.f32.mrf.mxu0
  %v387 = vadd.f32 %v153, %v386
  %v388 = vpop.f32.mrf.mxu0
  %389 = vmatprep.mubr.f32.mxu0 %v113
  %390 = vmatmul.mubr.f32.gmra.mxu0 %v112
  %v391 = vpop.f32.mrf.mxu0
  %v392 = vadd.f32 %v153, %v391
  %v393 = vpop.f32.mrf.mxu0
  %394 = vmatprep.mubr.f32.mxu0 %v115
  %395 = vmatmul.mubr.f32.gmra.mxu0 %v114
  %v396 = vpop.f32.mrf.mxu0
  %v397 = vadd.f32 %v153, %v396
  %v398 = vpop.f32.mrf.mxu0
  %399 = vdwg.mxu0
  %v400 = vmax.f32 %v222, 0.0
  %v401 = vmax.f32 %v227, 0.0
  %v402 = vmax.f32 %v232, 0.0
  %v403 = vmax.f32 %v237, 0.0
  %v404 = vmax.f32 %v242, 0.0
  %v405 = vmax.f32 %v247, 0.0
  %v406 = vmax.f32 %v252, 0.0
  %v407 = vmax.f32 %v257, 0.0
  %v408 = vmax.f32 %v262, 0.0
  %v409 = vmax.f32 %v267, 0.0
  %v410 = vmax.f32 %v272, 0.0
  %v411 = vmax.f32 %v277, 0.0
  %v412 = vmax.f32 %v282, 0.0
  %v413 = vmax.f32 %v287, 0.0
  %v414 = vmax.f32 %v292, 0.0
  %v415 = vmax.f32 %v297, 0.0
  %v416 = vmax.f32 %v302, 0.0
  %v417 = vmax.f32 %v307, 0.0
  %v418 = vmax.f32 %v312, 0.0
  %v419 = vmax.f32 %v317, 0.0
  %v420 = vmax.f32 %v322, 0.0
  %v421 = vmax.f32 %v327, 0.0
  %v422 = vmax.f32 %v332, 0.0
  %v423 = vmax.f32 %v337, 0.0
  %v424 = vmax.f32 %v342, 0.0
  %v425 = vmax.f32 %v347, 0.0
  %v426 = vmax.f32 %v352, 0.0
  %v427 = vmax.f32 %v357, 0.0
  %v428 = vmax.f32 %v362, 0.0
  %v429 = vmax.f32 %v367, 0.0
  %v430 = vmax.f32 %v372, 0.0
  %v431 = vmax.f32 %v377, 0.0
  %v432 = vmax.f32 %v382, 0.0
  %v433 = vmax.f32 %v387, 0.0
  %v434 = vmax.f32 %v392, 0.0
  %v435 = vmax.f32 %v397, 0.0
  %v436 = vld [vmem:[%s3] sm:$0xff]
  %v437 = vld [vmem:[%s3 + $0x8] sm:$0xff]
  %v438 = vld [vmem:[%s3 + $0x10] sm:$0xff]
  %v439 = vld [vmem:[%s3 + $0x18] sm:$0xff]
  %v440 = vld [vmem:[%s3 + $0x20] sm:$0xff]
  %v441 = vld [vmem:[%s3 + $0x28] sm:$0xff]
  %v442 = vld [vmem:[%s3 + $0x30] sm:$0xff]
  %v443 = vld [vmem:[%s3 + $0x38] sm:$0xff]
  %v444 = vld [vmem:[%s3 + $0x40] sm:$0xff]
  %v445 = vld [vmem:[%s3 + $0x48] sm:$0xff]
  %v446 = vld [vmem:[%s3 + $0x50] sm:$0xff]
  %v447 = vld [vmem:[%s3 + $0x58] sm:$0xff]
  %v448 = vld [vmem:[%s3 + $0x60] sm:$0xff]
  %v449 = vld [vmem:[%s3 + $0x68] sm:$0xff]
  %v450 = vld [vmem:[%s3 + $0x70] sm:$0xff]
  %v451 = vld [vmem:[%s3 + $0x78] sm:$0xff]
  %v452 = vld [vmem:[%s3 + $0x80] sm:$0xff]
  %v453 = vld [vmem:[%s3 + $0x88] sm:$0xff]
  %v454 = vld [vmem:[%s3 + $0x90] sm:$0x3]
  %v455 = vld [vmem:[%s3 + $0x98] sm:$0x3]
  %v456 = vld [vmem:[%s3 + $0xa0] sm:$0x3]
  %vm457 = vcmask 261120
  %v459 = vsel %vm457, %v438, 0
  %v462 = vsel %vm457, %v441, 0
  %v465 = vsel %vm457, %v444, 0
  %v468 = vsel %vm457, %v447, 0
  %v471 = vsel %vm457, %v450, 0
  %v474 = vsel %vm457, %v453, 0
  %v477 = vsel %vm457, %v456, 0
  %479 = vmatprep.subr.mxu0 0.0
  %480 = vmatpush1.msra.mxu0 %v415
  %481 = vmatprep.subr.mxu0 0.0
  %482 = vmatpush1.msra.mxu0 %v414
  %483 = vmatprep.subr.mxu0 0.0
  %484 = vmatpush1.msra.mxu0 %v413
  %485 = vmatprep.subr.mxu0 0.0
  %486 = vmatpush1.msra.mxu0 %v412
  %487 = vmatprep.subr.mxu0 0.0
  %488 = vmatpush1.msra.mxu0 %v411
  %489 = vmatprep.subr.mxu0 0.0
  %490 = vmatpush1.msra.mxu0 %v410
  %491 = vmatprep.subr.mxu0 0.0
  %492 = vmatpush1.msra.mxu0 %v409
  %493 = vmatprep.subr.mxu0 0.0
  %494 = vmatpush1.msra.mxu0 %v408
  %495 = vmatprep.subr.mxu0 0.0
  %496 = vmatpush1.msra.mxu0 %v407
  %497 = vmatprep.subr.mxu0 0.0
  %498 = vmatpush1.msra.mxu0 %v406
  %499 = vmatprep.subr.mxu0 0.0
  %500 = vmatpush1.msra.mxu0 %v405
  %501 = vmatprep.subr.mxu0 0.0
  %502 = vmatpush1.msra.mxu0 %v404
  %503 = vmatprep.subr.mxu0 0.0
  %504 = vmatpush1.msra.mxu0 %v403
  %505 = vmatprep.subr.mxu0 0.0
  %506 = vmatpush1.msra.mxu0 %v402
  %507 = vmatprep.subr.mxu0 0.0
  %508 = vmatpush1.msra.mxu0 %v401
  %509 = vmatprep.subr.mxu0 0.0
  %510 = vmatpush1.msra.mxu0 %v400
  %511 = vmatprep.subr.mxu0 0.0
  %512 = vmatpush2.msra.mxu0 %v431
  %513 = vmatprep.subr.mxu0 0.0
  %514 = vmatpush2.msra.mxu0 %v430
  %515 = vmatprep.subr.mxu0 0.0
  %516 = vmatpush2.msra.mxu0 %v429
  %517 = vmatprep.subr.mxu0 0.0
  %518 = vmatpush2.msra.mxu0 %v428
  %519 = vmatprep.subr.mxu0 0.0
  %520 = vmatpush2.msra.mxu0 %v427
  %521 = vmatprep.subr.mxu0 0.0
  %522 = vmatpush2.msra.mxu0 %v426
  %523 = vmatprep.subr.mxu0 0.0
  %524 = vmatpush2.msra.mxu0 %v425
  %525 = vmatprep.subr.mxu0 0.0
  %526 = vmatpush2.msra.mxu0 %v424
  %527 = vmatprep.subr.mxu0 0.0
  %528 = vmatpush2.msra.mxu0 %v423
  %529 = vmatprep.subr.mxu0 0.0
  %530 = vmatpush2.msra.mxu0 %v422
  %531 = vmatprep.subr.mxu0 0.0
  %532 = vmatpush2.msra.mxu0 %v421
  %533 = vmatprep.subr.mxu0 0.0
  %534 = vmatpush2.msra.mxu0 %v420
  %535 = vmatprep.subr.mxu0 0.0
  %536 = vmatpush2.msra.mxu0 %v419
  %537 = vmatprep.subr.mxu0 0.0
  %538 = vmatpush2.msra.mxu0 %v418
  %539 = vmatprep.subr.mxu0 0.0
  %540 = vmatpush2.msra.mxu0 %v417
  %541 = vmatprep.subr.mxu0 0.0
  %542 = vmatpush2.msra.mxu0 %v416
  %543 = vmatprep.mubr.f32.mxu0 %v437
  %544 = vmatmul.mubr.f32.gmra.mxu0 %v436
  %v545 = vpop.f32.mrf.mxu0
  %v546 = vadd.f32 0.0, %v545
  %v547 = vpop.f32.mrf.mxu0
  %548 = vmatprep.mubr.f32.mxu0 %v440
  %549 = vmatmul.mubr.f32.gmra.mxu0 %v439
  %v550 = vpop.f32.mrf.mxu0
  %v551 = vadd.f32 0.0, %v550
  %v552 = vpop.f32.mrf.mxu0
  %553 = vmatprep.mubr.f32.mxu0 %v443
  %554 = vmatmul.mubr.f32.gmra.mxu0 %v442
  %v555 = vpop.f32.mrf.mxu0
  %v556 = vadd.f32 0.0, %v555
  %v557 = vpop.f32.mrf.mxu0
  %558 = vmatprep.mubr.f32.mxu0 %v446
  %559 = vmatmul.mubr.f32.gmra.mxu0 %v445
  %v560 = vpop.f32.mrf.mxu0
  %v561 = vadd.f32 0.0, %v560
  %v562 = vpop.f32.mrf.mxu0
  %563 = vmatprep.mubr.f32.mxu0 %v449
  %564 = vmatmul.mubr.f32.gmra.mxu0 %v448
  %v565 = vpop.f32.mrf.mxu0
  %v566 = vadd.f32 0.0, %v565
  %v567 = vpop.f32.mrf.mxu0
  %568 = vmatprep.mubr.f32.mxu0 %v452
  %569 = vmatmul.mubr.f32.gmra.mxu0 %v451
  %v570 = vpop.f32.mrf.mxu0
  %v571 = vadd.f32 0.0, %v570
  %v572 = vpop.f32.mrf.mxu0
  %573 = vmatprep.mubr.f32.mxu0 %v455
  %574 = vmatmul.mubr.f32.gmra.mxu0 %v454
  %v575 = vpop.f32.mrf.mxu0
  %v576 = vadd.f32 0.0, %v575
  %v577 = vpop.f32.mrf.mxu0
  %578 = vdwg.mxu0
  %579 = vmatprep.subr.mxu0 0.0
  %580 = vmatpush1.msra.mxu0 0.0
  %581 = vmatprep.subr.mxu0 0.0
  %582 = vmatpush1.msra.mxu0 0.0
  %583 = vmatprep.subr.mxu0 0.0
  %584 = vmatpush1.msra.mxu0 0.0
  %585 = vmatprep.subr.mxu0 0.0
  %586 = vmatpush1.msra.mxu0 0.0
  %587 = vmatprep.subr.mxu0 0.0
  %588 = vmatpush1.msra.mxu0 0.0
  %589 = vmatprep.subr.mxu0 0.0
  %590 = vmatpush1.msra.mxu0 0.0
  %591 = vmatprep.subr.mxu0 0.0
  %592 = vmatpush1.msra.mxu0 0.0
  %593 = vmatprep.subr.mxu0 0.0
  %594 = vmatpush1.msra.mxu0 0.0
  %595 = vmatprep.subr.mxu0 0.0
  %596 = vmatpush1.msra.mxu0 0.0
  %597 = vmatprep.subr.mxu0 0.0
  %598 = vmatpush1.msra.mxu0 0.0
  %599 = vmatprep.subr.mxu0 0.0
  %600 = vmatpush1.msra.mxu0 0.0
  %601 = vmatprep.subr.mxu0 0.0
  %602 = vmatpush1.msra.mxu0 0.0
  %603 = vmatprep.subr.mxu0 0.0
  %604 = vmatpush1.msra.mxu0 %v435
  %605 = vmatprep.subr.mxu0 0.0
  %606 = vmatpush1.msra.mxu0 %v434
  %607 = vmatprep.subr.mxu0 0.0
  %608 = vmatpush1.msra.mxu0 %v433
  %609 = vmatprep.subr.mxu0 0.0
  %610 = vmatpush1.msra.mxu0 %v432
  %611 = vmatprep.subr.mxu0 0.0
  %612 = vmatpush2.msra.mxu0 0.0
  %613 = vmatprep.subr.mxu0 0.0
  %614 = vmatpush2.msra.mxu0 0.0
  %615 = vmatprep.subr.mxu0 0.0
  %616 = vmatpush2.msra.mxu0 0.0
  %617 = vmatprep.subr.mxu0 0.0
  %618 = vmatpush2.msra.mxu0 0.0
  %619 = vmatprep.subr.mxu0 0.0
  %620 = vmatpush2.msra.mxu0 0.0
  %621 = vmatprep.subr.mxu0 0.0
  %622 = vmatpush2.msra.mxu0 0.0
  %623 = vmatprep.subr.mxu0 0.0
  %624 = vmatpush2.msra.mxu0 0.0
  %625 = vmatprep.subr.mxu0 0.0
  %626 = vmatpush2.msra.mxu0 0.0
  %627 = vmatprep.subr.mxu0 0.0
  %628 = vmatpush2.msra.mxu0 0.0
  %629 = vmatprep.subr.mxu0 0.0
  %630 = vmatpush2.msra.mxu0 0.0
  %631 = vmatprep.subr.mxu0 0.0
  %632 = vmatpush2.msra.mxu0 0.0
  %633 = vmatprep.subr.mxu0 0.0
  %634 = vmatpush2.msra.mxu0 0.0
  %635 = vmatprep.subr.mxu0 0.0
  %636 = vmatpush2.msra.mxu0 0.0
  %637 = vmatprep.subr.mxu0 0.0
  %638 = vmatpush2.msra.mxu0 0.0
  %639 = vmatprep.subr.mxu0 0.0
  %640 = vmatpush2.msra.mxu0 0.0
  %641 = vmatprep.subr.mxu0 0.0
  %642 = vmatpush2.msra.mxu0 0.0
  %643 = vmatprep.mubr.f32.mxu0 0.0
  %644 = vmatmul.mubr.f32.gmra.mxu0 %v459
  %v645 = vpop.f32.mrf.mxu0
  %v646 = vadd.f32 %v546, %v645
  %v647 = vpop.f32.mrf.mxu0
  %648 = vmatprep.mubr.f32.mxu0 0.0
  %649 = vmatmul.mubr.f32.gmra.mxu0 %v462
  %v650 = vpop.f32.mrf.mxu0
  %v651 = vadd.f32 %v551, %v650
  %v652 = vpop.f32.mrf.mxu0
  %653 = vmatprep.mubr.f32.mxu0 0.0
  %654 = vmatmul.mubr.f32.gmra.mxu0 %v465
  %v655 = vpop.f32.mrf.mxu0
  %v656 = vadd.f32 %v556, %v655
  %v657 = vpop.f32.mrf.mxu0
  %658 = vmatprep.mubr.f32.mxu0 0.0
  %659 = vmatmul.mubr.f32.gmra.mxu0 %v468
  %v660 = vpop.f32.mrf.mxu0
  %v661 = vadd.f32 %v561, %v660
  %v662 = vpop.f32.mrf.mxu0
  %663 = vmatprep.mubr.f32.mxu0 0.0
  %664 = vmatmul.mubr.f32.gmra.mxu0 %v471
  %v665 = vpop.f32.mrf.mxu0
  %v666 = vadd.f32 %v566, %v665
  %v667 = vpop.f32.mrf.mxu0
  %668 = vmatprep.mubr.f32.mxu0 0.0
  %669 = vmatmul.mubr.f32.gmra.mxu0 %v474
  %v670 = vpop.f32.mrf.mxu0
  %v671 = vadd.f32 %v571, %v670
  %v672 = vpop.f32.mrf.mxu0
  %673 = vmatprep.mubr.f32.mxu0 0.0
  %674 = vmatmul.mubr.f32.gmra.mxu0 %v477
  %v675 = vpop.f32.mrf.mxu0
  %v676 = vadd.f32 %v576, %v675
  %v677 = vpop.f32.mrf.mxu0
  %678 = vdwg.mxu0
  %s679 = scalar_lea.vmem %s3, 168
  %v680 = vld [vmem:[%s679] sm:$0xff]
  %v681 = vld [vmem:[%s679 + $0x8] sm:$0xff]
  %v682 = vld [vmem:[%s679 + $0x10] sm:$0xff]
  %v683 = vld [vmem:[%s679 + $0x18] sm:$0xff]
  %v684 = vld [vmem:[%s679 + $0x20] sm:$0xff]
  %v685 = vld [vmem:[%s679 + $0x28] sm:$0xff]
  %v686 = vld [vmem:[%s679 + $0x30] sm:$0xff]
  %v687 = vld [vmem:[%s679 + $0x38] sm:$0xff]
  %v688 = vld [vmem:[%s679 + $0x40] sm:$0xff]
  %v689 = vld [vmem:[%s679 + $0x48] sm:$0xff]
  %v690 = vld [vmem:[%s679 + $0x50] sm:$0xff]
  %v691 = vld [vmem:[%s679 + $0x58] sm:$0xff]
  %v692 = vld [vmem:[%s679 + $0x60] sm:$0xff]
  %v693 = vld [vmem:[%s679 + $0x68] sm:$0xff]
  %v694 = vld [vmem:[%s679 + $0x70] sm:$0xff]
  %v695 = vld [vmem:[%s679 + $0x78] sm:$0xff]
  %v696 = vld [vmem:[%s679 + $0x80] sm:$0xff]
  %v697 = vld [vmem:[%s679 + $0x88] sm:$0xff]
  %v698 = vld [vmem:[%s679 + $0x90] sm:$0x3]
  %v699 = vld [vmem:[%s679 + $0x98] sm:$0x3]
  %v700 = vld [vmem:[%s679 + $0xa0] sm:$0x3]
  %v702 = vsel %vm457, %v682, 0
  %v705 = vsel %vm457, %v685, 0
  %v708 = vsel %vm457, %v688, 0
  %v711 = vsel %vm457, %v691, 0
  %v714 = vsel %vm457, %v694, 0
  %v717 = vsel %vm457, %v697, 0
  %v720 = vsel %vm457, %v700, 0
  %722 = vmatprep.subr.mxu0 0.0
  %723 = vmatpush1.msra.mxu0 %v415
  %724 = vmatprep.subr.mxu0 0.0
  %725 = vmatpush1.msra.mxu0 %v414
  %726 = vmatprep.subr.mxu0 0.0
  %727 = vmatpush1.msra.mxu0 %v413
  %728 = vmatprep.subr.mxu0 0.0
  %729 = vmatpush1.msra.mxu0 %v412
  %730 = vmatprep.subr.mxu0 0.0
  %731 = vmatpush1.msra.mxu0 %v411
  %732 = vmatprep.subr.mxu0 0.0
  %733 = vmatpush1.msra.mxu0 %v410
  %734 = vmatprep.subr.mxu0 0.0
  %735 = vmatpush1.msra.mxu0 %v409
  %736 = vmatprep.subr.mxu0 0.0
  %737 = vmatpush1.msra.mxu0 %v408
  %738 = vmatprep.subr.mxu0 0.0
  %739 = vmatpush1.msra.mxu0 %v407
  %740 = vmatprep.subr.mxu0 0.0
  %741 = vmatpush1.msra.mxu0 %v406
  %742 = vmatprep.subr.mxu0 0.0
  %743 = vmatpush1.msra.mxu0 %v405
  %744 = vmatprep.subr.mxu0 0.0
  %745 = vmatpush1.msra.mxu0 %v404
  %746 = vmatprep.subr.mxu0 0.0
  %747 = vmatpush1.msra.mxu0 %v403
  %748 = vmatprep.subr.mxu0 0.0
  %749 = vmatpush1.msra.mxu0 %v402
  %750 = vmatprep.subr.mxu0 0.0
  %751 = vmatpush1.msra.mxu0 %v401
  %752 = vmatprep.subr.mxu0 0.0
  %753 = vmatpush1.msra.mxu0 %v400
  %754 = vmatprep.subr.mxu0 0.0
  %755 = vmatpush2.msra.mxu0 %v431
  %756 = vmatprep.subr.mxu0 0.0
  %757 = vmatpush2.msra.mxu0 %v430
  %758 = vmatprep.subr.mxu0 0.0
  %759 = vmatpush2.msra.mxu0 %v429
  %760 = vmatprep.subr.mxu0 0.0
  %761 = vmatpush2.msra.mxu0 %v428
  %762 = vmatprep.subr.mxu0 0.0
  %763 = vmatpush2.msra.mxu0 %v427
  %764 = vmatprep.subr.mxu0 0.0
  %765 = vmatpush2.msra.mxu0 %v426
  %766 = vmatprep.subr.mxu0 0.0
  %767 = vmatpush2.msra.mxu0 %v425
  %768 = vmatprep.subr.mxu0 0.0
  %769 = vmatpush2.msra.mxu0 %v424
  %770 = vmatprep.subr.mxu0 0.0
  %771 = vmatpush2.msra.mxu0 %v423
  %772 = vmatprep.subr.mxu0 0.0
  %773 = vmatpush2.msra.mxu0 %v422
  %774 = vmatprep.subr.mxu0 0.0
  %775 = vmatpush2.msra.mxu0 %v421
  %776 = vmatprep.subr.mxu0 0.0
  %777 = vmatpush2.msra.mxu0 %v420
  %778 = vmatprep.subr.mxu0 0.0
  %779 = vmatpush2.msra.mxu0 %v419
  %780 = vmatprep.subr.mxu0 0.0
  %781 = vmatpush2.msra.mxu0 %v418
  %782 = vmatprep.subr.mxu0 0.0
  %783 = vmatpush2.msra.mxu0 %v417
  %784 = vmatprep.subr.mxu0 0.0
  %785 = vmatpush2.msra.mxu0 %v416
  %786 = vmatprep.mubr.f32.mxu0 %v681
  %787 = vmatmul.mubr.f32.gmra.mxu0 %v680
  %v788 = vpop.f32.mrf.mxu0
  %v789 = vadd.f32 0.0, %v788
  %v790 = vpop.f32.mrf.mxu0
  %791 = vmatprep.mubr.f32.mxu0 %v684
  %792 = vmatmul.mubr.f32.gmra.mxu0 %v683
  %v793 = vpop.f32.mrf.mxu0
  %v794 = vadd.f32 0.0, %v793
  %v795 = vpop.f32.mrf.mxu0
  %796 = vmatprep.mubr.f32.mxu0 %v687
  %797 = vmatmul.mubr.f32.gmra.mxu0 %v686
  %v798 = vpop.f32.mrf.mxu0
  %v799 = vadd.f32 0.0, %v798
  %v800 = vpop.f32.mrf.mxu0
  %801 = vmatprep.mubr.f32.mxu0 %v690
  %802 = vmatmul.mubr.f32.gmra.mxu0 %v689
  %v803 = vpop.f32.mrf.mxu0
  %v804 = vadd.f32 0.0, %v803
  %v805 = vpop.f32.mrf.mxu0
  %806 = vmatprep.mubr.f32.mxu0 %v693
  %807 = vmatmul.mubr.f32.gmra.mxu0 %v692
  %v808 = vpop.f32.mrf.mxu0
  %v809 = vadd.f32 0.0, %v808
  %v810 = vpop.f32.mrf.mxu0
  %811 = vmatprep.mubr.f32.mxu0 %v696
  %812 = vmatmul.mubr.f32.gmra.mxu0 %v695
  %v813 = vpop.f32.mrf.mxu0
  %v814 = vadd.f32 0.0, %v813
  %v815 = vpop.f32.mrf.mxu0
  %816 = vmatprep.mubr.f32.mxu0 %v699
  %817 = vmatmul.mubr.f32.gmra.mxu0 %v698
  %v818 = vpop.f32.mrf.mxu0
  %v819 = vadd.f32 0.0, %v818
  %v820 = vpop.f32.mrf.mxu0
  %821 = vdwg.mxu0
  %822 = vmatprep.subr.mxu0 0.0
  %823 = vmatpush1.msra.mxu0 0.0
  %824 = vmatprep.subr.mxu0 0.0
  %825 = vmatpush1.msra.mxu0 0.0
  %826 = vmatprep.subr.mxu0 0.0
  %827 = vmatpush1.msra.mxu0 0.0
  %828 = vmatprep.subr.mxu0 0.0
  %829 = vmatpush1.msra.mxu0 0.0
  %830 = vmatprep.subr.mxu0 0.0
  %831 = vmatpush1.msra.mxu0 0.0
  %832 = vmatprep.subr.mxu0 0.0
  %833 = vmatpush1.msra.mxu0 0.0
  %834 = vmatprep.subr.mxu0 0.0
  %835 = vmatpush1.msra.mxu0 0.0
  %836 = vmatprep.subr.mxu0 0.0
  %837 = vmatpush1.msra.mxu0 0.0
  %838 = vmatprep.subr.mxu0 0.0
  %839 = vmatpush1.msra.mxu0 0.0
  %840 = vmatprep.subr.mxu0 0.0
  %841 = vmatpush1.msra.mxu0 0.0
  %842 = vmatprep.subr.mxu0 0.0
  %843 = vmatpush1.msra.mxu0 0.0
  %844 = vmatprep.subr.mxu0 0.0
  %845 = vmatpush1.msra.mxu0 0.0
  %846 = vmatprep.subr.mxu0 0.0
  %847 = vmatpush1.msra.mxu0 %v435
  %848 = vmatprep.subr.mxu0 0.0
  %849 = vmatpush1.msra.mxu0 %v434
  %850 = vmatprep.subr.mxu0 0.0
  %851 = vmatpush1.msra.mxu0 %v433
  %852 = vmatprep.subr.mxu0 0.0
  %853 = vmatpush1.msra.mxu0 %v432
  %854 = vmatprep.subr.mxu0 0.0
  %855 = vmatpush2.msra.mxu0 0.0
  %856 = vmatprep.subr.mxu0 0.0
  %857 = vmatpush2.msra.mxu0 0.0
  %858 = vmatprep.subr.mxu0 0.0
  %859 = vmatpush2.msra.mxu0 0.0
  %860 = vmatprep.subr.mxu0 0.0
  %861 = vmatpush2.msra.mxu0 0.0
  %862 = vmatprep.subr.mxu0 0.0
  %863 = vmatpush2.msra.mxu0 0.0
  %864 = vmatprep.subr.mxu0 0.0
  %865 = vmatpush2.msra.mxu0 0.0
  %866 = vmatprep.subr.mxu0 0.0
  %867 = vmatpush2.msra.mxu0 0.0
  %868 = vmatprep.subr.mxu0 0.0
  %869 = vmatpush2.msra.mxu0 0.0
  %870 = vmatprep.subr.mxu0 0.0
  %871 = vmatpush2.msra.mxu0 0.0
  %872 = vmatprep.subr.mxu0 0.0
  %873 = vmatpush2.msra.mxu0 0.0
  %874 = vmatprep.subr.mxu0 0.0
  %875 = vmatpush2.msra.mxu0 0.0
  %876 = vmatprep.subr.mxu0 0.0
  %877 = vmatpush2.msra.mxu0 0.0
  %878 = vmatprep.subr.mxu0 0.0
  %879 = vmatpush2.msra.mxu0 0.0
  %880 = vmatprep.subr.mxu0 0.0
  %881 = vmatpush2.msra.mxu0 0.0
  %882 = vmatprep.subr.mxu0 0.0
  %883 = vmatpush2.msra.mxu0 0.0
  %884 = vmatprep.subr.mxu0 0.0
  %885 = vmatpush2.msra.mxu0 0.0
  %886 = vmatprep.mubr.f32.mxu0 0.0
  %887 = vmatmul.mubr.f32.gmra.mxu0 %v702
  %v888 = vpop.f32.mrf.mxu0
  %v889 = vadd.f32 %v789, %v888
  %v890 = vpop.f32.mrf.mxu0
  %891 = vmatprep.mubr.f32.mxu0 0.0
  %892 = vmatmul.mubr.f32.gmra.mxu0 %v705
  %v893 = vpop.f32.mrf.mxu0
  %v894 = vadd.f32 %v794, %v893
  %v895 = vpop.f32.mrf.mxu0
  %896 = vmatprep.mubr.f32.mxu0 0.0
  %897 = vmatmul.mubr.f32.gmra.mxu0 %v708
  %v898 = vpop.f32.mrf.mxu0
  %v899 = vadd.f32 %v799, %v898
  %v900 = vpop.f32.mrf.mxu0
  %901 = vmatprep.mubr.f32.mxu0 0.0
  %902 = vmatmul.mubr.f32.gmra.mxu0 %v711
  %v903 = vpop.f32.mrf.mxu0
  %v904 = vadd.f32 %v804, %v903
  %v905 = vpop.f32.mrf.mxu0
  %906 = vmatprep.mubr.f32.mxu0 0.0
  %907 = vmatmul.mubr.f32.gmra.mxu0 %v714
  %v908 = vpop.f32.mrf.mxu0
  %v909 = vadd.f32 %v809, %v908
  %v910 = vpop.f32.mrf.mxu0
  %911 = vmatprep.mubr.f32.mxu0 0.0
  %912 = vmatmul.mubr.f32.gmra.mxu0 %v717
  %v913 = vpop.f32.mrf.mxu0
  %v914 = vadd.f32 %v814, %v913
  %v915 = vpop.f32.mrf.mxu0
  %916 = vmatprep.mubr.f32.mxu0 0.0
  %917 = vmatmul.mubr.f32.gmra.mxu0 %v720
  %v918 = vpop.f32.mrf.mxu0
  %v919 = vadd.f32 %v819, %v918
  %v920 = vpop.f32.mrf.mxu0
  %921 = vdwg.mxu0
  %s922 = scalar_lea.vmem %s3, 336
  %v923 = vld [vmem:[%s922] sm:$0xff]
  %v924 = vld [vmem:[%s922 + $0x8] sm:$0xff]
  %v925 = vld [vmem:[%s922 + $0x10] sm:$0xff]
  %v926 = vld [vmem:[%s922 + $0x18] sm:$0xff]
  %v927 = vld [vmem:[%s922 + $0x20] sm:$0xff]
  %v928 = vld [vmem:[%s922 + $0x28] sm:$0xff]
  %v929 = vld [vmem:[%s922 + $0x30] sm:$0xff]
  %v930 = vld [vmem:[%s922 + $0x38] sm:$0xff]
  %v931 = vld [vmem:[%s922 + $0x40] sm:$0xff]
  %v932 = vld [vmem:[%s922 + $0x48] sm:$0xff]
  %v933 = vld [vmem:[%s922 + $0x50] sm:$0xff]
  %v934 = vld [vmem:[%s922 + $0x58] sm:$0xff]
  %v935 = vld [vmem:[%s922 + $0x60] sm:$0xff]
  %v936 = vld [vmem:[%s922 + $0x68] sm:$0xff]
  %v937 = vld [vmem:[%s922 + $0x70] sm:$0xff]
  %v938 = vld [vmem:[%s922 + $0x78] sm:$0xff]
  %v939 = vld [vmem:[%s922 + $0x80] sm:$0xff]
  %v940 = vld [vmem:[%s922 + $0x88] sm:$0xff]
  %v941 = vld [vmem:[%s922 + $0x90] sm:$0x3]
  %v942 = vld [vmem:[%s922 + $0x98] sm:$0x3]
  %v943 = vld [vmem:[%s922 + $0xa0] sm:$0x3]
  %v945 = vsel %vm457, %v925, 0
  %v948 = vsel %vm457, %v928, 0
  %v951 = vsel %vm457, %v931, 0
  %v954 = vsel %vm457, %v934, 0
  %v957 = vsel %vm457, %v937, 0
  %v960 = vsel %vm457, %v940, 0
  %v963 = vsel %vm457, %v943, 0
  %965 = vmatprep.subr.mxu0 0.0
  %966 = vmatpush1.msra.mxu0 %v415
  %967 = vmatprep.subr.mxu0 0.0
  %968 = vmatpush1.msra.mxu0 %v414
  %969 = vmatprep.subr.mxu0 0.0
  %970 = vmatpush1.msra.mxu0 %v413
  %971 = vmatprep.subr.mxu0 0.0
  %972 = vmatpush1.msra.mxu0 %v412
  %973 = vmatprep.subr.mxu0 0.0
  %974 = vmatpush1.msra.mxu0 %v411
  %975 = vmatprep.subr.mxu0 0.0
  %976 = vmatpush1.msra.mxu0 %v410
  %977 = vmatprep.subr.mxu0 0.0
  %978 = vmatpush1.msra.mxu0 %v409
  %979 = vmatprep.subr.mxu0 0.0
  %980 = vmatpush1.msra.mxu0 %v408
  %981 = vmatprep.subr.mxu0 0.0
  %982 = vmatpush1.msra.mxu0 %v407
  %983 = vmatprep.subr.mxu0 0.0
  %984 = vmatpush1.msra.mxu0 %v406
  %985 = vmatprep.subr.mxu0 0.0
  %986 = vmatpush1.msra.mxu0 %v405
  %987 = vmatprep.subr.mxu0 0.0
  %988 = vmatpush1.msra.mxu0 %v404
  %989 = vmatprep.subr.mxu0 0.0
  %990 = vmatpush1.msra.mxu0 %v403
  %991 = vmatprep.subr.mxu0 0.0
  %992 = vmatpush1.msra.mxu0 %v402
  %993 = vmatprep.subr.mxu0 0.0
  %994 = vmatpush1.msra.mxu0 %v401
  %995 = vmatprep.subr.mxu0 0.0
  %996 = vmatpush1.msra.mxu0 %v400
  %997 = vmatprep.subr.mxu0 0.0
  %998 = vmatpush2.msra.mxu0 %v431
  %999 = vmatprep.subr.mxu0 0.0
  %1000 = vmatpush2.msra.mxu0 %v430
  %1001 = vmatprep.subr.mxu0 0.0
  %1002 = vmatpush2.msra.mxu0 %v429
  %1003 = vmatprep.subr.mxu0 0.0
  %1004 = vmatpush2.msra.mxu0 %v428
  %1005 = vmatprep.subr.mxu0 0.0
  %1006 = vmatpush2.msra.mxu0 %v427
  %1007 = vmatprep.subr.mxu0 0.0
  %1008 = vmatpush2.msra.mxu0 %v426
  %1009 = vmatprep.subr.mxu0 0.0
  %1010 = vmatpush2.msra.mxu0 %v425
  %1011 = vmatprep.subr.mxu0 0.0
  %1012 = vmatpush2.msra.mxu0 %v424
  %1013 = vmatprep.subr.mxu0 0.0
  %1014 = vmatpush2.msra.mxu0 %v423
  %1015 = vmatprep.subr.mxu0 0.0
  %1016 = vmatpush2.msra.mxu0 %v422
  %1017 = vmatprep.subr.mxu0 0.0
  %1018 = vmatpush2.msra.mxu0 %v421
  %1019 = vmatprep.subr.mxu0 0.0
  %1020 = vmatpush2.msra.mxu0 %v420
  %1021 = vmatprep.subr.mxu0 0.0
  %1022 = vmatpush2.msra.mxu0 %v419
  %1023 = vmatprep.subr.mxu0 0.0
  %1024 = vmatpush2.msra.mxu0 %v418
  %1025 = vmatprep.subr.mxu0 0.0
  %1026 = vmatpush2.msra.mxu0 %v417
  %1027 = vmatprep.subr.mxu0 0.0
  %1028 = vmatpush2.msra.mxu0 %v416
  %1029 = vmatprep.mubr.f32.mxu0 %v924
  %1030 = vmatmul.mubr.f32.gmra.mxu0 %v923
  %v1031 = vpop.f32.mrf.mxu0
  %v1032 = vadd.f32 0.0, %v1031
  %v1033 = vpop.f32.mrf.mxu0
  %1034 = vmatprep.mubr.f32.mxu0 %v927
  %1035 = vmatmul.mubr.f32.gmra.mxu0 %v926
  %v1036 = vpop.f32.mrf.mxu0
  %v1037 = vadd.f32 0.0, %v1036
  %v1038 = vpop.f32.mrf.mxu0
  %1039 = vmatprep.mubr.f32.mxu0 %v930
  %1040 = vmatmul.mubr.f32.gmra.mxu0 %v929
  %v1041 = vpop.f32.mrf.mxu0
  %v1042 = vadd.f32 0.0, %v1041
  %v1043 = vpop.f32.mrf.mxu0
  %1044 = vmatprep.mubr.f32.mxu0 %v933
  %1045 = vmatmul.mubr.f32.gmra.mxu0 %v932
  %v1046 = vpop.f32.mrf.mxu0
  %v1047 = vadd.f32 0.0, %v1046
  %v1048 = vpop.f32.mrf.mxu0
  %1049 = vmatprep.mubr.f32.mxu0 %v936
  %1050 = vmatmul.mubr.f32.gmra.mxu0 %v935
  %v1051 = vpop.f32.mrf.mxu0
  %v1052 = vadd.f32 0.0, %v1051
  %v1053 = vpop.f32.mrf.mxu0
  %1054 = vmatprep.mubr.f32.mxu0 %v939
  %1055 = vmatmul.mubr.f32.gmra.mxu0 %v938
  %v1056 = vpop.f32.mrf.mxu0
  %v1057 = vadd.f32 0.0, %v1056
  %v1058 = vpop.f32.mrf.mxu0
  %1059 = vmatprep.mubr.f32.mxu0 %v942
  %1060 = vmatmul.mubr.f32.gmra.mxu0 %v941
  %v1061 = vpop.f32.mrf.mxu0
  %v1062 = vadd.f32 0.0, %v1061
  %v1063 = vpop.f32.mrf.mxu0
  %1064 = vdwg.mxu0
  %1065 = vmatprep.subr.mxu0 0.0
  %1066 = vmatpush1.msra.mxu0 0.0
  %1067 = vmatprep.subr.mxu0 0.0
  %1068 = vmatpush1.msra.mxu0 0.0
  %1069 = vmatprep.subr.mxu0 0.0
  %1070 = vmatpush1.msra.mxu0 0.0
  %1071 = vmatprep.subr.mxu0 0.0
  %1072 = vmatpush1.msra.mxu0 0.0
  %1073 = vmatprep.subr.mxu0 0.0
  %1074 = vmatpush1.msra.mxu0 0.0
  %1075 = vmatprep.subr.mxu0 0.0
  %1076 = vmatpush1.msra.mxu0 0.0
  %1077 = vmatprep.subr.mxu0 0.0
  %1078 = vmatpush1.msra.mxu0 0.0
  %1079 = vmatprep.subr.mxu0 0.0
  %1080 = vmatpush1.msra.mxu0 0.0
  %1081 = vmatprep.subr.mxu0 0.0
  %1082 = vmatpush1.msra.mxu0 0.0
  %1083 = vmatprep.subr.mxu0 0.0
  %1084 = vmatpush1.msra.mxu0 0.0
  %1085 = vmatprep.subr.mxu0 0.0
  %1086 = vmatpush1.msra.mxu0 0.0
  %1087 = vmatprep.subr.mxu0 0.0
  %1088 = vmatpush1.msra.mxu0 0.0
  %1089 = vmatprep.subr.mxu0 0.0
  %1090 = vmatpush1.msra.mxu0 %v435
  %1091 = vmatprep.subr.mxu0 0.0
  %1092 = vmatpush1.msra.mxu0 %v434
  %1093 = vmatprep.subr.mxu0 0.0
  %1094 = vmatpush1.msra.mxu0 %v433
  %1095 = vmatprep.subr.mxu0 0.0
  %1096 = vmatpush1.msra.mxu0 %v432
  %1097 = vmatprep.subr.mxu0 0.0
  %1098 = vmatpush2.msra.mxu0 0.0
  %1099 = vmatprep.subr.mxu0 0.0
  %1100 = vmatpush2.msra.mxu0 0.0
  %1101 = vmatprep.subr.mxu0 0.0
  %1102 = vmatpush2.msra.mxu0 0.0
  %1103 = vmatprep.subr.mxu0 0.0
  %1104 = vmatpush2.msra.mxu0 0.0
  %1105 = vmatprep.subr.mxu0 0.0
  %1106 = vmatpush2.msra.mxu0 0.0
  %1107 = vmatprep.subr.mxu0 0.0
  %1108 = vmatpush2.msra.mxu0 0.0
  %1109 = vmatprep.subr.mxu0 0.0
  %1110 = vmatpush2.msra.mxu0 0.0
  %1111 = vmatprep.subr.mxu0 0.0
  %1112 = vmatpush2.msra.mxu0 0.0
  %1113 = vmatprep.subr.mxu0 0.0
  %1114 = vmatpush2.msra.mxu0 0.0
  %1115 = vmatprep.subr.mxu0 0.0
  %1116 = vmatpush2.msra.mxu0 0.0
  %1117 = vmatprep.subr.mxu0 0.0
  %1118 = vmatpush2.msra.mxu0 0.0
  %1119 = vmatprep.subr.mxu0 0.0
  %1120 = vmatpush2.msra.mxu0 0.0
  %1121 = vmatprep.subr.mxu0 0.0
  %1122 = vmatpush2.msra.mxu0 0.0
  %1123 = vmatprep.subr.mxu0 0.0
  %1124 = vmatpush2.msra.mxu0 0.0
  %1125 = vmatprep.subr.mxu0 0.0
  %1126 = vmatpush2.msra.mxu0 0.0
  %1127 = vmatprep.subr.mxu0 0.0
  %1128 = vmatpush2.msra.mxu0 0.0
  %1129 = vmatprep.mubr.f32.mxu0 0.0
  %1130 = vmatmul.mubr.f32.gmra.mxu0 %v945
  %v1131 = vpop.f32.mrf.mxu0
  %v1132 = vadd.f32 %v1032, %v1131
  %v1133 = vpop.f32.mrf.mxu0
  %1134 = vmatprep.mubr.f32.mxu0 0.0
  %1135 = vmatmul.mubr.f32.gmra.mxu0 %v948
  %v1136 = vpop.f32.mrf.mxu0
  %v1137 = vadd.f32 %v1037, %v1136
  %v1138 = vpop.f32.mrf.mxu0
  %1139 = vmatprep.mubr.f32.mxu0 0.0
  %1140 = vmatmul.mubr.f32.gmra.mxu0 %v951
  %v1141 = vpop.f32.mrf.mxu0
  %v1142 = vadd.f32 %v1042, %v1141
  %v1143 = vpop.f32.mrf.mxu0
  %1144 = vmatprep.mubr.f32.mxu0 0.0
  %1145 = vmatmul.mubr.f32.gmra.mxu0 %v954
  %v1146 = vpop.f32.mrf.mxu0
  %v1147 = vadd.f32 %v1047, %v1146
  %v1148 = vpop.f32.mrf.mxu0
  %1149 = vmatprep.mubr.f32.mxu0 0.0
  %1150 = vmatmul.mubr.f32.gmra.mxu0 %v957
  %v1151 = vpop.f32.mrf.mxu0
  %v1152 = vadd.f32 %v1052, %v1151
  %v1153 = vpop.f32.mrf.mxu0
  %1154 = vmatprep.mubr.f32.mxu0 0.0
  %1155 = vmatmul.mubr.f32.gmra.mxu0 %v960
  %v1156 = vpop.f32.mrf.mxu0
  %v1157 = vadd.f32 %v1057, %v1156
  %v1158 = vpop.f32.mrf.mxu0
  %1159 = vmatprep.mubr.f32.mxu0 0.0
  %1160 = vmatmul.mubr.f32.gmra.mxu0 %v963
  %v1161 = vpop.f32.mrf.mxu0
  %v1162 = vadd.f32 %v1062, %v1161
  %v1163 = vpop.f32.mrf.mxu0
  %1164 = vdwg.mxu0
  %s1165 = scalar_lea.vmem %s3, 504
  %v1166 = vld [vmem:[%s1165] sm:$0xff]
  %v1167 = vld [vmem:[%s1165 + $0x8] sm:$0xff]
  %v1168 = vld [vmem:[%s1165 + $0x10] sm:$0xff]
  %v1169 = vld [vmem:[%s1165 + $0x18] sm:$0xff]
  %v1170 = vld [vmem:[%s1165 + $0x20] sm:$0xff]
  %v1171 = vld [vmem:[%s1165 + $0x28] sm:$0xff]
  %v1172 = vld [vmem:[%s1165 + $0x30] sm:$0xff]
  %v1173 = vld [vmem:[%s1165 + $0x38] sm:$0xff]
  %v1174 = vld [vmem:[%s1165 + $0x40] sm:$0xff]
  %v1175 = vld [vmem:[%s1165 + $0x48] sm:$0xff]
  %v1176 = vld [vmem:[%s1165 + $0x50] sm:$0xff]
  %v1177 = vld [vmem:[%s1165 + $0x58] sm:$0xff]
  %v1178 = vld [vmem:[%s1165 + $0x60] sm:$0xff]
  %v1179 = vld [vmem:[%s1165 + $0x68] sm:$0xff]
  %v1180 = vld [vmem:[%s1165 + $0x70] sm:$0xff]
  %v1181 = vld [vmem:[%s1165 + $0x78] sm:$0xff]
  %v1182 = vld [vmem:[%s1165 + $0x80] sm:$0xff]
  %v1183 = vld [vmem:[%s1165 + $0x88] sm:$0xff]
  %v1184 = vld [vmem:[%s1165 + $0x90] sm:$0x3]
  %v1185 = vld [vmem:[%s1165 + $0x98] sm:$0x3]
  %v1186 = vld [vmem:[%s1165 + $0xa0] sm:$0x3]
  %v1188 = vsel %vm457, %v1168, 0
  %v1191 = vsel %vm457, %v1171, 0
  %v1194 = vsel %vm457, %v1174, 0
  %v1197 = vsel %vm457, %v1177, 0
  %v1200 = vsel %vm457, %v1180, 0
  %v1203 = vsel %vm457, %v1183, 0
  %v1206 = vsel %vm457, %v1186, 0
  %1208 = vmatprep.subr.mxu0 0.0
  %1209 = vmatpush1.msra.mxu0 %v415
  %1210 = vmatprep.subr.mxu0 0.0
  %1211 = vmatpush1.msra.mxu0 %v414
  %1212 = vmatprep.subr.mxu0 0.0
  %1213 = vmatpush1.msra.mxu0 %v413
  %1214 = vmatprep.subr.mxu0 0.0
  %1215 = vmatpush1.msra.mxu0 %v412
  %1216 = vmatprep.subr.mxu0 0.0
  %1217 = vmatpush1.msra.mxu0 %v411
  %1218 = vmatprep.subr.mxu0 0.0
  %1219 = vmatpush1.msra.mxu0 %v410
  %1220 = vmatprep.subr.mxu0 0.0
  %1221 = vmatpush1.msra.mxu0 %v409
  %1222 = vmatprep.subr.mxu0 0.0
  %1223 = vmatpush1.msra.mxu0 %v408
  %1224 = vmatprep.subr.mxu0 0.0
  %1225 = vmatpush1.msra.mxu0 %v407
  %1226 = vmatprep.subr.mxu0 0.0
  %1227 = vmatpush1.msra.mxu0 %v406
  %1228 = vmatprep.subr.mxu0 0.0
  %1229 = vmatpush1.msra.mxu0 %v405
  %1230 = vmatprep.subr.mxu0 0.0
  %1231 = vmatpush1.msra.mxu0 %v404
  %1232 = vmatprep.subr.mxu0 0.0
  %1233 = vmatpush1.msra.mxu0 %v403
  %1234 = vmatprep.subr.mxu0 0.0
  %1235 = vmatpush1.msra.mxu0 %v402
  %1236 = vmatprep.subr.mxu0 0.0
  %1237 = vmatpush1.msra.mxu0 %v401
  %1238 = vmatprep.subr.mxu0 0.0
  %1239 = vmatpush1.msra.mxu0 %v400
  %1240 = vmatprep.subr.mxu0 0.0
  %1241 = vmatpush2.msra.mxu0 %v431
  %1242 = vmatprep.subr.mxu0 0.0
  %1243 = vmatpush2.msra.mxu0 %v430
  %1244 = vmatprep.subr.mxu0 0.0
  %1245 = vmatpush2.msra.mxu0 %v429
  %1246 = vmatprep.subr.mxu0 0.0
  %1247 = vmatpush2.msra.mxu0 %v428
  %1248 = vmatprep.subr.mxu0 0.0
  %1249 = vmatpush2.msra.mxu0 %v427
  %1250 = vmatprep.subr.mxu0 0.0
  %1251 = vmatpush2.msra.mxu0 %v426
  %1252 = vmatprep.subr.mxu0 0.0
  %1253 = vmatpush2.msra.mxu0 %v425
  %1254 = vmatprep.subr.mxu0 0.0
  %1255 = vmatpush2.msra.mxu0 %v424
  %1256 = vmatprep.subr.mxu0 0.0
  %1257 = vmatpush2.msra.mxu0 %v423
  %1258 = vmatprep.subr.mxu0 0.0
  %1259 = vmatpush2.msra.mxu0 %v422
  %1260 = vmatprep.subr.mxu0 0.0
  %1261 = vmatpush2.msra.mxu0 %v421
  %1262 = vmatprep.subr.mxu0 0.0
  %1263 = vmatpush2.msra.mxu0 %v420
  %1264 = vmatprep.subr.mxu0 0.0
  %1265 = vmatpush2.msra.mxu0 %v419
  %1266 = vmatprep.subr.mxu0 0.0
  %1267 = vmatpush2.msra.mxu0 %v418
  %1268 = vmatprep.subr.mxu0 0.0
  %1269 = vmatpush2.msra.mxu0 %v417
  %1270 = vmatprep.subr.mxu0 0.0
  %1271 = vmatpush2.msra.mxu0 %v416
  %1272 = vmatprep.mubr.f32.mxu0 %v1167
  %1273 = vmatmul.mubr.f32.gmra.mxu0 %v1166
  %v1274 = vpop.f32.mrf.mxu0
  %v1275 = vadd.f32 0.0, %v1274
  %v1276 = vpop.f32.mrf.mxu0
  %1277 = vmatprep.mubr.f32.mxu0 %v1170
  %1278 = vmatmul.mubr.f32.gmra.mxu0 %v1169
  %v1279 = vpop.f32.mrf.mxu0
  %v1280 = vadd.f32 0.0, %v1279
  %v1281 = vpop.f32.mrf.mxu0
  %1282 = vmatprep.mubr.f32.mxu0 %v1173
  %1283 = vmatmul.mubr.f32.gmra.mxu0 %v1172
  %v1284 = vpop.f32.mrf.mxu0
  %v1285 = vadd.f32 0.0, %v1284
  %v1286 = vpop.f32.mrf.mxu0
  %1287 = vmatprep.mubr.f32.mxu0 %v1176
  %1288 = vmatmul.mubr.f32.gmra.mxu0 %v1175
  %v1289 = vpop.f32.mrf.mxu0
  %v1290 = vadd.f32 0.0, %v1289
  %v1291 = vpop.f32.mrf.mxu0
  %1292 = vmatprep.mubr.f32.mxu0 %v1179
  %1293 = vmatmul.mubr.f32.gmra.mxu0 %v1178
  %v1294 = vpop.f32.mrf.mxu0
  %v1295 = vadd.f32 0.0, %v1294
  %v1296 = vpop.f32.mrf.mxu0
  %1297 = vmatprep.mubr.f32.mxu0 %v1182
  %1298 = vmatmul.mubr.f32.gmra.mxu0 %v1181
  %v1299 = vpop.f32.mrf.mxu0
  %v1300 = vadd.f32 0.0, %v1299
  %v1301 = vpop.f32.mrf.mxu0
  %1302 = vmatprep.mubr.f32.mxu0 %v1185
  %1303 = vmatmul.mubr.f32.gmra.mxu0 %v1184
  %v1304 = vpop.f32.mrf.mxu0
  %v1305 = vadd.f32 0.0, %v1304
  %v1306 = vpop.f32.mrf.mxu0
  %1307 = vdwg.mxu0
  %1308 = vmatprep.subr.mxu0 0.0
  %1309 = vmatpush1.msra.mxu0 0.0
  %1310 = vmatprep.subr.mxu0 0.0
  %1311 = vmatpush1.msra.mxu0 0.0
  %1312 = vmatprep.subr.mxu0 0.0
  %1313 = vmatpush1.msra.mxu0 0.0
  %1314 = vmatprep.subr.mxu0 0.0
  %1315 = vmatpush1.msra.mxu0 0.0
  %1316 = vmatprep.subr.mxu0 0.0
  %1317 = vmatpush1.msra.mxu0 0.0
  %1318 = vmatprep.subr.mxu0 0.0
  %1319 = vmatpush1.msra.mxu0 0.0
  %1320 = vmatprep.subr.mxu0 0.0
  %1321 = vmatpush1.msra.mxu0 0.0
  %1322 = vmatprep.subr.mxu0 0.0
  %1323 = vmatpush1.msra.mxu0 0.0
  %1324 = vmatprep.subr.mxu0 0.0
  %1325 = vmatpush1.msra.mxu0 0.0
  %1326 = vmatprep.subr.mxu0 0.0
  %1327 = vmatpush1.msra.mxu0 0.0
  %1328 = vmatprep.subr.mxu0 0.0
  %1329 = vmatpush1.msra.mxu0 0.0
  %1330 = vmatprep.subr.mxu0 0.0
  %1331 = vmatpush1.msra.mxu0 0.0
  %1332 = vmatprep.subr.mxu0 0.0
  %1333 = vmatpush1.msra.mxu0 %v435
  %1334 = vmatprep.subr.mxu0 0.0
  %1335 = vmatpush1.msra.mxu0 %v434
  %1336 = vmatprep.subr.mxu0 0.0
  %1337 = vmatpush1.msra.mxu0 %v433
  %1338 = vmatprep.subr.mxu0 0.0
  %1339 = vmatpush1.msra.mxu0 %v432
  %1340 = vmatprep.subr.mxu0 0.0
  %1341 = vmatpush2.msra.mxu0 0.0
  %1342 = vmatprep.subr.mxu0 0.0
  %1343 = vmatpush2.msra.mxu0 0.0
  %1344 = vmatprep.subr.mxu0 0.0
  %1345 = vmatpush2.msra.mxu0 0.0
  %1346 = vmatprep.subr.mxu0 0.0
  %1347 = vmatpush2.msra.mxu0 0.0
  %1348 = vmatprep.subr.mxu0 0.0
  %1349 = vmatpush2.msra.mxu0 0.0
  %1350 = vmatprep.subr.mxu0 0.0
  %1351 = vmatpush2.msra.mxu0 0.0
  %1352 = vmatprep.subr.mxu0 0.0
  %1353 = vmatpush2.msra.mxu0 0.0
  %1354 = vmatprep.subr.mxu0 0.0
  %1355 = vmatpush2.msra.mxu0 0.0
  %1356 = vmatprep.subr.mxu0 0.0
  %1357 = vmatpush2.msra.mxu0 0.0
  %1358 = vmatprep.subr.mxu0 0.0
  %1359 = vmatpush2.msra.mxu0 0.0
  %1360 = vmatprep.subr.mxu0 0.0
  %1361 = vmatpush2.msra.mxu0 0.0
  %1362 = vmatprep.subr.mxu0 0.0
  %1363 = vmatpush2.msra.mxu0 0.0
  %1364 = vmatprep.subr.mxu0 0.0
  %1365 = vmatpush2.msra.mxu0 0.0
  %1366 = vmatprep.subr.mxu0 0.0
  %1367 = vmatpush2.msra.mxu0 0.0
  %1368 = vmatprep.subr.mxu0 0.0
  %1369 = vmatpush2.msra.mxu0 0.0
  %1370 = vmatprep.subr.mxu0 0.0
  %1371 = vmatpush2.msra.mxu0 0.0
  %1372 = vmatprep.mubr.f32.mxu0 0.0
  %1373 = vmatmul.mubr.f32.gmra.mxu0 %v1188
  %v1374 = vpop.f32.mrf.mxu0
  %v1375 = vadd.f32 %v1275, %v1374
  %v1376 = vpop.f32.mrf.mxu0
  %1377 = vmatprep.mubr.f32.mxu0 0.0
  %1378 = vmatmul.mubr.f32.gmra.mxu0 %v1191
  %v1379 = vpop.f32.mrf.mxu0
  %v1380 = vadd.f32 %v1280, %v1379
  %v1381 = vpop.f32.mrf.mxu0
  %1382 = vmatprep.mubr.f32.mxu0 0.0
  %1383 = vmatmul.mubr.f32.gmra.mxu0 %v1194
  %v1384 = vpop.f32.mrf.mxu0
  %v1385 = vadd.f32 %v1285, %v1384
  %v1386 = vpop.f32.mrf.mxu0
  %1387 = vmatprep.mubr.f32.mxu0 0.0
  %1388 = vmatmul.mubr.f32.gmra.mxu0 %v1197
  %v1389 = vpop.f32.mrf.mxu0
  %v1390 = vadd.f32 %v1290, %v1389
  %v1391 = vpop.f32.mrf.mxu0
  %1392 = vmatprep.mubr.f32.mxu0 0.0
  %1393 = vmatmul.mubr.f32.gmra.mxu0 %v1200
  %v1394 = vpop.f32.mrf.mxu0
  %v1395 = vadd.f32 %v1295, %v1394
  %v1396 = vpop.f32.mrf.mxu0
  %1397 = vmatprep.mubr.f32.mxu0 0.0
  %1398 = vmatmul.mubr.f32.gmra.mxu0 %v1203
  %v1399 = vpop.f32.mrf.mxu0
  %v1400 = vadd.f32 %v1300, %v1399
  %v1401 = vpop.f32.mrf.mxu0
  %1402 = vmatprep.mubr.f32.mxu0 0.0
  %1403 = vmatmul.mubr.f32.gmra.mxu0 %v1206
  %v1404 = vpop.f32.mrf.mxu0
  %v1405 = vadd.f32 %v1305, %v1404
  %v1406 = vpop.f32.mrf.mxu0
  %1407 = vdwg.mxu0
  %s1408 = scalar_lea.vmem %s3, 672
  %v1409 = vld [vmem:[%s1408] sm:$0xff]
  %v1410 = vld [vmem:[%s1408 + $0x8] sm:$0xff]
  %v1411 = vld [vmem:[%s1408 + $0x10] sm:$0xff]
  %v1412 = vld [vmem:[%s1408 + $0x18] sm:$0xff]
  %v1413 = vld [vmem:[%s1408 + $0x20] sm:$0xff]
  %v1414 = vld [vmem:[%s1408 + $0x28] sm:$0xff]
  %v1415 = vld [vmem:[%s1408 + $0x30] sm:$0xff]
  %v1416 = vld [vmem:[%s1408 + $0x38] sm:$0xff]
  %v1417 = vld [vmem:[%s1408 + $0x40] sm:$0xff]
  %v1418 = vld [vmem:[%s1408 + $0x48] sm:$0xff]
  %v1419 = vld [vmem:[%s1408 + $0x50] sm:$0xff]
  %v1420 = vld [vmem:[%s1408 + $0x58] sm:$0xff]
  %v1421 = vld [vmem:[%s1408 + $0x60] sm:$0xff]
  %v1422 = vld [vmem:[%s1408 + $0x68] sm:$0xff]
  %v1423 = vld [vmem:[%s1408 + $0x70] sm:$0xff]
  %v1424 = vld [vmem:[%s1408 + $0x78] sm:$0xff]
  %v1425 = vld [vmem:[%s1408 + $0x80] sm:$0xff]
  %v1426 = vld [vmem:[%s1408 + $0x88] sm:$0xff]
  %v1427 = vld [vmem:[%s1408 + $0x90] sm:$0x3]
  %v1428 = vld [vmem:[%s1408 + $0x98] sm:$0x3]
  %v1429 = vld [vmem:[%s1408 + $0xa0] sm:$0x3]
  %v1431 = vsel %vm457, %v1411, 0
  %v1434 = vsel %vm457, %v1414, 0
  %v1437 = vsel %vm457, %v1417, 0
  %v1440 = vsel %vm457, %v1420, 0
  %v1443 = vsel %vm457, %v1423, 0
  %v1446 = vsel %vm457, %v1426, 0
  %v1449 = vsel %vm457, %v1429, 0
  %1451 = vmatprep.subr.mxu0 0.0
  %1452 = vmatpush1.msra.mxu0 %v415
  %1453 = vmatprep.subr.mxu0 0.0
  %1454 = vmatpush1.msra.mxu0 %v414
  %1455 = vmatprep.subr.mxu0 0.0
  %1456 = vmatpush1.msra.mxu0 %v413
  %1457 = vmatprep.subr.mxu0 0.0
  %1458 = vmatpush1.msra.mxu0 %v412
  %1459 = vmatprep.subr.mxu0 0.0
  %1460 = vmatpush1.msra.mxu0 %v411
  %1461 = vmatprep.subr.mxu0 0.0
  %1462 = vmatpush1.msra.mxu0 %v410
  %1463 = vmatprep.subr.mxu0 0.0
  %1464 = vmatpush1.msra.mxu0 %v409
  %1465 = vmatprep.subr.mxu0 0.0
  %1466 = vmatpush1.msra.mxu0 %v408
  %1467 = vmatprep.subr.mxu0 0.0
  %1468 = vmatpush1.msra.mxu0 %v407
  %1469 = vmatprep.subr.mxu0 0.0
  %1470 = vmatpush1.msra.mxu0 %v406
  %1471 = vmatprep.subr.mxu0 0.0
  %1472 = vmatpush1.msra.mxu0 %v405
  %1473 = vmatprep.subr.mxu0 0.0
  %1474 = vmatpush1.msra.mxu0 %v404
  %1475 = vmatprep.subr.mxu0 0.0
  %1476 = vmatpush1.msra.mxu0 %v403
  %1477 = vmatprep.subr.mxu0 0.0
  %1478 = vmatpush1.msra.mxu0 %v402
  %1479 = vmatprep.subr.mxu0 0.0
  %1480 = vmatpush1.msra.mxu0 %v401
  %1481 = vmatprep.subr.mxu0 0.0
  %1482 = vmatpush1.msra.mxu0 %v400
  %1483 = vmatprep.subr.mxu0 0.0
  %1484 = vmatpush2.msra.mxu0 %v431
  %1485 = vmatprep.subr.mxu0 0.0
  %1486 = vmatpush2.msra.mxu0 %v430
  %1487 = vmatprep.subr.mxu0 0.0
  %1488 = vmatpush2.msra.mxu0 %v429
  %1489 = vmatprep.subr.mxu0 0.0
  %1490 = vmatpush2.msra.mxu0 %v428
  %1491 = vmatprep.subr.mxu0 0.0
  %1492 = vmatpush2.msra.mxu0 %v427
  %1493 = vmatprep.subr.mxu0 0.0
  %1494 = vmatpush2.msra.mxu0 %v426
  %1495 = vmatprep.subr.mxu0 0.0
  %1496 = vmatpush2.msra.mxu0 %v425
  %1497 = vmatprep.subr.mxu0 0.0
  %1498 = vmatpush2.msra.mxu0 %v424
  %1499 = vmatprep.subr.mxu0 0.0
  %1500 = vmatpush2.msra.mxu0 %v423
  %1501 = vmatprep.subr.mxu0 0.0
  %1502 = vmatpush2.msra.mxu0 %v422
  %1503 = vmatprep.subr.mxu0 0.0
  %1504 = vmatpush2.msra.mxu0 %v421
  %1505 = vmatprep.subr.mxu0 0.0
  %1506 = vmatpush2.msra.mxu0 %v420
  %1507 = vmatprep.subr.mxu0 0.0
  %1508 = vmatpush2.msra.mxu0 %v419
  %1509 = vmatprep.subr.mxu0 0.0
  %1510 = vmatpush2.msra.mxu0 %v418
  %1511 = vmatprep.subr.mxu0 0.0
  %1512 = vmatpush2.msra.mxu0 %v417
  %1513 = vmatprep.subr.mxu0 0.0
  %1514 = vmatpush2.msra.mxu0 %v416
  %1515 = vmatprep.mubr.f32.mxu0 %v1410
  %1516 = vmatmul.mubr.f32.gmra.mxu0 %v1409
  %v1517 = vpop.f32.mrf.mxu0
  %v1518 = vadd.f32 0.0, %v1517
  %v1519 = vpop.f32.mrf.mxu0
  %1520 = vmatprep.mubr.f32.mxu0 %v1413
  %1521 = vmatmul.mubr.f32.gmra.mxu0 %v1412
  %v1522 = vpop.f32.mrf.mxu0
  %v1523 = vadd.f32 0.0, %v1522
  %v1524 = vpop.f32.mrf.mxu0
  %1525 = vmatprep.mubr.f32.mxu0 %v1416
  %1526 = vmatmul.mubr.f32.gmra.mxu0 %v1415
  %v1527 = vpop.f32.mrf.mxu0
  %v1528 = vadd.f32 0.0, %v1527
  %v1529 = vpop.f32.mrf.mxu0
  %1530 = vmatprep.mubr.f32.mxu0 %v1419
  %1531 = vmatmul.mubr.f32.gmra.mxu0 %v1418
  %v1532 = vpop.f32.mrf.mxu0
  %v1533 = vadd.f32 0.0, %v1532
  %v1534 = vpop.f32.mrf.mxu0
  %1535 = vmatprep.mubr.f32.mxu0 %v1422
  %1536 = vmatmul.mubr.f32.gmra.mxu0 %v1421
  %v1537 = vpop.f32.mrf.mxu0
  %v1538 = vadd.f32 0.0, %v1537
  %v1539 = vpop.f32.mrf.mxu0
  %1540 = vmatprep.mubr.f32.mxu0 %v1425
  %1541 = vmatmul.mubr.f32.gmra.mxu0 %v1424
  %v1542 = vpop.f32.mrf.mxu0
  %v1543 = vadd.f32 0.0, %v1542
  %v1544 = vpop.f32.mrf.mxu0
  %1545 = vmatprep.mubr.f32.mxu0 %v1428
  %1546 = vmatmul.mubr.f32.gmra.mxu0 %v1427
  %v1547 = vpop.f32.mrf.mxu0
  %v1548 = vadd.f32 0.0, %v1547
  %v1549 = vpop.f32.mrf.mxu0
  %1550 = vdwg.mxu0
  %1551 = vmatprep.subr.mxu0 0.0
  %1552 = vmatpush1.msra.mxu0 0.0
  %1553 = vmatprep.subr.mxu0 0.0
  %1554 = vmatpush1.msra.mxu0 0.0
  %1555 = vmatprep.subr.mxu0 0.0
  %1556 = vmatpush1.msra.mxu0 0.0
  %1557 = vmatprep.subr.mxu0 0.0
  %1558 = vmatpush1.msra.mxu0 0.0
  %1559 = vmatprep.subr.mxu0 0.0
  %1560 = vmatpush1.msra.mxu0 0.0
  %1561 = vmatprep.subr.mxu0 0.0
  %1562 = vmatpush1.msra.mxu0 0.0
  %1563 = vmatprep.subr.mxu0 0.0
  %1564 = vmatpush1.msra.mxu0 0.0
  %1565 = vmatprep.subr.mxu0 0.0
  %1566 = vmatpush1.msra.mxu0 0.0
  %1567 = vmatprep.subr.mxu0 0.0
  %1568 = vmatpush1.msra.mxu0 0.0
  %1569 = vmatprep.subr.mxu0 0.0
  %1570 = vmatpush1.msra.mxu0 0.0
  %1571 = vmatprep.subr.mxu0 0.0
  %1572 = vmatpush1.msra.mxu0 0.0
  %1573 = vmatprep.subr.mxu0 0.0
  %1574 = vmatpush1.msra.mxu0 0.0
  %1575 = vmatprep.subr.mxu0 0.0
  %1576 = vmatpush1.msra.mxu0 %v435
  %1577 = vmatprep.subr.mxu0 0.0
  %1578 = vmatpush1.msra.mxu0 %v434
  %1579 = vmatprep.subr.mxu0 0.0
  %1580 = vmatpush1.msra.mxu0 %v433
  %1581 = vmatprep.subr.mxu0 0.0
  %1582 = vmatpush1.msra.mxu0 %v432
  %1583 = vmatprep.subr.mxu0 0.0
  %1584 = vmatpush2.msra.mxu0 0.0
  %1585 = vmatprep.subr.mxu0 0.0
  %1586 = vmatpush2.msra.mxu0 0.0
  %1587 = vmatprep.subr.mxu0 0.0
  %1588 = vmatpush2.msra.mxu0 0.0
  %1589 = vmatprep.subr.mxu0 0.0
  %1590 = vmatpush2.msra.mxu0 0.0
  %1591 = vmatprep.subr.mxu0 0.0
  %1592 = vmatpush2.msra.mxu0 0.0
  %1593 = vmatprep.subr.mxu0 0.0
  %1594 = vmatpush2.msra.mxu0 0.0
  %1595 = vmatprep.subr.mxu0 0.0
  %1596 = vmatpush2.msra.mxu0 0.0
  %1597 = vmatprep.subr.mxu0 0.0
  %1598 = vmatpush2.msra.mxu0 0.0
  %1599 = vmatprep.subr.mxu0 0.0
  %1600 = vmatpush2.msra.mxu0 0.0
  %1601 = vmatprep.subr.mxu0 0.0
  %1602 = vmatpush2.msra.mxu0 0.0
  %1603 = vmatprep.subr.mxu0 0.0
  %1604 = vmatpush2.msra.mxu0 0.0
  %1605 = vmatprep.subr.mxu0 0.0
  %1606 = vmatpush2.msra.mxu0 0.0
  %1607 = vmatprep.subr.mxu0 0.0
  %1608 = vmatpush2.msra.mxu0 0.0
  %1609 = vmatprep.subr.mxu0 0.0
  %1610 = vmatpush2.msra.mxu0 0.0
  %1611 = vmatprep.subr.mxu0 0.0
  %1612 = vmatpush2.msra.mxu0 0.0
  %1613 = vmatprep.subr.mxu0 0.0
  %1614 = vmatpush2.msra.mxu0 0.0
  %1615 = vmatprep.mubr.f32.mxu0 0.0
  %1616 = vmatmul.mubr.f32.gmra.mxu0 %v1431
  %v1617 = vpop.f32.mrf.mxu0
  %v1618 = vadd.f32 %v1518, %v1617
  %v1619 = vpop.f32.mrf.mxu0
  %1620 = vmatprep.mubr.f32.mxu0 0.0
  %1621 = vmatmul.mubr.f32.gmra.mxu0 %v1434
  %v1622 = vpop.f32.mrf.mxu0
  %v1623 = vadd.f32 %v1523, %v1622
  %v1624 = vpop.f32.mrf.mxu0
  %1625 = vmatprep.mubr.f32.mxu0 0.0
  %1626 = vmatmul.mubr.f32.gmra.mxu0 %v1437
  %v1627 = vpop.f32.mrf.mxu0
  %v1628 = vadd.f32 %v1528, %v1627
  %v1629 = vpop.f32.mrf.mxu0
  %1630 = vmatprep.mubr.f32.mxu0 0.0
  %1631 = vmatmul.mubr.f32.gmra.mxu0 %v1440
  %v1632 = vpop.f32.mrf.mxu0
  %v1633 = vadd.f32 %v1533, %v1632
  %v1634 = vpop.f32.mrf.mxu0
  %1635 = vmatprep.mubr.f32.mxu0 0.0
  %1636 = vmatmul.mubr.f32.gmra.mxu0 %v1443
  %v1637 = vpop.f32.mrf.mxu0
  %v1638 = vadd.f32 %v1538, %v1637
  %v1639 = vpop.f32.mrf.mxu0
  %1640 = vmatprep.mubr.f32.mxu0 0.0
  %1641 = vmatmul.mubr.f32.gmra.mxu0 %v1446
  %v1642 = vpop.f32.mrf.mxu0
  %v1643 = vadd.f32 %v1543, %v1642
  %v1644 = vpop.f32.mrf.mxu0
  %1645 = vmatprep.mubr.f32.mxu0 0.0
  %1646 = vmatmul.mubr.f32.gmra.mxu0 %v1449
  %v1647 = vpop.f32.mrf.mxu0
  %v1648 = vadd.f32 %v1548, %v1647
  %v1649 = vpop.f32.mrf.mxu0
  %1650 = vdwg.mxu0
  %s1651 = scalar_lea.vmem %s3, 840
  %v1652 = vld [vmem:[%s1651] sm:$0xff]
  %v1653 = vld [vmem:[%s1651 + $0x8] sm:$0xff]
  %v1654 = vld [vmem:[%s1651 + $0x10] sm:$0xff]
  %v1655 = vld [vmem:[%s1651 + $0x18] sm:$0xff]
  %v1656 = vld [vmem:[%s1651 + $0x20] sm:$0xff]
  %v1657 = vld [vmem:[%s1651 + $0x28] sm:$0xff]
  %v1658 = vld [vmem:[%s1651 + $0x30] sm:$0xff]
  %v1659 = vld [vmem:[%s1651 + $0x38] sm:$0xff]
  %v1660 = vld [vmem:[%s1651 + $0x40] sm:$0xff]
  %v1661 = vld [vmem:[%s1651 + $0x48] sm:$0xff]
  %v1662 = vld [vmem:[%s1651 + $0x50] sm:$0xff]
  %v1663 = vld [vmem:[%s1651 + $0x58] sm:$0xff]
  %v1664 = vld [vmem:[%s1651 + $0x60] sm:$0xff]
  %v1665 = vld [vmem:[%s1651 + $0x68] sm:$0xff]
  %v1666 = vld [vmem:[%s1651 + $0x70] sm:$0xff]
  %v1667 = vld [vmem:[%s1651 + $0x78] sm:$0xff]
  %v1668 = vld [vmem:[%s1651 + $0x80] sm:$0xff]
  %v1669 = vld [vmem:[%s1651 + $0x88] sm:$0xff]
  %v1670 = vld [vmem:[%s1651 + $0x90] sm:$0x3]
  %v1671 = vld [vmem:[%s1651 + $0x98] sm:$0x3]
  %v1672 = vld [vmem:[%s1651 + $0xa0] sm:$0x3]
  %v1674 = vsel %vm457, %v1654, 0
  %v1677 = vsel %vm457, %v1657, 0
  %v1680 = vsel %vm457, %v1660, 0
  %v1683 = vsel %vm457, %v1663, 0
  %v1686 = vsel %vm457, %v1666, 0
  %v1689 = vsel %vm457, %v1669, 0
  %v1692 = vsel %vm457, %v1672, 0
  %1694 = vmatprep.subr.mxu0 0.0
  %1695 = vmatpush1.msra.mxu0 %v415
  %1696 = vmatprep.subr.mxu0 0.0
  %1697 = vmatpush1.msra.mxu0 %v414
  %1698 = vmatprep.subr.mxu0 0.0
  %1699 = vmatpush1.msra.mxu0 %v413
  %1700 = vmatprep.subr.mxu0 0.0
  %1701 = vmatpush1.msra.mxu0 %v412
  %1702 = vmatprep.subr.mxu0 0.0
  %1703 = vmatpush1.msra.mxu0 %v411
  %1704 = vmatprep.subr.mxu0 0.0
  %1705 = vmatpush1.msra.mxu0 %v410
  %1706 = vmatprep.subr.mxu0 0.0
  %1707 = vmatpush1.msra.mxu0 %v409
  %1708 = vmatprep.subr.mxu0 0.0
  %1709 = vmatpush1.msra.mxu0 %v408
  %1710 = vmatprep.subr.mxu0 0.0
  %1711 = vmatpush1.msra.mxu0 %v407
  %1712 = vmatprep.subr.mxu0 0.0
  %1713 = vmatpush1.msra.mxu0 %v406
  %1714 = vmatprep.subr.mxu0 0.0
  %1715 = vmatpush1.msra.mxu0 %v405
  %1716 = vmatprep.subr.mxu0 0.0
  %1717 = vmatpush1.msra.mxu0 %v404
  %1718 = vmatprep.subr.mxu0 0.0
  %1719 = vmatpush1.msra.mxu0 %v403
  %1720 = vmatprep.subr.mxu0 0.0
  %1721 = vmatpush1.msra.mxu0 %v402
  %1722 = vmatprep.subr.mxu0 0.0
  %1723 = vmatpush1.msra.mxu0 %v401
  %1724 = vmatprep.subr.mxu0 0.0
  %1725 = vmatpush1.msra.mxu0 %v400
  %1726 = vmatprep.subr.mxu0 0.0
  %1727 = vmatpush2.msra.mxu0 %v431
  %1728 = vmatprep.subr.mxu0 0.0
  %1729 = vmatpush2.msra.mxu0 %v430
  %1730 = vmatprep.subr.mxu0 0.0
  %1731 = vmatpush2.msra.mxu0 %v429
  %1732 = vmatprep.subr.mxu0 0.0
  %1733 = vmatpush2.msra.mxu0 %v428
  %1734 = vmatprep.subr.mxu0 0.0
  %1735 = vmatpush2.msra.mxu0 %v427
  %1736 = vmatprep.subr.mxu0 0.0
  %1737 = vmatpush2.msra.mxu0 %v426
  %1738 = vmatprep.subr.mxu0 0.0
  %1739 = vmatpush2.msra.mxu0 %v425
  %1740 = vmatprep.subr.mxu0 0.0
  %1741 = vmatpush2.msra.mxu0 %v424
  %1742 = vmatprep.subr.mxu0 0.0
  %1743 = vmatpush2.msra.mxu0 %v423
  %1744 = vmatprep.subr.mxu0 0.0
  %1745 = vmatpush2.msra.mxu0 %v422
  %1746 = vmatprep.subr.mxu0 0.0
  %1747 = vmatpush2.msra.mxu0 %v421
  %1748 = vmatprep.subr.mxu0 0.0
  %1749 = vmatpush2.msra.mxu0 %v420
  %1750 = vmatprep.subr.mxu0 0.0
  %1751 = vmatpush2.msra.mxu0 %v419
  %1752 = vmatprep.subr.mxu0 0.0
  %1753 = vmatpush2.msra.mxu0 %v418
  %1754 = vmatprep.subr.mxu0 0.0
  %1755 = vmatpush2.msra.mxu0 %v417
  %1756 = vmatprep.subr.mxu0 0.0
  %1757 = vmatpush2.msra.mxu0 %v416
  %1758 = vmatprep.mubr.f32.mxu0 %v1653
  %1759 = vmatmul.mubr.f32.gmra.mxu0 %v1652
  %v1760 = vpop.f32.mrf.mxu0
  %v1761 = vadd.f32 0.0, %v1760
  %v1762 = vpop.f32.mrf.mxu0
  %1763 = vmatprep.mubr.f32.mxu0 %v1656
  %1764 = vmatmul.mubr.f32.gmra.mxu0 %v1655
  %v1765 = vpop.f32.mrf.mxu0
  %v1766 = vadd.f32 0.0, %v1765
  %v1767 = vpop.f32.mrf.mxu0
  %1768 = vmatprep.mubr.f32.mxu0 %v1659
  %1769 = vmatmul.mubr.f32.gmra.mxu0 %v1658
  %v1770 = vpop.f32.mrf.mxu0
  %v1771 = vadd.f32 0.0, %v1770
  %v1772 = vpop.f32.mrf.mxu0
  %1773 = vmatprep.mubr.f32.mxu0 %v1662
  %1774 = vmatmul.mubr.f32.gmra.mxu0 %v1661
  %v1775 = vpop.f32.mrf.mxu0
  %v1776 = vadd.f32 0.0, %v1775
  %v1777 = vpop.f32.mrf.mxu0
  %1778 = vmatprep.mubr.f32.mxu0 %v1665
  %1779 = vmatmul.mubr.f32.gmra.mxu0 %v1664
  %v1780 = vpop.f32.mrf.mxu0
  %v1781 = vadd.f32 0.0, %v1780
  %v1782 = vpop.f32.mrf.mxu0
  %1783 = vmatprep.mubr.f32.mxu0 %v1668
  %1784 = vmatmul.mubr.f32.gmra.mxu0 %v1667
  %v1785 = vpop.f32.mrf.mxu0
  %v1786 = vadd.f32 0.0, %v1785
  %v1787 = vpop.f32.mrf.mxu0
  %1788 = vmatprep.mubr.f32.mxu0 %v1671
  %1789 = vmatmul.mubr.f32.gmra.mxu0 %v1670
  %v1790 = vpop.f32.mrf.mxu0
  %v1791 = vadd.f32 0.0, %v1790
  %v1792 = vpop.f32.mrf.mxu0
  %1793 = vdwg.mxu0
  %1794 = vmatprep.subr.mxu0 0.0
  %1795 = vmatpush1.msra.mxu0 0.0
  %1796 = vmatprep.subr.mxu0 0.0
  %1797 = vmatpush1.msra.mxu0 0.0
  %1798 = vmatprep.subr.mxu0 0.0
  %1799 = vmatpush1.msra.mxu0 0.0
  %1800 = vmatprep.subr.mxu0 0.0
  %1801 = vmatpush1.msra.mxu0 0.0
  %1802 = vmatprep.subr.mxu0 0.0
  %1803 = vmatpush1.msra.mxu0 0.0
  %1804 = vmatprep.subr.mxu0 0.0
  %1805 = vmatpush1.msra.mxu0 0.0
  %1806 = vmatprep.subr.mxu0 0.0
  %1807 = vmatpush1.msra.mxu0 0.0
  %1808 = vmatprep.subr.mxu0 0.0
  %1809 = vmatpush1.msra.mxu0 0.0
  %1810 = vmatprep.subr.mxu0 0.0
  %1811 = vmatpush1.msra.mxu0 0.0
  %1812 = vmatprep.subr.mxu0 0.0
  %1813 = vmatpush1.msra.mxu0 0.0
  %1814 = vmatprep.subr.mxu0 0.0
  %1815 = vmatpush1.msra.mxu0 0.0
  %1816 = vmatprep.subr.mxu0 0.0
  %1817 = vmatpush1.msra.mxu0 0.0
  %1818 = vmatprep.subr.mxu0 0.0
  %1819 = vmatpush1.msra.mxu0 %v435
  %1820 = vmatprep.subr.mxu0 0.0
  %1821 = vmatpush1.msra.mxu0 %v434
  %1822 = vmatprep.subr.mxu0 0.0
  %1823 = vmatpush1.msra.mxu0 %v433
  %1824 = vmatprep.subr.mxu0 0.0
  %1825 = vmatpush1.msra.mxu0 %v432
  %1826 = vmatprep.subr.mxu0 0.0
  %1827 = vmatpush2.msra.mxu0 0.0
  %1828 = vmatprep.subr.mxu0 0.0
  %1829 = vmatpush2.msra.mxu0 0.0
  %1830 = vmatprep.subr.mxu0 0.0
  %1831 = vmatpush2.msra.mxu0 0.0
  %1832 = vmatprep.subr.mxu0 0.0
  %1833 = vmatpush2.msra.mxu0 0.0
  %1834 = vmatprep.subr.mxu0 0.0
  %1835 = vmatpush2.msra.mxu0 0.0
  %1836 = vmatprep.subr.mxu0 0.0
  %1837 = vmatpush2.msra.mxu0 0.0
  %1838 = vmatprep.subr.mxu0 0.0
  %1839 = vmatpush2.msra.mxu0 0.0
  %1840 = vmatprep.subr.mxu0 0.0
  %1841 = vmatpush2.msra.mxu0 0.0
  %1842 = vmatprep.subr.mxu0 0.0
  %1843 = vmatpush2.msra.mxu0 0.0
  %1844 = vmatprep.subr.mxu0 0.0
  %1845 = vmatpush2.msra.mxu0 0.0
  %1846 = vmatprep.subr.mxu0 0.0
  %1847 = vmatpush2.msra.mxu0 0.0
  %1848 = vmatprep.subr.mxu0 0.0
  %1849 = vmatpush2.msra.mxu0 0.0
  %1850 = vmatprep.subr.mxu0 0.0
  %1851 = vmatpush2.msra.mxu0 0.0
  %1852 = vmatprep.subr.mxu0 0.0
  %1853 = vmatpush2.msra.mxu0 0.0
  %1854 = vmatprep.subr.mxu0 0.0
  %1855 = vmatpush2.msra.mxu0 0.0
  %1856 = vmatprep.subr.mxu0 0.0
  %1857 = vmatpush2.msra.mxu0 0.0
  %1858 = vmatprep.mubr.f32.mxu0 0.0
  %1859 = vmatmul.mubr.f32.gmra.mxu0 %v1674
  %v1860 = vpop.f32.mrf.mxu0
  %v1861 = vadd.f32 %v1761, %v1860
  %v1862 = vpop.f32.mrf.mxu0
  %1863 = vmatprep.mubr.f32.mxu0 0.0
  %1864 = vmatmul.mubr.f32.gmra.mxu0 %v1677
  %v1865 = vpop.f32.mrf.mxu0
  %v1866 = vadd.f32 %v1766, %v1865
  %v1867 = vpop.f32.mrf.mxu0
  %1868 = vmatprep.mubr.f32.mxu0 0.0
  %1869 = vmatmul.mubr.f32.gmra.mxu0 %v1680
  %v1870 = vpop.f32.mrf.mxu0
  %v1871 = vadd.f32 %v1771, %v1870
  %v1872 = vpop.f32.mrf.mxu0
  %1873 = vmatprep.mubr.f32.mxu0 0.0
  %1874 = vmatmul.mubr.f32.gmra.mxu0 %v1683
  %v1875 = vpop.f32.mrf.mxu0
  %v1876 = vadd.f32 %v1776, %v1875
  %v1877 = vpop.f32.mrf.mxu0
  %1878 = vmatprep.mubr.f32.mxu0 0.0
  %1879 = vmatmul.mubr.f32.gmra.mxu0 %v1686
  %v1880 = vpop.f32.mrf.mxu0
  %v1881 = vadd.f32 %v1781, %v1880
  %v1882 = vpop.f32.mrf.mxu0
  %1883 = vmatprep.mubr.f32.mxu0 0.0
  %1884 = vmatmul.mubr.f32.gmra.mxu0 %v1689
  %v1885 = vpop.f32.mrf.mxu0
  %v1886 = vadd.f32 %v1786, %v1885
  %v1887 = vpop.f32.mrf.mxu0
  %1888 = vmatprep.mubr.f32.mxu0 0.0
  %1889 = vmatmul.mubr.f32.gmra.mxu0 %v1692
  %v1890 = vpop.f32.mrf.mxu0
  %v1891 = vadd.f32 %v1791, %v1890
  %v1892 = vpop.f32.mrf.mxu0
  %1893 = vdwg.mxu0
  %s1894 = scalar_lea.vmem %s3, 1008
  %v1895 = vld [vmem:[%s1894] sm:$0xff]
  %v1896 = vld [vmem:[%s1894 + $0x8] sm:$0xff]
  %v1897 = vld [vmem:[%s1894 + $0x10] sm:$0xff]
  %v1898 = vld [vmem:[%s1894 + $0x18] sm:$0xff]
  %v1899 = vld [vmem:[%s1894 + $0x20] sm:$0xff]
  %v1900 = vld [vmem:[%s1894 + $0x28] sm:$0xff]
  %v1901 = vld [vmem:[%s1894 + $0x30] sm:$0xff]
  %v1902 = vld [vmem:[%s1894 + $0x38] sm:$0xff]
  %v1903 = vld [vmem:[%s1894 + $0x40] sm:$0xff]
  %v1904 = vld [vmem:[%s1894 + $0x48] sm:$0xff]
  %v1905 = vld [vmem:[%s1894 + $0x50] sm:$0xff]
  %v1906 = vld [vmem:[%s1894 + $0x58] sm:$0xff]
  %v1907 = vld [vmem:[%s1894 + $0x60] sm:$0xff]
  %v1908 = vld [vmem:[%s1894 + $0x68] sm:$0xff]
  %v1909 = vld [vmem:[%s1894 + $0x70] sm:$0xff]
  %v1910 = vld [vmem:[%s1894 + $0x78] sm:$0xff]
  %v1911 = vld [vmem:[%s1894 + $0x80] sm:$0xff]
  %v1912 = vld [vmem:[%s1894 + $0x88] sm:$0xff]
  %v1913 = vld [vmem:[%s1894 + $0x90] sm:$0x3]
  %v1914 = vld [vmem:[%s1894 + $0x98] sm:$0x3]
  %v1915 = vld [vmem:[%s1894 + $0xa0] sm:$0x3]
  %v1917 = vsel %vm457, %v1897, 0
  %v1920 = vsel %vm457, %v1900, 0
  %v1923 = vsel %vm457, %v1903, 0
  %v1926 = vsel %vm457, %v1906, 0
  %v1929 = vsel %vm457, %v1909, 0
  %v1932 = vsel %vm457, %v1912, 0
  %v1935 = vsel %vm457, %v1915, 0
  %1937 = vmatprep.subr.mxu0 0.0
  %1938 = vmatpush1.msra.mxu0 %v415
  %1939 = vmatprep.subr.mxu0 0.0
  %1940 = vmatpush1.msra.mxu0 %v414
  %1941 = vmatprep.subr.mxu0 0.0
  %1942 = vmatpush1.msra.mxu0 %v413
  %1943 = vmatprep.subr.mxu0 0.0
  %1944 = vmatpush1.msra.mxu0 %v412
  %1945 = vmatprep.subr.mxu0 0.0
  %1946 = vmatpush1.msra.mxu0 %v411
  %1947 = vmatprep.subr.mxu0 0.0
  %1948 = vmatpush1.msra.mxu0 %v410
  %1949 = vmatprep.subr.mxu0 0.0
  %1950 = vmatpush1.msra.mxu0 %v409
  %1951 = vmatprep.subr.mxu0 0.0
  %1952 = vmatpush1.msra.mxu0 %v408
  %1953 = vmatprep.subr.mxu0 0.0
  %1954 = vmatpush1.msra.mxu0 %v407
  %1955 = vmatprep.subr.mxu0 0.0
  %1956 = vmatpush1.msra.mxu0 %v406
  %1957 = vmatprep.subr.mxu0 0.0
  %1958 = vmatpush1.msra.mxu0 %v405
  %1959 = vmatprep.subr.mxu0 0.0
  %1960 = vmatpush1.msra.mxu0 %v404
  %1961 = vmatprep.subr.mxu0 0.0
  %1962 = vmatpush1.msra.mxu0 %v403
  %1963 = vmatprep.subr.mxu0 0.0
  %1964 = vmatpush1.msra.mxu0 %v402
  %1965 = vmatprep.subr.mxu0 0.0
  %1966 = vmatpush1.msra.mxu0 %v401
  %1967 = vmatprep.subr.mxu0 0.0
  %1968 = vmatpush1.msra.mxu0 %v400
  %1969 = vmatprep.subr.mxu0 0.0
  %1970 = vmatpush2.msra.mxu0 %v431
  %1971 = vmatprep.subr.mxu0 0.0
  %1972 = vmatpush2.msra.mxu0 %v430
  %1973 = vmatprep.subr.mxu0 0.0
  %1974 = vmatpush2.msra.mxu0 %v429
  %1975 = vmatprep.subr.mxu0 0.0
  %1976 = vmatpush2.msra.mxu0 %v428
  %1977 = vmatprep.subr.mxu0 0.0
  %1978 = vmatpush2.msra.mxu0 %v427
  %1979 = vmatprep.subr.mxu0 0.0
  %1980 = vmatpush2.msra.mxu0 %v426
  %1981 = vmatprep.subr.mxu0 0.0
  %1982 = vmatpush2.msra.mxu0 %v425
  %1983 = vmatprep.subr.mxu0 0.0
  %1984 = vmatpush2.msra.mxu0 %v424
  %1985 = vmatprep.subr.mxu0 0.0
  %1986 = vmatpush2.msra.mxu0 %v423
  %1987 = vmatprep.subr.mxu0 0.0
  %1988 = vmatpush2.msra.mxu0 %v422
  %1989 = vmatprep.subr.mxu0 0.0
  %1990 = vmatpush2.msra.mxu0 %v421
  %1991 = vmatprep.subr.mxu0 0.0
  %1992 = vmatpush2.msra.mxu0 %v420
  %1993 = vmatprep.subr.mxu0 0.0
  %1994 = vmatpush2.msra.mxu0 %v419
  %1995 = vmatprep.subr.mxu0 0.0
  %1996 = vmatpush2.msra.mxu0 %v418
  %1997 = vmatprep.subr.mxu0 0.0
  %1998 = vmatpush2.msra.mxu0 %v417
  %1999 = vmatprep.subr.mxu0 0.0
  %2000 = vmatpush2.msra.mxu0 %v416
  %2001 = vmatprep.mubr.f32.mxu0 %v1896
  %2002 = vmatmul.mubr.f32.gmra.mxu0 %v1895
  %v2003 = vpop.f32.mrf.mxu0
  %v2004 = vadd.f32 0.0, %v2003
  %v2005 = vpop.f32.mrf.mxu0
  %2006 = vmatprep.mubr.f32.mxu0 %v1899
  %2007 = vmatmul.mubr.f32.gmra.mxu0 %v1898
  %v2008 = vpop.f32.mrf.mxu0
  %v2009 = vadd.f32 0.0, %v2008
  %v2010 = vpop.f32.mrf.mxu0
  %2011 = vmatprep.mubr.f32.mxu0 %v1902
  %2012 = vmatmul.mubr.f32.gmra.mxu0 %v1901
  %v2013 = vpop.f32.mrf.mxu0
  %v2014 = vadd.f32 0.0, %v2013
  %v2015 = vpop.f32.mrf.mxu0
  %2016 = vmatprep.mubr.f32.mxu0 %v1905
  %2017 = vmatmul.mubr.f32.gmra.mxu0 %v1904
  %v2018 = vpop.f32.mrf.mxu0
  %v2019 = vadd.f32 0.0, %v2018
  %v2020 = vpop.f32.mrf.mxu0
  %2021 = vmatprep.mubr.f32.mxu0 %v1908
  %2022 = vmatmul.mubr.f32.gmra.mxu0 %v1907
  %v2023 = vpop.f32.mrf.mxu0
  %v2024 = vadd.f32 0.0, %v2023
  %v2025 = vpop.f32.mrf.mxu0
  %2026 = vmatprep.mubr.f32.mxu0 %v1911
  %2027 = vmatmul.mubr.f32.gmra.mxu0 %v1910
  %v2028 = vpop.f32.mrf.mxu0
  %v2029 = vadd.f32 0.0, %v2028
  %v2030 = vpop.f32.mrf.mxu0
  %2031 = vmatprep.mubr.f32.mxu0 %v1914
  %2032 = vmatmul.mubr.f32.gmra.mxu0 %v1913
  %v2033 = vpop.f32.mrf.mxu0
  %v2034 = vadd.f32 0.0, %v2033
  %v2035 = vpop.f32.mrf.mxu0
  %2036 = vdwg.mxu0
  %2037 = vmatprep.subr.mxu0 0.0
  %2038 = vmatpush1.msra.mxu0 0.0
  %2039 = vmatprep.subr.mxu0 0.0
  %2040 = vmatpush1.msra.mxu0 0.0
  %2041 = vmatprep.subr.mxu0 0.0
  %2042 = vmatpush1.msra.mxu0 0.0
  %2043 = vmatprep.subr.mxu0 0.0
  %2044 = vmatpush1.msra.mxu0 0.0
  %2045 = vmatprep.subr.mxu0 0.0
  %2046 = vmatpush1.msra.mxu0 0.0
  %2047 = vmatprep.subr.mxu0 0.0
  %2048 = vmatpush1.msra.mxu0 0.0
  %2049 = vmatprep.subr.mxu0 0.0
  %2050 = vmatpush1.msra.mxu0 0.0
  %2051 = vmatprep.subr.mxu0 0.0
  %2052 = vmatpush1.msra.mxu0 0.0
  %2053 = vmatprep.subr.mxu0 0.0
  %2054 = vmatpush1.msra.mxu0 0.0
  %2055 = vmatprep.subr.mxu0 0.0
  %2056 = vmatpush1.msra.mxu0 0.0
  %2057 = vmatprep.subr.mxu0 0.0
  %2058 = vmatpush1.msra.mxu0 0.0
  %2059 = vmatprep.subr.mxu0 0.0
  %2060 = vmatpush1.msra.mxu0 0.0
  %2061 = vmatprep.subr.mxu0 0.0
  %2062 = vmatpush1.msra.mxu0 %v435
  %2063 = vmatprep.subr.mxu0 0.0
  %2064 = vmatpush1.msra.mxu0 %v434
  %2065 = vmatprep.subr.mxu0 0.0
  %2066 = vmatpush1.msra.mxu0 %v433
  %2067 = vmatprep.subr.mxu0 0.0
  %2068 = vmatpush1.msra.mxu0 %v432
  %2069 = vmatprep.subr.mxu0 0.0
  %2070 = vmatpush2.msra.mxu0 0.0
  %2071 = vmatprep.subr.mxu0 0.0
  %2072 = vmatpush2.msra.mxu0 0.0
  %2073 = vmatprep.subr.mxu0 0.0
  %2074 = vmatpush2.msra.mxu0 0.0
  %2075 = vmatprep.subr.mxu0 0.0
  %2076 = vmatpush2.msra.mxu0 0.0
  %2077 = vmatprep.subr.mxu0 0.0
  %2078 = vmatpush2.msra.mxu0 0.0
  %2079 = vmatprep.subr.mxu0 0.0
  %2080 = vmatpush2.msra.mxu0 0.0
  %2081 = vmatprep.subr.mxu0 0.0
  %2082 = vmatpush2.msra.mxu0 0.0
  %2083 = vmatprep.subr.mxu0 0.0
  %2084 = vmatpush2.msra.mxu0 0.0
  %2085 = vmatprep.subr.mxu0 0.0
  %2086 = vmatpush2.msra.mxu0 0.0
  %2087 = vmatprep.subr.mxu0 0.0
  %2088 = vmatpush2.msra.mxu0 0.0
  %2089 = vmatprep.subr.mxu0 0.0
  %2090 = vmatpush2.msra.mxu0 0.0
  %2091 = vmatprep.subr.mxu0 0.0
  %2092 = vmatpush2.msra.mxu0 0.0
  %2093 = vmatprep.subr.mxu0 0.0
  %2094 = vmatpush2.msra.mxu0 0.0
  %2095 = vmatprep.subr.mxu0 0.0
  %2096 = vmatpush2.msra.mxu0 0.0
  %2097 = vmatprep.subr.mxu0 0.0
  %2098 = vmatpush2.msra.mxu0 0.0
  %2099 = vmatprep.subr.mxu0 0.0
  %2100 = vmatpush2.msra.mxu0 0.0
  %2101 = vmatprep.mubr.f32.mxu0 0.0
  %2102 = vmatmul.mubr.f32.gmra.mxu0 %v1917
  %v2103 = vpop.f32.mrf.mxu0
  %v2104 = vadd.f32 %v2004, %v2103
  %v2105 = vpop.f32.mrf.mxu0
  %2106 = vmatprep.mubr.f32.mxu0 0.0
  %2107 = vmatmul.mubr.f32.gmra.mxu0 %v1920
  %v2108 = vpop.f32.mrf.mxu0
  %v2109 = vadd.f32 %v2009, %v2108
  %v2110 = vpop.f32.mrf.mxu0
  %2111 = vmatprep.mubr.f32.mxu0 0.0
  %2112 = vmatmul.mubr.f32.gmra.mxu0 %v1923
  %v2113 = vpop.f32.mrf.mxu0
  %v2114 = vadd.f32 %v2014, %v2113
  %v2115 = vpop.f32.mrf.mxu0
  %2116 = vmatprep.mubr.f32.mxu0 0.0
  %2117 = vmatmul.mubr.f32.gmra.mxu0 %v1926
  %v2118 = vpop.f32.mrf.mxu0
  %v2119 = vadd.f32 %v2019, %v2118
  %v2120 = vpop.f32.mrf.mxu0
  %2121 = vmatprep.mubr.f32.mxu0 0.0
  %2122 = vmatmul.mubr.f32.gmra.mxu0 %v1929
  %v2123 = vpop.f32.mrf.mxu0
  %v2124 = vadd.f32 %v2024, %v2123
  %v2125 = vpop.f32.mrf.mxu0
  %2126 = vmatprep.mubr.f32.mxu0 0.0
  %2127 = vmatmul.mubr.f32.gmra.mxu0 %v1932
  %v2128 = vpop.f32.mrf.mxu0
  %v2129 = vadd.f32 %v2029, %v2128
  %v2130 = vpop.f32.mrf.mxu0
  %2131 = vmatprep.mubr.f32.mxu0 0.0
  %2132 = vmatmul.mubr.f32.gmra.mxu0 %v1935
  %v2133 = vpop.f32.mrf.mxu0
  %v2134 = vadd.f32 %v2034, %v2133
  %v2135 = vpop.f32.mrf.mxu0
  %2136 = vdwg.mxu0
  %s2137 = scalar_lea.vmem %s3, 1176
  %v2138 = vld [vmem:[%s2137] sm:$0xff]
  %v2139 = vld [vmem:[%s2137 + $0x8] sm:$0xff]
  %v2140 = vld [vmem:[%s2137 + $0x10] sm:$0xff]
  %v2141 = vld [vmem:[%s2137 + $0x18] sm:$0xff]
  %v2142 = vld [vmem:[%s2137 + $0x20] sm:$0xff]
  %v2143 = vld [vmem:[%s2137 + $0x28] sm:$0xff]
  %v2144 = vld [vmem:[%s2137 + $0x30] sm:$0xff]
  %v2145 = vld [vmem:[%s2137 + $0x38] sm:$0xff]
  %v2146 = vld [vmem:[%s2137 + $0x40] sm:$0xff]
  %v2147 = vld [vmem:[%s2137 + $0x48] sm:$0xff]
  %v2148 = vld [vmem:[%s2137 + $0x50] sm:$0xff]
  %v2149 = vld [vmem:[%s2137 + $0x58] sm:$0xff]
  %v2150 = vld [vmem:[%s2137 + $0x60] sm:$0xff]
  %v2151 = vld [vmem:[%s2137 + $0x68] sm:$0xff]
  %v2152 = vld [vmem:[%s2137 + $0x70] sm:$0xff]
  %v2153 = vld [vmem:[%s2137 + $0x78] sm:$0xff]
  %v2154 = vld [vmem:[%s2137 + $0x80] sm:$0xff]
  %v2155 = vld [vmem:[%s2137 + $0x88] sm:$0xff]
  %v2156 = vld [vmem:[%s2137 + $0x90] sm:$0x3]
  %v2157 = vld [vmem:[%s2137 + $0x98] sm:$0x3]
  %v2158 = vld [vmem:[%s2137 + $0xa0] sm:$0x3]
  %v2160 = vsel %vm457, %v2140, 0
  %v2163 = vsel %vm457, %v2143, 0
  %v2166 = vsel %vm457, %v2146, 0
  %v2169 = vsel %vm457, %v2149, 0
  %v2172 = vsel %vm457, %v2152, 0
  %v2175 = vsel %vm457, %v2155, 0
  %v2178 = vsel %vm457, %v2158, 0
  %2180 = vmatprep.subr.mxu0 0.0
  %2181 = vmatpush1.msra.mxu0 %v415
  %2182 = vmatprep.subr.mxu0 0.0
  %2183 = vmatpush1.msra.mxu0 %v414
  %2184 = vmatprep.subr.mxu0 0.0
  %2185 = vmatpush1.msra.mxu0 %v413
  %2186 = vmatprep.subr.mxu0 0.0
  %2187 = vmatpush1.msra.mxu0 %v412
  %2188 = vmatprep.subr.mxu0 0.0
  %2189 = vmatpush1.msra.mxu0 %v411
  %2190 = vmatprep.subr.mxu0 0.0
  %2191 = vmatpush1.msra.mxu0 %v410
  %2192 = vmatprep.subr.mxu0 0.0
  %2193 = vmatpush1.msra.mxu0 %v409
  %2194 = vmatprep.subr.mxu0 0.0
  %2195 = vmatpush1.msra.mxu0 %v408
  %2196 = vmatprep.subr.mxu0 0.0
  %2197 = vmatpush1.msra.mxu0 %v407
  %2198 = vmatprep.subr.mxu0 0.0
  %2199 = vmatpush1.msra.mxu0 %v406
  %2200 = vmatprep.subr.mxu0 0.0
  %2201 = vmatpush1.msra.mxu0 %v405
  %2202 = vmatprep.subr.mxu0 0.0
  %2203 = vmatpush1.msra.mxu0 %v404
  %2204 = vmatprep.subr.mxu0 0.0
  %2205 = vmatpush1.msra.mxu0 %v403
  %2206 = vmatprep.subr.mxu0 0.0
  %2207 = vmatpush1.msra.mxu0 %v402
  %2208 = vmatprep.subr.mxu0 0.0
  %2209 = vmatpush1.msra.mxu0 %v401
  %2210 = vmatprep.subr.mxu0 0.0
  %2211 = vmatpush1.msra.mxu0 %v400
  %2212 = vmatprep.subr.mxu0 0.0
  %2213 = vmatpush2.msra.mxu0 %v431
  %2214 = vmatprep.subr.mxu0 0.0
  %2215 = vmatpush2.msra.mxu0 %v430
  %2216 = vmatprep.subr.mxu0 0.0
  %2217 = vmatpush2.msra.mxu0 %v429
  %2218 = vmatprep.subr.mxu0 0.0
  %2219 = vmatpush2.msra.mxu0 %v428
  %2220 = vmatprep.subr.mxu0 0.0
  %2221 = vmatpush2.msra.mxu0 %v427
  %2222 = vmatprep.subr.mxu0 0.0
  %2223 = vmatpush2.msra.mxu0 %v426
  %2224 = vmatprep.subr.mxu0 0.0
  %2225 = vmatpush2.msra.mxu0 %v425
  %2226 = vmatprep.subr.mxu0 0.0
  %2227 = vmatpush2.msra.mxu0 %v424
  %2228 = vmatprep.subr.mxu0 0.0
  %2229 = vmatpush2.msra.mxu0 %v423
  %2230 = vmatprep.subr.mxu0 0.0
  %2231 = vmatpush2.msra.mxu0 %v422
  %2232 = vmatprep.subr.mxu0 0.0
  %2233 = vmatpush2.msra.mxu0 %v421
  %2234 = vmatprep.subr.mxu0 0.0
  %2235 = vmatpush2.msra.mxu0 %v420
  %2236 = vmatprep.subr.mxu0 0.0
  %2237 = vmatpush2.msra.mxu0 %v419
  %2238 = vmatprep.subr.mxu0 0.0
  %2239 = vmatpush2.msra.mxu0 %v418
  %2240 = vmatprep.subr.mxu0 0.0
  %2241 = vmatpush2.msra.mxu0 %v417
  %2242 = vmatprep.subr.mxu0 0.0
  %2243 = vmatpush2.msra.mxu0 %v416
  %2244 = vmatprep.mubr.f32.mxu0 %v2139
  %2245 = vmatmul.mubr.f32.gmra.mxu0 %v2138
  %v2246 = vpop.f32.mrf.mxu0
  %v2247 = vadd.f32 0.0, %v2246
  %v2248 = vpop.f32.mrf.mxu0
  %2249 = vmatprep.mubr.f32.mxu0 %v2142
  %2250 = vmatmul.mubr.f32.gmra.mxu0 %v2141
  %v2251 = vpop.f32.mrf.mxu0
  %v2252 = vadd.f32 0.0, %v2251
  %v2253 = vpop.f32.mrf.mxu0
  %2254 = vmatprep.mubr.f32.mxu0 %v2145
  %2255 = vmatmul.mubr.f32.gmra.mxu0 %v2144
  %v2256 = vpop.f32.mrf.mxu0
  %v2257 = vadd.f32 0.0, %v2256
  %v2258 = vpop.f32.mrf.mxu0
  %2259 = vmatprep.mubr.f32.mxu0 %v2148
  %2260 = vmatmul.mubr.f32.gmra.mxu0 %v2147
  %v2261 = vpop.f32.mrf.mxu0
  %v2262 = vadd.f32 0.0, %v2261
  %v2263 = vpop.f32.mrf.mxu0
  %2264 = vmatprep.mubr.f32.mxu0 %v2151
  %2265 = vmatmul.mubr.f32.gmra.mxu0 %v2150
  %v2266 = vpop.f32.mrf.mxu0
  %v2267 = vadd.f32 0.0, %v2266
  %v2268 = vpop.f32.mrf.mxu0
  %2269 = vmatprep.mubr.f32.mxu0 %v2154
  %2270 = vmatmul.mubr.f32.gmra.mxu0 %v2153
  %v2271 = vpop.f32.mrf.mxu0
  %v2272 = vadd.f32 0.0, %v2271
  %v2273 = vpop.f32.mrf.mxu0
  %2274 = vmatprep.mubr.f32.mxu0 %v2157
  %2275 = vmatmul.mubr.f32.gmra.mxu0 %v2156
  %v2276 = vpop.f32.mrf.mxu0
  %v2277 = vadd.f32 0.0, %v2276
  %v2278 = vpop.f32.mrf.mxu0
  %2279 = vdwg.mxu0
  %2280 = vmatprep.subr.mxu0 0.0
  %2281 = vmatpush1.msra.mxu0 0.0
  %2282 = vmatprep.subr.mxu0 0.0
  %2283 = vmatpush1.msra.mxu0 0.0
  %2284 = vmatprep.subr.mxu0 0.0
  %2285 = vmatpush1.msra.mxu0 0.0
  %2286 = vmatprep.subr.mxu0 0.0
  %2287 = vmatpush1.msra.mxu0 0.0
  %2288 = vmatprep.subr.mxu0 0.0
  %2289 = vmatpush1.msra.mxu0 0.0
  %2290 = vmatprep.subr.mxu0 0.0
  %2291 = vmatpush1.msra.mxu0 0.0
  %2292 = vmatprep.subr.mxu0 0.0
  %2293 = vmatpush1.msra.mxu0 0.0
  %2294 = vmatprep.subr.mxu0 0.0
  %2295 = vmatpush1.msra.mxu0 0.0
  %2296 = vmatprep.subr.mxu0 0.0
  %2297 = vmatpush1.msra.mxu0 0.0
  %2298 = vmatprep.subr.mxu0 0.0
  %2299 = vmatpush1.msra.mxu0 0.0
  %2300 = vmatprep.subr.mxu0 0.0
  %2301 = vmatpush1.msra.mxu0 0.0
  %2302 = vmatprep.subr.mxu0 0.0
  %2303 = vmatpush1.msra.mxu0 0.0
  %2304 = vmatprep.subr.mxu0 0.0
  %2305 = vmatpush1.msra.mxu0 %v435
  %2306 = vmatprep.subr.mxu0 0.0
  %2307 = vmatpush1.msra.mxu0 %v434
  %2308 = vmatprep.subr.mxu0 0.0
  %2309 = vmatpush1.msra.mxu0 %v433
  %2310 = vmatprep.subr.mxu0 0.0
  %2311 = vmatpush1.msra.mxu0 %v432
  %2312 = vmatprep.subr.mxu0 0.0
  %2313 = vmatpush2.msra.mxu0 0.0
  %2314 = vmatprep.subr.mxu0 0.0
  %2315 = vmatpush2.msra.mxu0 0.0
  %2316 = vmatprep.subr.mxu0 0.0
  %2317 = vmatpush2.msra.mxu0 0.0
  %2318 = vmatprep.subr.mxu0 0.0
  %2319 = vmatpush2.msra.mxu0 0.0
  %2320 = vmatprep.subr.mxu0 0.0
  %2321 = vmatpush2.msra.mxu0 0.0
  %2322 = vmatprep.subr.mxu0 0.0
  %2323 = vmatpush2.msra.mxu0 0.0
  %2324 = vmatprep.subr.mxu0 0.0
  %2325 = vmatpush2.msra.mxu0 0.0
  %2326 = vmatprep.subr.mxu0 0.0
  %2327 = vmatpush2.msra.mxu0 0.0
  %2328 = vmatprep.subr.mxu0 0.0
  %2329 = vmatpush2.msra.mxu0 0.0
  %2330 = vmatprep.subr.mxu0 0.0
  %2331 = vmatpush2.msra.mxu0 0.0
  %2332 = vmatprep.subr.mxu0 0.0
  %2333 = vmatpush2.msra.mxu0 0.0
  %2334 = vmatprep.subr.mxu0 0.0
  %2335 = vmatpush2.msra.mxu0 0.0
  %2336 = vmatprep.subr.mxu0 0.0
  %2337 = vmatpush2.msra.mxu0 0.0
  %2338 = vmatprep.subr.mxu0 0.0
  %2339 = vmatpush2.msra.mxu0 0.0
  %2340 = vmatprep.subr.mxu0 0.0
  %2341 = vmatpush2.msra.mxu0 0.0
  %2342 = vmatprep.subr.mxu0 0.0
  %2343 = vmatpush2.msra.mxu0 0.0
  %2344 = vmatprep.mubr.f32.mxu0 0.0
  %2345 = vmatmul.mubr.f32.gmra.mxu0 %v2160
  %v2346 = vpop.f32.mrf.mxu0
  %v2347 = vadd.f32 %v2247, %v2346
  %v2348 = vpop.f32.mrf.mxu0
  %2349 = vmatprep.mubr.f32.mxu0 0.0
  %2350 = vmatmul.mubr.f32.gmra.mxu0 %v2163
  %v2351 = vpop.f32.mrf.mxu0
  %v2352 = vadd.f32 %v2252, %v2351
  %v2353 = vpop.f32.mrf.mxu0
  %2354 = vmatprep.mubr.f32.mxu0 0.0
  %2355 = vmatmul.mubr.f32.gmra.mxu0 %v2166
  %v2356 = vpop.f32.mrf.mxu0
  %v2357 = vadd.f32 %v2257, %v2356
  %v2358 = vpop.f32.mrf.mxu0
  %2359 = vmatprep.mubr.f32.mxu0 0.0
  %2360 = vmatmul.mubr.f32.gmra.mxu0 %v2169
  %v2361 = vpop.f32.mrf.mxu0
  %v2362 = vadd.f32 %v2262, %v2361
  %v2363 = vpop.f32.mrf.mxu0
  %2364 = vmatprep.mubr.f32.mxu0 0.0
  %2365 = vmatmul.mubr.f32.gmra.mxu0 %v2172
  %v2366 = vpop.f32.mrf.mxu0
  %v2367 = vadd.f32 %v2267, %v2366
  %v2368 = vpop.f32.mrf.mxu0
  %2369 = vmatprep.mubr.f32.mxu0 0.0
  %2370 = vmatmul.mubr.f32.gmra.mxu0 %v2175
  %v2371 = vpop.f32.mrf.mxu0
  %v2372 = vadd.f32 %v2272, %v2371
  %v2373 = vpop.f32.mrf.mxu0
  %2374 = vmatprep.mubr.f32.mxu0 0.0
  %2375 = vmatmul.mubr.f32.gmra.mxu0 %v2178
  %v2376 = vpop.f32.mrf.mxu0
  %v2377 = vadd.f32 %v2277, %v2376
  %v2378 = vpop.f32.mrf.mxu0
  %2379 = vdwg.mxu0
  %s2380 = scalar_lea.vmem %s3, 1344
  %v2381 = vld [vmem:[%s2380] sm:$0xff]
  %v2382 = vld [vmem:[%s2380 + $0x8] sm:$0xff]
  %v2383 = vld [vmem:[%s2380 + $0x10] sm:$0xff]
  %v2384 = vld [vmem:[%s2380 + $0x18] sm:$0xff]
  %v2385 = vld [vmem:[%s2380 + $0x20] sm:$0xff]
  %v2386 = vld [vmem:[%s2380 + $0x28] sm:$0xff]
  %v2387 = vld [vmem:[%s2380 + $0x30] sm:$0xff]
  %v2388 = vld [vmem:[%s2380 + $0x38] sm:$0xff]
  %v2389 = vld [vmem:[%s2380 + $0x40] sm:$0xff]
  %v2390 = vld [vmem:[%s2380 + $0x48] sm:$0xff]
  %v2391 = vld [vmem:[%s2380 + $0x50] sm:$0xff]
  %v2392 = vld [vmem:[%s2380 + $0x58] sm:$0xff]
  %v2393 = vld [vmem:[%s2380 + $0x60] sm:$0xff]
  %v2394 = vld [vmem:[%s2380 + $0x68] sm:$0xff]
  %v2395 = vld [vmem:[%s2380 + $0x70] sm:$0xff]
  %v2396 = vld [vmem:[%s2380 + $0x78] sm:$0xff]
  %v2397 = vld [vmem:[%s2380 + $0x80] sm:$0xff]
  %v2398 = vld [vmem:[%s2380 + $0x88] sm:$0xff]
  %v2399 = vld [vmem:[%s2380 + $0x90] sm:$0x3]
  %v2400 = vld [vmem:[%s2380 + $0x98] sm:$0x3]
  %v2401 = vld [vmem:[%s2380 + $0xa0] sm:$0x3]
  %v2403 = vsel %vm457, %v2383, 0
  %v2406 = vsel %vm457, %v2386, 0
  %v2409 = vsel %vm457, %v2389, 0
  %v2412 = vsel %vm457, %v2392, 0
  %v2415 = vsel %vm457, %v2395, 0
  %v2418 = vsel %vm457, %v2398, 0
  %v2421 = vsel %vm457, %v2401, 0
  %2423 = vmatprep.subr.mxu0 0.0
  %2424 = vmatpush1.msra.mxu0 %v415
  %2425 = vmatprep.subr.mxu0 0.0
  %2426 = vmatpush1.msra.mxu0 %v414
  %2427 = vmatprep.subr.mxu0 0.0
  %2428 = vmatpush1.msra.mxu0 %v413
  %2429 = vmatprep.subr.mxu0 0.0
  %2430 = vmatpush1.msra.mxu0 %v412
  %2431 = vmatprep.subr.mxu0 0.0
  %2432 = vmatpush1.msra.mxu0 %v411
  %2433 = vmatprep.subr.mxu0 0.0
  %2434 = vmatpush1.msra.mxu0 %v410
  %2435 = vmatprep.subr.mxu0 0.0
  %2436 = vmatpush1.msra.mxu0 %v409
  %2437 = vmatprep.subr.mxu0 0.0
  %2438 = vmatpush1.msra.mxu0 %v408
  %2439 = vmatprep.subr.mxu0 0.0
  %2440 = vmatpush1.msra.mxu0 %v407
  %2441 = vmatprep.subr.mxu0 0.0
  %2442 = vmatpush1.msra.mxu0 %v406
  %2443 = vmatprep.subr.mxu0 0.0
  %2444 = vmatpush1.msra.mxu0 %v405
  %2445 = vmatprep.subr.mxu0 0.0
  %2446 = vmatpush1.msra.mxu0 %v404
  %2447 = vmatprep.subr.mxu0 0.0
  %2448 = vmatpush1.msra.mxu0 %v403
  %2449 = vmatprep.subr.mxu0 0.0
  %2450 = vmatpush1.msra.mxu0 %v402
  %2451 = vmatprep.subr.mxu0 0.0
  %2452 = vmatpush1.msra.mxu0 %v401
  %2453 = vmatprep.subr.mxu0 0.0
  %2454 = vmatpush1.msra.mxu0 %v400
  %2455 = vmatprep.subr.mxu0 0.0
  %2456 = vmatpush2.msra.mxu0 %v431
  %2457 = vmatprep.subr.mxu0 0.0
  %2458 = vmatpush2.msra.mxu0 %v430
  %2459 = vmatprep.subr.mxu0 0.0
  %2460 = vmatpush2.msra.mxu0 %v429
  %2461 = vmatprep.subr.mxu0 0.0
  %2462 = vmatpush2.msra.mxu0 %v428
  %2463 = vmatprep.subr.mxu0 0.0
  %2464 = vmatpush2.msra.mxu0 %v427
  %2465 = vmatprep.subr.mxu0 0.0
  %2466 = vmatpush2.msra.mxu0 %v426
  %2467 = vmatprep.subr.mxu0 0.0
  %2468 = vmatpush2.msra.mxu0 %v425
  %2469 = vmatprep.subr.mxu0 0.0
  %2470 = vmatpush2.msra.mxu0 %v424
  %2471 = vmatprep.subr.mxu0 0.0
  %2472 = vmatpush2.msra.mxu0 %v423
  %2473 = vmatprep.subr.mxu0 0.0
  %2474 = vmatpush2.msra.mxu0 %v422
  %2475 = vmatprep.subr.mxu0 0.0
  %2476 = vmatpush2.msra.mxu0 %v421
  %2477 = vmatprep.subr.mxu0 0.0
  %2478 = vmatpush2.msra.mxu0 %v420
  %2479 = vmatprep.subr.mxu0 0.0
  %2480 = vmatpush2.msra.mxu0 %v419
  %2481 = vmatprep.subr.mxu0 0.0
  %2482 = vmatpush2.msra.mxu0 %v418
  %2483 = vmatprep.subr.mxu0 0.0
  %2484 = vmatpush2.msra.mxu0 %v417
  %2485 = vmatprep.subr.mxu0 0.0
  %2486 = vmatpush2.msra.mxu0 %v416
  %2487 = vmatprep.mubr.f32.mxu0 %v2382
  %2488 = vmatmul.mubr.f32.gmra.mxu0 %v2381
  %v2489 = vpop.f32.mrf.mxu0
  %v2490 = vadd.f32 0.0, %v2489
  %v2491 = vpop.f32.mrf.mxu0
  %2492 = vmatprep.mubr.f32.mxu0 %v2385
  %2493 = vmatmul.mubr.f32.gmra.mxu0 %v2384
  %v2494 = vpop.f32.mrf.mxu0
  %v2495 = vadd.f32 0.0, %v2494
  %v2496 = vpop.f32.mrf.mxu0
  %2497 = vmatprep.mubr.f32.mxu0 %v2388
  %2498 = vmatmul.mubr.f32.gmra.mxu0 %v2387
  %v2499 = vpop.f32.mrf.mxu0
  %v2500 = vadd.f32 0.0, %v2499
  %v2501 = vpop.f32.mrf.mxu0
  %2502 = vmatprep.mubr.f32.mxu0 %v2391
  %2503 = vmatmul.mubr.f32.gmra.mxu0 %v2390
  %v2504 = vpop.f32.mrf.mxu0
  %v2505 = vadd.f32 0.0, %v2504
  %v2506 = vpop.f32.mrf.mxu0
  %2507 = vmatprep.mubr.f32.mxu0 %v2394
  %2508 = vmatmul.mubr.f32.gmra.mxu0 %v2393
  %v2509 = vpop.f32.mrf.mxu0
  %v2510 = vadd.f32 0.0, %v2509
  %v2511 = vpop.f32.mrf.mxu0
  %2512 = vmatprep.mubr.f32.mxu0 %v2397
  %2513 = vmatmul.mubr.f32.gmra.mxu0 %v2396
  %v2514 = vpop.f32.mrf.mxu0
  %v2515 = vadd.f32 0.0, %v2514
  %v2516 = vpop.f32.mrf.mxu0
  %2517 = vmatprep.mubr.f32.mxu0 %v2400
  %2518 = vmatmul.mubr.f32.gmra.mxu0 %v2399
  %v2519 = vpop.f32.mrf.mxu0
  %v2520 = vadd.f32 0.0, %v2519
  %v2521 = vpop.f32.mrf.mxu0
  %2522 = vdwg.mxu0
  %2523 = vmatprep.subr.mxu0 0.0
  %2524 = vmatpush1.msra.mxu0 0.0
  %2525 = vmatprep.subr.mxu0 0.0
  %2526 = vmatpush1.msra.mxu0 0.0
  %2527 = vmatprep.subr.mxu0 0.0
  %2528 = vmatpush1.msra.mxu0 0.0
  %2529 = vmatprep.subr.mxu0 0.0
  %2530 = vmatpush1.msra.mxu0 0.0
  %2531 = vmatprep.subr.mxu0 0.0
  %2532 = vmatpush1.msra.mxu0 0.0
  %2533 = vmatprep.subr.mxu0 0.0
  %2534 = vmatpush1.msra.mxu0 0.0
  %2535 = vmatprep.subr.mxu0 0.0
  %2536 = vmatpush1.msra.mxu0 0.0
  %2537 = vmatprep.subr.mxu0 0.0
  %2538 = vmatpush1.msra.mxu0 0.0
  %2539 = vmatprep.subr.mxu0 0.0
  %2540 = vmatpush1.msra.mxu0 0.0
  %2541 = vmatprep.subr.mxu0 0.0
  %2542 = vmatpush1.msra.mxu0 0.0
  %2543 = vmatprep.subr.mxu0 0.0
  %2544 = vmatpush1.msra.mxu0 0.0
  %2545 = vmatprep.subr.mxu0 0.0
  %2546 = vmatpush1.msra.mxu0 0.0
  %2547 = vmatprep.subr.mxu0 0.0
  %2548 = vmatpush1.msra.mxu0 %v435
  %2549 = vmatprep.subr.mxu0 0.0
  %2550 = vmatpush1.msra.mxu0 %v434
  %2551 = vmatprep.subr.mxu0 0.0
  %2552 = vmatpush1.msra.mxu0 %v433
  %2553 = vmatprep.subr.mxu0 0.0
  %2554 = vmatpush1.msra.mxu0 %v432
  %2555 = vmatprep.subr.mxu0 0.0
  %2556 = vmatpush2.msra.mxu0 0.0
  %2557 = vmatprep.subr.mxu0 0.0
  %2558 = vmatpush2.msra.mxu0 0.0
  %2559 = vmatprep.subr.mxu0 0.0
  %2560 = vmatpush2.msra.mxu0 0.0
  %2561 = vmatprep.subr.mxu0 0.0
  %2562 = vmatpush2.msra.mxu0 0.0
  %2563 = vmatprep.subr.mxu0 0.0
  %2564 = vmatpush2.msra.mxu0 0.0
  %2565 = vmatprep.subr.mxu0 0.0
  %2566 = vmatpush2.msra.mxu0 0.0
  %2567 = vmatprep.subr.mxu0 0.0
  %2568 = vmatpush2.msra.mxu0 0.0
  %2569 = vmatprep.subr.mxu0 0.0
  %2570 = vmatpush2.msra.mxu0 0.0
  %2571 = vmatprep.subr.mxu0 0.0
  %2572 = vmatpush2.msra.mxu0 0.0
  %2573 = vmatprep.subr.mxu0 0.0
  %2574 = vmatpush2.msra.mxu0 0.0
  %2575 = vmatprep.subr.mxu0 0.0
  %2576 = vmatpush2.msra.mxu0 0.0
  %2577 = vmatprep.subr.mxu0 0.0
  %2578 = vmatpush2.msra.mxu0 0.0
  %2579 = vmatprep.subr.mxu0 0.0
  %2580 = vmatpush2.msra.mxu0 0.0
  %2581 = vmatprep.subr.mxu0 0.0
  %2582 = vmatpush2.msra.mxu0 0.0
  %2583 = vmatprep.subr.mxu0 0.0
  %2584 = vmatpush2.msra.mxu0 0.0
  %2585 = vmatprep.subr.mxu0 0.0
  %2586 = vmatpush2.msra.mxu0 0.0
  %2587 = vmatprep.mubr.f32.mxu0 0.0
  %2588 = vmatmul.mubr.f32.gmra.mxu0 %v2403
  %v2589 = vpop.f32.mrf.mxu0
  %v2590 = vadd.f32 %v2490, %v2589
  %v2591 = vpop.f32.mrf.mxu0
  %2592 = vmatprep.mubr.f32.mxu0 0.0
  %2593 = vmatmul.mubr.f32.gmra.mxu0 %v2406
  %v2594 = vpop.f32.mrf.mxu0
  %v2595 = vadd.f32 %v2495, %v2594
  %v2596 = vpop.f32.mrf.mxu0
  %2597 = vmatprep.mubr.f32.mxu0 0.0
  %2598 = vmatmul.mubr.f32.gmra.mxu0 %v2409
  %v2599 = vpop.f32.mrf.mxu0
  %v2600 = vadd.f32 %v2500, %v2599
  %v2601 = vpop.f32.mrf.mxu0
  %2602 = vmatprep.mubr.f32.mxu0 0.0
  %2603 = vmatmul.mubr.f32.gmra.mxu0 %v2412
  %v2604 = vpop.f32.mrf.mxu0
  %v2605 = vadd.f32 %v2505, %v2604
  %v2606 = vpop.f32.mrf.mxu0
  %2607 = vmatprep.mubr.f32.mxu0 0.0
  %2608 = vmatmul.mubr.f32.gmra.mxu0 %v2415
  %v2609 = vpop.f32.mrf.mxu0
  %v2610 = vadd.f32 %v2510, %v2609
  %v2611 = vpop.f32.mrf.mxu0
  %2612 = vmatprep.mubr.f32.mxu0 0.0
  %2613 = vmatmul.mubr.f32.gmra.mxu0 %v2418
  %v2614 = vpop.f32.mrf.mxu0
  %v2615 = vadd.f32 %v2515, %v2614
  %v2616 = vpop.f32.mrf.mxu0
  %2617 = vmatprep.mubr.f32.mxu0 0.0
  %2618 = vmatmul.mubr.f32.gmra.mxu0 %v2421
  %v2619 = vpop.f32.mrf.mxu0
  %v2620 = vadd.f32 %v2520, %v2619
  %v2621 = vpop.f32.mrf.mxu0
  %2622 = vdwg.mxu0
  %s2623 = scalar_lea.vmem %s3, 1512
  %v2624 = vld [vmem:[%s2623] sm:$0xff]
  %v2625 = vld [vmem:[%s2623 + $0x8] sm:$0xff]
  %v2626 = vld [vmem:[%s2623 + $0x10] sm:$0xff]
  %v2627 = vld [vmem:[%s2623 + $0x18] sm:$0xff]
  %v2628 = vld [vmem:[%s2623 + $0x20] sm:$0xff]
  %v2629 = vld [vmem:[%s2623 + $0x28] sm:$0xff]
  %v2630 = vld [vmem:[%s2623 + $0x30] sm:$0xff]
  %v2631 = vld [vmem:[%s2623 + $0x38] sm:$0xff]
  %v2632 = vld [vmem:[%s2623 + $0x40] sm:$0xff]
  %v2633 = vld [vmem:[%s2623 + $0x48] sm:$0xff]
  %v2634 = vld [vmem:[%s2623 + $0x50] sm:$0xff]
  %v2635 = vld [vmem:[%s2623 + $0x58] sm:$0xff]
  %v2636 = vld [vmem:[%s2623 + $0x60] sm:$0xff]
  %v2637 = vld [vmem:[%s2623 + $0x68] sm:$0xff]
  %v2638 = vld [vmem:[%s2623 + $0x70] sm:$0xff]
  %v2639 = vld [vmem:[%s2623 + $0x78] sm:$0xff]
  %v2640 = vld [vmem:[%s2623 + $0x80] sm:$0xff]
  %v2641 = vld [vmem:[%s2623 + $0x88] sm:$0xff]
  %v2642 = vld [vmem:[%s2623 + $0x90] sm:$0x3]
  %v2643 = vld [vmem:[%s2623 + $0x98] sm:$0x3]
  %v2644 = vld [vmem:[%s2623 + $0xa0] sm:$0x3]
  %v2646 = vsel %vm457, %v2626, 0
  %v2649 = vsel %vm457, %v2629, 0
  %v2652 = vsel %vm457, %v2632, 0
  %v2655 = vsel %vm457, %v2635, 0
  %v2658 = vsel %vm457, %v2638, 0
  %v2661 = vsel %vm457, %v2641, 0
  %v2664 = vsel %vm457, %v2644, 0
  %2666 = vmatprep.subr.mxu0 0.0
  %2667 = vmatpush1.msra.mxu0 %v415
  %2668 = vmatprep.subr.mxu0 0.0
  %2669 = vmatpush1.msra.mxu0 %v414
  %2670 = vmatprep.subr.mxu0 0.0
  %2671 = vmatpush1.msra.mxu0 %v413
  %2672 = vmatprep.subr.mxu0 0.0
  %2673 = vmatpush1.msra.mxu0 %v412
  %2674 = vmatprep.subr.mxu0 0.0
  %2675 = vmatpush1.msra.mxu0 %v411
  %2676 = vmatprep.subr.mxu0 0.0
  %2677 = vmatpush1.msra.mxu0 %v410
  %2678 = vmatprep.subr.mxu0 0.0
  %2679 = vmatpush1.msra.mxu0 %v409
  %2680 = vmatprep.subr.mxu0 0.0
  %2681 = vmatpush1.msra.mxu0 %v408
  %2682 = vmatprep.subr.mxu0 0.0
  %2683 = vmatpush1.msra.mxu0 %v407
  %2684 = vmatprep.subr.mxu0 0.0
  %2685 = vmatpush1.msra.mxu0 %v406
  %2686 = vmatprep.subr.mxu0 0.0
  %2687 = vmatpush1.msra.mxu0 %v405
  %2688 = vmatprep.subr.mxu0 0.0
  %2689 = vmatpush1.msra.mxu0 %v404
  %2690 = vmatprep.subr.mxu0 0.0
  %2691 = vmatpush1.msra.mxu0 %v403
  %2692 = vmatprep.subr.mxu0 0.0
  %2693 = vmatpush1.msra.mxu0 %v402
  %2694 = vmatprep.subr.mxu0 0.0
  %2695 = vmatpush1.msra.mxu0 %v401
  %2696 = vmatprep.subr.mxu0 0.0
  %2697 = vmatpush1.msra.mxu0 %v400
  %2698 = vmatprep.subr.mxu0 0.0
  %2699 = vmatpush2.msra.mxu0 %v431
  %2700 = vmatprep.subr.mxu0 0.0
  %2701 = vmatpush2.msra.mxu0 %v430
  %2702 = vmatprep.subr.mxu0 0.0
  %2703 = vmatpush2.msra.mxu0 %v429
  %2704 = vmatprep.subr.mxu0 0.0
  %2705 = vmatpush2.msra.mxu0 %v428
  %2706 = vmatprep.subr.mxu0 0.0
  %2707 = vmatpush2.msra.mxu0 %v427
  %2708 = vmatprep.subr.mxu0 0.0
  %2709 = vmatpush2.msra.mxu0 %v426
  %2710 = vmatprep.subr.mxu0 0.0
  %2711 = vmatpush2.msra.mxu0 %v425
  %2712 = vmatprep.subr.mxu0 0.0
  %2713 = vmatpush2.msra.mxu0 %v424
  %2714 = vmatprep.subr.mxu0 0.0
  %2715 = vmatpush2.msra.mxu0 %v423
  %2716 = vmatprep.subr.mxu0 0.0
  %2717 = vmatpush2.msra.mxu0 %v422
  %2718 = vmatprep.subr.mxu0 0.0
  %2719 = vmatpush2.msra.mxu0 %v421
  %2720 = vmatprep.subr.mxu0 0.0
  %2721 = vmatpush2.msra.mxu0 %v420
  %2722 = vmatprep.subr.mxu0 0.0
  %2723 = vmatpush2.msra.mxu0 %v419
  %2724 = vmatprep.subr.mxu0 0.0
  %2725 = vmatpush2.msra.mxu0 %v418
  %2726 = vmatprep.subr.mxu0 0.0
  %2727 = vmatpush2.msra.mxu0 %v417
  %2728 = vmatprep.subr.mxu0 0.0
  %2729 = vmatpush2.msra.mxu0 %v416
  %2730 = vmatprep.mubr.f32.mxu0 %v2625
  %2731 = vmatmul.mubr.f32.gmra.mxu0 %v2624
  %v2732 = vpop.f32.mrf.mxu0
  %v2733 = vadd.f32 0.0, %v2732
  %v2734 = vpop.f32.mrf.mxu0
  %2735 = vmatprep.mubr.f32.mxu0 %v2628
  %2736 = vmatmul.mubr.f32.gmra.mxu0 %v2627
  %v2737 = vpop.f32.mrf.mxu0
  %v2738 = vadd.f32 0.0, %v2737
  %v2739 = vpop.f32.mrf.mxu0
  %2740 = vmatprep.mubr.f32.mxu0 %v2631
  %2741 = vmatmul.mubr.f32.gmra.mxu0 %v2630
  %v2742 = vpop.f32.mrf.mxu0
  %v2743 = vadd.f32 0.0, %v2742
  %v2744 = vpop.f32.mrf.mxu0
  %2745 = vmatprep.mubr.f32.mxu0 %v2634
  %2746 = vmatmul.mubr.f32.gmra.mxu0 %v2633
  %v2747 = vpop.f32.mrf.mxu0
  %v2748 = vadd.f32 0.0, %v2747
  %v2749 = vpop.f32.mrf.mxu0
  %2750 = vmatprep.mubr.f32.mxu0 %v2637
  %2751 = vmatmul.mubr.f32.gmra.mxu0 %v2636
  %v2752 = vpop.f32.mrf.mxu0
  %v2753 = vadd.f32 0.0, %v2752
  %v2754 = vpop.f32.mrf.mxu0
  %2755 = vmatprep.mubr.f32.mxu0 %v2640
  %2756 = vmatmul.mubr.f32.gmra.mxu0 %v2639
  %v2757 = vpop.f32.mrf.mxu0
  %v2758 = vadd.f32 0.0, %v2757
  %v2759 = vpop.f32.mrf.mxu0
  %2760 = vmatprep.mubr.f32.mxu0 %v2643
  %2761 = vmatmul.mubr.f32.gmra.mxu0 %v2642
  %v2762 = vpop.f32.mrf.mxu0
  %v2763 = vadd.f32 0.0, %v2762
  %v2764 = vpop.f32.mrf.mxu0
  %2765 = vdwg.mxu0
  %2766 = vmatprep.subr.mxu0 0.0
  %2767 = vmatpush1.msra.mxu0 0.0
  %2768 = vmatprep.subr.mxu0 0.0
  %2769 = vmatpush1.msra.mxu0 0.0
  %2770 = vmatprep.subr.mxu0 0.0
  %2771 = vmatpush1.msra.mxu0 0.0
  %2772 = vmatprep.subr.mxu0 0.0
  %2773 = vmatpush1.msra.mxu0 0.0
  %2774 = vmatprep.subr.mxu0 0.0
  %2775 = vmatpush1.msra.mxu0 0.0
  %2776 = vmatprep.subr.mxu0 0.0
  %2777 = vmatpush1.msra.mxu0 0.0
  %2778 = vmatprep.subr.mxu0 0.0
  %2779 = vmatpush1.msra.mxu0 0.0
  %2780 = vmatprep.subr.mxu0 0.0
  %2781 = vmatpush1.msra.mxu0 0.0
  %2782 = vmatprep.subr.mxu0 0.0
  %2783 = vmatpush1.msra.mxu0 0.0
  %2784 = vmatprep.subr.mxu0 0.0
  %2785 = vmatpush1.msra.mxu0 0.0
  %2786 = vmatprep.subr.mxu0 0.0
  %2787 = vmatpush1.msra.mxu0 0.0
  %2788 = vmatprep.subr.mxu0 0.0
  %2789 = vmatpush1.msra.mxu0 0.0
  %2790 = vmatprep.subr.mxu0 0.0
  %2791 = vmatpush1.msra.mxu0 %v435
  %2792 = vmatprep.subr.mxu0 0.0
  %2793 = vmatpush1.msra.mxu0 %v434
  %2794 = vmatprep.subr.mxu0 0.0
  %2795 = vmatpush1.msra.mxu0 %v433
  %2796 = vmatprep.subr.mxu0 0.0
  %2797 = vmatpush1.msra.mxu0 %v432
  %2798 = vmatprep.subr.mxu0 0.0
  %2799 = vmatpush2.msra.mxu0 0.0
  %2800 = vmatprep.subr.mxu0 0.0
  %2801 = vmatpush2.msra.mxu0 0.0
  %2802 = vmatprep.subr.mxu0 0.0
  %2803 = vmatpush2.msra.mxu0 0.0
  %2804 = vmatprep.subr.mxu0 0.0
  %2805 = vmatpush2.msra.mxu0 0.0
  %2806 = vmatprep.subr.mxu0 0.0
  %2807 = vmatpush2.msra.mxu0 0.0
  %2808 = vmatprep.subr.mxu0 0.0
  %2809 = vmatpush2.msra.mxu0 0.0
  %2810 = vmatprep.subr.mxu0 0.0
  %2811 = vmatpush2.msra.mxu0 0.0
  %2812 = vmatprep.subr.mxu0 0.0
  %2813 = vmatpush2.msra.mxu0 0.0
  %2814 = vmatprep.subr.mxu0 0.0
  %2815 = vmatpush2.msra.mxu0 0.0
  %2816 = vmatprep.subr.mxu0 0.0
  %2817 = vmatpush2.msra.mxu0 0.0
  %2818 = vmatprep.subr.mxu0 0.0
  %2819 = vmatpush2.msra.mxu0 0.0
  %2820 = vmatprep.subr.mxu0 0.0
  %2821 = vmatpush2.msra.mxu0 0.0
  %2822 = vmatprep.subr.mxu0 0.0
  %2823 = vmatpush2.msra.mxu0 0.0
  %2824 = vmatprep.subr.mxu0 0.0
  %2825 = vmatpush2.msra.mxu0 0.0
  %2826 = vmatprep.subr.mxu0 0.0
  %2827 = vmatpush2.msra.mxu0 0.0
  %2828 = vmatprep.subr.mxu0 0.0
  %2829 = vmatpush2.msra.mxu0 0.0
  %2830 = vmatprep.mubr.f32.mxu0 0.0
  %2831 = vmatmul.mubr.f32.gmra.mxu0 %v2646
  %v2832 = vpop.f32.mrf.mxu0
  %v2833 = vadd.f32 %v2733, %v2832
  %v2834 = vpop.f32.mrf.mxu0
  %2835 = vmatprep.mubr.f32.mxu0 0.0
  %2836 = vmatmul.mubr.f32.gmra.mxu0 %v2649
  %v2837 = vpop.f32.mrf.mxu0
  %v2838 = vadd.f32 %v2738, %v2837
  %v2839 = vpop.f32.mrf.mxu0
  %2840 = vmatprep.mubr.f32.mxu0 0.0
  %2841 = vmatmul.mubr.f32.gmra.mxu0 %v2652
  %v2842 = vpop.f32.mrf.mxu0
  %v2843 = vadd.f32 %v2743, %v2842
  %v2844 = vpop.f32.mrf.mxu0
  %2845 = vmatprep.mubr.f32.mxu0 0.0
  %2846 = vmatmul.mubr.f32.gmra.mxu0 %v2655
  %v2847 = vpop.f32.mrf.mxu0
  %v2848 = vadd.f32 %v2748, %v2847
  %v2849 = vpop.f32.mrf.mxu0
  %2850 = vmatprep.mubr.f32.mxu0 0.0
  %2851 = vmatmul.mubr.f32.gmra.mxu0 %v2658
  %v2852 = vpop.f32.mrf.mxu0
  %v2853 = vadd.f32 %v2753, %v2852
  %v2854 = vpop.f32.mrf.mxu0
  %2855 = vmatprep.mubr.f32.mxu0 0.0
  %2856 = vmatmul.mubr.f32.gmra.mxu0 %v2661
  %v2857 = vpop.f32.mrf.mxu0
  %v2858 = vadd.f32 %v2758, %v2857
  %v2859 = vpop.f32.mrf.mxu0
  %2860 = vmatprep.mubr.f32.mxu0 0.0
  %2861 = vmatmul.mubr.f32.gmra.mxu0 %v2664
  %v2862 = vpop.f32.mrf.mxu0
  %v2863 = vadd.f32 %v2763, %v2862
  %v2864 = vpop.f32.mrf.mxu0
  %2865 = vdwg.mxu0
  %s2866 = scalar_lea.vmem %s3, 1680
  %v2867 = vld [vmem:[%s2866] sm:$0xff]
  %v2868 = vld [vmem:[%s2866 + $0x8] sm:$0xff]
  %v2869 = vld [vmem:[%s2866 + $0x10] sm:$0xff]
  %v2870 = vld [vmem:[%s2866 + $0x18] sm:$0xff]
  %v2871 = vld [vmem:[%s2866 + $0x20] sm:$0xff]
  %v2872 = vld [vmem:[%s2866 + $0x28] sm:$0xff]
  %v2873 = vld [vmem:[%s2866 + $0x30] sm:$0xff]
  %v2874 = vld [vmem:[%s2866 + $0x38] sm:$0xff]
  %v2875 = vld [vmem:[%s2866 + $0x40] sm:$0xff]
  %v2876 = vld [vmem:[%s2866 + $0x48] sm:$0xff]
  %v2877 = vld [vmem:[%s2866 + $0x50] sm:$0xff]
  %v2878 = vld [vmem:[%s2866 + $0x58] sm:$0xff]
  %v2879 = vld [vmem:[%s2866 + $0x60] sm:$0xff]
  %v2880 = vld [vmem:[%s2866 + $0x68] sm:$0xff]
  %v2881 = vld [vmem:[%s2866 + $0x70] sm:$0xff]
  %v2882 = vld [vmem:[%s2866 + $0x78] sm:$0xff]
  %v2883 = vld [vmem:[%s2866 + $0x80] sm:$0xff]
  %v2884 = vld [vmem:[%s2866 + $0x88] sm:$0xff]
  %v2885 = vld [vmem:[%s2866 + $0x90] sm:$0x3]
  %v2886 = vld [vmem:[%s2866 + $0x98] sm:$0x3]
  %v2887 = vld [vmem:[%s2866 + $0xa0] sm:$0x3]
  %v2889 = vsel %vm457, %v2869, 0
  %v2892 = vsel %vm457, %v2872, 0
  %v2895 = vsel %vm457, %v2875, 0
  %v2898 = vsel %vm457, %v2878, 0
  %v2901 = vsel %vm457, %v2881, 0
  %v2904 = vsel %vm457, %v2884, 0
  %v2907 = vsel %vm457, %v2887, 0
  %2909 = vmatprep.subr.mxu0 0.0
  %2910 = vmatpush1.msra.mxu0 %v415
  %2911 = vmatprep.subr.mxu0 0.0
  %2912 = vmatpush1.msra.mxu0 %v414
  %2913 = vmatprep.subr.mxu0 0.0
  %2914 = vmatpush1.msra.mxu0 %v413
  %2915 = vmatprep.subr.mxu0 0.0
  %2916 = vmatpush1.msra.mxu0 %v412
  %2917 = vmatprep.subr.mxu0 0.0
  %2918 = vmatpush1.msra.mxu0 %v411
  %2919 = vmatprep.subr.mxu0 0.0
  %2920 = vmatpush1.msra.mxu0 %v410
  %2921 = vmatprep.subr.mxu0 0.0
  %2922 = vmatpush1.msra.mxu0 %v409
  %2923 = vmatprep.subr.mxu0 0.0
  %2924 = vmatpush1.msra.mxu0 %v408
  %2925 = vmatprep.subr.mxu0 0.0
  %2926 = vmatpush1.msra.mxu0 %v407
  %2927 = vmatprep.subr.mxu0 0.0
  %2928 = vmatpush1.msra.mxu0 %v406
  %2929 = vmatprep.subr.mxu0 0.0
  %2930 = vmatpush1.msra.mxu0 %v405
  %2931 = vmatprep.subr.mxu0 0.0
  %2932 = vmatpush1.msra.mxu0 %v404
  %2933 = vmatprep.subr.mxu0 0.0
  %2934 = vmatpush1.msra.mxu0 %v403
  %2935 = vmatprep.subr.mxu0 0.0
  %2936 = vmatpush1.msra.mxu0 %v402
  %2937 = vmatprep.subr.mxu0 0.0
  %2938 = vmatpush1.msra.mxu0 %v401
  %2939 = vmatprep.subr.mxu0 0.0
  %2940 = vmatpush1.msra.mxu0 %v400
  %2941 = vmatprep.subr.mxu0 0.0
  %2942 = vmatpush2.msra.mxu0 %v431
  %2943 = vmatprep.subr.mxu0 0.0
  %2944 = vmatpush2.msra.mxu0 %v430
  %2945 = vmatprep.subr.mxu0 0.0
  %2946 = vmatpush2.msra.mxu0 %v429
  %2947 = vmatprep.subr.mxu0 0.0
  %2948 = vmatpush2.msra.mxu0 %v428
  %2949 = vmatprep.subr.mxu0 0.0
  %2950 = vmatpush2.msra.mxu0 %v427
  %2951 = vmatprep.subr.mxu0 0.0
  %2952 = vmatpush2.msra.mxu0 %v426
  %2953 = vmatprep.subr.mxu0 0.0
  %2954 = vmatpush2.msra.mxu0 %v425
  %2955 = vmatprep.subr.mxu0 0.0
  %2956 = vmatpush2.msra.mxu0 %v424
  %2957 = vmatprep.subr.mxu0 0.0
  %2958 = vmatpush2.msra.mxu0 %v423
  %2959 = vmatprep.subr.mxu0 0.0
  %2960 = vmatpush2.msra.mxu0 %v422
  %2961 = vmatprep.subr.mxu0 0.0
  %2962 = vmatpush2.msra.mxu0 %v421
  %2963 = vmatprep.subr.mxu0 0.0
  %2964 = vmatpush2.msra.mxu0 %v420
  %2965 = vmatprep.subr.mxu0 0.0
  %2966 = vmatpush2.msra.mxu0 %v419
  %2967 = vmatprep.subr.mxu0 0.0
  %2968 = vmatpush2.msra.mxu0 %v418
  %2969 = vmatprep.subr.mxu0 0.0
  %2970 = vmatpush2.msra.mxu0 %v417
  %2971 = vmatprep.subr.mxu0 0.0
  %2972 = vmatpush2.msra.mxu0 %v416
  %2973 = vmatprep.mubr.f32.mxu0 %v2868
  %2974 = vmatmul.mubr.f32.gmra.mxu0 %v2867
  %v2975 = vpop.f32.mrf.mxu0
  %v2976 = vadd.f32 0.0, %v2975
  %v2977 = vpop.f32.mrf.mxu0
  %2978 = vmatprep.mubr.f32.mxu0 %v2871
  %2979 = vmatmul.mubr.f32.gmra.mxu0 %v2870
  %v2980 = vpop.f32.mrf.mxu0
  %v2981 = vadd.f32 0.0, %v2980
  %v2982 = vpop.f32.mrf.mxu0
  %2983 = vmatprep.mubr.f32.mxu0 %v2874
  %2984 = vmatmul.mubr.f32.gmra.mxu0 %v2873
  %v2985 = vpop.f32.mrf.mxu0
  %v2986 = vadd.f32 0.0, %v2985
  %v2987 = vpop.f32.mrf.mxu0
  %2988 = vmatprep.mubr.f32.mxu0 %v2877
  %2989 = vmatmul.mubr.f32.gmra.mxu0 %v2876
  %v2990 = vpop.f32.mrf.mxu0
  %v2991 = vadd.f32 0.0, %v2990
  %v2992 = vpop.f32.mrf.mxu0
  %2993 = vmatprep.mubr.f32.mxu0 %v2880
  %2994 = vmatmul.mubr.f32.gmra.mxu0 %v2879
  %v2995 = vpop.f32.mrf.mxu0
  %v2996 = vadd.f32 0.0, %v2995
  %v2997 = vpop.f32.mrf.mxu0
  %2998 = vmatprep.mubr.f32.mxu0 %v2883
  %2999 = vmatmul.mubr.f32.gmra.mxu0 %v2882
  %v3000 = vpop.f32.mrf.mxu0
  %v3001 = vadd.f32 0.0, %v3000
  %v3002 = vpop.f32.mrf.mxu0
  %3003 = vmatprep.mubr.f32.mxu0 %v2886
  %3004 = vmatmul.mubr.f32.gmra.mxu0 %v2885
  %v3005 = vpop.f32.mrf.mxu0
  %v3006 = vadd.f32 0.0, %v3005
  %v3007 = vpop.f32.mrf.mxu0
  %3008 = vdwg.mxu0
  %3009 = vmatprep.subr.mxu0 0.0
  %3010 = vmatpush1.msra.mxu0 0.0
  %3011 = vmatprep.subr.mxu0 0.0
  %3012 = vmatpush1.msra.mxu0 0.0
  %3013 = vmatprep.subr.mxu0 0.0
  %3014 = vmatpush1.msra.mxu0 0.0
  %3015 = vmatprep.subr.mxu0 0.0
  %3016 = vmatpush1.msra.mxu0 0.0
  %3017 = vmatprep.subr.mxu0 0.0
  %3018 = vmatpush1.msra.mxu0 0.0
  %3019 = vmatprep.subr.mxu0 0.0
  %3020 = vmatpush1.msra.mxu0 0.0
  %3021 = vmatprep.subr.mxu0 0.0
  %3022 = vmatpush1.msra.mxu0 0.0
  %3023 = vmatprep.subr.mxu0 0.0
  %3024 = vmatpush1.msra.mxu0 0.0
  %3025 = vmatprep.subr.mxu0 0.0
  %3026 = vmatpush1.msra.mxu0 0.0
  %3027 = vmatprep.subr.mxu0 0.0
  %3028 = vmatpush1.msra.mxu0 0.0
  %3029 = vmatprep.subr.mxu0 0.0
  %3030 = vmatpush1.msra.mxu0 0.0
  %3031 = vmatprep.subr.mxu0 0.0
  %3032 = vmatpush1.msra.mxu0 0.0
  %3033 = vmatprep.subr.mxu0 0.0
  %3034 = vmatpush1.msra.mxu0 %v435
  %3035 = vmatprep.subr.mxu0 0.0
  %3036 = vmatpush1.msra.mxu0 %v434
  %3037 = vmatprep.subr.mxu0 0.0
  %3038 = vmatpush1.msra.mxu0 %v433
  %3039 = vmatprep.subr.mxu0 0.0
  %3040 = vmatpush1.msra.mxu0 %v432
  %3041 = vmatprep.subr.mxu0 0.0
  %3042 = vmatpush2.msra.mxu0 0.0
  %3043 = vmatprep.subr.mxu0 0.0
  %3044 = vmatpush2.msra.mxu0 0.0
  %3045 = vmatprep.subr.mxu0 0.0
  %3046 = vmatpush2.msra.mxu0 0.0
  %3047 = vmatprep.subr.mxu0 0.0
  %3048 = vmatpush2.msra.mxu0 0.0
  %3049 = vmatprep.subr.mxu0 0.0
  %3050 = vmatpush2.msra.mxu0 0.0
  %3051 = vmatprep.subr.mxu0 0.0
  %3052 = vmatpush2.msra.mxu0 0.0
  %3053 = vmatprep.subr.mxu0 0.0
  %3054 = vmatpush2.msra.mxu0 0.0
  %3055 = vmatprep.subr.mxu0 0.0
  %3056 = vmatpush2.msra.mxu0 0.0
  %3057 = vmatprep.subr.mxu0 0.0
  %3058 = vmatpush2.msra.mxu0 0.0
  %3059 = vmatprep.subr.mxu0 0.0
  %3060 = vmatpush2.msra.mxu0 0.0
  %3061 = vmatprep.subr.mxu0 0.0
  %3062 = vmatpush2.msra.mxu0 0.0
  %3063 = vmatprep.subr.mxu0 0.0
  %3064 = vmatpush2.msra.mxu0 0.0
  %3065 = vmatprep.subr.mxu0 0.0
  %3066 = vmatpush2.msra.mxu0 0.0
  %3067 = vmatprep.subr.mxu0 0.0
  %3068 = vmatpush2.msra.mxu0 0.0
  %3069 = vmatprep.subr.mxu0 0.0
  %3070 = vmatpush2.msra.mxu0 0.0
  %3071 = vmatprep.subr.mxu0 0.0
  %3072 = vmatpush2.msra.mxu0 0.0
  %3073 = vmatprep.mubr.f32.mxu0 0.0
  %3074 = vmatmul.mubr.f32.gmra.mxu0 %v2889
  %v3075 = vpop.f32.mrf.mxu0
  %v3076 = vadd.f32 %v2976, %v3075
  %v3077 = vpop.f32.mrf.mxu0
  %3078 = vmatprep.mubr.f32.mxu0 0.0
  %3079 = vmatmul.mubr.f32.gmra.mxu0 %v2892
  %v3080 = vpop.f32.mrf.mxu0
  %v3081 = vadd.f32 %v2981, %v3080
  %v3082 = vpop.f32.mrf.mxu0
  %3083 = vmatprep.mubr.f32.mxu0 0.0
  %3084 = vmatmul.mubr.f32.gmra.mxu0 %v2895
  %v3085 = vpop.f32.mrf.mxu0
  %v3086 = vadd.f32 %v2986, %v3085
  %v3087 = vpop.f32.mrf.mxu0
  %3088 = vmatprep.mubr.f32.mxu0 0.0
  %3089 = vmatmul.mubr.f32.gmra.mxu0 %v2898
  %v3090 = vpop.f32.mrf.mxu0
  %v3091 = vadd.f32 %v2991, %v3090
  %v3092 = vpop.f32.mrf.mxu0
  %3093 = vmatprep.mubr.f32.mxu0 0.0
  %3094 = vmatmul.mubr.f32.gmra.mxu0 %v2901
  %v3095 = vpop.f32.mrf.mxu0
  %v3096 = vadd.f32 %v2996, %v3095
  %v3097 = vpop.f32.mrf.mxu0
  %3098 = vmatprep.mubr.f32.mxu0 0.0
  %3099 = vmatmul.mubr.f32.gmra.mxu0 %v2904
  %v3100 = vpop.f32.mrf.mxu0
  %v3101 = vadd.f32 %v3001, %v3100
  %v3102 = vpop.f32.mrf.mxu0
  %3103 = vmatprep.mubr.f32.mxu0 0.0
  %3104 = vmatmul.mubr.f32.gmra.mxu0 %v2907
  %v3105 = vpop.f32.mrf.mxu0
  %v3106 = vadd.f32 %v3006, %v3105
  %v3107 = vpop.f32.mrf.mxu0
  %3108 = vdwg.mxu0
  %s3109 = scalar_lea.vmem %s3, 1848
  %v3110 = vld [vmem:[%s3109] sm:$0xff]
  %v3111 = vld [vmem:[%s3109 + $0x8] sm:$0xff]
  %v3112 = vld [vmem:[%s3109 + $0x10] sm:$0xff]
  %v3113 = vld [vmem:[%s3109 + $0x18] sm:$0xff]
  %v3114 = vld [vmem:[%s3109 + $0x20] sm:$0xff]
  %v3115 = vld [vmem:[%s3109 + $0x28] sm:$0xff]
  %v3116 = vld [vmem:[%s3109 + $0x30] sm:$0xff]
  %v3117 = vld [vmem:[%s3109 + $0x38] sm:$0xff]
  %v3118 = vld [vmem:[%s3109 + $0x40] sm:$0xff]
  %v3119 = vld [vmem:[%s3109 + $0x48] sm:$0xff]
  %v3120 = vld [vmem:[%s3109 + $0x50] sm:$0xff]
  %v3121 = vld [vmem:[%s3109 + $0x58] sm:$0xff]
  %v3122 = vld [vmem:[%s3109 + $0x60] sm:$0xff]
  %v3123 = vld [vmem:[%s3109 + $0x68] sm:$0xff]
  %v3124 = vld [vmem:[%s3109 + $0x70] sm:$0xff]
  %v3125 = vld [vmem:[%s3109 + $0x78] sm:$0xff]
  %v3126 = vld [vmem:[%s3109 + $0x80] sm:$0xff]
  %v3127 = vld [vmem:[%s3109 + $0x88] sm:$0xff]
  %v3128 = vld [vmem:[%s3109 + $0x90] sm:$0x3]
  %v3129 = vld [vmem:[%s3109 + $0x98] sm:$0x3]
  %v3130 = vld [vmem:[%s3109 + $0xa0] sm:$0x3]
  %v3132 = vsel %vm457, %v3112, 0
  %v3135 = vsel %vm457, %v3115, 0
  %v3138 = vsel %vm457, %v3118, 0
  %v3141 = vsel %vm457, %v3121, 0
  %v3144 = vsel %vm457, %v3124, 0
  %v3147 = vsel %vm457, %v3127, 0
  %v3150 = vsel %vm457, %v3130, 0
  %3152 = vmatprep.subr.mxu0 0.0
  %3153 = vmatpush1.msra.mxu0 %v415
  %3154 = vmatprep.subr.mxu0 0.0
  %3155 = vmatpush1.msra.mxu0 %v414
  %3156 = vmatprep.subr.mxu0 0.0
  %3157 = vmatpush1.msra.mxu0 %v413
  %3158 = vmatprep.subr.mxu0 0.0
  %3159 = vmatpush1.msra.mxu0 %v412
  %3160 = vmatprep.subr.mxu0 0.0
  %3161 = vmatpush1.msra.mxu0 %v411
  %3162 = vmatprep.subr.mxu0 0.0
  %3163 = vmatpush1.msra.mxu0 %v410
  %3164 = vmatprep.subr.mxu0 0.0
  %3165 = vmatpush1.msra.mxu0 %v409
  %3166 = vmatprep.subr.mxu0 0.0
  %3167 = vmatpush1.msra.mxu0 %v408
  %3168 = vmatprep.subr.mxu0 0.0
  %3169 = vmatpush1.msra.mxu0 %v407
  %3170 = vmatprep.subr.mxu0 0.0
  %3171 = vmatpush1.msra.mxu0 %v406
  %3172 = vmatprep.subr.mxu0 0.0
  %3173 = vmatpush1.msra.mxu0 %v405
  %3174 = vmatprep.subr.mxu0 0.0
  %3175 = vmatpush1.msra.mxu0 %v404
  %3176 = vmatprep.subr.mxu0 0.0
  %3177 = vmatpush1.msra.mxu0 %v403
  %3178 = vmatprep.subr.mxu0 0.0
  %3179 = vmatpush1.msra.mxu0 %v402
  %3180 = vmatprep.subr.mxu0 0.0
  %3181 = vmatpush1.msra.mxu0 %v401
  %3182 = vmatprep.subr.mxu0 0.0
  %3183 = vmatpush1.msra.mxu0 %v400
  %3184 = vmatprep.subr.mxu0 0.0
  %3185 = vmatpush2.msra.mxu0 %v431
  %3186 = vmatprep.subr.mxu0 0.0
  %3187 = vmatpush2.msra.mxu0 %v430
  %3188 = vmatprep.subr.mxu0 0.0
  %3189 = vmatpush2.msra.mxu0 %v429
  %3190 = vmatprep.subr.mxu0 0.0
  %3191 = vmatpush2.msra.mxu0 %v428
  %3192 = vmatprep.subr.mxu0 0.0
  %3193 = vmatpush2.msra.mxu0 %v427
  %3194 = vmatprep.subr.mxu0 0.0
  %3195 = vmatpush2.msra.mxu0 %v426
  %3196 = vmatprep.subr.mxu0 0.0
  %3197 = vmatpush2.msra.mxu0 %v425
  %3198 = vmatprep.subr.mxu0 0.0
  %3199 = vmatpush2.msra.mxu0 %v424
  %3200 = vmatprep.subr.mxu0 0.0
  %3201 = vmatpush2.msra.mxu0 %v423
  %3202 = vmatprep.subr.mxu0 0.0
  %3203 = vmatpush2.msra.mxu0 %v422
  %3204 = vmatprep.subr.mxu0 0.0
  %3205 = vmatpush2.msra.mxu0 %v421
  %3206 = vmatprep.subr.mxu0 0.0
  %3207 = vmatpush2.msra.mxu0 %v420
  %3208 = vmatprep.subr.mxu0 0.0
  %3209 = vmatpush2.msra.mxu0 %v419
  %3210 = vmatprep.subr.mxu0 0.0
  %3211 = vmatpush2.msra.mxu0 %v418
  %3212 = vmatprep.subr.mxu0 0.0
  %3213 = vmatpush2.msra.mxu0 %v417
  %3214 = vmatprep.subr.mxu0 0.0
  %3215 = vmatpush2.msra.mxu0 %v416
  %3216 = vmatprep.mubr.f32.mxu0 %v3111
  %3217 = vmatmul.mubr.f32.gmra.mxu0 %v3110
  %v3218 = vpop.f32.mrf.mxu0
  %v3219 = vadd.f32 0.0, %v3218
  %v3220 = vpop.f32.mrf.mxu0
  %3221 = vmatprep.mubr.f32.mxu0 %v3114
  %3222 = vmatmul.mubr.f32.gmra.mxu0 %v3113
  %v3223 = vpop.f32.mrf.mxu0
  %v3224 = vadd.f32 0.0, %v3223
  %v3225 = vpop.f32.mrf.mxu0
  %3226 = vmatprep.mubr.f32.mxu0 %v3117
  %3227 = vmatmul.mubr.f32.gmra.mxu0 %v3116
  %v3228 = vpop.f32.mrf.mxu0
  %v3229 = vadd.f32 0.0, %v3228
  %v3230 = vpop.f32.mrf.mxu0
  %3231 = vmatprep.mubr.f32.mxu0 %v3120
  %3232 = vmatmul.mubr.f32.gmra.mxu0 %v3119
  %v3233 = vpop.f32.mrf.mxu0
  %v3234 = vadd.f32 0.0, %v3233
  %v3235 = vpop.f32.mrf.mxu0
  %3236 = vmatprep.mubr.f32.mxu0 %v3123
  %3237 = vmatmul.mubr.f32.gmra.mxu0 %v3122
  %v3238 = vpop.f32.mrf.mxu0
  %v3239 = vadd.f32 0.0, %v3238
  %v3240 = vpop.f32.mrf.mxu0
  %3241 = vmatprep.mubr.f32.mxu0 %v3126
  %3242 = vmatmul.mubr.f32.gmra.mxu0 %v3125
  %v3243 = vpop.f32.mrf.mxu0
  %v3244 = vadd.f32 0.0, %v3243
  %v3245 = vpop.f32.mrf.mxu0
  %3246 = vmatprep.mubr.f32.mxu0 %v3129
  %3247 = vmatmul.mubr.f32.gmra.mxu0 %v3128
  %v3248 = vpop.f32.mrf.mxu0
  %v3249 = vadd.f32 0.0, %v3248
  %v3250 = vpop.f32.mrf.mxu0
  %3251 = vdwg.mxu0
  %3252 = vmatprep.subr.mxu0 0.0
  %3253 = vmatpush1.msra.mxu0 0.0
  %3254 = vmatprep.subr.mxu0 0.0
  %3255 = vmatpush1.msra.mxu0 0.0
  %3256 = vmatprep.subr.mxu0 0.0
  %3257 = vmatpush1.msra.mxu0 0.0
  %3258 = vmatprep.subr.mxu0 0.0
  %3259 = vmatpush1.msra.mxu0 0.0
  %3260 = vmatprep.subr.mxu0 0.0
  %3261 = vmatpush1.msra.mxu0 0.0
  %3262 = vmatprep.subr.mxu0 0.0
  %3263 = vmatpush1.msra.mxu0 0.0
  %3264 = vmatprep.subr.mxu0 0.0
  %3265 = vmatpush1.msra.mxu0 0.0
  %3266 = vmatprep.subr.mxu0 0.0
  %3267 = vmatpush1.msra.mxu0 0.0
  %3268 = vmatprep.subr.mxu0 0.0
  %3269 = vmatpush1.msra.mxu0 0.0
  %3270 = vmatprep.subr.mxu0 0.0
  %3271 = vmatpush1.msra.mxu0 0.0
  %3272 = vmatprep.subr.mxu0 0.0
  %3273 = vmatpush1.msra.mxu0 0.0
  %3274 = vmatprep.subr.mxu0 0.0
  %3275 = vmatpush1.msra.mxu0 0.0
  %3276 = vmatprep.subr.mxu0 0.0
  %3277 = vmatpush1.msra.mxu0 %v435
  %3278 = vmatprep.subr.mxu0 0.0
  %3279 = vmatpush1.msra.mxu0 %v434
  %3280 = vmatprep.subr.mxu0 0.0
  %3281 = vmatpush1.msra.mxu0 %v433
  %3282 = vmatprep.subr.mxu0 0.0
  %3283 = vmatpush1.msra.mxu0 %v432
  %3284 = vmatprep.subr.mxu0 0.0
  %3285 = vmatpush2.msra.mxu0 0.0
  %3286 = vmatprep.subr.mxu0 0.0
  %3287 = vmatpush2.msra.mxu0 0.0
  %3288 = vmatprep.subr.mxu0 0.0
  %3289 = vmatpush2.msra.mxu0 0.0
  %3290 = vmatprep.subr.mxu0 0.0
  %3291 = vmatpush2.msra.mxu0 0.0
  %3292 = vmatprep.subr.mxu0 0.0
  %3293 = vmatpush2.msra.mxu0 0.0
  %3294 = vmatprep.subr.mxu0 0.0
  %3295 = vmatpush2.msra.mxu0 0.0
  %3296 = vmatprep.subr.mxu0 0.0
  %3297 = vmatpush2.msra.mxu0 0.0
  %3298 = vmatprep.subr.mxu0 0.0
  %3299 = vmatpush2.msra.mxu0 0.0
  %3300 = vmatprep.subr.mxu0 0.0
  %3301 = vmatpush2.msra.mxu0 0.0
  %3302 = vmatprep.subr.mxu0 0.0
  %3303 = vmatpush2.msra.mxu0 0.0
  %3304 = vmatprep.subr.mxu0 0.0
  %3305 = vmatpush2.msra.mxu0 0.0
  %3306 = vmatprep.subr.mxu0 0.0
  %3307 = vmatpush2.msra.mxu0 0.0
  %3308 = vmatprep.subr.mxu0 0.0
  %3309 = vmatpush2.msra.mxu0 0.0
  %3310 = vmatprep.subr.mxu0 0.0
  %3311 = vmatpush2.msra.mxu0 0.0
  %3312 = vmatprep.subr.mxu0 0.0
  %3313 = vmatpush2.msra.mxu0 0.0
  %3314 = vmatprep.subr.mxu0 0.0
  %3315 = vmatpush2.msra.mxu0 0.0
  %3316 = vmatprep.mubr.f32.mxu0 0.0
  %3317 = vmatmul.mubr.f32.gmra.mxu0 %v3132
  %v3318 = vpop.f32.mrf.mxu0
  %v3319 = vadd.f32 %v3219, %v3318
  %v3320 = vpop.f32.mrf.mxu0
  %3321 = vmatprep.mubr.f32.mxu0 0.0
  %3322 = vmatmul.mubr.f32.gmra.mxu0 %v3135
  %v3323 = vpop.f32.mrf.mxu0
  %v3324 = vadd.f32 %v3224, %v3323
  %v3325 = vpop.f32.mrf.mxu0
  %3326 = vmatprep.mubr.f32.mxu0 0.0
  %3327 = vmatmul.mubr.f32.gmra.mxu0 %v3138
  %v3328 = vpop.f32.mrf.mxu0
  %v3329 = vadd.f32 %v3229, %v3328
  %v3330 = vpop.f32.mrf.mxu0
  %3331 = vmatprep.mubr.f32.mxu0 0.0
  %3332 = vmatmul.mubr.f32.gmra.mxu0 %v3141
  %v3333 = vpop.f32.mrf.mxu0
  %v3334 = vadd.f32 %v3234, %v3333
  %v3335 = vpop.f32.mrf.mxu0
  %3336 = vmatprep.mubr.f32.mxu0 0.0
  %3337 = vmatmul.mubr.f32.gmra.mxu0 %v3144
  %v3338 = vpop.f32.mrf.mxu0
  %v3339 = vadd.f32 %v3239, %v3338
  %v3340 = vpop.f32.mrf.mxu0
  %3341 = vmatprep.mubr.f32.mxu0 0.0
  %3342 = vmatmul.mubr.f32.gmra.mxu0 %v3147
  %v3343 = vpop.f32.mrf.mxu0
  %v3344 = vadd.f32 %v3244, %v3343
  %v3345 = vpop.f32.mrf.mxu0
  %3346 = vmatprep.mubr.f32.mxu0 0.0
  %3347 = vmatmul.mubr.f32.gmra.mxu0 %v3150
  %v3348 = vpop.f32.mrf.mxu0
  %v3349 = vadd.f32 %v3249, %v3348
  %v3350 = vpop.f32.mrf.mxu0
  %3351 = vdwg.mxu0
  %s3352 = scalar_lea.vmem %s3, 2016
  %v3353 = vld [vmem:[%s3352] sm:$0xff]
  %v3354 = vld [vmem:[%s3352 + $0x8] sm:$0xff]
  %v3355 = vld [vmem:[%s3352 + $0x10] sm:$0xff]
  %v3356 = vld [vmem:[%s3352 + $0x18] sm:$0xff]
  %v3357 = vld [vmem:[%s3352 + $0x20] sm:$0xff]
  %v3358 = vld [vmem:[%s3352 + $0x28] sm:$0xff]
  %v3359 = vld [vmem:[%s3352 + $0x30] sm:$0xff]
  %v3360 = vld [vmem:[%s3352 + $0x38] sm:$0xff]
  %v3361 = vld [vmem:[%s3352 + $0x40] sm:$0xff]
  %v3362 = vld [vmem:[%s3352 + $0x48] sm:$0xff]
  %v3363 = vld [vmem:[%s3352 + $0x50] sm:$0xff]
  %v3364 = vld [vmem:[%s3352 + $0x58] sm:$0xff]
  %v3365 = vld [vmem:[%s3352 + $0x60] sm:$0xff]
  %v3366 = vld [vmem:[%s3352 + $0x68] sm:$0xff]
  %v3367 = vld [vmem:[%s3352 + $0x70] sm:$0xff]
  %v3368 = vld [vmem:[%s3352 + $0x78] sm:$0xff]
  %v3369 = vld [vmem:[%s3352 + $0x80] sm:$0xff]
  %v3370 = vld [vmem:[%s3352 + $0x88] sm:$0xff]
  %v3371 = vld [vmem:[%s3352 + $0x90] sm:$0x3]
  %v3372 = vld [vmem:[%s3352 + $0x98] sm:$0x3]
  %v3373 = vld [vmem:[%s3352 + $0xa0] sm:$0x3]
  %v3375 = vsel %vm457, %v3355, 0
  %v3378 = vsel %vm457, %v3358, 0
  %v3381 = vsel %vm457, %v3361, 0
  %v3384 = vsel %vm457, %v3364, 0
  %v3387 = vsel %vm457, %v3367, 0
  %v3390 = vsel %vm457, %v3370, 0
  %v3393 = vsel %vm457, %v3373, 0
  %3395 = vmatprep.subr.mxu0 0.0
  %3396 = vmatpush1.msra.mxu0 %v415
  %3397 = vmatprep.subr.mxu0 0.0
  %3398 = vmatpush1.msra.mxu0 %v414
  %3399 = vmatprep.subr.mxu0 0.0
  %3400 = vmatpush1.msra.mxu0 %v413
  %3401 = vmatprep.subr.mxu0 0.0
  %3402 = vmatpush1.msra.mxu0 %v412
  %3403 = vmatprep.subr.mxu0 0.0
  %3404 = vmatpush1.msra.mxu0 %v411
  %3405 = vmatprep.subr.mxu0 0.0
  %3406 = vmatpush1.msra.mxu0 %v410
  %3407 = vmatprep.subr.mxu0 0.0
  %3408 = vmatpush1.msra.mxu0 %v409
  %3409 = vmatprep.subr.mxu0 0.0
  %3410 = vmatpush1.msra.mxu0 %v408
  %3411 = vmatprep.subr.mxu0 0.0
  %3412 = vmatpush1.msra.mxu0 %v407
  %3413 = vmatprep.subr.mxu0 0.0
  %3414 = vmatpush1.msra.mxu0 %v406
  %3415 = vmatprep.subr.mxu0 0.0
  %3416 = vmatpush1.msra.mxu0 %v405
  %3417 = vmatprep.subr.mxu0 0.0
  %3418 = vmatpush1.msra.mxu0 %v404
  %3419 = vmatprep.subr.mxu0 0.0
  %3420 = vmatpush1.msra.mxu0 %v403
  %3421 = vmatprep.subr.mxu0 0.0
  %3422 = vmatpush1.msra.mxu0 %v402
  %3423 = vmatprep.subr.mxu0 0.0
  %3424 = vmatpush1.msra.mxu0 %v401
  %3425 = vmatprep.subr.mxu0 0.0
  %3426 = vmatpush1.msra.mxu0 %v400
  %3427 = vmatprep.subr.mxu0 0.0
  %3428 = vmatpush2.msra.mxu0 %v431
  %3429 = vmatprep.subr.mxu0 0.0
  %3430 = vmatpush2.msra.mxu0 %v430
  %3431 = vmatprep.subr.mxu0 0.0
  %3432 = vmatpush2.msra.mxu0 %v429
  %3433 = vmatprep.subr.mxu0 0.0
  %3434 = vmatpush2.msra.mxu0 %v428
  %3435 = vmatprep.subr.mxu0 0.0
  %3436 = vmatpush2.msra.mxu0 %v427
  %3437 = vmatprep.subr.mxu0 0.0
  %3438 = vmatpush2.msra.mxu0 %v426
  %3439 = vmatprep.subr.mxu0 0.0
  %3440 = vmatpush2.msra.mxu0 %v425
  %3441 = vmatprep.subr.mxu0 0.0
  %3442 = vmatpush2.msra.mxu0 %v424
  %3443 = vmatprep.subr.mxu0 0.0
  %3444 = vmatpush2.msra.mxu0 %v423
  %3445 = vmatprep.subr.mxu0 0.0
  %3446 = vmatpush2.msra.mxu0 %v422
  %3447 = vmatprep.subr.mxu0 0.0
  %3448 = vmatpush2.msra.mxu0 %v421
  %3449 = vmatprep.subr.mxu0 0.0
  %3450 = vmatpush2.msra.mxu0 %v420
  %3451 = vmatprep.subr.mxu0 0.0
  %3452 = vmatpush2.msra.mxu0 %v419
  %3453 = vmatprep.subr.mxu0 0.0
  %3454 = vmatpush2.msra.mxu0 %v418
  %3455 = vmatprep.subr.mxu0 0.0
  %3456 = vmatpush2.msra.mxu0 %v417
  %3457 = vmatprep.subr.mxu0 0.0
  %3458 = vmatpush2.msra.mxu0 %v416
  %3459 = vmatprep.mubr.f32.mxu0 %v3354
  %3460 = vmatmul.mubr.f32.gmra.mxu0 %v3353
  %v3461 = vpop.f32.mrf.mxu0
  %v3462 = vadd.f32 0.0, %v3461
  %v3463 = vpop.f32.mrf.mxu0
  %3464 = vmatprep.mubr.f32.mxu0 %v3357
  %3465 = vmatmul.mubr.f32.gmra.mxu0 %v3356
  %v3466 = vpop.f32.mrf.mxu0
  %v3467 = vadd.f32 0.0, %v3466
  %v3468 = vpop.f32.mrf.mxu0
  %3469 = vmatprep.mubr.f32.mxu0 %v3360
  %3470 = vmatmul.mubr.f32.gmra.mxu0 %v3359
  %v3471 = vpop.f32.mrf.mxu0
  %v3472 = vadd.f32 0.0, %v3471
  %v3473 = vpop.f32.mrf.mxu0
  %3474 = vmatprep.mubr.f32.mxu0 %v3363
  %3475 = vmatmul.mubr.f32.gmra.mxu0 %v3362
  %v3476 = vpop.f32.mrf.mxu0
  %v3477 = vadd.f32 0.0, %v3476
  %v3478 = vpop.f32.mrf.mxu0
  %3479 = vmatprep.mubr.f32.mxu0 %v3366
  %3480 = vmatmul.mubr.f32.gmra.mxu0 %v3365
  %v3481 = vpop.f32.mrf.mxu0
  %v3482 = vadd.f32 0.0, %v3481
  %v3483 = vpop.f32.mrf.mxu0
  %3484 = vmatprep.mubr.f32.mxu0 %v3369
  %3485 = vmatmul.mubr.f32.gmra.mxu0 %v3368
  %v3486 = vpop.f32.mrf.mxu0
  %v3487 = vadd.f32 0.0, %v3486
  %v3488 = vpop.f32.mrf.mxu0
  %3489 = vmatprep.mubr.f32.mxu0 %v3372
  %3490 = vmatmul.mubr.f32.gmra.mxu0 %v3371
  %v3491 = vpop.f32.mrf.mxu0
  %v3492 = vadd.f32 0.0, %v3491
  %v3493 = vpop.f32.mrf.mxu0
  %3494 = vdwg.mxu0
  %3495 = vmatprep.subr.mxu0 0.0
  %3496 = vmatpush1.msra.mxu0 0.0
  %3497 = vmatprep.subr.mxu0 0.0
  %3498 = vmatpush1.msra.mxu0 0.0
  %3499 = vmatprep.subr.mxu0 0.0
  %3500 = vmatpush1.msra.mxu0 0.0
  %3501 = vmatprep.subr.mxu0 0.0
  %3502 = vmatpush1.msra.mxu0 0.0
  %3503 = vmatprep.subr.mxu0 0.0
  %3504 = vmatpush1.msra.mxu0 0.0
  %3505 = vmatprep.subr.mxu0 0.0
  %3506 = vmatpush1.msra.mxu0 0.0
  %3507 = vmatprep.subr.mxu0 0.0
  %3508 = vmatpush1.msra.mxu0 0.0
  %3509 = vmatprep.subr.mxu0 0.0
  %3510 = vmatpush1.msra.mxu0 0.0
  %3511 = vmatprep.subr.mxu0 0.0
  %3512 = vmatpush1.msra.mxu0 0.0
  %3513 = vmatprep.subr.mxu0 0.0
  %3514 = vmatpush1.msra.mxu0 0.0
  %3515 = vmatprep.subr.mxu0 0.0
  %3516 = vmatpush1.msra.mxu0 0.0
  %3517 = vmatprep.subr.mxu0 0.0
  %3518 = vmatpush1.msra.mxu0 0.0
  %3519 = vmatprep.subr.mxu0 0.0
  %3520 = vmatpush1.msra.mxu0 %v435
  %3521 = vmatprep.subr.mxu0 0.0
  %3522 = vmatpush1.msra.mxu0 %v434
  %3523 = vmatprep.subr.mxu0 0.0
  %3524 = vmatpush1.msra.mxu0 %v433
  %3525 = vmatprep.subr.mxu0 0.0
  %3526 = vmatpush1.msra.mxu0 %v432
  %3527 = vmatprep.subr.mxu0 0.0
  %3528 = vmatpush2.msra.mxu0 0.0
  %3529 = vmatprep.subr.mxu0 0.0
  %3530 = vmatpush2.msra.mxu0 0.0
  %3531 = vmatprep.subr.mxu0 0.0
  %3532 = vmatpush2.msra.mxu0 0.0
  %3533 = vmatprep.subr.mxu0 0.0
  %3534 = vmatpush2.msra.mxu0 0.0
  %3535 = vmatprep.subr.mxu0 0.0
  %3536 = vmatpush2.msra.mxu0 0.0
  %3537 = vmatprep.subr.mxu0 0.0
  %3538 = vmatpush2.msra.mxu0 0.0
  %3539 = vmatprep.subr.mxu0 0.0
  %3540 = vmatpush2.msra.mxu0 0.0
  %3541 = vmatprep.subr.mxu0 0.0
  %3542 = vmatpush2.msra.mxu0 0.0
  %3543 = vmatprep.subr.mxu0 0.0
  %3544 = vmatpush2.msra.mxu0 0.0
  %3545 = vmatprep.subr.mxu0 0.0
  %3546 = vmatpush2.msra.mxu0 0.0
  %3547 = vmatprep.subr.mxu0 0.0
  %3548 = vmatpush2.msra.mxu0 0.0
  %3549 = vmatprep.subr.mxu0 0.0
  %3550 = vmatpush2.msra.mxu0 0.0
  %3551 = vmatprep.subr.mxu0 0.0
  %3552 = vmatpush2.msra.mxu0 0.0
  %3553 = vmatprep.subr.mxu0 0.0
  %3554 = vmatpush2.msra.mxu0 0.0
  %3555 = vmatprep.subr.mxu0 0.0
  %3556 = vmatpush2.msra.mxu0 0.0
  %3557 = vmatprep.subr.mxu0 0.0
  %3558 = vmatpush2.msra.mxu0 0.0
  %3559 = vmatprep.mubr.f32.mxu0 0.0
  %3560 = vmatmul.mubr.f32.gmra.mxu0 %v3375
  %v3561 = vpop.f32.mrf.mxu0
  %v3562 = vadd.f32 %v3462, %v3561
  %v3563 = vpop.f32.mrf.mxu0
  %3564 = vmatprep.mubr.f32.mxu0 0.0
  %3565 = vmatmul.mubr.f32.gmra.mxu0 %v3378
  %v3566 = vpop.f32.mrf.mxu0
  %v3567 = vadd.f32 %v3467, %v3566
  %v3568 = vpop.f32.mrf.mxu0
  %3569 = vmatprep.mubr.f32.mxu0 0.0
  %3570 = vmatmul.mubr.f32.gmra.mxu0 %v3381
  %v3571 = vpop.f32.mrf.mxu0
  %v3572 = vadd.f32 %v3472, %v3571
  %v3573 = vpop.f32.mrf.mxu0
  %3574 = vmatprep.mubr.f32.mxu0 0.0
  %3575 = vmatmul.mubr.f32.gmra.mxu0 %v3384
  %v3576 = vpop.f32.mrf.mxu0
  %v3577 = vadd.f32 %v3477, %v3576
  %v3578 = vpop.f32.mrf.mxu0
  %3579 = vmatprep.mubr.f32.mxu0 0.0
  %3580 = vmatmul.mubr.f32.gmra.mxu0 %v3387
  %v3581 = vpop.f32.mrf.mxu0
  %v3582 = vadd.f32 %v3482, %v3581
  %v3583 = vpop.f32.mrf.mxu0
  %3584 = vmatprep.mubr.f32.mxu0 0.0
  %3585 = vmatmul.mubr.f32.gmra.mxu0 %v3390
  %v3586 = vpop.f32.mrf.mxu0
  %v3587 = vadd.f32 %v3487, %v3586
  %v3588 = vpop.f32.mrf.mxu0
  %3589 = vmatprep.mubr.f32.mxu0 0.0
  %3590 = vmatmul.mubr.f32.gmra.mxu0 %v3393
  %v3591 = vpop.f32.mrf.mxu0
  %v3592 = vadd.f32 %v3492, %v3591
  %v3593 = vpop.f32.mrf.mxu0
  %3594 = vdwg.mxu0
  %s3595 = scalar_lea.vmem %s3, 2184
  %v3596 = vld [vmem:[%s3595] sm:$0xff]
  %v3597 = vld [vmem:[%s3595 + $0x8] sm:$0xff]
  %v3598 = vld [vmem:[%s3595 + $0x10] sm:$0xff]
  %v3599 = vld [vmem:[%s3595 + $0x18] sm:$0xff]
  %v3600 = vld [vmem:[%s3595 + $0x20] sm:$0xff]
  %v3601 = vld [vmem:[%s3595 + $0x28] sm:$0xff]
  %v3602 = vld [vmem:[%s3595 + $0x30] sm:$0xff]
  %v3603 = vld [vmem:[%s3595 + $0x38] sm:$0xff]
  %v3604 = vld [vmem:[%s3595 + $0x40] sm:$0xff]
  %v3605 = vld [vmem:[%s3595 + $0x48] sm:$0xff]
  %v3606 = vld [vmem:[%s3595 + $0x50] sm:$0xff]
  %v3607 = vld [vmem:[%s3595 + $0x58] sm:$0xff]
  %v3608 = vld [vmem:[%s3595 + $0x60] sm:$0xff]
  %v3609 = vld [vmem:[%s3595 + $0x68] sm:$0xff]
  %v3610 = vld [vmem:[%s3595 + $0x70] sm:$0xff]
  %v3611 = vld [vmem:[%s3595 + $0x78] sm:$0xff]
  %v3612 = vld [vmem:[%s3595 + $0x80] sm:$0xff]
  %v3613 = vld [vmem:[%s3595 + $0x88] sm:$0xff]
  %v3614 = vld [vmem:[%s3595 + $0x90] sm:$0x3]
  %v3615 = vld [vmem:[%s3595 + $0x98] sm:$0x3]
  %v3616 = vld [vmem:[%s3595 + $0xa0] sm:$0x3]
  %v3618 = vsel %vm457, %v3598, 0
  %v3621 = vsel %vm457, %v3601, 0
  %v3624 = vsel %vm457, %v3604, 0
  %v3627 = vsel %vm457, %v3607, 0
  %v3630 = vsel %vm457, %v3610, 0
  %v3633 = vsel %vm457, %v3613, 0
  %v3636 = vsel %vm457, %v3616, 0
  %3638 = vmatprep.subr.mxu0 0.0
  %3639 = vmatpush1.msra.mxu0 %v415
  %3640 = vmatprep.subr.mxu0 0.0
  %3641 = vmatpush1.msra.mxu0 %v414
  %3642 = vmatprep.subr.mxu0 0.0
  %3643 = vmatpush1.msra.mxu0 %v413
  %3644 = vmatprep.subr.mxu0 0.0
  %3645 = vmatpush1.msra.mxu0 %v412
  %3646 = vmatprep.subr.mxu0 0.0
  %3647 = vmatpush1.msra.mxu0 %v411
  %3648 = vmatprep.subr.mxu0 0.0
  %3649 = vmatpush1.msra.mxu0 %v410
  %3650 = vmatprep.subr.mxu0 0.0
  %3651 = vmatpush1.msra.mxu0 %v409
  %3652 = vmatprep.subr.mxu0 0.0
  %3653 = vmatpush1.msra.mxu0 %v408
  %3654 = vmatprep.subr.mxu0 0.0
  %3655 = vmatpush1.msra.mxu0 %v407
  %3656 = vmatprep.subr.mxu0 0.0
  %3657 = vmatpush1.msra.mxu0 %v406
  %3658 = vmatprep.subr.mxu0 0.0
  %3659 = vmatpush1.msra.mxu0 %v405
  %3660 = vmatprep.subr.mxu0 0.0
  %3661 = vmatpush1.msra.mxu0 %v404
  %3662 = vmatprep.subr.mxu0 0.0
  %3663 = vmatpush1.msra.mxu0 %v403
  %3664 = vmatprep.subr.mxu0 0.0
  %3665 = vmatpush1.msra.mxu0 %v402
  %3666 = vmatprep.subr.mxu0 0.0
  %3667 = vmatpush1.msra.mxu0 %v401
  %3668 = vmatprep.subr.mxu0 0.0
  %3669 = vmatpush1.msra.mxu0 %v400
  %3670 = vmatprep.subr.mxu0 0.0
  %3671 = vmatpush2.msra.mxu0 %v431
  %3672 = vmatprep.subr.mxu0 0.0
  %3673 = vmatpush2.msra.mxu0 %v430
  %3674 = vmatprep.subr.mxu0 0.0
  %3675 = vmatpush2.msra.mxu0 %v429
  %3676 = vmatprep.subr.mxu0 0.0
  %3677 = vmatpush2.msra.mxu0 %v428
  %3678 = vmatprep.subr.mxu0 0.0
  %3679 = vmatpush2.msra.mxu0 %v427
  %3680 = vmatprep.subr.mxu0 0.0
  %3681 = vmatpush2.msra.mxu0 %v426
  %3682 = vmatprep.subr.mxu0 0.0
  %3683 = vmatpush2.msra.mxu0 %v425
  %3684 = vmatprep.subr.mxu0 0.0
  %3685 = vmatpush2.msra.mxu0 %v424
  %3686 = vmatprep.subr.mxu0 0.0
  %3687 = vmatpush2.msra.mxu0 %v423
  %3688 = vmatprep.subr.mxu0 0.0
  %3689 = vmatpush2.msra.mxu0 %v422
  %3690 = vmatprep.subr.mxu0 0.0
  %3691 = vmatpush2.msra.mxu0 %v421
  %3692 = vmatprep.subr.mxu0 0.0
  %3693 = vmatpush2.msra.mxu0 %v420
  %3694 = vmatprep.subr.mxu0 0.0
  %3695 = vmatpush2.msra.mxu0 %v419
  %3696 = vmatprep.subr.mxu0 0.0
  %3697 = vmatpush2.msra.mxu0 %v418
  %3698 = vmatprep.subr.mxu0 0.0
  %3699 = vmatpush2.msra.mxu0 %v417
  %3700 = vmatprep.subr.mxu0 0.0
  %3701 = vmatpush2.msra.mxu0 %v416
  %3702 = vmatprep.mubr.f32.mxu0 %v3597
  %3703 = vmatmul.mubr.f32.gmra.mxu0 %v3596
  %v3704 = vpop.f32.mrf.mxu0
  %v3705 = vadd.f32 0.0, %v3704
  %v3706 = vpop.f32.mrf.mxu0
  %3707 = vmatprep.mubr.f32.mxu0 %v3600
  %3708 = vmatmul.mubr.f32.gmra.mxu0 %v3599
  %v3709 = vpop.f32.mrf.mxu0
  %v3710 = vadd.f32 0.0, %v3709
  %v3711 = vpop.f32.mrf.mxu0
  %3712 = vmatprep.mubr.f32.mxu0 %v3603
  %3713 = vmatmul.mubr.f32.gmra.mxu0 %v3602
  %v3714 = vpop.f32.mrf.mxu0
  %v3715 = vadd.f32 0.0, %v3714
  %v3716 = vpop.f32.mrf.mxu0
  %3717 = vmatprep.mubr.f32.mxu0 %v3606
  %3718 = vmatmul.mubr.f32.gmra.mxu0 %v3605
  %v3719 = vpop.f32.mrf.mxu0
  %v3720 = vadd.f32 0.0, %v3719
  %v3721 = vpop.f32.mrf.mxu0
  %3722 = vmatprep.mubr.f32.mxu0 %v3609
  %3723 = vmatmul.mubr.f32.gmra.mxu0 %v3608
  %v3724 = vpop.f32.mrf.mxu0
  %v3725 = vadd.f32 0.0, %v3724
  %v3726 = vpop.f32.mrf.mxu0
  %3727 = vmatprep.mubr.f32.mxu0 %v3612
  %3728 = vmatmul.mubr.f32.gmra.mxu0 %v3611
  %v3729 = vpop.f32.mrf.mxu0
  %v3730 = vadd.f32 0.0, %v3729
  %v3731 = vpop.f32.mrf.mxu0
  %3732 = vmatprep.mubr.f32.mxu0 %v3615
  %3733 = vmatmul.mubr.f32.gmra.mxu0 %v3614
  %v3734 = vpop.f32.mrf.mxu0
  %v3735 = vadd.f32 0.0, %v3734
  %v3736 = vpop.f32.mrf.mxu0
  %3737 = vdwg.mxu0
  %3738 = vmatprep.subr.mxu0 0.0
  %3739 = vmatpush1.msra.mxu0 0.0
  %3740 = vmatprep.subr.mxu0 0.0
  %3741 = vmatpush1.msra.mxu0 0.0
  %3742 = vmatprep.subr.mxu0 0.0
  %3743 = vmatpush1.msra.mxu0 0.0
  %3744 = vmatprep.subr.mxu0 0.0
  %3745 = vmatpush1.msra.mxu0 0.0
  %3746 = vmatprep.subr.mxu0 0.0
  %3747 = vmatpush1.msra.mxu0 0.0
  %3748 = vmatprep.subr.mxu0 0.0
  %3749 = vmatpush1.msra.mxu0 0.0
  %3750 = vmatprep.subr.mxu0 0.0
  %3751 = vmatpush1.msra.mxu0 0.0
  %3752 = vmatprep.subr.mxu0 0.0
  %3753 = vmatpush1.msra.mxu0 0.0
  %3754 = vmatprep.subr.mxu0 0.0
  %3755 = vmatpush1.msra.mxu0 0.0
  %3756 = vmatprep.subr.mxu0 0.0
  %3757 = vmatpush1.msra.mxu0 0.0
  %3758 = vmatprep.subr.mxu0 0.0
  %3759 = vmatpush1.msra.mxu0 0.0
  %3760 = vmatprep.subr.mxu0 0.0
  %3761 = vmatpush1.msra.mxu0 0.0
  %3762 = vmatprep.subr.mxu0 0.0
  %3763 = vmatpush1.msra.mxu0 %v435
  %3764 = vmatprep.subr.mxu0 0.0
  %3765 = vmatpush1.msra.mxu0 %v434
  %3766 = vmatprep.subr.mxu0 0.0
  %3767 = vmatpush1.msra.mxu0 %v433
  %3768 = vmatprep.subr.mxu0 0.0
  %3769 = vmatpush1.msra.mxu0 %v432
  %3770 = vmatprep.subr.mxu0 0.0
  %3771 = vmatpush2.msra.mxu0 0.0
  %3772 = vmatprep.subr.mxu0 0.0
  %3773 = vmatpush2.msra.mxu0 0.0
  %3774 = vmatprep.subr.mxu0 0.0
  %3775 = vmatpush2.msra.mxu0 0.0
  %3776 = vmatprep.subr.mxu0 0.0
  %3777 = vmatpush2.msra.mxu0 0.0
  %3778 = vmatprep.subr.mxu0 0.0
  %3779 = vmatpush2.msra.mxu0 0.0
  %3780 = vmatprep.subr.mxu0 0.0
  %3781 = vmatpush2.msra.mxu0 0.0
  %3782 = vmatprep.subr.mxu0 0.0
  %3783 = vmatpush2.msra.mxu0 0.0
  %3784 = vmatprep.subr.mxu0 0.0
  %3785 = vmatpush2.msra.mxu0 0.0
  %3786 = vmatprep.subr.mxu0 0.0
  %3787 = vmatpush2.msra.mxu0 0.0
  %3788 = vmatprep.subr.mxu0 0.0
  %3789 = vmatpush2.msra.mxu0 0.0
  %3790 = vmatprep.subr.mxu0 0.0
  %3791 = vmatpush2.msra.mxu0 0.0
  %3792 = vmatprep.subr.mxu0 0.0
  %3793 = vmatpush2.msra.mxu0 0.0
  %3794 = vmatprep.subr.mxu0 0.0
  %3795 = vmatpush2.msra.mxu0 0.0
  %3796 = vmatprep.subr.mxu0 0.0
  %3797 = vmatpush2.msra.mxu0 0.0
  %3798 = vmatprep.subr.mxu0 0.0
  %3799 = vmatpush2.msra.mxu0 0.0
  %3800 = vmatprep.subr.mxu0 0.0
  %3801 = vmatpush2.msra.mxu0 0.0
  %3802 = vmatprep.mubr.f32.mxu0 0.0
  %3803 = vmatmul.mubr.f32.gmra.mxu0 %v3618
  %v3804 = vpop.f32.mrf.mxu0
  %v3805 = vadd.f32 %v3705, %v3804
  %v3806 = vpop.f32.mrf.mxu0
  %3807 = vmatprep.mubr.f32.mxu0 0.0
  %3808 = vmatmul.mubr.f32.gmra.mxu0 %v3621
  %v3809 = vpop.f32.mrf.mxu0
  %v3810 = vadd.f32 %v3710, %v3809
  %v3811 = vpop.f32.mrf.mxu0
  %3812 = vmatprep.mubr.f32.mxu0 0.0
  %3813 = vmatmul.mubr.f32.gmra.mxu0 %v3624
  %v3814 = vpop.f32.mrf.mxu0
  %v3815 = vadd.f32 %v3715, %v3814
  %v3816 = vpop.f32.mrf.mxu0
  %3817 = vmatprep.mubr.f32.mxu0 0.0
  %3818 = vmatmul.mubr.f32.gmra.mxu0 %v3627
  %v3819 = vpop.f32.mrf.mxu0
  %v3820 = vadd.f32 %v3720, %v3819
  %v3821 = vpop.f32.mrf.mxu0
  %3822 = vmatprep.mubr.f32.mxu0 0.0
  %3823 = vmatmul.mubr.f32.gmra.mxu0 %v3630
  %v3824 = vpop.f32.mrf.mxu0
  %v3825 = vadd.f32 %v3725, %v3824
  %v3826 = vpop.f32.mrf.mxu0
  %3827 = vmatprep.mubr.f32.mxu0 0.0
  %3828 = vmatmul.mubr.f32.gmra.mxu0 %v3633
  %v3829 = vpop.f32.mrf.mxu0
  %v3830 = vadd.f32 %v3730, %v3829
  %v3831 = vpop.f32.mrf.mxu0
  %3832 = vmatprep.mubr.f32.mxu0 0.0
  %3833 = vmatmul.mubr.f32.gmra.mxu0 %v3636
  %v3834 = vpop.f32.mrf.mxu0
  %v3835 = vadd.f32 %v3735, %v3834
  %v3836 = vpop.f32.mrf.mxu0
  %3837 = vdwg.mxu0
  %s3838 = scalar_lea.vmem %s3, 2352
  %v3839 = vld [vmem:[%s3838] sm:$0xff]
  %v3840 = vld [vmem:[%s3838 + $0x8] sm:$0xff]
  %v3841 = vld [vmem:[%s3838 + $0x10] sm:$0xff]
  %v3842 = vld [vmem:[%s3838 + $0x18] sm:$0xff]
  %v3843 = vld [vmem:[%s3838 + $0x20] sm:$0xff]
  %v3844 = vld [vmem:[%s3838 + $0x28] sm:$0xff]
  %v3845 = vld [vmem:[%s3838 + $0x30] sm:$0xff]
  %v3846 = vld [vmem:[%s3838 + $0x38] sm:$0xff]
  %v3847 = vld [vmem:[%s3838 + $0x40] sm:$0xff]
  %v3848 = vld [vmem:[%s3838 + $0x48] sm:$0xff]
  %v3849 = vld [vmem:[%s3838 + $0x50] sm:$0xff]
  %v3850 = vld [vmem:[%s3838 + $0x58] sm:$0xff]
  %v3851 = vld [vmem:[%s3838 + $0x60] sm:$0xff]
  %v3852 = vld [vmem:[%s3838 + $0x68] sm:$0xff]
  %v3853 = vld [vmem:[%s3838 + $0x70] sm:$0xff]
  %v3854 = vld [vmem:[%s3838 + $0x78] sm:$0xff]
  %v3855 = vld [vmem:[%s3838 + $0x80] sm:$0xff]
  %v3856 = vld [vmem:[%s3838 + $0x88] sm:$0xff]
  %v3857 = vld [vmem:[%s3838 + $0x90] sm:$0x3]
  %v3858 = vld [vmem:[%s3838 + $0x98] sm:$0x3]
  %v3859 = vld [vmem:[%s3838 + $0xa0] sm:$0x3]
  %v3861 = vsel %vm457, %v3841, 0
  %v3864 = vsel %vm457, %v3844, 0
  %v3867 = vsel %vm457, %v3847, 0
  %v3870 = vsel %vm457, %v3850, 0
  %v3873 = vsel %vm457, %v3853, 0
  %v3876 = vsel %vm457, %v3856, 0
  %v3879 = vsel %vm457, %v3859, 0
  %3881 = vmatprep.subr.mxu0 0.0
  %3882 = vmatpush1.msra.mxu0 %v415
  %3883 = vmatprep.subr.mxu0 0.0
  %3884 = vmatpush1.msra.mxu0 %v414
  %3885 = vmatprep.subr.mxu0 0.0
  %3886 = vmatpush1.msra.mxu0 %v413
  %3887 = vmatprep.subr.mxu0 0.0
  %3888 = vmatpush1.msra.mxu0 %v412
  %3889 = vmatprep.subr.mxu0 0.0
  %3890 = vmatpush1.msra.mxu0 %v411
  %3891 = vmatprep.subr.mxu0 0.0
  %3892 = vmatpush1.msra.mxu0 %v410
  %3893 = vmatprep.subr.mxu0 0.0
  %3894 = vmatpush1.msra.mxu0 %v409
  %3895 = vmatprep.subr.mxu0 0.0
  %3896 = vmatpush1.msra.mxu0 %v408
  %3897 = vmatprep.subr.mxu0 0.0
  %3898 = vmatpush1.msra.mxu0 %v407
  %3899 = vmatprep.subr.mxu0 0.0
  %3900 = vmatpush1.msra.mxu0 %v406
  %3901 = vmatprep.subr.mxu0 0.0
  %3902 = vmatpush1.msra.mxu0 %v405
  %3903 = vmatprep.subr.mxu0 0.0
  %3904 = vmatpush1.msra.mxu0 %v404
  %3905 = vmatprep.subr.mxu0 0.0
  %3906 = vmatpush1.msra.mxu0 %v403
  %3907 = vmatprep.subr.mxu0 0.0
  %3908 = vmatpush1.msra.mxu0 %v402
  %3909 = vmatprep.subr.mxu0 0.0
  %3910 = vmatpush1.msra.mxu0 %v401
  %3911 = vmatprep.subr.mxu0 0.0
  %3912 = vmatpush1.msra.mxu0 %v400
  %3913 = vmatprep.subr.mxu0 0.0
  %3914 = vmatpush2.msra.mxu0 %v431
  %3915 = vmatprep.subr.mxu0 0.0
  %3916 = vmatpush2.msra.mxu0 %v430
  %3917 = vmatprep.subr.mxu0 0.0
  %3918 = vmatpush2.msra.mxu0 %v429
  %3919 = vmatprep.subr.mxu0 0.0
  %3920 = vmatpush2.msra.mxu0 %v428
  %3921 = vmatprep.subr.mxu0 0.0
  %3922 = vmatpush2.msra.mxu0 %v427
  %3923 = vmatprep.subr.mxu0 0.0
  %3924 = vmatpush2.msra.mxu0 %v426
  %3925 = vmatprep.subr.mxu0 0.0
  %3926 = vmatpush2.msra.mxu0 %v425
  %3927 = vmatprep.subr.mxu0 0.0
  %3928 = vmatpush2.msra.mxu0 %v424
  %3929 = vmatprep.subr.mxu0 0.0
  %3930 = vmatpush2.msra.mxu0 %v423
  %3931 = vmatprep.subr.mxu0 0.0
  %3932 = vmatpush2.msra.mxu0 %v422
  %3933 = vmatprep.subr.mxu0 0.0
  %3934 = vmatpush2.msra.mxu0 %v421
  %3935 = vmatprep.subr.mxu0 0.0
  %3936 = vmatpush2.msra.mxu0 %v420
  %3937 = vmatprep.subr.mxu0 0.0
  %3938 = vmatpush2.msra.mxu0 %v419
  %3939 = vmatprep.subr.mxu0 0.0
  %3940 = vmatpush2.msra.mxu0 %v418
  %3941 = vmatprep.subr.mxu0 0.0
  %3942 = vmatpush2.msra.mxu0 %v417
  %3943 = vmatprep.subr.mxu0 0.0
  %3944 = vmatpush2.msra.mxu0 %v416
  %3945 = vmatprep.mubr.f32.mxu0 %v3840
  %3946 = vmatmul.mubr.f32.gmra.mxu0 %v3839
  %v3947 = vpop.f32.mrf.mxu0
  %v3948 = vadd.f32 0.0, %v3947
  %v3949 = vpop.f32.mrf.mxu0
  %3950 = vmatprep.mubr.f32.mxu0 %v3843
  %3951 = vmatmul.mubr.f32.gmra.mxu0 %v3842
  %v3952 = vpop.f32.mrf.mxu0
  %v3953 = vadd.f32 0.0, %v3952
  %v3954 = vpop.f32.mrf.mxu0
  %3955 = vmatprep.mubr.f32.mxu0 %v3846
  %3956 = vmatmul.mubr.f32.gmra.mxu0 %v3845
  %v3957 = vpop.f32.mrf.mxu0
  %v3958 = vadd.f32 0.0, %v3957
  %v3959 = vpop.f32.mrf.mxu0
  %3960 = vmatprep.mubr.f32.mxu0 %v3849
  %3961 = vmatmul.mubr.f32.gmra.mxu0 %v3848
  %v3962 = vpop.f32.mrf.mxu0
  %v3963 = vadd.f32 0.0, %v3962
  %v3964 = vpop.f32.mrf.mxu0
  %3965 = vmatprep.mubr.f32.mxu0 %v3852
  %3966 = vmatmul.mubr.f32.gmra.mxu0 %v3851
  %v3967 = vpop.f32.mrf.mxu0
  %v3968 = vadd.f32 0.0, %v3967
  %v3969 = vpop.f32.mrf.mxu0
  %3970 = vmatprep.mubr.f32.mxu0 %v3855
  %3971 = vmatmul.mubr.f32.gmra.mxu0 %v3854
  %v3972 = vpop.f32.mrf.mxu0
  %v3973 = vadd.f32 0.0, %v3972
  %v3974 = vpop.f32.mrf.mxu0
  %3975 = vmatprep.mubr.f32.mxu0 %v3858
  %3976 = vmatmul.mubr.f32.gmra.mxu0 %v3857
  %v3977 = vpop.f32.mrf.mxu0
  %v3978 = vadd.f32 0.0, %v3977
  %v3979 = vpop.f32.mrf.mxu0
  %3980 = vdwg.mxu0
  %3981 = vmatprep.subr.mxu0 0.0
  %3982 = vmatpush1.msra.mxu0 0.0
  %3983 = vmatprep.subr.mxu0 0.0
  %3984 = vmatpush1.msra.mxu0 0.0
  %3985 = vmatprep.subr.mxu0 0.0
  %3986 = vmatpush1.msra.mxu0 0.0
  %3987 = vmatprep.subr.mxu0 0.0
  %3988 = vmatpush1.msra.mxu0 0.0
  %3989 = vmatprep.subr.mxu0 0.0
  %3990 = vmatpush1.msra.mxu0 0.0
  %3991 = vmatprep.subr.mxu0 0.0
  %3992 = vmatpush1.msra.mxu0 0.0
  %3993 = vmatprep.subr.mxu0 0.0
  %3994 = vmatpush1.msra.mxu0 0.0
  %3995 = vmatprep.subr.mxu0 0.0
  %3996 = vmatpush1.msra.mxu0 0.0
  %3997 = vmatprep.subr.mxu0 0.0
  %3998 = vmatpush1.msra.mxu0 0.0
  %3999 = vmatprep.subr.mxu0 0.0
  %4000 = vmatpush1.msra.mxu0 0.0
  %4001 = vmatprep.subr.mxu0 0.0
  %4002 = vmatpush1.msra.mxu0 0.0
  %4003 = vmatprep.subr.mxu0 0.0
  %4004 = vmatpush1.msra.mxu0 0.0
  %4005 = vmatprep.subr.mxu0 0.0
  %4006 = vmatpush1.msra.mxu0 %v435
  %4007 = vmatprep.subr.mxu0 0.0
  %4008 = vmatpush1.msra.mxu0 %v434
  %4009 = vmatprep.subr.mxu0 0.0
  %4010 = vmatpush1.msra.mxu0 %v433
  %4011 = vmatprep.subr.mxu0 0.0
  %4012 = vmatpush1.msra.mxu0 %v432
  %4013 = vmatprep.subr.mxu0 0.0
  %4014 = vmatpush2.msra.mxu0 0.0
  %4015 = vmatprep.subr.mxu0 0.0
  %4016 = vmatpush2.msra.mxu0 0.0
  %4017 = vmatprep.subr.mxu0 0.0
  %4018 = vmatpush2.msra.mxu0 0.0
  %4019 = vmatprep.subr.mxu0 0.0
  %4020 = vmatpush2.msra.mxu0 0.0
  %4021 = vmatprep.subr.mxu0 0.0
  %4022 = vmatpush2.msra.mxu0 0.0
  %4023 = vmatprep.subr.mxu0 0.0
  %4024 = vmatpush2.msra.mxu0 0.0
  %4025 = vmatprep.subr.mxu0 0.0
  %4026 = vmatpush2.msra.mxu0 0.0
  %4027 = vmatprep.subr.mxu0 0.0
  %4028 = vmatpush2.msra.mxu0 0.0
  %4029 = vmatprep.subr.mxu0 0.0
  %4030 = vmatpush2.msra.mxu0 0.0
  %4031 = vmatprep.subr.mxu0 0.0
  %4032 = vmatpush2.msra.mxu0 0.0
  %4033 = vmatprep.subr.mxu0 0.0
  %4034 = vmatpush2.msra.mxu0 0.0
  %4035 = vmatprep.subr.mxu0 0.0
  %4036 = vmatpush2.msra.mxu0 0.0
  %4037 = vmatprep.subr.mxu0 0.0
  %4038 = vmatpush2.msra.mxu0 0.0
  %4039 = vmatprep.subr.mxu0 0.0
  %4040 = vmatpush2.msra.mxu0 0.0
  %4041 = vmatprep.subr.mxu0 0.0
  %4042 = vmatpush2.msra.mxu0 0.0
  %4043 = vmatprep.subr.mxu0 0.0
  %4044 = vmatpush2.msra.mxu0 0.0
  %4045 = vmatprep.mubr.f32.mxu0 0.0
  %4046 = vmatmul.mubr.f32.gmra.mxu0 %v3861
  %v4047 = vpop.f32.mrf.mxu0
  %v4048 = vadd.f32 %v3948, %v4047
  %v4049 = vpop.f32.mrf.mxu0
  %4050 = vmatprep.mubr.f32.mxu0 0.0
  %4051 = vmatmul.mubr.f32.gmra.mxu0 %v3864
  %v4052 = vpop.f32.mrf.mxu0
  %v4053 = vadd.f32 %v3953, %v4052
  %v4054 = vpop.f32.mrf.mxu0
  %4055 = vmatprep.mubr.f32.mxu0 0.0
  %4056 = vmatmul.mubr.f32.gmra.mxu0 %v3867
  %v4057 = vpop.f32.mrf.mxu0
  %v4058 = vadd.f32 %v3958, %v4057
  %v4059 = vpop.f32.mrf.mxu0
  %4060 = vmatprep.mubr.f32.mxu0 0.0
  %4061 = vmatmul.mubr.f32.gmra.mxu0 %v3870
  %v4062 = vpop.f32.mrf.mxu0
  %v4063 = vadd.f32 %v3963, %v4062
  %v4064 = vpop.f32.mrf.mxu0
  %4065 = vmatprep.mubr.f32.mxu0 0.0
  %4066 = vmatmul.mubr.f32.gmra.mxu0 %v3873
  %v4067 = vpop.f32.mrf.mxu0
  %v4068 = vadd.f32 %v3968, %v4067
  %v4069 = vpop.f32.mrf.mxu0
  %4070 = vmatprep.mubr.f32.mxu0 0.0
  %4071 = vmatmul.mubr.f32.gmra.mxu0 %v3876
  %v4072 = vpop.f32.mrf.mxu0
  %v4073 = vadd.f32 %v3973, %v4072
  %v4074 = vpop.f32.mrf.mxu0
  %4075 = vmatprep.mubr.f32.mxu0 0.0
  %4076 = vmatmul.mubr.f32.gmra.mxu0 %v3879
  %v4077 = vpop.f32.mrf.mxu0
  %v4078 = vadd.f32 %v3978, %v4077
  %v4079 = vpop.f32.mrf.mxu0
  %4080 = vdwg.mxu0
  %s4081 = scalar_lea.vmem %s3, 2520
  %v4082 = vld [vmem:[%s4081] sm:$0xff]
  %v4083 = vld [vmem:[%s4081 + $0x8] sm:$0xff]
  %v4084 = vld [vmem:[%s4081 + $0x10] sm:$0xff]
  %v4085 = vld [vmem:[%s4081 + $0x18] sm:$0xff]
  %v4086 = vld [vmem:[%s4081 + $0x20] sm:$0xff]
  %v4087 = vld [vmem:[%s4081 + $0x28] sm:$0xff]
  %v4088 = vld [vmem:[%s4081 + $0x30] sm:$0xff]
  %v4089 = vld [vmem:[%s4081 + $0x38] sm:$0xff]
  %v4090 = vld [vmem:[%s4081 + $0x40] sm:$0xff]
  %v4091 = vld [vmem:[%s4081 + $0x48] sm:$0xff]
  %v4092 = vld [vmem:[%s4081 + $0x50] sm:$0xff]
  %v4093 = vld [vmem:[%s4081 + $0x58] sm:$0xff]
  %v4094 = vld [vmem:[%s4081 + $0x60] sm:$0xff]
  %v4095 = vld [vmem:[%s4081 + $0x68] sm:$0xff]
  %v4096 = vld [vmem:[%s4081 + $0x70] sm:$0xff]
  %v4097 = vld [vmem:[%s4081 + $0x78] sm:$0xff]
  %v4098 = vld [vmem:[%s4081 + $0x80] sm:$0xff]
  %v4099 = vld [vmem:[%s4081 + $0x88] sm:$0xff]
  %v4100 = vld [vmem:[%s4081 + $0x90] sm:$0x3]
  %v4101 = vld [vmem:[%s4081 + $0x98] sm:$0x3]
  %v4102 = vld [vmem:[%s4081 + $0xa0] sm:$0x3]
  %v4104 = vsel %vm457, %v4084, 0
  %v4107 = vsel %vm457, %v4087, 0
  %v4110 = vsel %vm457, %v4090, 0
  %v4113 = vsel %vm457, %v4093, 0
  %v4116 = vsel %vm457, %v4096, 0
  %v4119 = vsel %vm457, %v4099, 0
  %v4122 = vsel %vm457, %v4102, 0
  %4124 = vmatprep.subr.mxu0 0.0
  %4125 = vmatpush1.msra.mxu0 %v415
  %4126 = vmatprep.subr.mxu0 0.0
  %4127 = vmatpush1.msra.mxu0 %v414
  %4128 = vmatprep.subr.mxu0 0.0
  %4129 = vmatpush1.msra.mxu0 %v413
  %4130 = vmatprep.subr.mxu0 0.0
  %4131 = vmatpush1.msra.mxu0 %v412
  %4132 = vmatprep.subr.mxu0 0.0
  %4133 = vmatpush1.msra.mxu0 %v411
  %4134 = vmatprep.subr.mxu0 0.0
  %4135 = vmatpush1.msra.mxu0 %v410
  %4136 = vmatprep.subr.mxu0 0.0
  %4137 = vmatpush1.msra.mxu0 %v409
  %4138 = vmatprep.subr.mxu0 0.0
  %4139 = vmatpush1.msra.mxu0 %v408
  %4140 = vmatprep.subr.mxu0 0.0
  %4141 = vmatpush1.msra.mxu0 %v407
  %4142 = vmatprep.subr.mxu0 0.0
  %4143 = vmatpush1.msra.mxu0 %v406
  %4144 = vmatprep.subr.mxu0 0.0
  %4145 = vmatpush1.msra.mxu0 %v405
  %4146 = vmatprep.subr.mxu0 0.0
  %4147 = vmatpush1.msra.mxu0 %v404
  %4148 = vmatprep.subr.mxu0 0.0
  %4149 = vmatpush1.msra.mxu0 %v403
  %4150 = vmatprep.subr.mxu0 0.0
  %4151 = vmatpush1.msra.mxu0 %v402
  %4152 = vmatprep.subr.mxu0 0.0
  %4153 = vmatpush1.msra.mxu0 %v401
  %4154 = vmatprep.subr.mxu0 0.0
  %4155 = vmatpush1.msra.mxu0 %v400
  %4156 = vmatprep.subr.mxu0 0.0
  %4157 = vmatpush2.msra.mxu0 %v431
  %4158 = vmatprep.subr.mxu0 0.0
  %4159 = vmatpush2.msra.mxu0 %v430
  %4160 = vmatprep.subr.mxu0 0.0
  %4161 = vmatpush2.msra.mxu0 %v429
  %4162 = vmatprep.subr.mxu0 0.0
  %4163 = vmatpush2.msra.mxu0 %v428
  %4164 = vmatprep.subr.mxu0 0.0
  %4165 = vmatpush2.msra.mxu0 %v427
  %4166 = vmatprep.subr.mxu0 0.0
  %4167 = vmatpush2.msra.mxu0 %v426
  %4168 = vmatprep.subr.mxu0 0.0
  %4169 = vmatpush2.msra.mxu0 %v425
  %4170 = vmatprep.subr.mxu0 0.0
  %4171 = vmatpush2.msra.mxu0 %v424
  %4172 = vmatprep.subr.mxu0 0.0
  %4173 = vmatpush2.msra.mxu0 %v423
  %4174 = vmatprep.subr.mxu0 0.0
  %4175 = vmatpush2.msra.mxu0 %v422
  %4176 = vmatprep.subr.mxu0 0.0
  %4177 = vmatpush2.msra.mxu0 %v421
  %4178 = vmatprep.subr.mxu0 0.0
  %4179 = vmatpush2.msra.mxu0 %v420
  %4180 = vmatprep.subr.mxu0 0.0
  %4181 = vmatpush2.msra.mxu0 %v419
  %4182 = vmatprep.subr.mxu0 0.0
  %4183 = vmatpush2.msra.mxu0 %v418
  %4184 = vmatprep.subr.mxu0 0.0
  %4185 = vmatpush2.msra.mxu0 %v417
  %4186 = vmatprep.subr.mxu0 0.0
  %4187 = vmatpush2.msra.mxu0 %v416
  %4188 = vmatprep.mubr.f32.mxu0 %v4083
  %4189 = vmatmul.mubr.f32.gmra.mxu0 %v4082
  %v4190 = vpop.f32.mrf.mxu0
  %v4191 = vadd.f32 0.0, %v4190
  %v4192 = vpop.f32.mrf.mxu0
  %4193 = vmatprep.mubr.f32.mxu0 %v4086
  %4194 = vmatmul.mubr.f32.gmra.mxu0 %v4085
  %v4195 = vpop.f32.mrf.mxu0
  %v4196 = vadd.f32 0.0, %v4195
  %v4197 = vpop.f32.mrf.mxu0
  %4198 = vmatprep.mubr.f32.mxu0 %v4089
  %4199 = vmatmul.mubr.f32.gmra.mxu0 %v4088
  %v4200 = vpop.f32.mrf.mxu0
  %v4201 = vadd.f32 0.0, %v4200
  %v4202 = vpop.f32.mrf.mxu0
  %4203 = vmatprep.mubr.f32.mxu0 %v4092
  %4204 = vmatmul.mubr.f32.gmra.mxu0 %v4091
  %v4205 = vpop.f32.mrf.mxu0
  %v4206 = vadd.f32 0.0, %v4205
  %v4207 = vpop.f32.mrf.mxu0
  %4208 = vmatprep.mubr.f32.mxu0 %v4095
  %4209 = vmatmul.mubr.f32.gmra.mxu0 %v4094
  %v4210 = vpop.f32.mrf.mxu0
  %v4211 = vadd.f32 0.0, %v4210
  %v4212 = vpop.f32.mrf.mxu0
  %4213 = vmatprep.mubr.f32.mxu0 %v4098
  %4214 = vmatmul.mubr.f32.gmra.mxu0 %v4097
  %v4215 = vpop.f32.mrf.mxu0
  %v4216 = vadd.f32 0.0, %v4215
  %v4217 = vpop.f32.mrf.mxu0
  %4218 = vmatprep.mubr.f32.mxu0 %v4101
  %4219 = vmatmul.mubr.f32.gmra.mxu0 %v4100
  %v4220 = vpop.f32.mrf.mxu0
  %v4221 = vadd.f32 0.0, %v4220
  %v4222 = vpop.f32.mrf.mxu0
  %4223 = vdwg.mxu0
  %4224 = vmatprep.subr.mxu0 0.0
  %4225 = vmatpush1.msra.mxu0 0.0
  %4226 = vmatprep.subr.mxu0 0.0
  %4227 = vmatpush1.msra.mxu0 0.0
  %4228 = vmatprep.subr.mxu0 0.0
  %4229 = vmatpush1.msra.mxu0 0.0
  %4230 = vmatprep.subr.mxu0 0.0
  %4231 = vmatpush1.msra.mxu0 0.0
  %4232 = vmatprep.subr.mxu0 0.0
  %4233 = vmatpush1.msra.mxu0 0.0
  %4234 = vmatprep.subr.mxu0 0.0
  %4235 = vmatpush1.msra.mxu0 0.0
  %4236 = vmatprep.subr.mxu0 0.0
  %4237 = vmatpush1.msra.mxu0 0.0
  %4238 = vmatprep.subr.mxu0 0.0
  %4239 = vmatpush1.msra.mxu0 0.0
  %4240 = vmatprep.subr.mxu0 0.0
  %4241 = vmatpush1.msra.mxu0 0.0
  %4242 = vmatprep.subr.mxu0 0.0
  %4243 = vmatpush1.msra.mxu0 0.0
  %4244 = vmatprep.subr.mxu0 0.0
  %4245 = vmatpush1.msra.mxu0 0.0
  %4246 = vmatprep.subr.mxu0 0.0
  %4247 = vmatpush1.msra.mxu0 0.0
  %4248 = vmatprep.subr.mxu0 0.0
  %4249 = vmatpush1.msra.mxu0 %v435
  %4250 = vmatprep.subr.mxu0 0.0
  %4251 = vmatpush1.msra.mxu0 %v434
  %4252 = vmatprep.subr.mxu0 0.0
  %4253 = vmatpush1.msra.mxu0 %v433
  %4254 = vmatprep.subr.mxu0 0.0
  %4255 = vmatpush1.msra.mxu0 %v432
  %4256 = vmatprep.subr.mxu0 0.0
  %4257 = vmatpush2.msra.mxu0 0.0
  %4258 = vmatprep.subr.mxu0 0.0
  %4259 = vmatpush2.msra.mxu0 0.0
  %4260 = vmatprep.subr.mxu0 0.0
  %4261 = vmatpush2.msra.mxu0 0.0
  %4262 = vmatprep.subr.mxu0 0.0
  %4263 = vmatpush2.msra.mxu0 0.0
  %4264 = vmatprep.subr.mxu0 0.0
  %4265 = vmatpush2.msra.mxu0 0.0
  %4266 = vmatprep.subr.mxu0 0.0
  %4267 = vmatpush2.msra.mxu0 0.0
  %4268 = vmatprep.subr.mxu0 0.0
  %4269 = vmatpush2.msra.mxu0 0.0
  %4270 = vmatprep.subr.mxu0 0.0
  %4271 = vmatpush2.msra.mxu0 0.0
  %4272 = vmatprep.subr.mxu0 0.0
  %4273 = vmatpush2.msra.mxu0 0.0
  %4274 = vmatprep.subr.mxu0 0.0
  %4275 = vmatpush2.msra.mxu0 0.0
  %4276 = vmatprep.subr.mxu0 0.0
  %4277 = vmatpush2.msra.mxu0 0.0
  %4278 = vmatprep.subr.mxu0 0.0
  %4279 = vmatpush2.msra.mxu0 0.0
  %4280 = vmatprep.subr.mxu0 0.0
  %4281 = vmatpush2.msra.mxu0 0.0
  %4282 = vmatprep.subr.mxu0 0.0
  %4283 = vmatpush2.msra.mxu0 0.0
  %4284 = vmatprep.subr.mxu0 0.0
  %4285 = vmatpush2.msra.mxu0 0.0
  %4286 = vmatprep.subr.mxu0 0.0
  %4287 = vmatpush2.msra.mxu0 0.0
  %4288 = vmatprep.mubr.f32.mxu0 0.0
  %4289 = vmatmul.mubr.f32.gmra.mxu0 %v4104
  %v4290 = vpop.f32.mrf.mxu0
  %v4291 = vadd.f32 %v4191, %v4290
  %v4292 = vpop.f32.mrf.mxu0
  %4293 = vmatprep.mubr.f32.mxu0 0.0
  %4294 = vmatmul.mubr.f32.gmra.mxu0 %v4107
  %v4295 = vpop.f32.mrf.mxu0
  %v4296 = vadd.f32 %v4196, %v4295
  %v4297 = vpop.f32.mrf.mxu0
  %4298 = vmatprep.mubr.f32.mxu0 0.0
  %4299 = vmatmul.mubr.f32.gmra.mxu0 %v4110
  %v4300 = vpop.f32.mrf.mxu0
  %v4301 = vadd.f32 %v4201, %v4300
  %v4302 = vpop.f32.mrf.mxu0
  %4303 = vmatprep.mubr.f32.mxu0 0.0
  %4304 = vmatmul.mubr.f32.gmra.mxu0 %v4113
  %v4305 = vpop.f32.mrf.mxu0
  %v4306 = vadd.f32 %v4206, %v4305
  %v4307 = vpop.f32.mrf.mxu0
  %4308 = vmatprep.mubr.f32.mxu0 0.0
  %4309 = vmatmul.mubr.f32.gmra.mxu0 %v4116
  %v4310 = vpop.f32.mrf.mxu0
  %v4311 = vadd.f32 %v4211, %v4310
  %v4312 = vpop.f32.mrf.mxu0
  %4313 = vmatprep.mubr.f32.mxu0 0.0
  %4314 = vmatmul.mubr.f32.gmra.mxu0 %v4119
  %v4315 = vpop.f32.mrf.mxu0
  %v4316 = vadd.f32 %v4216, %v4315
  %v4317 = vpop.f32.mrf.mxu0
  %4318 = vmatprep.mubr.f32.mxu0 0.0
  %4319 = vmatmul.mubr.f32.gmra.mxu0 %v4122
  %v4320 = vpop.f32.mrf.mxu0
  %v4321 = vadd.f32 %v4221, %v4320
  %v4322 = vpop.f32.mrf.mxu0
  %4323 = vdwg.mxu0
  %4331 = vrot.lane.b32.xlu0 %v889, 32
  %v4332 = vpop.permute.xlu0 %4331
  %4333 = vrot.lane.b32.xlu0 %v894, 32
  %v4334 = vpop.permute.xlu0 %4333
  %4335 = vrot.lane.b32.xlu0 %v899, 32
  %v4336 = vpop.permute.xlu0 %4335
  %4337 = vrot.lane.b32.xlu0 %v904, 32
  %v4338 = vpop.permute.xlu0 %4337
  %4339 = vrot.lane.b32.xlu0 %v909, 32
  %v4340 = vpop.permute.xlu0 %4339
  %4341 = vrot.lane.b32.xlu0 %v914, 32
  %v4342 = vpop.permute.xlu0 %4341
  %4343 = vrot.lane.b32.xlu0 %v919, 32
  %v4344 = vpop.permute.xlu0 %4343
  %4359 = vrot.lane.b32.xlu0 %v1132, 64
  %v4360 = vpop.permute.xlu0 %4359
  %4361 = vrot.lane.b32.xlu0 %v1137, 64
  %v4362 = vpop.permute.xlu0 %4361
  %4363 = vrot.lane.b32.xlu0 %v1142, 64
  %v4364 = vpop.permute.xlu0 %4363
  %4365 = vrot.lane.b32.xlu0 %v1147, 64
  %v4366 = vpop.permute.xlu0 %4365
  %4367 = vrot.lane.b32.xlu0 %v1152, 64
  %v4368 = vpop.permute.xlu0 %4367
  %4369 = vrot.lane.b32.xlu0 %v1157, 64
  %v4370 = vpop.permute.xlu0 %4369
  %4371 = vrot.lane.b32.xlu0 %v1162, 64
  %v4372 = vpop.permute.xlu0 %4371
  %4387 = vrot.lane.b32.xlu0 %v1375, 96
  %v4388 = vpop.permute.xlu0 %4387
  %4389 = vrot.lane.b32.xlu0 %v1380, 96
  %v4390 = vpop.permute.xlu0 %4389
  %4391 = vrot.lane.b32.xlu0 %v1385, 96
  %v4392 = vpop.permute.xlu0 %4391
  %4393 = vrot.lane.b32.xlu0 %v1390, 96
  %v4394 = vpop.permute.xlu0 %4393
  %4395 = vrot.lane.b32.xlu0 %v1395, 96
  %v4396 = vpop.permute.xlu0 %4395
  %4397 = vrot.lane.b32.xlu0 %v1400, 96
  %v4398 = vpop.permute.xlu0 %4397
  %4399 = vrot.lane.b32.xlu0 %v1405, 96
  %v4400 = vpop.permute.xlu0 %4399
  %4415 = vrot.lane.b32.xlu0 %v1861, 32
  %v4416 = vpop.permute.xlu0 %4415
  %4417 = vrot.lane.b32.xlu0 %v1866, 32
  %v4418 = vpop.permute.xlu0 %4417
  %4419 = vrot.lane.b32.xlu0 %v1871, 32
  %v4420 = vpop.permute.xlu0 %4419
  %4421 = vrot.lane.b32.xlu0 %v1876, 32
  %v4422 = vpop.permute.xlu0 %4421
  %4423 = vrot.lane.b32.xlu0 %v1881, 32
  %v4424 = vpop.permute.xlu0 %4423
  %4425 = vrot.lane.b32.xlu0 %v1886, 32
  %v4426 = vpop.permute.xlu0 %4425
  %4427 = vrot.lane.b32.xlu0 %v1891, 32
  %v4428 = vpop.permute.xlu0 %4427
  %4443 = vrot.lane.b32.xlu0 %v2104, 64
  %v4444 = vpop.permute.xlu0 %4443
  %4445 = vrot.lane.b32.xlu0 %v2109, 64
  %v4446 = vpop.permute.xlu0 %4445
  %4447 = vrot.lane.b32.xlu0 %v2114, 64
  %v4448 = vpop.permute.xlu0 %4447
  %4449 = vrot.lane.b32.xlu0 %v2119, 64
  %v4450 = vpop.permute.xlu0 %4449
  %4451 = vrot.lane.b32.xlu0 %v2124, 64
  %v4452 = vpop.permute.xlu0 %4451
  %4453 = vrot.lane.b32.xlu0 %v2129, 64
  %v4454 = vpop.permute.xlu0 %4453
  %4455 = vrot.lane.b32.xlu0 %v2134, 64
  %v4456 = vpop.permute.xlu0 %4455
  %4471 = vrot.lane.b32.xlu0 %v2347, 96
  %v4472 = vpop.permute.xlu0 %4471
  %4473 = vrot.lane.b32.xlu0 %v2352, 96
  %v4474 = vpop.permute.xlu0 %4473
  %4475 = vrot.lane.b32.xlu0 %v2357, 96
  %v4476 = vpop.permute.xlu0 %4475
  %4477 = vrot.lane.b32.xlu0 %v2362, 96
  %v4478 = vpop.permute.xlu0 %4477
  %4479 = vrot.lane.b32.xlu0 %v2367, 96
  %v4480 = vpop.permute.xlu0 %4479
  %4481 = vrot.lane.b32.xlu0 %v2372, 96
  %v4482 = vpop.permute.xlu0 %4481
  %4483 = vrot.lane.b32.xlu0 %v2377, 96
  %v4484 = vpop.permute.xlu0 %4483
  %4499 = vrot.lane.b32.xlu0 %v2833, 32
  %v4500 = vpop.permute.xlu0 %4499
  %4501 = vrot.lane.b32.xlu0 %v2838, 32
  %v4502 = vpop.permute.xlu0 %4501
  %4503 = vrot.lane.b32.xlu0 %v2843, 32
  %v4504 = vpop.permute.xlu0 %4503
  %4505 = vrot.lane.b32.xlu0 %v2848, 32
  %v4506 = vpop.permute.xlu0 %4505
  %4507 = vrot.lane.b32.xlu0 %v2853, 32
  %v4508 = vpop.permute.xlu0 %4507
  %4509 = vrot.lane.b32.xlu0 %v2858, 32
  %v4510 = vpop.permute.xlu0 %4509
  %4511 = vrot.lane.b32.xlu0 %v2863, 32
  %v4512 = vpop.permute.xlu0 %4511
  %4527 = vrot.lane.b32.xlu0 %v3076, 64
  %v4528 = vpop.permute.xlu0 %4527
  %4529 = vrot.lane.b32.xlu0 %v3081, 64
  %v4530 = vpop.permute.xlu0 %4529
  %4531 = vrot.lane.b32.xlu0 %v3086, 64
  %v4532 = vpop.permute.xlu0 %4531
  %4533 = vrot.lane.b32.xlu0 %v3091, 64
  %v4534 = vpop.permute.xlu0 %4533
  %4535 = vrot.lane.b32.xlu0 %v3096, 64
  %v4536 = vpop.permute.xlu0 %4535
  %4537 = vrot.lane.b32.xlu0 %v3101, 64
  %v4538 = vpop.permute.xlu0 %4537
  %4539 = vrot.lane.b32.xlu0 %v3106, 64
  %v4540 = vpop.permute.xlu0 %4539
  %4555 = vrot.lane.b32.xlu0 %v3319, 96
  %v4556 = vpop.permute.xlu0 %4555
  %4557 = vrot.lane.b32.xlu0 %v3324, 96
  %v4558 = vpop.permute.xlu0 %4557
  %4559 = vrot.lane.b32.xlu0 %v3329, 96
  %v4560 = vpop.permute.xlu0 %4559
  %4561 = vrot.lane.b32.xlu0 %v3334, 96
  %v4562 = vpop.permute.xlu0 %4561
  %4563 = vrot.lane.b32.xlu0 %v3339, 96
  %v4564 = vpop.permute.xlu0 %4563
  %4565 = vrot.lane.b32.xlu0 %v3344, 96
  %v4566 = vpop.permute.xlu0 %4565
  %4567 = vrot.lane.b32.xlu0 %v3349, 96
  %v4568 = vpop.permute.xlu0 %4567
  %4583 = vrot.lane.b32.xlu0 %v3805, 32
  %v4584 = vpop.permute.xlu0 %4583
  %4585 = vrot.lane.b32.xlu0 %v3810, 32
  %v4586 = vpop.permute.xlu0 %4585
  %4587 = vrot.lane.b32.xlu0 %v3815, 32
  %v4588 = vpop.permute.xlu0 %4587
  %4589 = vrot.lane.b32.xlu0 %v3820, 32
  %v4590 = vpop.permute.xlu0 %4589
  %4591 = vrot.lane.b32.xlu0 %v3825, 32
  %v4592 = vpop.permute.xlu0 %4591
  %4593 = vrot.lane.b32.xlu0 %v3830, 32
  %v4594 = vpop.permute.xlu0 %4593
  %4595 = vrot.lane.b32.xlu0 %v3835, 32
  %v4596 = vpop.permute.xlu0 %4595
  %4611 = vrot.lane.b32.xlu0 %v4048, 64
  %v4612 = vpop.permute.xlu0 %4611
  %4613 = vrot.lane.b32.xlu0 %v4053, 64
  %v4614 = vpop.permute.xlu0 %4613
  %4615 = vrot.lane.b32.xlu0 %v4058, 64
  %v4616 = vpop.permute.xlu0 %4615
  %4617 = vrot.lane.b32.xlu0 %v4063, 64
  %v4618 = vpop.permute.xlu0 %4617
  %4619 = vrot.lane.b32.xlu0 %v4068, 64
  %v4620 = vpop.permute.xlu0 %4619
  %4621 = vrot.lane.b32.xlu0 %v4073, 64
  %v4622 = vpop.permute.xlu0 %4621
  %4623 = vrot.lane.b32.xlu0 %v4078, 64
  %v4624 = vpop.permute.xlu0 %4623
  %4639 = vrot.lane.b32.xlu0 %v4291, 96
  %v4640 = vpop.permute.xlu0 %4639
  %4641 = vrot.lane.b32.xlu0 %v4296, 96
  %v4642 = vpop.permute.xlu0 %4641
  %4643 = vrot.lane.b32.xlu0 %v4301, 96
  %v4644 = vpop.permute.xlu0 %4643
  %4645 = vrot.lane.b32.xlu0 %v4306, 96
  %v4646 = vpop.permute.xlu0 %4645
  %4647 = vrot.lane.b32.xlu0 %v4311, 96
  %v4648 = vpop.permute.xlu0 %4647
  %4649 = vrot.lane.b32.xlu0 %v4316, 96
  %v4650 = vpop.permute.xlu0 %4649
  %4651 = vrot.lane.b32.xlu0 %v4321, 96
  %v4652 = vpop.permute.xlu0 %4651
  %v4660 = vsel %vm457, %v646, %v4332
  %v4661 = vsel %vm457, %v651, %v4334
  %v4662 = vsel %vm457, %v656, %v4336
  %v4663 = vsel %vm457, %v661, %v4338
  %v4664 = vsel %vm457, %v666, %v4340
  %v4665 = vsel %vm457, %v671, %v4342
  %v4666 = vsel %vm457, %v676, %v4344
  %vm4667 = vcmask 523264
  %v4668 = vsel %vm4667, %v4660, %v4360
  %v4669 = vsel %vm4667, %v4661, %v4362
  %v4670 = vsel %vm4667, %v4662, %v4364
  %v4671 = vsel %vm4667, %v4663, %v4366
  %v4672 = vsel %vm4667, %v4664, %v4368
  %v4673 = vsel %vm4667, %v4665, %v4370
  %v4674 = vsel %vm4667, %v4666, %v4372
  %vm4675 = vcmask 785408
  %v4676 = vsel %vm4675, %v4668, %v4388
  %v4677 = vsel %vm4675, %v4669, %v4390
  %v4678 = vsel %vm4675, %v4670, %v4392
  %v4679 = vsel %vm4675, %v4671, %v4394
  %v4680 = vsel %vm4675, %v4672, %v4396
  %v4681 = vsel %vm4675, %v4673, %v4398
  %v4682 = vsel %vm4675, %v4674, %v4400
  %v4683 = vsel %vm457, %v1618, %v4416
  %v4684 = vsel %vm457, %v1623, %v4418
  %v4685 = vsel %vm457, %v1628, %v4420
  %v4686 = vsel %vm457, %v1633, %v4422
  %v4687 = vsel %vm457, %v1638, %v4424
  %v4688 = vsel %vm457, %v1643, %v4426
  %v4689 = vsel %vm457, %v1648, %v4428
  %v4690 = vsel %vm4667, %v4683, %v4444
  %v4691 = vsel %vm4667, %v4684, %v4446
  %v4692 = vsel %vm4667, %v4685, %v4448
  %v4693 = vsel %vm4667, %v4686, %v4450
  %v4694 = vsel %vm4667, %v4687, %v4452
  %v4695 = vsel %vm4667, %v4688, %v4454
  %v4696 = vsel %vm4667, %v4689, %v4456
  %v4697 = vsel %vm4675, %v4690, %v4472
  %v4698 = vsel %vm4675, %v4691, %v4474
  %v4699 = vsel %vm4675, %v4692, %v4476
  %v4700 = vsel %vm4675, %v4693, %v4478
  %v4701 = vsel %vm4675, %v4694, %v4480
  %v4702 = vsel %vm4675, %v4695, %v4482
  %v4703 = vsel %vm4675, %v4696, %v4484
  %v4704 = vsel %vm457, %v2590, %v4500
  %v4705 = vsel %vm457, %v2595, %v4502
  %v4706 = vsel %vm457, %v2600, %v4504
  %v4707 = vsel %vm457, %v2605, %v4506
  %v4708 = vsel %vm457, %v2610, %v4508
  %v4709 = vsel %vm457, %v2615, %v4510
  %v4710 = vsel %vm457, %v2620, %v4512
  %v4711 = vsel %vm4667, %v4704, %v4528
  %v4712 = vsel %vm4667, %v4705, %v4530
  %v4713 = vsel %vm4667, %v4706, %v4532
  %v4714 = vsel %vm4667, %v4707, %v4534
  %v4715 = vsel %vm4667, %v4708, %v4536
  %v4716 = vsel %vm4667, %v4709, %v4538
  %v4717 = vsel %vm4667, %v4710, %v4540
  %v4718 = vsel %vm4675, %v4711, %v4556
  %v4719 = vsel %vm4675, %v4712, %v4558
  %v4720 = vsel %vm4675, %v4713, %v4560
  %v4721 = vsel %vm4675, %v4714, %v4562
  %v4722 = vsel %vm4675, %v4715, %v4564
  %v4723 = vsel %vm4675, %v4716, %v4566
  %v4724 = vsel %vm4675, %v4717, %v4568
  %v4725 = vsel %vm457, %v3562, %v4584
  %v4726 = vsel %vm457, %v3567, %v4586
  %v4727 = vsel %vm457, %v3572, %v4588
  %v4728 = vsel %vm457, %v3577, %v4590
  %v4729 = vsel %vm457, %v3582, %v4592
  %v4730 = vsel %vm457, %v3587, %v4594
  %v4731 = vsel %vm457, %v3592, %v4596
  %v4732 = vsel %vm4667, %v4725, %v4612
  %v4733 = vsel %vm4667, %v4726, %v4614
  %v4734 = vsel %vm4667, %v4727, %v4616
  %v4735 = vsel %vm4667, %v4728, %v4618
  %v4736 = vsel %vm4667, %v4729, %v4620
  %v4737 = vsel %vm4667, %v4730, %v4622
  %v4738 = vsel %vm4667, %v4731, %v4624
  %v4739 = vsel %vm4675, %v4732, %v4640
  %v4740 = vsel %vm4675, %v4733, %v4642
  %v4741 = vsel %vm4675, %v4734, %v4644
  %v4742 = vsel %vm4675, %v4735, %v4646
  %v4743 = vsel %vm4675, %v4736, %v4648
  %v4744 = vsel %vm4675, %v4737, %v4650
  %v4745 = vsel %vm4675, %v4738, %v4652
  %v4746 = vld [vmem:[%s4] sm:$0xff]
  %v4747 = vld [vmem:[%s4 + $0x8] sm:$0xff]
  %v4748 = vld [vmem:[%s4 + $0x10] sm:$0xff]
  %v4749 = vld [vmem:[%s4 + $0x18] sm:$0xff]
  %v4750 = vld [vmem:[%s4 + $0x20] sm:$0xff]
  %v4751 = vld [vmem:[%s4 + $0x28] sm:$0xff]
  %v4752 = vld [vmem:[%s4 + $0x30] sm:$0xff]
  %v4753 = vld [vmem:[%s4 + $0x38] sm:$0xff]
  %v4754 = vld [vmem:[%s4 + $0x40] sm:$0xff]
  %v4755 = vld [vmem:[%s4 + $0x48] sm:$0xff]
  %v4756 = vld [vmem:[%s4 + $0x50] sm:$0xff]
  %v4757 = vld [vmem:[%s4 + $0x58] sm:$0xff]
  %v4758 = vld [vmem:[%s4 + $0x60] sm:$0xff]
  %v4759 = vld [vmem:[%s4 + $0x68] sm:$0xff]
  %v4760 = vld [vmem:[%s4 + $0x70] sm:$0xff]
  %v4761 = vld [vmem:[%s4 + $0x78] sm:$0xff]
  %v4762 = vld [vmem:[%s4 + $0x80] sm:$0xff]
  %v4763 = vld [vmem:[%s4 + $0x88] sm:$0xff]
  %v4764 = vld [vmem:[%s4 + $0x90] sm:$0xff]
  %v4765 = vld [vmem:[%s4 + $0x98] sm:$0xff]
  %v4766 = vld [vmem:[%s4 + $0xa0] sm:$0xff]
  %v4767 = vld [vmem:[%s4 + $0xa8] sm:$0xff]
  %v4768 = vld [vmem:[%s4 + $0xb0] sm:$0xff]
  %v4769 = vld [vmem:[%s4 + $0xb8] sm:$0xff]
  %v4770 = vld [vmem:[%s4 + $0xc0] sm:$0xff]
  %v4771 = vld [vmem:[%s4 + $0xc8] sm:$0xff]
  %v4772 = vld [vmem:[%s4 + $0xd0] sm:$0xff]
  %v4773 = vld [vmem:[%s4 + $0xd8] sm:$0xff]
  %v4774 = vld [vmem:[%s4 + $0xe0] sm:$0xff]
  %v4775 = vld [vmem:[%s4 + $0xe8] sm:$0xff]
  %v4776 = vld [vmem:[%s4 + $0xf0] sm:$0xff]
  %v4777 = vld [vmem:[%s4 + $0xf8] sm:$0xff]
  %v4778 = vld [vmem:[%s4 + $0x100] sm:$0xff]
  %v4779 = vld [vmem:[%s4 + $0x108] sm:$0xff]
  %v4780 = vld [vmem:[%s4 + $0x110] sm:$0xff]
  %v4781 = vld [vmem:[%s4 + $0x118] sm:$0xff]
  %v4782 = vld [vmem:[%s4 + $0x120] sm:$0xff]
  %v4783 = vld [vmem:[%s4 + $0x128] sm:$0xff]
  %v4784 = vld [vmem:[%s4 + $0x130] sm:$0xff]
  %v4785 = vld [vmem:[%s4 + $0x138] sm:$0xff]
  %v4786 = vld [vmem:[%s4 + $0x140] sm:$0xff]
  %v4787 = vld [vmem:[%s4 + $0x148] sm:$0xff]
  %v4788 = vld [vmem:[%s4 + $0x150] sm:$0xff]
  %v4789 = vld [vmem:[%s4 + $0x158] sm:$0xff]
  %v4790 = vld [vmem:[%s4 + $0x160] sm:$0xff]
  %v4791 = vld [vmem:[%s4 + $0x168] sm:$0xff]
  %v4792 = vld [vmem:[%s4 + $0x170] sm:$0xff]
  %v4793 = vld [vmem:[%s4 + $0x178] sm:$0xff]
  %v4794 = vld [vmem:[%s4 + $0x180] sm:$0xff]
  %v4795 = vld [vmem:[%s4 + $0x188] sm:$0xff]
  %v4796 = vld [vmem:[%s4 + $0x190] sm:$0xff]
  %v4797 = vld [vmem:[%s4 + $0x198] sm:$0xff]
  %v4798 = vld [vmem:[%s4 + $0x1a0] sm:$0xff]
  %v4799 = vld [vmem:[%s4 + $0x1a8] sm:$0xff]
  %v4800 = vld [vmem:[%s4 + $0x1b0] sm:$0xff]
  %v4801 = vld [vmem:[%s4 + $0x1b8] sm:$0xff]
  %v4802 = vld [vmem:[%s4 + $0x1c0] sm:$0xff]
  %v4803 = vld [vmem:[%s4 + $0x1c8] sm:$0xff]
  %v4804 = vld [vmem:[%s4 + $0x1d0] sm:$0xff]
  %v4805 = vld [vmem:[%s4 + $0x1d8] sm:$0xff]
  %v4806 = vld [vmem:[%s4 + $0x1e0] sm:$0xff]
  %v4807 = vld [vmem:[%s4 + $0x1e8] sm:$0xff]
  %v4808 = vld [vmem:[%s4 + $0x1f0] sm:$0xff]
  %v4809 = vld [vmem:[%s4 + $0x1f8] sm:$0xff]
  %v4810 = vld [vmem:[%s5] sm:$0x1]
  %v4812 = vlaneseq
  %v4813 = vshrl.u32 %v4812, 7
  %v4814 = vsub.s32 0, %v4813
  %v4815 = vrot.slane %v4810, %v4814
  %4817 = vmatprep.subr.mxu0 0.0
  %4818 = vmatpush1.msra.mxu0 %v4761
  %4819 = vmatprep.subr.mxu0 0.0
  %4820 = vmatpush1.msra.mxu0 %v4760
  %4821 = vmatprep.subr.mxu0 0.0
  %4822 = vmatpush1.msra.mxu0 %v4759
  %4823 = vmatprep.subr.mxu0 0.0
  %4824 = vmatpush1.msra.mxu0 %v4758
  %4825 = vmatprep.subr.mxu0 0.0
  %4826 = vmatpush1.msra.mxu0 %v4757
  %4827 = vmatprep.subr.mxu0 0.0
  %4828 = vmatpush1.msra.mxu0 %v4756
  %4829 = vmatprep.subr.mxu0 0.0
  %4830 = vmatpush1.msra.mxu0 %v4755
  %4831 = vmatprep.subr.mxu0 0.0
  %4832 = vmatpush1.msra.mxu0 %v4754
  %4833 = vmatprep.subr.mxu0 0.0
  %4834 = vmatpush1.msra.mxu0 %v4753
  %4835 = vmatprep.subr.mxu0 0.0
  %4836 = vmatpush1.msra.mxu0 %v4752
  %4837 = vmatprep.subr.mxu0 0.0
  %4838 = vmatpush1.msra.mxu0 %v4751
  %4839 = vmatprep.subr.mxu0 0.0
  %4840 = vmatpush1.msra.mxu0 %v4750
  %4841 = vmatprep.subr.mxu0 0.0
  %4842 = vmatpush1.msra.mxu0 %v4749
  %4843 = vmatprep.subr.mxu0 0.0
  %4844 = vmatpush1.msra.mxu0 %v4748
  %4845 = vmatprep.subr.mxu0 0.0
  %4846 = vmatpush1.msra.mxu0 %v4747
  %4847 = vmatprep.subr.mxu0 0.0
  %4848 = vmatpush1.msra.mxu0 %v4746
  %4849 = vmatprep.subr.mxu0 0.0
  %4850 = vmatpush2.msra.mxu0 %v4777
  %4851 = vmatprep.subr.mxu0 0.0
  %4852 = vmatpush2.msra.mxu0 %v4776
  %4853 = vmatprep.subr.mxu0 0.0
  %4854 = vmatpush2.msra.mxu0 %v4775
  %4855 = vmatprep.subr.mxu0 0.0
  %4856 = vmatpush2.msra.mxu0 %v4774
  %4857 = vmatprep.subr.mxu0 0.0
  %4858 = vmatpush2.msra.mxu0 %v4773
  %4859 = vmatprep.subr.mxu0 0.0
  %4860 = vmatpush2.msra.mxu0 %v4772
  %4861 = vmatprep.subr.mxu0 0.0
  %4862 = vmatpush2.msra.mxu0 %v4771
  %4863 = vmatprep.subr.mxu0 0.0
  %4864 = vmatpush2.msra.mxu0 %v4770
  %4865 = vmatprep.subr.mxu0 0.0
  %4866 = vmatpush2.msra.mxu0 %v4769
  %4867 = vmatprep.subr.mxu0 0.0
  %4868 = vmatpush2.msra.mxu0 %v4768
  %4869 = vmatprep.subr.mxu0 0.0
  %4870 = vmatpush2.msra.mxu0 %v4767
  %4871 = vmatprep.subr.mxu0 0.0
  %4872 = vmatpush2.msra.mxu0 %v4766
  %4873 = vmatprep.subr.mxu0 0.0
  %4874 = vmatpush2.msra.mxu0 %v4765
  %4875 = vmatprep.subr.mxu0 0.0
  %4876 = vmatpush2.msra.mxu0 %v4764
  %4877 = vmatprep.subr.mxu0 0.0
  %4878 = vmatpush2.msra.mxu0 %v4763
  %4879 = vmatprep.subr.mxu0 0.0
  %4880 = vmatpush2.msra.mxu0 %v4762
  %4881 = vmatprep.mubr.f32.mxu0 %v4697
  %4882 = vmatmul.mubr.f32.gmra.mxu0 %v4676
  %v4883 = vpop.f32.mrf.mxu0
  %v4884 = vadd.f32 %v4815, %v4883
  %v4885 = vpop.f32.mrf.mxu0
  %4886 = vmatprep.mubr.f32.mxu0 %v4698
  %4887 = vmatmul.mubr.f32.gmra.mxu0 %v4677
  %v4888 = vpop.f32.mrf.mxu0
  %v4889 = vadd.f32 %v4815, %v4888
  %v4890 = vpop.f32.mrf.mxu0
  %4891 = vmatprep.mubr.f32.mxu0 %v4699
  %4892 = vmatmul.mubr.f32.gmra.mxu0 %v4678
  %v4893 = vpop.f32.mrf.mxu0
  %v4894 = vadd.f32 %v4815, %v4893
  %v4895 = vpop.f32.mrf.mxu0
  %4896 = vmatprep.mubr.f32.mxu0 %v4700
  %4897 = vmatmul.mubr.f32.gmra.mxu0 %v4679
  %v4898 = vpop.f32.mrf.mxu0
  %v4899 = vadd.f32 %v4815, %v4898
  %v4900 = vpop.f32.mrf.mxu0
  %4901 = vmatprep.mubr.f32.mxu0 %v4701
  %4902 = vmatmul.mubr.f32.gmra.mxu0 %v4680
  %v4903 = vpop.f32.mrf.mxu0
  %v4904 = vadd.f32 %v4815, %v4903
  %v4905 = vpop.f32.mrf.mxu0
  %4906 = vmatprep.mubr.f32.mxu0 %v4702
  %4907 = vmatmul.mubr.f32.gmra.mxu0 %v4681
  %v4908 = vpop.f32.mrf.mxu0
  %v4909 = vadd.f32 %v4815, %v4908
  %v4910 = vpop.f32.mrf.mxu0
  %4911 = vmatprep.mubr.f32.mxu0 %v4703
  %4912 = vmatmul.mubr.f32.gmra.mxu0 %v4682
  %v4913 = vpop.f32.mrf.mxu0
  %v4914 = vadd.f32 %v4815, %v4913
  %v4915 = vpop.f32.mrf.mxu0
  %4916 = vdwg.mxu0
  %4917 = vmatprep.subr.mxu0 0.0
  %4918 = vmatpush1.msra.mxu0 %v4793
  %4919 = vmatprep.subr.mxu0 0.0
  %4920 = vmatpush1.msra.mxu0 %v4792
  %4921 = vmatprep.subr.mxu0 0.0
  %4922 = vmatpush1.msra.mxu0 %v4791
  %4923 = vmatprep.subr.mxu0 0.0
  %4924 = vmatpush1.msra.mxu0 %v4790
  %4925 = vmatprep.subr.mxu0 0.0
  %4926 = vmatpush1.msra.mxu0 %v4789
  %4927 = vmatprep.subr.mxu0 0.0
  %4928 = vmatpush1.msra.mxu0 %v4788
  %4929 = vmatprep.subr.mxu0 0.0
  %4930 = vmatpush1.msra.mxu0 %v4787
  %4931 = vmatprep.subr.mxu0 0.0
  %4932 = vmatpush1.msra.mxu0 %v4786
  %4933 = vmatprep.subr.mxu0 0.0
  %4934 = vmatpush1.msra.mxu0 %v4785
  %4935 = vmatprep.subr.mxu0 0.0
  %4936 = vmatpush1.msra.mxu0 %v4784
  %4937 = vmatprep.subr.mxu0 0.0
  %4938 = vmatpush1.msra.mxu0 %v4783
  %4939 = vmatprep.subr.mxu0 0.0
  %4940 = vmatpush1.msra.mxu0 %v4782
  %4941 = vmatprep.subr.mxu0 0.0
  %4942 = vmatpush1.msra.mxu0 %v4781
  %4943 = vmatprep.subr.mxu0 0.0
  %4944 = vmatpush1.msra.mxu0 %v4780
  %4945 = vmatprep.subr.mxu0 0.0
  %4946 = vmatpush1.msra.mxu0 %v4779
  %4947 = vmatprep.subr.mxu0 0.0
  %4948 = vmatpush1.msra.mxu0 %v4778
  %4949 = vmatprep.subr.mxu0 0.0
  %4950 = vmatpush2.msra.mxu0 %v4809
  %4951 = vmatprep.subr.mxu0 0.0
  %4952 = vmatpush2.msra.mxu0 %v4808
  %4953 = vmatprep.subr.mxu0 0.0
  %4954 = vmatpush2.msra.mxu0 %v4807
  %4955 = vmatprep.subr.mxu0 0.0
  %4956 = vmatpush2.msra.mxu0 %v4806
  %4957 = vmatprep.subr.mxu0 0.0
  %4958 = vmatpush2.msra.mxu0 %v4805
  %4959 = vmatprep.subr.mxu0 0.0
  %4960 = vmatpush2.msra.mxu0 %v4804
  %4961 = vmatprep.subr.mxu0 0.0
  %4962 = vmatpush2.msra.mxu0 %v4803
  %4963 = vmatprep.subr.mxu0 0.0
  %4964 = vmatpush2.msra.mxu0 %v4802
  %4965 = vmatprep.subr.mxu0 0.0
  %4966 = vmatpush2.msra.mxu0 %v4801
  %4967 = vmatprep.subr.mxu0 0.0
  %4968 = vmatpush2.msra.mxu0 %v4800
  %4969 = vmatprep.subr.mxu0 0.0
  %4970 = vmatpush2.msra.mxu0 %v4799
  %4971 = vmatprep.subr.mxu0 0.0
  %4972 = vmatpush2.msra.mxu0 %v4798
  %4973 = vmatprep.subr.mxu0 0.0
  %4974 = vmatpush2.msra.mxu0 %v4797
  %4975 = vmatprep.subr.mxu0 0.0
  %4976 = vmatpush2.msra.mxu0 %v4796
  %4977 = vmatprep.subr.mxu0 0.0
  %4978 = vmatpush2.msra.mxu0 %v4795
  %4979 = vmatprep.subr.mxu0 0.0
  %4980 = vmatpush2.msra.mxu0 %v4794
  %4981 = vmatprep.mubr.f32.mxu0 %v4739
  %4982 = vmatmul.mubr.f32.gmra.mxu0 %v4718
  %v4983 = vpop.f32.mrf.mxu0
  %v4984 = vadd.f32 %v4884, %v4983
  %v4985 = vpop.f32.mrf.mxu0
  %4986 = vmatprep.mubr.f32.mxu0 %v4740
  %4987 = vmatmul.mubr.f32.gmra.mxu0 %v4719
  %v4988 = vpop.f32.mrf.mxu0
  %v4989 = vadd.f32 %v4889, %v4988
  %v4990 = vpop.f32.mrf.mxu0
  %4991 = vmatprep.mubr.f32.mxu0 %v4741
  %4992 = vmatmul.mubr.f32.gmra.mxu0 %v4720
  %v4993 = vpop.f32.mrf.mxu0
  %v4994 = vadd.f32 %v4894, %v4993
  %v4995 = vpop.f32.mrf.mxu0
  %4996 = vmatprep.mubr.f32.mxu0 %v4742
  %4997 = vmatmul.mubr.f32.gmra.mxu0 %v4721
  %v4998 = vpop.f32.mrf.mxu0
  %v4999 = vadd.f32 %v4899, %v4998
  %v5000 = vpop.f32.mrf.mxu0
  %5001 = vmatprep.mubr.f32.mxu0 %v4743
  %5002 = vmatmul.mubr.f32.gmra.mxu0 %v4722
  %v5003 = vpop.f32.mrf.mxu0
  %v5004 = vadd.f32 %v4904, %v5003
  %v5005 = vpop.f32.mrf.mxu0
  %5006 = vmatprep.mubr.f32.mxu0 %v4744
  %5007 = vmatmul.mubr.f32.gmra.mxu0 %v4723
  %v5008 = vpop.f32.mrf.mxu0
  %v5009 = vadd.f32 %v4909, %v5008
  %v5010 = vpop.f32.mrf.mxu0
  %5011 = vmatprep.mubr.f32.mxu0 %v4745
  %5012 = vmatmul.mubr.f32.gmra.mxu0 %v4724
  %v5013 = vpop.f32.mrf.mxu0
  %v5014 = vadd.f32 %v4914, %v5013
  %v5015 = vpop.f32.mrf.mxu0
  %5016 = vdwg.mxu0
  %v5017 = vmax.f32 %v4984, 0.0
  %v5018 = vmax.f32 %v4989, 0.0
  %v5019 = vmax.f32 %v4994, 0.0
  %v5020 = vmax.f32 %v4999, 0.0
  %v5021 = vmax.f32 %v5004, 0.0
  %v5022 = vmax.f32 %v5009, 0.0
  %v5023 = vmax.f32 %v5014, 0.0
  %v5024 = vld [vmem:[%s6] sm:$0xff]
  %v5025 = vld [vmem:[%s6 + $0x8] sm:$0xff]
  %v5026 = vld [vmem:[%s6 + $0x10] sm:$0x3]
  %vm5027 = vcmask 408576
  %v5029 = vsel %vm5027, %v5024, 0
  %v5032 = vsel %vm5027, %v5025, 0
  %v5035 = vsel %vm5027, %v5026, 0
  %vm5037 = vcmask 1041408
  %v5039 = vsel %vm5037, %v5023, 0
  %5041 = vmatprep.subr.mxu0 0.0
  %5042 = vmatpush1.msra.mxu0 0.0
  %5043 = vmatprep.subr.mxu0 0.0
  %5044 = vmatpush1.msra.mxu0 0.0
  %5045 = vmatprep.subr.mxu0 0.0
  %5046 = vmatpush1.msra.mxu0 0.0
  %5047 = vmatprep.subr.mxu0 0.0
  %5048 = vmatpush1.msra.mxu0 0.0
  %5049 = vmatprep.subr.mxu0 0.0
  %5050 = vmatpush1.msra.mxu0 0.0
  %5051 = vmatprep.subr.mxu0 0.0
  %5052 = vmatpush1.msra.mxu0 0.0
  %5053 = vmatprep.subr.mxu0 0.0
  %5054 = vmatpush1.msra.mxu0 0.0
  %5055 = vmatprep.subr.mxu0 0.0
  %5056 = vmatpush1.msra.mxu0 0.0
  %5057 = vmatprep.subr.mxu0 0.0
  %5058 = vmatpush1.msra.mxu0 0.0
  %5059 = vmatprep.subr.mxu0 0.0
  %5060 = vmatpush1.msra.mxu0 %v5039
  %5061 = vmatprep.subr.mxu0 0.0
  %5062 = vmatpush1.msra.mxu0 %v5022
  %5063 = vmatprep.subr.mxu0 0.0
  %5064 = vmatpush1.msra.mxu0 %v5021
  %5065 = vmatprep.subr.mxu0 0.0
  %5066 = vmatpush1.msra.mxu0 %v5020
  %5067 = vmatprep.subr.mxu0 0.0
  %5068 = vmatpush1.msra.mxu0 %v5019
  %5069 = vmatprep.subr.mxu0 0.0
  %5070 = vmatpush1.msra.mxu0 %v5018
  %5071 = vmatprep.subr.mxu0 0.0
  %5072 = vmatpush1.msra.mxu0 %v5017
  %5073 = vmatprep.subr.mxu0 0.0
  %5074 = vmatpush2.msra.mxu0 0.0
  %5075 = vmatprep.subr.mxu0 0.0
  %5076 = vmatpush2.msra.mxu0 0.0
  %5077 = vmatprep.subr.mxu0 0.0
  %5078 = vmatpush2.msra.mxu0 0.0
  %5079 = vmatprep.subr.mxu0 0.0
  %5080 = vmatpush2.msra.mxu0 0.0
  %5081 = vmatprep.subr.mxu0 0.0
  %5082 = vmatpush2.msra.mxu0 0.0
  %5083 = vmatprep.subr.mxu0 0.0
  %5084 = vmatpush2.msra.mxu0 0.0
  %5085 = vmatprep.subr.mxu0 0.0
  %5086 = vmatpush2.msra.mxu0 0.0
  %5087 = vmatprep.subr.mxu0 0.0
  %5088 = vmatpush2.msra.mxu0 0.0
  %5089 = vmatprep.subr.mxu0 0.0
  %5090 = vmatpush2.msra.mxu0 0.0
  %5091 = vmatprep.subr.mxu0 0.0
  %5092 = vmatpush2.msra.mxu0 0.0
  %5093 = vmatprep.subr.mxu0 0.0
  %5094 = vmatpush2.msra.mxu0 0.0
  %5095 = vmatprep.subr.mxu0 0.0
  %5096 = vmatpush2.msra.mxu0 0.0
  %5097 = vmatprep.subr.mxu0 0.0
  %5098 = vmatpush2.msra.mxu0 0.0
  %5099 = vmatprep.subr.mxu0 0.0
  %5100 = vmatpush2.msra.mxu0 0.0
  %5101 = vmatprep.subr.mxu0 0.0
  %5102 = vmatpush2.msra.mxu0 0.0
  %5103 = vmatprep.subr.mxu0 0.0
  %5104 = vmatpush2.msra.mxu0 0.0
  %5105 = vmatprep.mubr.f32.mxu0 0.0
  %5106 = vmatmul.mubr.f32.gmra.mxu0 %v5029
  %v5107 = vpop.f32.mrf.mxu0
  %v5108 = vadd.f32 0.0, %v5107
  %v5109 = vpop.f32.mrf.mxu0
  %5110 = vmatprep.mubr.f32.mxu0 0.0
  %5111 = vmatmul.mubr.f32.gmra.mxu0 %v5032
  %v5112 = vpop.f32.mrf.mxu0
  %v5113 = vadd.f32 0.0, %v5112
  %v5114 = vpop.f32.mrf.mxu0
  %5115 = vmatprep.mubr.f32.mxu0 0.0
  %5116 = vmatmul.mubr.f32.gmra.mxu0 %v5035
  %v5117 = vpop.f32.mrf.mxu0
  %v5118 = vadd.f32 0.0, %v5117
  %v5119 = vpop.f32.mrf.mxu0
  %5120 = vdwg.mxu0
  %s5121 = scalar_lea.vmem %s6, 24
  %v5122 = vld [vmem:[%s5121] sm:$0xff]
  %v5123 = vld [vmem:[%s5121 + $0x8] sm:$0xff]
  %v5124 = vld [vmem:[%s5121 + $0x10] sm:$0x3]
  %v5126 = vsel %vm5027, %v5122, 0
  %v5129 = vsel %vm5027, %v5123, 0
  %v5132 = vsel %vm5027, %v5124, 0
  %5134 = vmatprep.subr.mxu0 0.0
  %5135 = vmatpush1.msra.mxu0 0.0
  %5136 = vmatprep.subr.mxu0 0.0
  %5137 = vmatpush1.msra.mxu0 0.0
  %5138 = vmatprep.subr.mxu0 0.0
  %5139 = vmatpush1.msra.mxu0 0.0
  %5140 = vmatprep.subr.mxu0 0.0
  %5141 = vmatpush1.msra.mxu0 0.0
  %5142 = vmatprep.subr.mxu0 0.0
  %5143 = vmatpush1.msra.mxu0 0.0
  %5144 = vmatprep.subr.mxu0 0.0
  %5145 = vmatpush1.msra.mxu0 0.0
  %5146 = vmatprep.subr.mxu0 0.0
  %5147 = vmatpush1.msra.mxu0 0.0
  %5148 = vmatprep.subr.mxu0 0.0
  %5149 = vmatpush1.msra.mxu0 0.0
  %5150 = vmatprep.subr.mxu0 0.0
  %5151 = vmatpush1.msra.mxu0 0.0
  %5152 = vmatprep.subr.mxu0 0.0
  %5153 = vmatpush1.msra.mxu0 %v5039
  %5154 = vmatprep.subr.mxu0 0.0
  %5155 = vmatpush1.msra.mxu0 %v5022
  %5156 = vmatprep.subr.mxu0 0.0
  %5157 = vmatpush1.msra.mxu0 %v5021
  %5158 = vmatprep.subr.mxu0 0.0
  %5159 = vmatpush1.msra.mxu0 %v5020
  %5160 = vmatprep.subr.mxu0 0.0
  %5161 = vmatpush1.msra.mxu0 %v5019
  %5162 = vmatprep.subr.mxu0 0.0
  %5163 = vmatpush1.msra.mxu0 %v5018
  %5164 = vmatprep.subr.mxu0 0.0
  %5165 = vmatpush1.msra.mxu0 %v5017
  %5166 = vmatprep.subr.mxu0 0.0
  %5167 = vmatpush2.msra.mxu0 0.0
  %5168 = vmatprep.subr.mxu0 0.0
  %5169 = vmatpush2.msra.mxu0 0.0
  %5170 = vmatprep.subr.mxu0 0.0
  %5171 = vmatpush2.msra.mxu0 0.0
  %5172 = vmatprep.subr.mxu0 0.0
  %5173 = vmatpush2.msra.mxu0 0.0
  %5174 = vmatprep.subr.mxu0 0.0
  %5175 = vmatpush2.msra.mxu0 0.0
  %5176 = vmatprep.subr.mxu0 0.0
  %5177 = vmatpush2.msra.mxu0 0.0
  %5178 = vmatprep.subr.mxu0 0.0
  %5179 = vmatpush2.msra.mxu0 0.0
  %5180 = vmatprep.subr.mxu0 0.0
  %5181 = vmatpush2.msra.mxu0 0.0
  %5182 = vmatprep.subr.mxu0 0.0
  %5183 = vmatpush2.msra.mxu0 0.0
  %5184 = vmatprep.subr.mxu0 0.0
  %5185 = vmatpush2.msra.mxu0 0.0
  %5186 = vmatprep.subr.mxu0 0.0
  %5187 = vmatpush2.msra.mxu0 0.0
  %5188 = vmatprep.subr.mxu0 0.0
  %5189 = vmatpush2.msra.mxu0 0.0
  %5190 = vmatprep.subr.mxu0 0.0
  %5191 = vmatpush2.msra.mxu0 0.0
  %5192 = vmatprep.subr.mxu0 0.0
  %5193 = vmatpush2.msra.mxu0 0.0
  %5194 = vmatprep.subr.mxu0 0.0
  %5195 = vmatpush2.msra.mxu0 0.0
  %5196 = vmatprep.subr.mxu0 0.0
  %5197 = vmatpush2.msra.mxu0 0.0
  %5198 = vmatprep.mubr.f32.mxu0 0.0
  %5199 = vmatmul.mubr.f32.gmra.mxu0 %v5126
  %v5200 = vpop.f32.mrf.mxu0
  %v5201 = vadd.f32 0.0, %v5200
  %v5202 = vpop.f32.mrf.mxu0
  %5203 = vmatprep.mubr.f32.mxu0 0.0
  %5204 = vmatmul.mubr.f32.gmra.mxu0 %v5129
  %v5205 = vpop.f32.mrf.mxu0
  %v5206 = vadd.f32 0.0, %v5205
  %v5207 = vpop.f32.mrf.mxu0
  %5208 = vmatprep.mubr.f32.mxu0 0.0
  %5209 = vmatmul.mubr.f32.gmra.mxu0 %v5132
  %v5210 = vpop.f32.mrf.mxu0
  %v5211 = vadd.f32 0.0, %v5210
  %v5212 = vpop.f32.mrf.mxu0
  %5213 = vdwg.mxu0
  %s5214 = scalar_lea.vmem %s6, 48
  %v5215 = vld [vmem:[%s5214] sm:$0xff]
  %v5216 = vld [vmem:[%s5214 + $0x8] sm:$0xff]
  %v5217 = vld [vmem:[%s5214 + $0x10] sm:$0x3]
  %v5219 = vsel %vm5027, %v5215, 0
  %v5222 = vsel %vm5027, %v5216, 0
  %v5225 = vsel %vm5027, %v5217, 0
  %5227 = vmatprep.subr.mxu0 0.0
  %5228 = vmatpush1.msra.mxu0 0.0
  %5229 = vmatprep.subr.mxu0 0.0
  %5230 = vmatpush1.msra.mxu0 0.0
  %5231 = vmatprep.subr.mxu0 0.0
  %5232 = vmatpush1.msra.mxu0 0.0
  %5233 = vmatprep.subr.mxu0 0.0
  %5234 = vmatpush1.msra.mxu0 0.0
  %5235 = vmatprep.subr.mxu0 0.0
  %5236 = vmatpush1.msra.mxu0 0.0
  %5237 = vmatprep.subr.mxu0 0.0
  %5238 = vmatpush1.msra.mxu0 0.0
  %5239 = vmatprep.subr.mxu0 0.0
  %5240 = vmatpush1.msra.mxu0 0.0
  %5241 = vmatprep.subr.mxu0 0.0
  %5242 = vmatpush1.msra.mxu0 0.0
  %5243 = vmatprep.subr.mxu0 0.0
  %5244 = vmatpush1.msra.mxu0 0.0
  %5245 = vmatprep.subr.mxu0 0.0
  %5246 = vmatpush1.msra.mxu0 %v5039
  %5247 = vmatprep.subr.mxu0 0.0
  %5248 = vmatpush1.msra.mxu0 %v5022
  %5249 = vmatprep.subr.mxu0 0.0
  %5250 = vmatpush1.msra.mxu0 %v5021
  %5251 = vmatprep.subr.mxu0 0.0
  %5252 = vmatpush1.msra.mxu0 %v5020
  %5253 = vmatprep.subr.mxu0 0.0
  %5254 = vmatpush1.msra.mxu0 %v5019
  %5255 = vmatprep.subr.mxu0 0.0
  %5256 = vmatpush1.msra.mxu0 %v5018
  %5257 = vmatprep.subr.mxu0 0.0
  %5258 = vmatpush1.msra.mxu0 %v5017
  %5259 = vmatprep.subr.mxu0 0.0
  %5260 = vmatpush2.msra.mxu0 0.0
  %5261 = vmatprep.subr.mxu0 0.0
  %5262 = vmatpush2.msra.mxu0 0.0
  %5263 = vmatprep.subr.mxu0 0.0
  %5264 = vmatpush2.msra.mxu0 0.0
  %5265 = vmatprep.subr.mxu0 0.0
  %5266 = vmatpush2.msra.mxu0 0.0
  %5267 = vmatprep.subr.mxu0 0.0
  %5268 = vmatpush2.msra.mxu0 0.0
  %5269 = vmatprep.subr.mxu0 0.0
  %5270 = vmatpush2.msra.mxu0 0.0
  %5271 = vmatprep.subr.mxu0 0.0
  %5272 = vmatpush2.msra.mxu0 0.0
  %5273 = vmatprep.subr.mxu0 0.0
  %5274 = vmatpush2.msra.mxu0 0.0
  %5275 = vmatprep.subr.mxu0 0.0
  %5276 = vmatpush2.msra.mxu0 0.0
  %5277 = vmatprep.subr.mxu0 0.0
  %5278 = vmatpush2.msra.mxu0 0.0
  %5279 = vmatprep.subr.mxu0 0.0
  %5280 = vmatpush2.msra.mxu0 0.0
  %5281 = vmatprep.subr.mxu0 0.0
  %5282 = vmatpush2.msra.mxu0 0.0
  %5283 = vmatprep.subr.mxu0 0.0
  %5284 = vmatpush2.msra.mxu0 0.0
  %5285 = vmatprep.subr.mxu0 0.0
  %5286 = vmatpush2.msra.mxu0 0.0
  %5287 = vmatprep.subr.mxu0 0.0
  %5288 = vmatpush2.msra.mxu0 0.0
  %5289 = vmatprep.subr.mxu0 0.0
  %5290 = vmatpush2.msra.mxu0 0.0
  %5291 = vmatprep.mubr.f32.mxu0 0.0
  %5292 = vmatmul.mubr.f32.gmra.mxu0 %v5219
  %v5293 = vpop.f32.mrf.mxu0
  %v5294 = vadd.f32 0.0, %v5293
  %v5295 = vpop.f32.mrf.mxu0
  %5296 = vmatprep.mubr.f32.mxu0 0.0
  %5297 = vmatmul.mubr.f32.gmra.mxu0 %v5222
  %v5298 = vpop.f32.mrf.mxu0
  %v5299 = vadd.f32 0.0, %v5298
  %v5300 = vpop.f32.mrf.mxu0
  %5301 = vmatprep.mubr.f32.mxu0 0.0
  %5302 = vmatmul.mubr.f32.gmra.mxu0 %v5225
  %v5303 = vpop.f32.mrf.mxu0
  %v5304 = vadd.f32 0.0, %v5303
  %v5305 = vpop.f32.mrf.mxu0
  %5306 = vdwg.mxu0
  %s5307 = scalar_lea.vmem %s6, 72
  %v5308 = vld [vmem:[%s5307] sm:$0xff]
  %v5309 = vld [vmem:[%s5307 + $0x8] sm:$0xff]
  %v5310 = vld [vmem:[%s5307 + $0x10] sm:$0x3]
  %v5312 = vsel %vm5027, %v5308, 0
  %v5315 = vsel %vm5027, %v5309, 0
  %v5318 = vsel %vm5027, %v5310, 0
  %5320 = vmatprep.subr.mxu0 0.0
  %5321 = vmatpush1.msra.mxu0 0.0
  %5322 = vmatprep.subr.mxu0 0.0
  %5323 = vmatpush1.msra.mxu0 0.0
  %5324 = vmatprep.subr.mxu0 0.0
  %5325 = vmatpush1.msra.mxu0 0.0
  %5326 = vmatprep.subr.mxu0 0.0
  %5327 = vmatpush1.msra.mxu0 0.0
  %5328 = vmatprep.subr.mxu0 0.0
  %5329 = vmatpush1.msra.mxu0 0.0
  %5330 = vmatprep.subr.mxu0 0.0
  %5331 = vmatpush1.msra.mxu0 0.0
  %5332 = vmatprep.subr.mxu0 0.0
  %5333 = vmatpush1.msra.mxu0 0.0
  %5334 = vmatprep.subr.mxu0 0.0
  %5335 = vmatpush1.msra.mxu0 0.0
  %5336 = vmatprep.subr.mxu0 0.0
  %5337 = vmatpush1.msra.mxu0 0.0
  %5338 = vmatprep.subr.mxu0 0.0
  %5339 = vmatpush1.msra.mxu0 %v5039
  %5340 = vmatprep.subr.mxu0 0.0
  %5341 = vmatpush1.msra.mxu0 %v5022
  %5342 = vmatprep.subr.mxu0 0.0
  %5343 = vmatpush1.msra.mxu0 %v5021
  %5344 = vmatprep.subr.mxu0 0.0
  %5345 = vmatpush1.msra.mxu0 %v5020
  %5346 = vmatprep.subr.mxu0 0.0
  %5347 = vmatpush1.msra.mxu0 %v5019
  %5348 = vmatprep.subr.mxu0 0.0
  %5349 = vmatpush1.msra.mxu0 %v5018
  %5350 = vmatprep.subr.mxu0 0.0
  %5351 = vmatpush1.msra.mxu0 %v5017
  %5352 = vmatprep.subr.mxu0 0.0
  %5353 = vmatpush2.msra.mxu0 0.0
  %5354 = vmatprep.subr.mxu0 0.0
  %5355 = vmatpush2.msra.mxu0 0.0
  %5356 = vmatprep.subr.mxu0 0.0
  %5357 = vmatpush2.msra.mxu0 0.0
  %5358 = vmatprep.subr.mxu0 0.0
  %5359 = vmatpush2.msra.mxu0 0.0
  %5360 = vmatprep.subr.mxu0 0.0
  %5361 = vmatpush2.msra.mxu0 0.0
  %5362 = vmatprep.subr.mxu0 0.0
  %5363 = vmatpush2.msra.mxu0 0.0
  %5364 = vmatprep.subr.mxu0 0.0
  %5365 = vmatpush2.msra.mxu0 0.0
  %5366 = vmatprep.subr.mxu0 0.0
  %5367 = vmatpush2.msra.mxu0 0.0
  %5368 = vmatprep.subr.mxu0 0.0
  %5369 = vmatpush2.msra.mxu0 0.0
  %5370 = vmatprep.subr.mxu0 0.0
  %5371 = vmatpush2.msra.mxu0 0.0
  %5372 = vmatprep.subr.mxu0 0.0
  %5373 = vmatpush2.msra.mxu0 0.0
  %5374 = vmatprep.subr.mxu0 0.0
  %5375 = vmatpush2.msra.mxu0 0.0
  %5376 = vmatprep.subr.mxu0 0.0
  %5377 = vmatpush2.msra.mxu0 0.0
  %5378 = vmatprep.subr.mxu0 0.0
  %5379 = vmatpush2.msra.mxu0 0.0
  %5380 = vmatprep.subr.mxu0 0.0
  %5381 = vmatpush2.msra.mxu0 0.0
  %5382 = vmatprep.subr.mxu0 0.0
  %5383 = vmatpush2.msra.mxu0 0.0
  %5384 = vmatprep.mubr.f32.mxu0 0.0
  %5385 = vmatmul.mubr.f32.gmra.mxu0 %v5312
  %v5386 = vpop.f32.mrf.mxu0
  %v5387 = vadd.f32 0.0, %v5386
  %v5388 = vpop.f32.mrf.mxu0
  %5389 = vmatprep.mubr.f32.mxu0 0.0
  %5390 = vmatmul.mubr.f32.gmra.mxu0 %v5315
  %v5391 = vpop.f32.mrf.mxu0
  %v5392 = vadd.f32 0.0, %v5391
  %v5393 = vpop.f32.mrf.mxu0
  %5394 = vmatprep.mubr.f32.mxu0 0.0
  %5395 = vmatmul.mubr.f32.gmra.mxu0 %v5318
  %v5396 = vpop.f32.mrf.mxu0
  %v5397 = vadd.f32 0.0, %v5396
  %v5398 = vpop.f32.mrf.mxu0
  %5399 = vdwg.mxu0
  %s5400 = scalar_lea.vmem %s6, 96
  %v5401 = vld [vmem:[%s5400] sm:$0xff]
  %v5402 = vld [vmem:[%s5400 + $0x8] sm:$0xff]
  %v5403 = vld [vmem:[%s5400 + $0x10] sm:$0x3]
  %v5405 = vsel %vm5027, %v5401, 0
  %v5408 = vsel %vm5027, %v5402, 0
  %v5411 = vsel %vm5027, %v5403, 0
  %5413 = vmatprep.subr.mxu0 0.0
  %5414 = vmatpush1.msra.mxu0 0.0
  %5415 = vmatprep.subr.mxu0 0.0
  %5416 = vmatpush1.msra.mxu0 0.0
  %5417 = vmatprep.subr.mxu0 0.0
  %5418 = vmatpush1.msra.mxu0 0.0
  %5419 = vmatprep.subr.mxu0 0.0
  %5420 = vmatpush1.msra.mxu0 0.0
  %5421 = vmatprep.subr.mxu0 0.0
  %5422 = vmatpush1.msra.mxu0 0.0
  %5423 = vmatprep.subr.mxu0 0.0
  %5424 = vmatpush1.msra.mxu0 0.0
  %5425 = vmatprep.subr.mxu0 0.0
  %5426 = vmatpush1.msra.mxu0 0.0
  %5427 = vmatprep.subr.mxu0 0.0
  %5428 = vmatpush1.msra.mxu0 0.0
  %5429 = vmatprep.subr.mxu0 0.0
  %5430 = vmatpush1.msra.mxu0 0.0
  %5431 = vmatprep.subr.mxu0 0.0
  %5432 = vmatpush1.msra.mxu0 %v5039
  %5433 = vmatprep.subr.mxu0 0.0
  %5434 = vmatpush1.msra.mxu0 %v5022
  %5435 = vmatprep.subr.mxu0 0.0
  %5436 = vmatpush1.msra.mxu0 %v5021
  %5437 = vmatprep.subr.mxu0 0.0
  %5438 = vmatpush1.msra.mxu0 %v5020
  %5439 = vmatprep.subr.mxu0 0.0
  %5440 = vmatpush1.msra.mxu0 %v5019
  %5441 = vmatprep.subr.mxu0 0.0
  %5442 = vmatpush1.msra.mxu0 %v5018
  %5443 = vmatprep.subr.mxu0 0.0
  %5444 = vmatpush1.msra.mxu0 %v5017
  %5445 = vmatprep.subr.mxu0 0.0
  %5446 = vmatpush2.msra.mxu0 0.0
  %5447 = vmatprep.subr.mxu0 0.0
  %5448 = vmatpush2.msra.mxu0 0.0
  %5449 = vmatprep.subr.mxu0 0.0
  %5450 = vmatpush2.msra.mxu0 0.0
  %5451 = vmatprep.subr.mxu0 0.0
  %5452 = vmatpush2.msra.mxu0 0.0
  %5453 = vmatprep.subr.mxu0 0.0
  %5454 = vmatpush2.msra.mxu0 0.0
  %5455 = vmatprep.subr.mxu0 0.0
  %5456 = vmatpush2.msra.mxu0 0.0
  %5457 = vmatprep.subr.mxu0 0.0
  %5458 = vmatpush2.msra.mxu0 0.0
  %5459 = vmatprep.subr.mxu0 0.0
  %5460 = vmatpush2.msra.mxu0 0.0
  %5461 = vmatprep.subr.mxu0 0.0
  %5462 = vmatpush2.msra.mxu0 0.0
  %5463 = vmatprep.subr.mxu0 0.0
  %5464 = vmatpush2.msra.mxu0 0.0
  %5465 = vmatprep.subr.mxu0 0.0
  %5466 = vmatpush2.msra.mxu0 0.0
  %5467 = vmatprep.subr.mxu0 0.0
  %5468 = vmatpush2.msra.mxu0 0.0
  %5469 = vmatprep.subr.mxu0 0.0
  %5470 = vmatpush2.msra.mxu0 0.0
  %5471 = vmatprep.subr.mxu0 0.0
  %5472 = vmatpush2.msra.mxu0 0.0
  %5473 = vmatprep.subr.mxu0 0.0
  %5474 = vmatpush2.msra.mxu0 0.0
  %5475 = vmatprep.subr.mxu0 0.0
  %5476 = vmatpush2.msra.mxu0 0.0
  %5477 = vmatprep.mubr.f32.mxu0 0.0
  %5478 = vmatmul.mubr.f32.gmra.mxu0 %v5405
  %v5479 = vpop.f32.mrf.mxu0
  %v5480 = vadd.f32 0.0, %v5479
  %v5481 = vpop.f32.mrf.mxu0
  %5482 = vmatprep.mubr.f32.mxu0 0.0
  %5483 = vmatmul.mubr.f32.gmra.mxu0 %v5408
  %v5484 = vpop.f32.mrf.mxu0
  %v5485 = vadd.f32 0.0, %v5484
  %v5486 = vpop.f32.mrf.mxu0
  %5487 = vmatprep.mubr.f32.mxu0 0.0
  %5488 = vmatmul.mubr.f32.gmra.mxu0 %v5411
  %v5489 = vpop.f32.mrf.mxu0
  %v5490 = vadd.f32 0.0, %v5489
  %v5491 = vpop.f32.mrf.mxu0
  %5492 = vdwg.mxu0
  %s5493 = scalar_lea.vmem %s6, 120
  %v5494 = vld [vmem:[%s5493] sm:$0xff]
  %v5495 = vld [vmem:[%s5493 + $0x8] sm:$0xff]
  %v5496 = vld [vmem:[%s5493 + $0x10] sm:$0x3]
  %v5498 = vsel %vm5027, %v5494, 0
  %v5501 = vsel %vm5027, %v5495, 0
  %v5504 = vsel %vm5027, %v5496, 0
  %5506 = vmatprep.subr.mxu0 0.0
  %5507 = vmatpush1.msra.mxu0 0.0
  %5508 = vmatprep.subr.mxu0 0.0
  %5509 = vmatpush1.msra.mxu0 0.0
  %5510 = vmatprep.subr.mxu0 0.0
  %5511 = vmatpush1.msra.mxu0 0.0
  %5512 = vmatprep.subr.mxu0 0.0
  %5513 = vmatpush1.msra.mxu0 0.0
  %5514 = vmatprep.subr.mxu0 0.0
  %5515 = vmatpush1.msra.mxu0 0.0
  %5516 = vmatprep.subr.mxu0 0.0
  %5517 = vmatpush1.msra.mxu0 0.0
  %5518 = vmatprep.subr.mxu0 0.0
  %5519 = vmatpush1.msra.mxu0 0.0
  %5520 = vmatprep.subr.mxu0 0.0
  %5521 = vmatpush1.msra.mxu0 0.0
  %5522 = vmatprep.subr.mxu0 0.0
  %5523 = vmatpush1.msra.mxu0 0.0
  %5524 = vmatprep.subr.mxu0 0.0
  %5525 = vmatpush1.msra.mxu0 %v5039
  %5526 = vmatprep.subr.mxu0 0.0
  %5527 = vmatpush1.msra.mxu0 %v5022
  %5528 = vmatprep.subr.mxu0 0.0
  %5529 = vmatpush1.msra.mxu0 %v5021
  %5530 = vmatprep.subr.mxu0 0.0
  %5531 = vmatpush1.msra.mxu0 %v5020
  %5532 = vmatprep.subr.mxu0 0.0
  %5533 = vmatpush1.msra.mxu0 %v5019
  %5534 = vmatprep.subr.mxu0 0.0
  %5535 = vmatpush1.msra.mxu0 %v5018
  %5536 = vmatprep.subr.mxu0 0.0
  %5537 = vmatpush1.msra.mxu0 %v5017
  %5538 = vmatprep.subr.mxu0 0.0
  %5539 = vmatpush2.msra.mxu0 0.0
  %5540 = vmatprep.subr.mxu0 0.0
  %5541 = vmatpush2.msra.mxu0 0.0
  %5542 = vmatprep.subr.mxu0 0.0
  %5543 = vmatpush2.msra.mxu0 0.0
  %5544 = vmatprep.subr.mxu0 0.0
  %5545 = vmatpush2.msra.mxu0 0.0
  %5546 = vmatprep.subr.mxu0 0.0
  %5547 = vmatpush2.msra.mxu0 0.0
  %5548 = vmatprep.subr.mxu0 0.0
  %5549 = vmatpush2.msra.mxu0 0.0
  %5550 = vmatprep.subr.mxu0 0.0
  %5551 = vmatpush2.msra.mxu0 0.0
  %5552 = vmatprep.subr.mxu0 0.0
  %5553 = vmatpush2.msra.mxu0 0.0
  %5554 = vmatprep.subr.mxu0 0.0
  %5555 = vmatpush2.msra.mxu0 0.0
  %5556 = vmatprep.subr.mxu0 0.0
  %5557 = vmatpush2.msra.mxu0 0.0
  %5558 = vmatprep.subr.mxu0 0.0
  %5559 = vmatpush2.msra.mxu0 0.0
  %5560 = vmatprep.subr.mxu0 0.0
  %5561 = vmatpush2.msra.mxu0 0.0
  %5562 = vmatprep.subr.mxu0 0.0
  %5563 = vmatpush2.msra.mxu0 0.0
  %5564 = vmatprep.subr.mxu0 0.0
  %5565 = vmatpush2.msra.mxu0 0.0
  %5566 = vmatprep.subr.mxu0 0.0
  %5567 = vmatpush2.msra.mxu0 0.0
  %5568 = vmatprep.subr.mxu0 0.0
  %5569 = vmatpush2.msra.mxu0 0.0
  %5570 = vmatprep.mubr.f32.mxu0 0.0
  %5571 = vmatmul.mubr.f32.gmra.mxu0 %v5498
  %v5572 = vpop.f32.mrf.mxu0
  %v5573 = vadd.f32 0.0, %v5572
  %v5574 = vpop.f32.mrf.mxu0
  %5575 = vmatprep.mubr.f32.mxu0 0.0
  %5576 = vmatmul.mubr.f32.gmra.mxu0 %v5501
  %v5577 = vpop.f32.mrf.mxu0
  %v5578 = vadd.f32 0.0, %v5577
  %v5579 = vpop.f32.mrf.mxu0
  %5580 = vmatprep.mubr.f32.mxu0 0.0
  %5581 = vmatmul.mubr.f32.gmra.mxu0 %v5504
  %v5582 = vpop.f32.mrf.mxu0
  %v5583 = vadd.f32 0.0, %v5582
  %v5584 = vpop.f32.mrf.mxu0
  %5585 = vdwg.mxu0
  %s5586 = scalar_lea.vmem %s6, 144
  %v5587 = vld [vmem:[%s5586] sm:$0xff]
  %v5588 = vld [vmem:[%s5586 + $0x8] sm:$0xff]
  %v5589 = vld [vmem:[%s5586 + $0x10] sm:$0x3]
  %v5591 = vsel %vm5027, %v5587, 0
  %v5594 = vsel %vm5027, %v5588, 0
  %v5597 = vsel %vm5027, %v5589, 0
  %5599 = vmatprep.subr.mxu0 0.0
  %5600 = vmatpush1.msra.mxu0 0.0
  %5601 = vmatprep.subr.mxu0 0.0
  %5602 = vmatpush1.msra.mxu0 0.0
  %5603 = vmatprep.subr.mxu0 0.0
  %5604 = vmatpush1.msra.mxu0 0.0
  %5605 = vmatprep.subr.mxu0 0.0
  %5606 = vmatpush1.msra.mxu0 0.0
  %5607 = vmatprep.subr.mxu0 0.0
  %5608 = vmatpush1.msra.mxu0 0.0
  %5609 = vmatprep.subr.mxu0 0.0
  %5610 = vmatpush1.msra.mxu0 0.0
  %5611 = vmatprep.subr.mxu0 0.0
  %5612 = vmatpush1.msra.mxu0 0.0
  %5613 = vmatprep.subr.mxu0 0.0
  %5614 = vmatpush1.msra.mxu0 0.0
  %5615 = vmatprep.subr.mxu0 0.0
  %5616 = vmatpush1.msra.mxu0 0.0
  %5617 = vmatprep.subr.mxu0 0.0
  %5618 = vmatpush1.msra.mxu0 %v5039
  %5619 = vmatprep.subr.mxu0 0.0
  %5620 = vmatpush1.msra.mxu0 %v5022
  %5621 = vmatprep.subr.mxu0 0.0
  %5622 = vmatpush1.msra.mxu0 %v5021
  %5623 = vmatprep.subr.mxu0 0.0
  %5624 = vmatpush1.msra.mxu0 %v5020
  %5625 = vmatprep.subr.mxu0 0.0
  %5626 = vmatpush1.msra.mxu0 %v5019
  %5627 = vmatprep.subr.mxu0 0.0
  %5628 = vmatpush1.msra.mxu0 %v5018
  %5629 = vmatprep.subr.mxu0 0.0
  %5630 = vmatpush1.msra.mxu0 %v5017
  %5631 = vmatprep.subr.mxu0 0.0
  %5632 = vmatpush2.msra.mxu0 0.0
  %5633 = vmatprep.subr.mxu0 0.0
  %5634 = vmatpush2.msra.mxu0 0.0
  %5635 = vmatprep.subr.mxu0 0.0
  %5636 = vmatpush2.msra.mxu0 0.0
  %5637 = vmatprep.subr.mxu0 0.0
  %5638 = vmatpush2.msra.mxu0 0.0
  %5639 = vmatprep.subr.mxu0 0.0
  %5640 = vmatpush2.msra.mxu0 0.0
  %5641 = vmatprep.subr.mxu0 0.0
  %5642 = vmatpush2.msra.mxu0 0.0
  %5643 = vmatprep.subr.mxu0 0.0
  %5644 = vmatpush2.msra.mxu0 0.0
  %5645 = vmatprep.subr.mxu0 0.0
  %5646 = vmatpush2.msra.mxu0 0.0
  %5647 = vmatprep.subr.mxu0 0.0
  %5648 = vmatpush2.msra.mxu0 0.0
  %5649 = vmatprep.subr.mxu0 0.0
  %5650 = vmatpush2.msra.mxu0 0.0
  %5651 = vmatprep.subr.mxu0 0.0
  %5652 = vmatpush2.msra.mxu0 0.0
  %5653 = vmatprep.subr.mxu0 0.0
  %5654 = vmatpush2.msra.mxu0 0.0
  %5655 = vmatprep.subr.mxu0 0.0
  %5656 = vmatpush2.msra.mxu0 0.0
  %5657 = vmatprep.subr.mxu0 0.0
  %5658 = vmatpush2.msra.mxu0 0.0
  %5659 = vmatprep.subr.mxu0 0.0
  %5660 = vmatpush2.msra.mxu0 0.0
  %5661 = vmatprep.subr.mxu0 0.0
  %5662 = vmatpush2.msra.mxu0 0.0
  %5663 = vmatprep.mubr.f32.mxu0 0.0
  %5664 = vmatmul.mubr.f32.gmra.mxu0 %v5591
  %v5665 = vpop.f32.mrf.mxu0
  %v5666 = vadd.f32 0.0, %v5665
  %v5667 = vpop.f32.mrf.mxu0
  %5668 = vmatprep.mubr.f32.mxu0 0.0
  %5669 = vmatmul.mubr.f32.gmra.mxu0 %v5594
  %v5670 = vpop.f32.mrf.mxu0
  %v5671 = vadd.f32 0.0, %v5670
  %v5672 = vpop.f32.mrf.mxu0
  %5673 = vmatprep.mubr.f32.mxu0 0.0
  %5674 = vmatmul.mubr.f32.gmra.mxu0 %v5597
  %v5675 = vpop.f32.mrf.mxu0
  %v5676 = vadd.f32 0.0, %v5675
  %v5677 = vpop.f32.mrf.mxu0
  %5678 = vdwg.mxu0
  %s5679 = scalar_lea.vmem %s6, 168
  %v5680 = vld [vmem:[%s5679] sm:$0xff]
  %v5681 = vld [vmem:[%s5679 + $0x8] sm:$0xff]
  %v5682 = vld [vmem:[%s5679 + $0x10] sm:$0x3]
  %v5684 = vsel %vm5027, %v5680, 0
  %v5687 = vsel %vm5027, %v5681, 0
  %v5690 = vsel %vm5027, %v5682, 0
  %5692 = vmatprep.subr.mxu0 0.0
  %5693 = vmatpush1.msra.mxu0 0.0
  %5694 = vmatprep.subr.mxu0 0.0
  %5695 = vmatpush1.msra.mxu0 0.0
  %5696 = vmatprep.subr.mxu0 0.0
  %5697 = vmatpush1.msra.mxu0 0.0
  %5698 = vmatprep.subr.mxu0 0.0
  %5699 = vmatpush1.msra.mxu0 0.0
  %5700 = vmatprep.subr.mxu0 0.0
  %5701 = vmatpush1.msra.mxu0 0.0
  %5702 = vmatprep.subr.mxu0 0.0
  %5703 = vmatpush1.msra.mxu0 0.0
  %5704 = vmatprep.subr.mxu0 0.0
  %5705 = vmatpush1.msra.mxu0 0.0
  %5706 = vmatprep.subr.mxu0 0.0
  %5707 = vmatpush1.msra.mxu0 0.0
  %5708 = vmatprep.subr.mxu0 0.0
  %5709 = vmatpush1.msra.mxu0 0.0
  %5710 = vmatprep.subr.mxu0 0.0
  %5711 = vmatpush1.msra.mxu0 %v5039
  %5712 = vmatprep.subr.mxu0 0.0
  %5713 = vmatpush1.msra.mxu0 %v5022
  %5714 = vmatprep.subr.mxu0 0.0
  %5715 = vmatpush1.msra.mxu0 %v5021
  %5716 = vmatprep.subr.mxu0 0.0
  %5717 = vmatpush1.msra.mxu0 %v5020
  %5718 = vmatprep.subr.mxu0 0.0
  %5719 = vmatpush1.msra.mxu0 %v5019
  %5720 = vmatprep.subr.mxu0 0.0
  %5721 = vmatpush1.msra.mxu0 %v5018
  %5722 = vmatprep.subr.mxu0 0.0
  %5723 = vmatpush1.msra.mxu0 %v5017
  %5724 = vmatprep.subr.mxu0 0.0
  %5725 = vmatpush2.msra.mxu0 0.0
  %5726 = vmatprep.subr.mxu0 0.0
  %5727 = vmatpush2.msra.mxu0 0.0
  %5728 = vmatprep.subr.mxu0 0.0
  %5729 = vmatpush2.msra.mxu0 0.0
  %5730 = vmatprep.subr.mxu0 0.0
  %5731 = vmatpush2.msra.mxu0 0.0
  %5732 = vmatprep.subr.mxu0 0.0
  %5733 = vmatpush2.msra.mxu0 0.0
  %5734 = vmatprep.subr.mxu0 0.0
  %5735 = vmatpush2.msra.mxu0 0.0
  %5736 = vmatprep.subr.mxu0 0.0
  %5737 = vmatpush2.msra.mxu0 0.0
  %5738 = vmatprep.subr.mxu0 0.0
  %5739 = vmatpush2.msra.mxu0 0.0
  %5740 = vmatprep.subr.mxu0 0.0
  %5741 = vmatpush2.msra.mxu0 0.0
  %5742 = vmatprep.subr.mxu0 0.0
  %5743 = vmatpush2.msra.mxu0 0.0
  %5744 = vmatprep.subr.mxu0 0.0
  %5745 = vmatpush2.msra.mxu0 0.0
  %5746 = vmatprep.subr.mxu0 0.0
  %5747 = vmatpush2.msra.mxu0 0.0
  %5748 = vmatprep.subr.mxu0 0.0
  %5749 = vmatpush2.msra.mxu0 0.0
  %5750 = vmatprep.subr.mxu0 0.0
  %5751 = vmatpush2.msra.mxu0 0.0
  %5752 = vmatprep.subr.mxu0 0.0
  %5753 = vmatpush2.msra.mxu0 0.0
  %5754 = vmatprep.subr.mxu0 0.0
  %5755 = vmatpush2.msra.mxu0 0.0
  %5756 = vmatprep.mubr.f32.mxu0 0.0
  %5757 = vmatmul.mubr.f32.gmra.mxu0 %v5684
  %v5758 = vpop.f32.mrf.mxu0
  %v5759 = vadd.f32 0.0, %v5758
  %v5760 = vpop.f32.mrf.mxu0
  %5761 = vmatprep.mubr.f32.mxu0 0.0
  %5762 = vmatmul.mubr.f32.gmra.mxu0 %v5687
  %v5763 = vpop.f32.mrf.mxu0
  %v5764 = vadd.f32 0.0, %v5763
  %v5765 = vpop.f32.mrf.mxu0
  %5766 = vmatprep.mubr.f32.mxu0 0.0
  %5767 = vmatmul.mubr.f32.gmra.mxu0 %v5690
  %v5768 = vpop.f32.mrf.mxu0
  %v5769 = vadd.f32 0.0, %v5768
  %v5770 = vpop.f32.mrf.mxu0
  %5771 = vdwg.mxu0
  %s5772 = scalar_lea.vmem %s6, 192
  %v5773 = vld [vmem:[%s5772] sm:$0xff]
  %v5774 = vld [vmem:[%s5772 + $0x8] sm:$0xff]
  %v5775 = vld [vmem:[%s5772 + $0x10] sm:$0x3]
  %v5777 = vsel %vm5027, %v5773, 0
  %v5780 = vsel %vm5027, %v5774, 0
  %v5783 = vsel %vm5027, %v5775, 0
  %5785 = vmatprep.subr.mxu0 0.0
  %5786 = vmatpush1.msra.mxu0 0.0
  %5787 = vmatprep.subr.mxu0 0.0
  %5788 = vmatpush1.msra.mxu0 0.0
  %5789 = vmatprep.subr.mxu0 0.0
  %5790 = vmatpush1.msra.mxu0 0.0
  %5791 = vmatprep.subr.mxu0 0.0
  %5792 = vmatpush1.msra.mxu0 0.0
  %5793 = vmatprep.subr.mxu0 0.0
  %5794 = vmatpush1.msra.mxu0 0.0
  %5795 = vmatprep.subr.mxu0 0.0
  %5796 = vmatpush1.msra.mxu0 0.0
  %5797 = vmatprep.subr.mxu0 0.0
  %5798 = vmatpush1.msra.mxu0 0.0
  %5799 = vmatprep.subr.mxu0 0.0
  %5800 = vmatpush1.msra.mxu0 0.0
  %5801 = vmatprep.subr.mxu0 0.0
  %5802 = vmatpush1.msra.mxu0 0.0
  %5803 = vmatprep.subr.mxu0 0.0
  %5804 = vmatpush1.msra.mxu0 %v5039
  %5805 = vmatprep.subr.mxu0 0.0
  %5806 = vmatpush1.msra.mxu0 %v5022
  %5807 = vmatprep.subr.mxu0 0.0
  %5808 = vmatpush1.msra.mxu0 %v5021
  %5809 = vmatprep.subr.mxu0 0.0
  %5810 = vmatpush1.msra.mxu0 %v5020
  %5811 = vmatprep.subr.mxu0 0.0
  %5812 = vmatpush1.msra.mxu0 %v5019
  %5813 = vmatprep.subr.mxu0 0.0
  %5814 = vmatpush1.msra.mxu0 %v5018
  %5815 = vmatprep.subr.mxu0 0.0
  %5816 = vmatpush1.msra.mxu0 %v5017
  %5817 = vmatprep.subr.mxu0 0.0
  %5818 = vmatpush2.msra.mxu0 0.0
  %5819 = vmatprep.subr.mxu0 0.0
  %5820 = vmatpush2.msra.mxu0 0.0
  %5821 = vmatprep.subr.mxu0 0.0
  %5822 = vmatpush2.msra.mxu0 0.0
  %5823 = vmatprep.subr.mxu0 0.0
  %5824 = vmatpush2.msra.mxu0 0.0
  %5825 = vmatprep.subr.mxu0 0.0
  %5826 = vmatpush2.msra.mxu0 0.0
  %5827 = vmatprep.subr.mxu0 0.0
  %5828 = vmatpush2.msra.mxu0 0.0
  %5829 = vmatprep.subr.mxu0 0.0
  %5830 = vmatpush2.msra.mxu0 0.0
  %5831 = vmatprep.subr.mxu0 0.0
  %5832 = vmatpush2.msra.mxu0 0.0
  %5833 = vmatprep.subr.mxu0 0.0
  %5834 = vmatpush2.msra.mxu0 0.0
  %5835 = vmatprep.subr.mxu0 0.0
  %5836 = vmatpush2.msra.mxu0 0.0
  %5837 = vmatprep.subr.mxu0 0.0
  %5838 = vmatpush2.msra.mxu0 0.0
  %5839 = vmatprep.subr.mxu0 0.0
  %5840 = vmatpush2.msra.mxu0 0.0
  %5841 = vmatprep.subr.mxu0 0.0
  %5842 = vmatpush2.msra.mxu0 0.0
  %5843 = vmatprep.subr.mxu0 0.0
  %5844 = vmatpush2.msra.mxu0 0.0
  %5845 = vmatprep.subr.mxu0 0.0
  %5846 = vmatpush2.msra.mxu0 0.0
  %5847 = vmatprep.subr.mxu0 0.0
  %5848 = vmatpush2.msra.mxu0 0.0
  %5849 = vmatprep.mubr.f32.mxu0 0.0
  %5850 = vmatmul.mubr.f32.gmra.mxu0 %v5777
  %v5851 = vpop.f32.mrf.mxu0
  %v5852 = vadd.f32 0.0, %v5851
  %v5853 = vpop.f32.mrf.mxu0
  %5854 = vmatprep.mubr.f32.mxu0 0.0
  %5855 = vmatmul.mubr.f32.gmra.mxu0 %v5780
  %v5856 = vpop.f32.mrf.mxu0
  %v5857 = vadd.f32 0.0, %v5856
  %v5858 = vpop.f32.mrf.mxu0
  %5859 = vmatprep.mubr.f32.mxu0 0.0
  %5860 = vmatmul.mubr.f32.gmra.mxu0 %v5783
  %v5861 = vpop.f32.mrf.mxu0
  %v5862 = vadd.f32 0.0, %v5861
  %v5863 = vpop.f32.mrf.mxu0
  %5864 = vdwg.mxu0
  %5868 = vrot.lane.b32.xlu0 %v5201, 64
  %v5869 = vpop.permute.xlu0 %5868
  %5870 = vrot.lane.b32.xlu0 %v5206, 64
  %v5871 = vpop.permute.xlu0 %5870
  %5872 = vrot.lane.b32.xlu0 %v5211, 64
  %v5873 = vpop.permute.xlu0 %5872
  %5880 = vrot.lane.b32.xlu0 %v5387, 64
  %v5881 = vpop.permute.xlu0 %5880
  %5882 = vrot.lane.b32.xlu0 %v5392, 64
  %v5883 = vpop.permute.xlu0 %5882
  %5884 = vrot.lane.b32.xlu0 %v5397, 64
  %v5885 = vpop.permute.xlu0 %5884
  %5892 = vrot.lane.b32.xlu0 %v5573, 64
  %v5893 = vpop.permute.xlu0 %5892
  %5894 = vrot.lane.b32.xlu0 %v5578, 64
  %v5895 = vpop.permute.xlu0 %5894
  %5896 = vrot.lane.b32.xlu0 %v5583, 64
  %v5897 = vpop.permute.xlu0 %5896
  %5904 = vrot.lane.b32.xlu0 %v5759, 64
  %v5905 = vpop.permute.xlu0 %5904
  %5906 = vrot.lane.b32.xlu0 %v5764, 64
  %v5907 = vpop.permute.xlu0 %5906
  %5908 = vrot.lane.b32.xlu0 %v5769, 64
  %v5909 = vpop.permute.xlu0 %5908
  %v5913 = vsel %vm4667, %v5108, %v5869
  %v5914 = vsel %vm4667, %v5113, %v5871
  %v5915 = vsel %vm4667, %v5118, %v5873
  %v5916 = vsel %vm4667, %v5294, %v5881
  %v5917 = vsel %vm4667, %v5299, %v5883
  %v5918 = vsel %vm4667, %v5304, %v5885
  %v5919 = vsel %vm4667, %v5480, %v5893
  %v5920 = vsel %vm4667, %v5485, %v5895
  %v5921 = vsel %vm4667, %v5490, %v5897
  %v5922 = vsel %vm4667, %v5666, %v5905
  %v5923 = vsel %vm4667, %v5671, %v5907
  %v5924 = vsel %vm4667, %v5676, %v5909
  %v5925 = vld [vmem:[%s7] sm:$0xff]
  %v5926 = vld [vmem:[%s7 + $0x8] sm:$0xff]
  %v5927 = vld [vmem:[%s7 + $0x10] sm:$0xff]
  %v5928 = vld [vmem:[%s7 + $0x18] sm:$0xff]
  %v5929 = vld [vmem:[%s7 + $0x20] sm:$0xff]
  %v5930 = vld [vmem:[%s7 + $0x28] sm:$0xff]
  %v5931 = vld [vmem:[%s7 + $0x30] sm:$0xff]
  %v5932 = vld [vmem:[%s7 + $0x38] sm:$0xff]
  %v5933 = vld [vmem:[%s7 + $0x40] sm:$0xff]
  %v5934 = vld [vmem:[%s7 + $0x48] sm:$0xff]
  %v5935 = vld [vmem:[%s7 + $0x50] sm:$0xff]
  %v5936 = vld [vmem:[%s7 + $0x58] sm:$0xff]
  %v5937 = vld [vmem:[%s7 + $0x60] sm:$0xff]
  %v5938 = vld [vmem:[%s7 + $0x68] sm:$0xff]
  %v5939 = vld [vmem:[%s7 + $0x70] sm:$0xff]
  %v5940 = vld [vmem:[%s7 + $0x78] sm:$0xff]
  %v5941 = vld [vmem:[%s7 + $0x80] sm:$0xff]
  %v5942 = vld [vmem:[%s7 + $0x88] sm:$0xff]
  %v5943 = vld [vmem:[%s7 + $0x90] sm:$0xff]
  %v5944 = vld [vmem:[%s7 + $0x98] sm:$0xff]
  %v5945 = vld [vmem:[%s7 + $0xa0] sm:$0xff]
  %v5946 = vld [vmem:[%s7 + $0xa8] sm:$0xff]
  %v5947 = vld [vmem:[%s7 + $0xb0] sm:$0xff]
  %v5948 = vld [vmem:[%s7 + $0xb8] sm:$0xff]
  %v5949 = vld [vmem:[%s7 + $0xc0] sm:$0xff]
  %v5950 = vld [vmem:[%s7 + $0xc8] sm:$0xff]
  %v5951 = vld [vmem:[%s7 + $0xd0] sm:$0xff]
  %v5952 = vld [vmem:[%s7 + $0xd8] sm:$0xff]
  %v5953 = vld [vmem:[%s7 + $0xe0] sm:$0xff]
  %v5954 = vld [vmem:[%s7 + $0xe8] sm:$0xff]
  %v5955 = vld [vmem:[%s7 + $0xf0] sm:$0xff]
  %v5956 = vld [vmem:[%s7 + $0xf8] sm:$0xff]
  %v5957 = vld [vmem:[%s7 + $0x100] sm:$0xff]
  %v5958 = vld [vmem:[%s7 + $0x108] sm:$0xff]
  %v5959 = vld [vmem:[%s7 + $0x110] sm:$0xff]
  %v5960 = vld [vmem:[%s7 + $0x118] sm:$0xff]
  %v5961 = vld [vmem:[%s7 + $0x120] sm:$0xff]
  %v5962 = vld [vmem:[%s7 + $0x128] sm:$0xff]
  %v5963 = vld [vmem:[%s7 + $0x130] sm:$0xff]
  %v5964 = vld [vmem:[%s7 + $0x138] sm:$0xff]
  %v5965 = vld [vmem:[%s7 + $0x140] sm:$0xff]
  %v5966 = vld [vmem:[%s7 + $0x148] sm:$0xff]
  %v5967 = vld [vmem:[%s7 + $0x150] sm:$0xff]
  %v5968 = vld [vmem:[%s7 + $0x158] sm:$0xff]
  %v5969 = vld [vmem:[%s7 + $0x160] sm:$0xff]
  %v5970 = vld [vmem:[%s7 + $0x168] sm:$0xff]
  %v5971 = vld [vmem:[%s7 + $0x170] sm:$0xff]
  %v5972 = vld [vmem:[%s7 + $0x178] sm:$0xff]
  %v5973 = vld [vmem:[%s7 + $0x180] sm:$0xff]
  %v5974 = vld [vmem:[%s7 + $0x188] sm:$0xff]
  %v5975 = vld [vmem:[%s7 + $0x190] sm:$0xff]
  %v5976 = vld [vmem:[%s7 + $0x198] sm:$0xff]
  %v5977 = vld [vmem:[%s7 + $0x1a0] sm:$0xff]
  %v5978 = vld [vmem:[%s7 + $0x1a8] sm:$0xff]
  %v5979 = vld [vmem:[%s7 + $0x1b0] sm:$0xff]
  %v5980 = vld [vmem:[%s7 + $0x1b8] sm:$0xff]
  %v5981 = vld [vmem:[%s7 + $0x1c0] sm:$0xff]
  %v5982 = vld [vmem:[%s7 + $0x1c8] sm:$0xff]
  %v5983 = vld [vmem:[%s7 + $0x1d0] sm:$0xff]
  %v5984 = vld [vmem:[%s7 + $0x1d8] sm:$0xff]
  %v5985 = vld [vmem:[%s7 + $0x1e0] sm:$0xff]
  %v5986 = vld [vmem:[%s7 + $0x1e8] sm:$0xff]
  %v5987 = vld [vmem:[%s7 + $0x1f0] sm:$0xff]
  %v5988 = vld [vmem:[%s7 + $0x1f8] sm:$0xff]
  %v5989 = vld [vmem:[%s7 + $0x200] sm:$0xff]
  %v5990 = vld [vmem:[%s7 + $0x208] sm:$0xff]
  %v5991 = vld [vmem:[%s7 + $0x210] sm:$0xff]
  %v5992 = vld [vmem:[%s7 + $0x218] sm:$0xff]
  %v5993 = vld [vmem:[%s7 + $0x220] sm:$0xff]
  %v5994 = vld [vmem:[%s7 + $0x228] sm:$0xff]
  %v5995 = vld [vmem:[%s7 + $0x230] sm:$0xff]
  %v5996 = vld [vmem:[%s7 + $0x238] sm:$0xff]
  %v5997 = vld [vmem:[%s8] sm:$0x1]
  %v5999 = vlaneseq
  %v6000 = vshrl.u32 %v5999, 7
  %v6001 = vsub.s32 0, %v6000
  %v6002 = vrot.slane %v5997, %v6001
  %v6005 = vsel %vm4667, %v5852, 0
  %v6008 = vsel %vm4667, %v5857, 0
  %v6011 = vsel %vm4667, %v5862, 0
  %6013 = vmatprep.subr.mxu0 0.0
  %6014 = vmatpush1.msra.mxu0 %v5940
  %6015 = vmatprep.subr.mxu0 0.0
  %6016 = vmatpush1.msra.mxu0 %v5939
  %6017 = vmatprep.subr.mxu0 0.0
  %6018 = vmatpush1.msra.mxu0 %v5938
  %6019 = vmatprep.subr.mxu0 0.0
  %6020 = vmatpush1.msra.mxu0 %v5937
  %6021 = vmatprep.subr.mxu0 0.0
  %6022 = vmatpush1.msra.mxu0 %v5936
  %6023 = vmatprep.subr.mxu0 0.0
  %6024 = vmatpush1.msra.mxu0 %v5935
  %6025 = vmatprep.subr.mxu0 0.0
  %6026 = vmatpush1.msra.mxu0 %v5934
  %6027 = vmatprep.subr.mxu0 0.0
  %6028 = vmatpush1.msra.mxu0 %v5933
  %6029 = vmatprep.subr.mxu0 0.0
  %6030 = vmatpush1.msra.mxu0 %v5932
  %6031 = vmatprep.subr.mxu0 0.0
  %6032 = vmatpush1.msra.mxu0 %v5931
  %6033 = vmatprep.subr.mxu0 0.0
  %6034 = vmatpush1.msra.mxu0 %v5930
  %6035 = vmatprep.subr.mxu0 0.0
  %6036 = vmatpush1.msra.mxu0 %v5929
  %6037 = vmatprep.subr.mxu0 0.0
  %6038 = vmatpush1.msra.mxu0 %v5928
  %6039 = vmatprep.subr.mxu0 0.0
  %6040 = vmatpush1.msra.mxu0 %v5927
  %6041 = vmatprep.subr.mxu0 0.0
  %6042 = vmatpush1.msra.mxu0 %v5926
  %6043 = vmatprep.subr.mxu0 0.0
  %6044 = vmatpush1.msra.mxu0 %v5925
  %6045 = vmatprep.subr.mxu0 0.0
  %6046 = vmatpush2.msra.mxu0 %v5956
  %6047 = vmatprep.subr.mxu0 0.0
  %6048 = vmatpush2.msra.mxu0 %v5955
  %6049 = vmatprep.subr.mxu0 0.0
  %6050 = vmatpush2.msra.mxu0 %v5954
  %6051 = vmatprep.subr.mxu0 0.0
  %6052 = vmatpush2.msra.mxu0 %v5953
  %6053 = vmatprep.subr.mxu0 0.0
  %6054 = vmatpush2.msra.mxu0 %v5952
  %6055 = vmatprep.subr.mxu0 0.0
  %6056 = vmatpush2.msra.mxu0 %v5951
  %6057 = vmatprep.subr.mxu0 0.0
  %6058 = vmatpush2.msra.mxu0 %v5950
  %6059 = vmatprep.subr.mxu0 0.0
  %6060 = vmatpush2.msra.mxu0 %v5949
  %6061 = vmatprep.subr.mxu0 0.0
  %6062 = vmatpush2.msra.mxu0 %v5948
  %6063 = vmatprep.subr.mxu0 0.0
  %6064 = vmatpush2.msra.mxu0 %v5947
  %6065 = vmatprep.subr.mxu0 0.0
  %6066 = vmatpush2.msra.mxu0 %v5946
  %6067 = vmatprep.subr.mxu0 0.0
  %6068 = vmatpush2.msra.mxu0 %v5945
  %6069 = vmatprep.subr.mxu0 0.0
  %6070 = vmatpush2.msra.mxu0 %v5944
  %6071 = vmatprep.subr.mxu0 0.0
  %6072 = vmatpush2.msra.mxu0 %v5943
  %6073 = vmatprep.subr.mxu0 0.0
  %6074 = vmatpush2.msra.mxu0 %v5942
  %6075 = vmatprep.subr.mxu0 0.0
  %6076 = vmatpush2.msra.mxu0 %v5941
  %6077 = vmatprep.mubr.f32.mxu0 %v5916
  %6078 = vmatmul.mubr.f32.gmra.mxu0 %v5913
  %v6079 = vpop.f32.mrf.mxu0
  %v6080 = vadd.f32 %v6002, %v6079
  %v6081 = vpop.f32.mrf.mxu0
  %6082 = vmatprep.mubr.f32.mxu0 %v5917
  %6083 = vmatmul.mubr.f32.gmra.mxu0 %v5914
  %v6084 = vpop.f32.mrf.mxu0
  %v6085 = vadd.f32 %v6002, %v6084
  %v6086 = vpop.f32.mrf.mxu0
  %6087 = vmatprep.mubr.f32.mxu0 %v5918
  %6088 = vmatmul.mubr.f32.gmra.mxu0 %v5915
  %v6089 = vpop.f32.mrf.mxu0
  %v6090 = vadd.f32 %v6002, %v6089
  %v6091 = vpop.f32.mrf.mxu0
  %6092 = vdwg.mxu0
  %6093 = vmatprep.subr.mxu0 0.0
  %6094 = vmatpush1.msra.mxu0 %v5972
  %6095 = vmatprep.subr.mxu0 0.0
  %6096 = vmatpush1.msra.mxu0 %v5971
  %6097 = vmatprep.subr.mxu0 0.0
  %6098 = vmatpush1.msra.mxu0 %v5970
  %6099 = vmatprep.subr.mxu0 0.0
  %6100 = vmatpush1.msra.mxu0 %v5969
  %6101 = vmatprep.subr.mxu0 0.0
  %6102 = vmatpush1.msra.mxu0 %v5968
  %6103 = vmatprep.subr.mxu0 0.0
  %6104 = vmatpush1.msra.mxu0 %v5967
  %6105 = vmatprep.subr.mxu0 0.0
  %6106 = vmatpush1.msra.mxu0 %v5966
  %6107 = vmatprep.subr.mxu0 0.0
  %6108 = vmatpush1.msra.mxu0 %v5965
  %6109 = vmatprep.subr.mxu0 0.0
  %6110 = vmatpush1.msra.mxu0 %v5964
  %6111 = vmatprep.subr.mxu0 0.0
  %6112 = vmatpush1.msra.mxu0 %v5963
  %6113 = vmatprep.subr.mxu0 0.0
  %6114 = vmatpush1.msra.mxu0 %v5962
  %6115 = vmatprep.subr.mxu0 0.0
  %6116 = vmatpush1.msra.mxu0 %v5961
  %6117 = vmatprep.subr.mxu0 0.0
  %6118 = vmatpush1.msra.mxu0 %v5960
  %6119 = vmatprep.subr.mxu0 0.0
  %6120 = vmatpush1.msra.mxu0 %v5959
  %6121 = vmatprep.subr.mxu0 0.0
  %6122 = vmatpush1.msra.mxu0 %v5958
  %6123 = vmatprep.subr.mxu0 0.0
  %6124 = vmatpush1.msra.mxu0 %v5957
  %6125 = vmatprep.subr.mxu0 0.0
  %6126 = vmatpush2.msra.mxu0 %v5988
  %6127 = vmatprep.subr.mxu0 0.0
  %6128 = vmatpush2.msra.mxu0 %v5987
  %6129 = vmatprep.subr.mxu0 0.0
  %6130 = vmatpush2.msra.mxu0 %v5986
  %6131 = vmatprep.subr.mxu0 0.0
  %6132 = vmatpush2.msra.mxu0 %v5985
  %6133 = vmatprep.subr.mxu0 0.0
  %6134 = vmatpush2.msra.mxu0 %v5984
  %6135 = vmatprep.subr.mxu0 0.0
  %6136 = vmatpush2.msra.mxu0 %v5983
  %6137 = vmatprep.subr.mxu0 0.0
  %6138 = vmatpush2.msra.mxu0 %v5982
  %6139 = vmatprep.subr.mxu0 0.0
  %6140 = vmatpush2.msra.mxu0 %v5981
  %6141 = vmatprep.subr.mxu0 0.0
  %6142 = vmatpush2.msra.mxu0 %v5980
  %6143 = vmatprep.subr.mxu0 0.0
  %6144 = vmatpush2.msra.mxu0 %v5979
  %6145 = vmatprep.subr.mxu0 0.0
  %6146 = vmatpush2.msra.mxu0 %v5978
  %6147 = vmatprep.subr.mxu0 0.0
  %6148 = vmatpush2.msra.mxu0 %v5977
  %6149 = vmatprep.subr.mxu0 0.0
  %6150 = vmatpush2.msra.mxu0 %v5976
  %6151 = vmatprep.subr.mxu0 0.0
  %6152 = vmatpush2.msra.mxu0 %v5975
  %6153 = vmatprep.subr.mxu0 0.0
  %6154 = vmatpush2.msra.mxu0 %v5974
  %6155 = vmatprep.subr.mxu0 0.0
  %6156 = vmatpush2.msra.mxu0 %v5973
  %6157 = vmatprep.mubr.f32.mxu0 %v5922
  %6158 = vmatmul.mubr.f32.gmra.mxu0 %v5919
  %v6159 = vpop.f32.mrf.mxu0
  %v6160 = vadd.f32 %v6080, %v6159
  %v6161 = vpop.f32.mrf.mxu0
  %6162 = vmatprep.mubr.f32.mxu0 %v5923
  %6163 = vmatmul.mubr.f32.gmra.mxu0 %v5920
  %v6164 = vpop.f32.mrf.mxu0
  %v6165 = vadd.f32 %v6085, %v6164
  %v6166 = vpop.f32.mrf.mxu0
  %6167 = vmatprep.mubr.f32.mxu0 %v5924
  %6168 = vmatmul.mubr.f32.gmra.mxu0 %v5921
  %v6169 = vpop.f32.mrf.mxu0
  %v6170 = vadd.f32 %v6090, %v6169
  %v6171 = vpop.f32.mrf.mxu0
  %6172 = vdwg.mxu0
  %6173 = vmatprep.subr.mxu0 0.0
  %6174 = vmatpush1.msra.mxu0 0.0
  %6175 = vmatprep.subr.mxu0 0.0
  %6176 = vmatpush1.msra.mxu0 0.0
  %6177 = vmatprep.subr.mxu0 0.0
  %6178 = vmatpush1.msra.mxu0 0.0
  %6179 = vmatprep.subr.mxu0 0.0
  %6180 = vmatpush1.msra.mxu0 0.0
  %6181 = vmatprep.subr.mxu0 0.0
  %6182 = vmatpush1.msra.mxu0 0.0
  %6183 = vmatprep.subr.mxu0 0.0
  %6184 = vmatpush1.msra.mxu0 0.0
  %6185 = vmatprep.subr.mxu0 0.0
  %6186 = vmatpush1.msra.mxu0 0.0
  %6187 = vmatprep.subr.mxu0 0.0
  %6188 = vmatpush1.msra.mxu0 0.0
  %6189 = vmatprep.subr.mxu0 0.0
  %6190 = vmatpush1.msra.mxu0 %v5996
  %6191 = vmatprep.subr.mxu0 0.0
  %6192 = vmatpush1.msra.mxu0 %v5995
  %6193 = vmatprep.subr.mxu0 0.0
  %6194 = vmatpush1.msra.mxu0 %v5994
  %6195 = vmatprep.subr.mxu0 0.0
  %6196 = vmatpush1.msra.mxu0 %v5993
  %6197 = vmatprep.subr.mxu0 0.0
  %6198 = vmatpush1.msra.mxu0 %v5992
  %6199 = vmatprep.subr.mxu0 0.0
  %6200 = vmatpush1.msra.mxu0 %v5991
  %6201 = vmatprep.subr.mxu0 0.0
  %6202 = vmatpush1.msra.mxu0 %v5990
  %6203 = vmatprep.subr.mxu0 0.0
  %6204 = vmatpush1.msra.mxu0 %v5989
  %6205 = vmatprep.subr.mxu0 0.0
  %6206 = vmatpush2.msra.mxu0 0.0
  %6207 = vmatprep.subr.mxu0 0.0
  %6208 = vmatpush2.msra.mxu0 0.0
  %6209 = vmatprep.subr.mxu0 0.0
  %6210 = vmatpush2.msra.mxu0 0.0
  %6211 = vmatprep.subr.mxu0 0.0
  %6212 = vmatpush2.msra.mxu0 0.0
  %6213 = vmatprep.subr.mxu0 0.0
  %6214 = vmatpush2.msra.mxu0 0.0
  %6215 = vmatprep.subr.mxu0 0.0
  %6216 = vmatpush2.msra.mxu0 0.0
  %6217 = vmatprep.subr.mxu0 0.0
  %6218 = vmatpush2.msra.mxu0 0.0
  %6219 = vmatprep.subr.mxu0 0.0
  %6220 = vmatpush2.msra.mxu0 0.0
  %6221 = vmatprep.subr.mxu0 0.0
  %6222 = vmatpush2.msra.mxu0 0.0
  %6223 = vmatprep.subr.mxu0 0.0
  %6224 = vmatpush2.msra.mxu0 0.0
  %6225 = vmatprep.subr.mxu0 0.0
  %6226 = vmatpush2.msra.mxu0 0.0
  %6227 = vmatprep.subr.mxu0 0.0
  %6228 = vmatpush2.msra.mxu0 0.0
  %6229 = vmatprep.subr.mxu0 0.0
  %6230 = vmatpush2.msra.mxu0 0.0
  %6231 = vmatprep.subr.mxu0 0.0
  %6232 = vmatpush2.msra.mxu0 0.0
  %6233 = vmatprep.subr.mxu0 0.0
  %6234 = vmatpush2.msra.mxu0 0.0
  %6235 = vmatprep.subr.mxu0 0.0
  %6236 = vmatpush2.msra.mxu0 0.0
  %6237 = vmatprep.mubr.f32.mxu0 0.0
  %6238 = vmatmul.mubr.f32.gmra.mxu0 %v6005
  %v6239 = vpop.f32.mrf.mxu0
  %v6240 = vadd.f32 %v6160, %v6239
  %v6241 = vpop.f32.mrf.mxu0
  %6242 = vmatprep.mubr.f32.mxu0 0.0
  %6243 = vmatmul.mubr.f32.gmra.mxu0 %v6008
  %v6244 = vpop.f32.mrf.mxu0
  %v6245 = vadd.f32 %v6165, %v6244
  %v6246 = vpop.f32.mrf.mxu0
  %6247 = vmatprep.mubr.f32.mxu0 0.0
  %6248 = vmatmul.mubr.f32.gmra.mxu0 %v6011
  %v6249 = vpop.f32.mrf.mxu0
  %v6250 = vadd.f32 %v6170, %v6249
  %v6251 = vpop.f32.mrf.mxu0
  %6252 = vdwg.mxu0
  %v6253 = vmax.f32 %v6240, 0.0
  %v6254 = vmax.f32 %v6245, 0.0
  %v6255 = vmax.f32 %v6250, 0.0
  %v6259 = vcombine.high %v6253, %v6253
  %v6261 = vunpack.c.l.s4 1983009808
  %v6262 = vunpack.c.0.s8 %v6261
  %v6263 = vlaneseq
  %v6264 = vshrl.u32 %v6263, 7
  %v6265 = vsub.s32 %v6262, %v6264
  %v6266 = vrot.slane %v6253, %v6265
  %v6268 = vunpack.c.l.s4 1983009808
  %v6269 = vunpack.c.0.s8 %v6268
  %v6270 = vlaneseq
  %v6271 = vshrl.u32 %v6270, 7
  %v6272 = vsub.s32 %v6269, %v6271
  %v6273 = vrot.slane %v6259, %v6272
  %v6274 = vcombine.high %v6266, %v6266
  %v6275 = vcombine.high %v6273, %v6273
  %v6276 = vcombine.high %v6254, %v6254
  %v6278 = vunpack.c.l.s4 1983009808
  %v6279 = vunpack.c.0.s8 %v6278
  %v6280 = vlaneseq
  %v6281 = vshrl.u32 %v6280, 7
  %v6282 = vsub.s32 %v6279, %v6281
  %v6283 = vrot.slane %v6254, %v6282
  %v6285 = vunpack.c.l.s4 1983009808
  %v6286 = vunpack.c.0.s8 %v6285
  %v6287 = vlaneseq
  %v6288 = vshrl.u32 %v6287, 7
  %v6289 = vsub.s32 %v6286, %v6288
  %v6290 = vrot.slane %v6276, %v6289
  %v6291 = vcombine.high %v6283, %v6283
  %v6292 = vcombine.high %v6290, %v6290
  %v6294 = vunpack.c.l.s4 1983009808
  %v6295 = vunpack.c.0.s8 %v6294
  %v6296 = vlaneseq
  %v6297 = vshrl.u32 %v6296, 7
  %v6298 = vsub.s32 %v6295, %v6297
  %v6299 = vrot.slane %v6255, %v6298
  %v6302 = vunpack.c.l.s4 1983009808
  %v6303 = vunpack.c.0.s8 %v6302
  %v6304 = vlaneseq
  %v6305 = vshrl.u32 %v6304, 7
  %v6306 = vsub.s32 %v6303, %v6305
  %v6307 = vrot.slane %v6274, %v6306
  %6308 = vrot.lane.b32.xlu0 %v6307, 6
  %v6309 = vpop.permute.xlu0 %6308
  %v6312 = vunpack.c.l.s4 1983009808
  %v6313 = vunpack.c.0.s8 %v6312
  %v6314 = vlaneseq
  %v6315 = vshrl.u32 %v6314, 7
  %v6316 = vsub.s32 %v6313, %v6315
  %v6317 = vrot.slane %v6273, %v6316
  %6318 = vrot.lane.b32.xlu0 %v6317, 12
  %v6319 = vpop.permute.xlu0 %6318
  %v6322 = vunpack.c.l.s4 1983009808
  %v6323 = vunpack.c.0.s8 %v6322
  %v6324 = vlaneseq
  %v6325 = vshrl.u32 %v6324, 7
  %v6326 = vsub.s32 %v6323, %v6325
  %v6327 = vrot.slane %v6275, %v6326
  %6328 = vrot.lane.b32.xlu0 %v6327, 18
  %v6329 = vpop.permute.xlu0 %6328
  %v6332 = vunpack.c.l.s4 1983009808
  %v6333 = vunpack.c.0.s8 %v6332
  %v6334 = vlaneseq
  %v6335 = vshrl.u32 %v6334, 7
  %v6336 = vsub.s32 %v6333, %v6335
  %v6337 = vrot.slane %v6283, %v6336
  %6338 = vrot.lane.b32.xlu0 %v6337, 24
  %v6339 = vpop.permute.xlu0 %6338
  %v6342 = vunpack.c.l.s4 1983009808
  %v6343 = vunpack.c.0.s8 %v6342
  %v6344 = vlaneseq
  %v6345 = vshrl.u32 %v6344, 7
  %v6346 = vsub.s32 %v6343, %v6345
  %v6347 = vrot.slane %v6291, %v6346
  %6348 = vrot.lane.b32.xlu0 %v6347, 30
  %v6349 = vpop.permute.xlu0 %6348
  %v6352 = vunpack.c.l.s4 1983009808
  %v6353 = vunpack.c.0.s8 %v6352
  %v6354 = vlaneseq
  %v6355 = vshrl.u32 %v6354, 7
  %v6356 = vsub.s32 %v6353, %v6355
  %v6357 = vrot.slane %v6290, %v6356
  %6358 = vrot.lane.b32.xlu0 %v6357, 36
  %v6359 = vpop.permute.xlu0 %6358
  %v6362 = vunpack.c.l.s4 1983009808
  %v6363 = vunpack.c.0.s8 %v6362
  %v6364 = vlaneseq
  %v6365 = vshrl.u32 %v6364, 7
  %v6366 = vsub.s32 %v6363, %v6365
  %v6367 = vrot.slane %v6292, %v6366
  %6368 = vrot.lane.b32.xlu0 %v6367, 42
  %v6369 = vpop.permute.xlu0 %6368
  %v6372 = vunpack.c.l.s4 1983009808
  %v6373 = vunpack.c.0.s8 %v6372
  %v6374 = vlaneseq
  %v6375 = vshrl.u32 %v6374, 7
  %v6376 = vsub.s32 %v6373, %v6375
  %v6377 = vrot.slane %v6299, %v6376
  %6378 = vrot.lane.b32.xlu0 %v6377, 48
  %v6379 = vpop.permute.xlu0 %6378
  %vm6381 = vcmask 48128
  %v6382 = vsel %vm6381, %v6266, %v6309
  %vm6383 = vcmask 97280
  %v6384 = vsel %vm6383, %v6382, %v6319
  %vm6385 = vcmask 146432
  %v6386 = vsel %vm6385, %v6384, %v6329
  %vm6387 = vcmask 195584
  %v6388 = vsel %vm6387, %v6386, %v6339
  %vm6389 = vcmask 244736
  %v6390 = vsel %vm6389, %v6388, %v6349
  %vm6391 = vcmask 293888
  %v6392 = vsel %vm6391, %v6390, %v6359
  %vm6393 = vcmask 343040
  %v6394 = vsel %vm6393, %v6392, %v6369
  %vm6395 = vcmask 392192
  %v6396 = vsel %vm6395, %v6394, %v6379
  %v6397 = vld [vmem:[%s9] sm:$0xff]
  %v6398 = vld [vmem:[%s9 + $0x8] sm:$0xff]
  %v6399 = vld [vmem:[%s9 + $0x10] sm:$0xff]
  %v6400 = vld [vmem:[%s9 + $0x18] sm:$0xff]
  %v6401 = vld [vmem:[%s9 + $0x20] sm:$0xff]
  %v6402 = vld [vmem:[%s9 + $0x28] sm:$0xff]
  %v6403 = vld [vmem:[%s9 + $0x30] sm:$0xff]
  %v6404 = vld [vmem:[%s9 + $0x38] sm:$0xff]
  %v6405 = vld [vmem:[%s9 + $0x40] sm:$0xff]
  %v6406 = vld [vmem:[%s9 + $0x48] sm:$0xff]
  %v6407 = vld [vmem:[%s9 + $0x50] sm:$0xff]
  %v6408 = vld [vmem:[%s9 + $0x58] sm:$0xff]
  %v6409 = vld [vmem:[%s9 + $0x60] sm:$0xff]
  %v6410 = vld [vmem:[%s9 + $0x68] sm:$0xff]
  %v6411 = vld [vmem:[%s9 + $0x70] sm:$0xff]
  %v6412 = vld [vmem:[%s9 + $0x78] sm:$0xff]
  %v6413 = vld [vmem:[%s9 + $0x80] sm:$0xff]
  %v6414 = vld [vmem:[%s9 + $0x88] sm:$0xff]
  %v6415 = vld [vmem:[%s9 + $0x90] sm:$0xff]
  %v6416 = vld [vmem:[%s9 + $0x98] sm:$0xff]
  %v6417 = vld [vmem:[%s9 + $0xa0] sm:$0xff]
  %v6418 = vld [vmem:[%s9 + $0xa8] sm:$0xff]
  %v6419 = vld [vmem:[%s9 + $0xb0] sm:$0xff]
  %v6420 = vld [vmem:[%s9 + $0xb8] sm:$0xff]
  %v6421 = vld [vmem:[%s9 + $0xc0] sm:$0xff]
  %v6422 = vld [vmem:[%s9 + $0xc8] sm:$0xff]
  %v6423 = vld [vmem:[%s9 + $0xd0] sm:$0xff]
  %v6424 = vld [vmem:[%s9 + $0xd8] sm:$0xff]
  %v6425 = vld [vmem:[%s9 + $0xe0] sm:$0xff]
  %v6426 = vld [vmem:[%s9 + $0xe8] sm:$0xff]
  %v6427 = vld [vmem:[%s9 + $0xf0] sm:$0xff]
  %v6428 = vld [vmem:[%s9 + $0xf8] sm:$0xff]
  %v6429 = vld [vmem:[%s9 + $0x100] sm:$0xff]
  %v6430 = vld [vmem:[%s9 + $0x108] sm:$0xff]
  %v6431 = vld [vmem:[%s9 + $0x110] sm:$0xff]
  %v6432 = vld [vmem:[%s9 + $0x118] sm:$0xff]
  %v6433 = vld [vmem:[%s9 + $0x120] sm:$0xff]
  %v6434 = vld [vmem:[%s9 + $0x128] sm:$0xff]
  %v6435 = vld [vmem:[%s9 + $0x130] sm:$0xff]
  %v6436 = vld [vmem:[%s9 + $0x138] sm:$0xff]
  %v6437 = vld [vmem:[%s9 + $0x140] sm:$0xff]
  %v6438 = vld [vmem:[%s9 + $0x148] sm:$0xff]
  %v6439 = vld [vmem:[%s9 + $0x150] sm:$0xff]
  %v6440 = vld [vmem:[%s9 + $0x158] sm:$0xff]
  %v6441 = vld [vmem:[%s9 + $0x160] sm:$0xff]
  %v6442 = vld [vmem:[%s9 + $0x168] sm:$0xff]
  %v6443 = vld [vmem:[%s9 + $0x170] sm:$0xff]
  %v6444 = vld [vmem:[%s9 + $0x178] sm:$0xff]
  %v6445 = vld [vmem:[%s9 + $0x180] sm:$0x3f]
  %v6446 = vld [vmem:[%s9 + $0x188] sm:$0x3f]
  %v6447 = vld [vmem:[%s9 + $0x190] sm:$0x3f]
  %v6448 = vld [vmem:[%s9 + $0x198] sm:$0x3f]
  %v6449 = vld [vmem:[%s9 + $0x1a0] sm:$0x3f]
  %v6450 = vld [vmem:[%s9 + $0x1a8] sm:$0x3f]
  %v6451 = vld [vmem:[%s9 + $0x1b0] sm:$0x3f]
  %v6452 = vld [vmem:[%s9 + $0x1b8] sm:$0x3f]
  %v6453 = vld [vmem:[%s10] sm:$0xff]
  %v6455 = vlaneseq
  %v6456 = vshrl.u32 %v6455, 7
  %v6457 = vsub.s32 0, %v6456
  %v6458 = vrot.slane %v6453, %v6457
  %v6459 = vlaneseq
  %v6460 = vshrl.u32 %v6459, 7
  %v6461 = vsub.s32 1, %v6460
  %v6462 = vrot.slane %v6453, %v6461
  %v6463 = vlaneseq
  %v6464 = vshrl.u32 %v6463, 7
  %v6465 = vsub.s32 2, %v6464
  %v6466 = vrot.slane %v6453, %v6465
  %v6467 = vlaneseq
  %v6468 = vshrl.u32 %v6467, 7
  %v6469 = vsub.s32 3, %v6468
  %v6470 = vrot.slane %v6453, %v6469
  %v6471 = vlaneseq
  %v6472 = vshrl.u32 %v6471, 7
  %v6473 = vsub.s32 4, %v6472
  %v6474 = vrot.slane %v6453, %v6473
  %v6475 = vlaneseq
  %v6476 = vshrl.u32 %v6475, 7
  %v6477 = vsub.s32 5, %v6476
  %v6478 = vrot.slane %v6453, %v6477
  %v6479 = vlaneseq
  %v6480 = vshrl.u32 %v6479, 7
  %v6481 = vsub.s32 6, %v6480
  %v6482 = vrot.slane %v6453, %v6481
  %v6483 = vlaneseq
  %v6484 = vshrl.u32 %v6483, 7
  %v6485 = vsub.s32 7, %v6484
  %v6486 = vrot.slane %v6453, %v6485
  %vm6495 = vcmask 441344
  %v6497 = vsel %vm6495, %v6396, 0
  %vm6499 = vcmask 1045504
  %v6501 = vsel %vm6499, %v6445, 0
  %v6504 = vsel %vm6499, %v6446, 0
  %v6507 = vsel %vm6499, %v6447, 0
  %v6510 = vsel %vm6499, %v6448, 0
  %v6513 = vsel %vm6499, %v6449, 0
  %v6516 = vsel %vm6499, %v6450, 0
  %v6519 = vsel %vm6499, %v6451, 0
  %v6522 = vsel %vm6499, %v6452, 0
  %6524 = vmatprep.subr.mxu0 0.0
  %6525 = vmatpush1.msra.mxu0 0.0
  %6526 = vmatprep.subr.mxu0 0.0
  %6527 = vmatpush1.msra.mxu0 0.0
  %6528 = vmatprep.subr.mxu0 0.0
  %6529 = vmatpush1.msra.mxu0 0.0
  %6530 = vmatprep.subr.mxu0 0.0
  %6531 = vmatpush1.msra.mxu0 0.0
  %6532 = vmatprep.subr.mxu0 0.0
  %6533 = vmatpush1.msra.mxu0 0.0
  %6534 = vmatprep.subr.mxu0 0.0
  %6535 = vmatpush1.msra.mxu0 0.0
  %6536 = vmatprep.subr.mxu0 0.0
  %6537 = vmatpush1.msra.mxu0 0.0
  %6538 = vmatprep.subr.mxu0 0.0
  %6539 = vmatpush1.msra.mxu0 0.0
  %6540 = vmatprep.subr.mxu0 0.0
  %6541 = vmatpush1.msra.mxu0 0.0
  %6542 = vmatprep.subr.mxu0 %v6504
  %6543 = vmatpush1.msra.mxu0 %v6501
  %6544 = vmatprep.subr.mxu0 %v6438
  %6545 = vmatpush1.msra.mxu0 %v6437
  %6546 = vmatprep.subr.mxu0 %v6430
  %6547 = vmatpush1.msra.mxu0 %v6429
  %6548 = vmatprep.subr.mxu0 %v6422
  %6549 = vmatpush1.msra.mxu0 %v6421
  %6550 = vmatprep.subr.mxu0 %v6414
  %6551 = vmatpush1.msra.mxu0 %v6413
  %6552 = vmatprep.subr.mxu0 %v6406
  %6553 = vmatpush1.msra.mxu0 %v6405
  %6554 = vmatprep.subr.mxu0 %v6398
  %6555 = vmatpush1.msra.mxu0 %v6397
  %6556 = vmatprep.subr.mxu0 0.0
  %6557 = vmatpush2.msra.mxu0 0.0
  %6558 = vmatprep.subr.mxu0 0.0
  %6559 = vmatpush2.msra.mxu0 0.0
  %6560 = vmatprep.subr.mxu0 0.0
  %6561 = vmatpush2.msra.mxu0 0.0
  %6562 = vmatprep.subr.mxu0 0.0
  %6563 = vmatpush2.msra.mxu0 0.0
  %6564 = vmatprep.subr.mxu0 0.0
  %6565 = vmatpush2.msra.mxu0 0.0
  %6566 = vmatprep.subr.mxu0 0.0
  %6567 = vmatpush2.msra.mxu0 0.0
  %6568 = vmatprep.subr.mxu0 0.0
  %6569 = vmatpush2.msra.mxu0 0.0
  %6570 = vmatprep.subr.mxu0 0.0
  %6571 = vmatpush2.msra.mxu0 0.0
  %6572 = vmatprep.subr.mxu0 0.0
  %6573 = vmatpush2.msra.mxu0 0.0
  %6574 = vmatprep.subr.mxu0 0.0
  %6575 = vmatpush2.msra.mxu0 0.0
  %6576 = vmatprep.subr.mxu0 0.0
  %6577 = vmatpush2.msra.mxu0 0.0
  %6578 = vmatprep.subr.mxu0 0.0
  %6579 = vmatpush2.msra.mxu0 0.0
  %6580 = vmatprep.subr.mxu0 0.0
  %6581 = vmatpush2.msra.mxu0 0.0
  %6582 = vmatprep.subr.mxu0 0.0
  %6583 = vmatpush2.msra.mxu0 0.0
  %6584 = vmatprep.subr.mxu0 0.0
  %6585 = vmatpush2.msra.mxu0 0.0
  %6586 = vmatprep.subr.mxu0 0.0
  %6587 = vmatpush2.msra.mxu0 0.0
  %6588 = vmatprep.mubr.f32.mxu0 0.0
  %6589 = vmatmul.mubr.f32.gmra.mxu0 %v6497
  %v6590 = vpop.f32.mrf.mxu0
  %v6591 = vadd.f32 %v6458, %v6590
  %v6592 = vpop.f32.mrf.mxu0
  %v6593 = vadd.f32 %v6462, %v6592
  %6594 = vdwg.mxu0
  %6595 = vmatprep.subr.mxu0 0.0
  %6596 = vmatpush1.msra.mxu0 0.0
  %6597 = vmatprep.subr.mxu0 0.0
  %6598 = vmatpush1.msra.mxu0 0.0
  %6599 = vmatprep.subr.mxu0 0.0
  %6600 = vmatpush1.msra.mxu0 0.0
  %6601 = vmatprep.subr.mxu0 0.0
  %6602 = vmatpush1.msra.mxu0 0.0
  %6603 = vmatprep.subr.mxu0 0.0
  %6604 = vmatpush1.msra.mxu0 0.0
  %6605 = vmatprep.subr.mxu0 0.0
  %6606 = vmatpush1.msra.mxu0 0.0
  %6607 = vmatprep.subr.mxu0 0.0
  %6608 = vmatpush1.msra.mxu0 0.0
  %6609 = vmatprep.subr.mxu0 0.0
  %6610 = vmatpush1.msra.mxu0 0.0
  %6611 = vmatprep.subr.mxu0 0.0
  %6612 = vmatpush1.msra.mxu0 0.0
  %6613 = vmatprep.subr.mxu0 %v6510
  %6614 = vmatpush1.msra.mxu0 %v6507
  %6615 = vmatprep.subr.mxu0 %v6440
  %6616 = vmatpush1.msra.mxu0 %v6439
  %6617 = vmatprep.subr.mxu0 %v6432
  %6618 = vmatpush1.msra.mxu0 %v6431
  %6619 = vmatprep.subr.mxu0 %v6424
  %6620 = vmatpush1.msra.mxu0 %v6423
  %6621 = vmatprep.subr.mxu0 %v6416
  %6622 = vmatpush1.msra.mxu0 %v6415
  %6623 = vmatprep.subr.mxu0 %v6408
  %6624 = vmatpush1.msra.mxu0 %v6407
  %6625 = vmatprep.subr.mxu0 %v6400
  %6626 = vmatpush1.msra.mxu0 %v6399
  %6627 = vmatprep.subr.mxu0 0.0
  %6628 = vmatpush2.msra.mxu0 0.0
  %6629 = vmatprep.subr.mxu0 0.0
  %6630 = vmatpush2.msra.mxu0 0.0
  %6631 = vmatprep.subr.mxu0 0.0
  %6632 = vmatpush2.msra.mxu0 0.0
  %6633 = vmatprep.subr.mxu0 0.0
  %6634 = vmatpush2.msra.mxu0 0.0
  %6635 = vmatprep.subr.mxu0 0.0
  %6636 = vmatpush2.msra.mxu0 0.0
  %6637 = vmatprep.subr.mxu0 0.0
  %6638 = vmatpush2.msra.mxu0 0.0
  %6639 = vmatprep.subr.mxu0 0.0
  %6640 = vmatpush2.msra.mxu0 0.0
  %6641 = vmatprep.subr.mxu0 0.0
  %6642 = vmatpush2.msra.mxu0 0.0
  %6643 = vmatprep.subr.mxu0 0.0
  %6644 = vmatpush2.msra.mxu0 0.0
  %6645 = vmatprep.subr.mxu0 0.0
  %6646 = vmatpush2.msra.mxu0 0.0
  %6647 = vmatprep.subr.mxu0 0.0
  %6648 = vmatpush2.msra.mxu0 0.0
  %6649 = vmatprep.subr.mxu0 0.0
  %6650 = vmatpush2.msra.mxu0 0.0
  %6651 = vmatprep.subr.mxu0 0.0
  %6652 = vmatpush2.msra.mxu0 0.0
  %6653 = vmatprep.subr.mxu0 0.0
  %6654 = vmatpush2.msra.mxu0 0.0
  %6655 = vmatprep.subr.mxu0 0.0
  %6656 = vmatpush2.msra.mxu0 0.0
  %6657 = vmatprep.subr.mxu0 0.0
  %6658 = vmatpush2.msra.mxu0 0.0
  %6659 = vmatprep.mubr.f32.mxu0 0.0
  %6660 = vmatmul.mubr.f32.gmra.mxu0 %v6497
  %v6661 = vpop.f32.mrf.mxu0
  %v6662 = vadd.f32 %v6466, %v6661
  %v6663 = vpop.f32.mrf.mxu0
  %v6664 = vadd.f32 %v6470, %v6663
  %6665 = vdwg.mxu0
  %6666 = vmatprep.subr.mxu0 0.0
  %6667 = vmatpush1.msra.mxu0 0.0
  %6668 = vmatprep.subr.mxu0 0.0
  %6669 = vmatpush1.msra.mxu0 0.0
  %6670 = vmatprep.subr.mxu0 0.0
  %6671 = vmatpush1.msra.mxu0 0.0
  %6672 = vmatprep.subr.mxu0 0.0
  %6673 = vmatpush1.msra.mxu0 0.0
  %6674 = vmatprep.subr.mxu0 0.0
  %6675 = vmatpush1.msra.mxu0 0.0
  %6676 = vmatprep.subr.mxu0 0.0
  %6677 = vmatpush1.msra.mxu0 0.0
  %6678 = vmatprep.subr.mxu0 0.0
  %6679 = vmatpush1.msra.mxu0 0.0
  %6680 = vmatprep.subr.mxu0 0.0
  %6681 = vmatpush1.msra.mxu0 0.0
  %6682 = vmatprep.subr.mxu0 0.0
  %6683 = vmatpush1.msra.mxu0 0.0
  %6684 = vmatprep.subr.mxu0 %v6516
  %6685 = vmatpush1.msra.mxu0 %v6513
  %6686 = vmatprep.subr.mxu0 %v6442
  %6687 = vmatpush1.msra.mxu0 %v6441
  %6688 = vmatprep.subr.mxu0 %v6434
  %6689 = vmatpush1.msra.mxu0 %v6433
  %6690 = vmatprep.subr.mxu0 %v6426
  %6691 = vmatpush1.msra.mxu0 %v6425
  %6692 = vmatprep.subr.mxu0 %v6418
  %6693 = vmatpush1.msra.mxu0 %v6417
  %6694 = vmatprep.subr.mxu0 %v6410
  %6695 = vmatpush1.msra.mxu0 %v6409
  %6696 = vmatprep.subr.mxu0 %v6402
  %6697 = vmatpush1.msra.mxu0 %v6401
  %6698 = vmatprep.subr.mxu0 0.0
  %6699 = vmatpush2.msra.mxu0 0.0
  %6700 = vmatprep.subr.mxu0 0.0
  %6701 = vmatpush2.msra.mxu0 0.0
  %6702 = vmatprep.subr.mxu0 0.0
  %6703 = vmatpush2.msra.mxu0 0.0
  %6704 = vmatprep.subr.mxu0 0.0
  %6705 = vmatpush2.msra.mxu0 0.0
  %6706 = vmatprep.subr.mxu0 0.0
  %6707 = vmatpush2.msra.mxu0 0.0
  %6708 = vmatprep.subr.mxu0 0.0
  %6709 = vmatpush2.msra.mxu0 0.0
  %6710 = vmatprep.subr.mxu0 0.0
  %6711 = vmatpush2.msra.mxu0 0.0
  %6712 = vmatprep.subr.mxu0 0.0
  %6713 = vmatpush2.msra.mxu0 0.0
  %6714 = vmatprep.subr.mxu0 0.0
  %6715 = vmatpush2.msra.mxu0 0.0
  %6716 = vmatprep.subr.mxu0 0.0
  %6717 = vmatpush2.msra.mxu0 0.0
  %6718 = vmatprep.subr.mxu0 0.0
  %6719 = vmatpush2.msra.mxu0 0.0
  %6720 = vmatprep.subr.mxu0 0.0
  %6721 = vmatpush2.msra.mxu0 0.0
  %6722 = vmatprep.subr.mxu0 0.0
  %6723 = vmatpush2.msra.mxu0 0.0
  %6724 = vmatprep.subr.mxu0 0.0
  %6725 = vmatpush2.msra.mxu0 0.0
  %6726 = vmatprep.subr.mxu0 0.0
  %6727 = vmatpush2.msra.mxu0 0.0
  %6728 = vmatprep.subr.mxu0 0.0
  %6729 = vmatpush2.msra.mxu0 0.0
  %6730 = vmatprep.mubr.f32.mxu0 0.0
  %6731 = vmatmul.mubr.f32.gmra.mxu0 %v6497
  %v6732 = vpop.f32.mrf.mxu0
  %v6733 = vadd.f32 %v6474, %v6732
  %v6734 = vpop.f32.mrf.mxu0
  %v6735 = vadd.f32 %v6478, %v6734
  %6736 = vdwg.mxu0
  %6737 = vmatprep.subr.mxu0 0.0
  %6738 = vmatpush1.msra.mxu0 0.0
  %6739 = vmatprep.subr.mxu0 0.0
  %6740 = vmatpush1.msra.mxu0 0.0
  %6741 = vmatprep.subr.mxu0 0.0
  %6742 = vmatpush1.msra.mxu0 0.0
  %6743 = vmatprep.subr.mxu0 0.0
  %6744 = vmatpush1.msra.mxu0 0.0
  %6745 = vmatprep.subr.mxu0 0.0
  %6746 = vmatpush1.msra.mxu0 0.0
  %6747 = vmatprep.subr.mxu0 0.0
  %6748 = vmatpush1.msra.mxu0 0.0
  %6749 = vmatprep.subr.mxu0 0.0
  %6750 = vmatpush1.msra.mxu0 0.0
  %6751 = vmatprep.subr.mxu0 0.0
  %6752 = vmatpush1.msra.mxu0 0.0
  %6753 = vmatprep.subr.mxu0 0.0
  %6754 = vmatpush1.msra.mxu0 0.0
  %6755 = vmatprep.subr.mxu0 %v6522
  %6756 = vmatpush1.msra.mxu0 %v6519
  %6757 = vmatprep.subr.mxu0 %v6444
  %6758 = vmatpush1.msra.mxu0 %v6443
  %6759 = vmatprep.subr.mxu0 %v6436
  %6760 = vmatpush1.msra.mxu0 %v6435
  %6761 = vmatprep.subr.mxu0 %v6428
  %6762 = vmatpush1.msra.mxu0 %v6427
  %6763 = vmatprep.subr.mxu0 %v6420
  %6764 = vmatpush1.msra.mxu0 %v6419
  %6765 = vmatprep.subr.mxu0 %v6412
  %6766 = vmatpush1.msra.mxu0 %v6411
  %6767 = vmatprep.subr.mxu0 %v6404
  %6768 = vmatpush1.msra.mxu0 %v6403
  %6769 = vmatprep.subr.mxu0 0.0
  %6770 = vmatpush2.msra.mxu0 0.0
  %6771 = vmatprep.subr.mxu0 0.0
  %6772 = vmatpush2.msra.mxu0 0.0
  %6773 = vmatprep.subr.mxu0 0.0
  %6774 = vmatpush2.msra.mxu0 0.0
  %6775 = vmatprep.subr.mxu0 0.0
  %6776 = vmatpush2.msra.mxu0 0.0
  %6777 = vmatprep.subr.mxu0 0.0
  %6778 = vmatpush2.msra.mxu0 0.0
  %6779 = vmatprep.subr.mxu0 0.0
  %6780 = vmatpush2.msra.mxu0 0.0
  %6781 = vmatprep.subr.mxu0 0.0
  %6782 = vmatpush2.msra.mxu0 0.0
  %6783 = vmatprep.subr.mxu0 0.0
  %6784 = vmatpush2.msra.mxu0 0.0
  %6785 = vmatprep.subr.mxu0 0.0
  %6786 = vmatpush2.msra.mxu0 0.0
  %6787 = vmatprep.subr.mxu0 0.0
  %6788 = vmatpush2.msra.mxu0 0.0
  %6789 = vmatprep.subr.mxu0 0.0
  %6790 = vmatpush2.msra.mxu0 0.0
  %6791 = vmatprep.subr.mxu0 0.0
  %6792 = vmatpush2.msra.mxu0 0.0
  %6793 = vmatprep.subr.mxu0 0.0
  %6794 = vmatpush2.msra.mxu0 0.0
  %6795 = vmatprep.subr.mxu0 0.0
  %6796 = vmatpush2.msra.mxu0 0.0
  %6797 = vmatprep.subr.mxu0 0.0
  %6798 = vmatpush2.msra.mxu0 0.0
  %6799 = vmatprep.subr.mxu0 0.0
  %6800 = vmatpush2.msra.mxu0 0.0
  %6801 = vmatprep.mubr.f32.mxu0 0.0
  %6802 = vmatmul.mubr.f32.gmra.mxu0 %v6497
  %v6803 = vpop.f32.mrf.mxu0
  %v6804 = vadd.f32 %v6482, %v6803
  %v6805 = vpop.f32.mrf.mxu0
  %v6806 = vadd.f32 %v6486, %v6805
  %6807 = vdwg.mxu0
  %v6808 = vmax.f32 %v6591, 0.0
  %v6809 = vmax.f32 %v6593, 0.0
  %v6810 = vmax.f32 %v6662, 0.0
  %v6811 = vmax.f32 %v6664, 0.0
  %v6812 = vmax.f32 %v6733, 0.0
  %v6813 = vmax.f32 %v6735, 0.0
  %v6814 = vmax.f32 %v6804, 0.0
  %v6815 = vmax.f32 %v6806, 0.0
  %v6816 = vld [vmem:[%s11] sm:$0xff]
  %v6817 = vld [vmem:[%s11 + $0x8] sm:$0xff]
  %v6818 = vld [vmem:[%s11 + $0x10] sm:$0xff]
  %v6819 = vld [vmem:[%s11 + $0x18] sm:$0xff]
  %v6820 = vld [vmem:[%s11 + $0x20] sm:$0xff]
  %v6821 = vld [vmem:[%s11 + $0x28] sm:$0xff]
  %v6822 = vld [vmem:[%s11 + $0x30] sm:$0xff]
  %v6823 = vld [vmem:[%s11 + $0x38] sm:$0xff]
  %v6824 = vld [vmem:[%s11 + $0x40] sm:$0xff]
  %v6825 = vld [vmem:[%s11 + $0x48] sm:$0xff]
  %v6826 = vld [vmem:[%s11 + $0x50] sm:$0xff]
  %v6827 = vld [vmem:[%s11 + $0x58] sm:$0xff]
  %v6828 = vld [vmem:[%s11 + $0x60] sm:$0xff]
  %v6829 = vld [vmem:[%s11 + $0x68] sm:$0xff]
  %v6830 = vld [vmem:[%s11 + $0x70] sm:$0xff]
  %v6831 = vld [vmem:[%s11 + $0x78] sm:$0xff]
  %v6832 = vld [vmem:[%s11 + $0x80] sm:$0xff]
  %v6833 = vld [vmem:[%s11 + $0x88] sm:$0xff]
  %v6834 = vld [vmem:[%s11 + $0x90] sm:$0xff]
  %v6835 = vld [vmem:[%s11 + $0x98] sm:$0xff]
  %v6836 = vld [vmem:[%s11 + $0xa0] sm:$0xff]
  %v6837 = vld [vmem:[%s11 + $0xa8] sm:$0xff]
  %v6838 = vld [vmem:[%s11 + $0xb0] sm:$0xff]
  %v6839 = vld [vmem:[%s11 + $0xb8] sm:$0xff]
  %v6840 = vld [vmem:[%s11 + $0xc0] sm:$0xff]
  %v6841 = vld [vmem:[%s11 + $0xc8] sm:$0xff]
  %v6842 = vld [vmem:[%s11 + $0xd0] sm:$0xff]
  %v6843 = vld [vmem:[%s11 + $0xd8] sm:$0xff]
  %v6844 = vld [vmem:[%s11 + $0xe0] sm:$0xff]
  %v6845 = vld [vmem:[%s11 + $0xe8] sm:$0xff]
  %v6846 = vld [vmem:[%s11 + $0xf0] sm:$0xff]
  %v6847 = vld [vmem:[%s11 + $0xf8] sm:$0xff]
  %v6848 = vld [vmem:[%s11 + $0x100] sm:$0xff]
  %v6849 = vld [vmem:[%s11 + $0x108] sm:$0xff]
  %v6850 = vld [vmem:[%s11 + $0x110] sm:$0xff]
  %v6851 = vld [vmem:[%s11 + $0x118] sm:$0xff]
  %v6852 = vld [vmem:[%s11 + $0x120] sm:$0xff]
  %v6853 = vld [vmem:[%s11 + $0x128] sm:$0xff]
  %v6854 = vld [vmem:[%s11 + $0x130] sm:$0xff]
  %v6855 = vld [vmem:[%s11 + $0x138] sm:$0xff]
  %v6856 = vld [vmem:[%s11 + $0x140] sm:$0xff]
  %v6857 = vld [vmem:[%s11 + $0x148] sm:$0xff]
  %v6858 = vld [vmem:[%s11 + $0x150] sm:$0xff]
  %v6859 = vld [vmem:[%s11 + $0x158] sm:$0xff]
  %v6860 = vld [vmem:[%s11 + $0x160] sm:$0xff]
  %v6861 = vld [vmem:[%s11 + $0x168] sm:$0xff]
  %v6862 = vld [vmem:[%s11 + $0x170] sm:$0xff]
  %v6863 = vld [vmem:[%s11 + $0x178] sm:$0xff]
  %v6864 = vld [vmem:[%s11 + $0x180] sm:$0xff]
  %v6865 = vld [vmem:[%s11 + $0x188] sm:$0xff]
  %v6866 = vld [vmem:[%s11 + $0x190] sm:$0xff]
  %v6867 = vld [vmem:[%s11 + $0x198] sm:$0xff]
  %v6868 = vld [vmem:[%s11 + $0x1a0] sm:$0xff]
  %v6869 = vld [vmem:[%s11 + $0x1a8] sm:$0xff]
  %v6870 = vld [vmem:[%s11 + $0x1b0] sm:$0xff]
  %v6871 = vld [vmem:[%s11 + $0x1b8] sm:$0xff]
  %v6872 = vld [vmem:[%s11 + $0x1c0] sm:$0xff]
  %v6873 = vld [vmem:[%s11 + $0x1c8] sm:$0xff]
  %v6874 = vld [vmem:[%s11 + $0x1d0] sm:$0xff]
  %v6875 = vld [vmem:[%s11 + $0x1d8] sm:$0xff]
  %v6876 = vld [vmem:[%s11 + $0x1e0] sm:$0xff]
  %v6877 = vld [vmem:[%s11 + $0x1e8] sm:$0xff]
  %v6878 = vld [vmem:[%s11 + $0x1f0] sm:$0xff]
  %v6879 = vld [vmem:[%s11 + $0x1f8] sm:$0xff]
  %v6880 = vld [vmem:[%s11 + $0x200] sm:$0xff]
  %v6881 = vld [vmem:[%s11 + $0x208] sm:$0xff]
  %v6882 = vld [vmem:[%s11 + $0x210] sm:$0xff]
  %v6883 = vld [vmem:[%s11 + $0x218] sm:$0xff]
  %v6884 = vld [vmem:[%s11 + $0x220] sm:$0xff]
  %v6885 = vld [vmem:[%s11 + $0x228] sm:$0xff]
  %v6886 = vld [vmem:[%s11 + $0x230] sm:$0xff]
  %v6887 = vld [vmem:[%s11 + $0x238] sm:$0xff]
  %v6888 = vld [vmem:[%s11 + $0x240] sm:$0xff]
  %v6889 = vld [vmem:[%s11 + $0x248] sm:$0xff]
  %v6890 = vld [vmem:[%s11 + $0x250] sm:$0xff]
  %v6891 = vld [vmem:[%s11 + $0x258] sm:$0xff]
  %v6892 = vld [vmem:[%s11 + $0x260] sm:$0xff]
  %v6893 = vld [vmem:[%s11 + $0x268] sm:$0xff]
  %v6894 = vld [vmem:[%s11 + $0x270] sm:$0xff]
  %v6895 = vld [vmem:[%s11 + $0x278] sm:$0xff]
  %v6896 = vld [vmem:[%s11 + $0x280] sm:$0xff]
  %v6897 = vld [vmem:[%s11 + $0x288] sm:$0xff]
  %v6898 = vld [vmem:[%s11 + $0x290] sm:$0xff]
  %v6899 = vld [vmem:[%s11 + $0x298] sm:$0xff]
  %v6900 = vld [vmem:[%s11 + $0x2a0] sm:$0xff]
  %v6901 = vld [vmem:[%s11 + $0x2a8] sm:$0xff]
  %v6902 = vld [vmem:[%s11 + $0x2b0] sm:$0xff]
  %v6903 = vld [vmem:[%s11 + $0x2b8] sm:$0xff]
  %v6904 = vld [vmem:[%s11 + $0x2c0] sm:$0xff]
  %v6905 = vld [vmem:[%s11 + $0x2c8] sm:$0xff]
  %v6906 = vld [vmem:[%s11 + $0x2d0] sm:$0xff]
  %v6907 = vld [vmem:[%s11 + $0x2d8] sm:$0xff]
  %v6908 = vld [vmem:[%s11 + $0x2e0] sm:$0xff]
  %v6909 = vld [vmem:[%s11 + $0x2e8] sm:$0xff]
  %v6910 = vld [vmem:[%s11 + $0x2f0] sm:$0xff]
  %v6911 = vld [vmem:[%s11 + $0x2f8] sm:$0xff]
  %v6912 = vld [vmem:[%s11 + $0x300] sm:$0xff]
  %v6913 = vld [vmem:[%s11 + $0x308] sm:$0xff]
  %v6914 = vld [vmem:[%s11 + $0x310] sm:$0xff]
  %v6915 = vld [vmem:[%s11 + $0x318] sm:$0xff]
  %v6916 = vld [vmem:[%s11 + $0x320] sm:$0xff]
  %v6917 = vld [vmem:[%s11 + $0x328] sm:$0xff]
  %v6918 = vld [vmem:[%s11 + $0x330] sm:$0xff]
  %v6919 = vld [vmem:[%s11 + $0x338] sm:$0xff]
  %v6920 = vld [vmem:[%s11 + $0x340] sm:$0xff]
  %v6921 = vld [vmem:[%s11 + $0x348] sm:$0xff]
  %v6922 = vld [vmem:[%s11 + $0x350] sm:$0xff]
  %v6923 = vld [vmem:[%s11 + $0x358] sm:$0xff]
  %v6924 = vld [vmem:[%s11 + $0x360] sm:$0xff]
  %v6925 = vld [vmem:[%s11 + $0x368] sm:$0xff]
  %v6926 = vld [vmem:[%s11 + $0x370] sm:$0xff]
  %v6927 = vld [vmem:[%s11 + $0x378] sm:$0xff]
  %v6928 = vld [vmem:[%s11 + $0x380] sm:$0xff]
  %v6929 = vld [vmem:[%s11 + $0x388] sm:$0xff]
  %v6930 = vld [vmem:[%s11 + $0x390] sm:$0xff]
  %v6931 = vld [vmem:[%s11 + $0x398] sm:$0xff]
  %v6932 = vld [vmem:[%s11 + $0x3a0] sm:$0xff]
  %v6933 = vld [vmem:[%s11 + $0x3a8] sm:$0xff]
  %v6934 = vld [vmem:[%s11 + $0x3b0] sm:$0xff]
  %v6935 = vld [vmem:[%s11 + $0x3b8] sm:$0xff]
  %v6936 = vld [vmem:[%s11 + $0x3c0] sm:$0xff]
  %v6937 = vld [vmem:[%s11 + $0x3c8] sm:$0xff]
  %v6938 = vld [vmem:[%s11 + $0x3d0] sm:$0xff]
  %v6939 = vld [vmem:[%s11 + $0x3d8] sm:$0xff]
  %v6940 = vld [vmem:[%s11 + $0x3e0] sm:$0xff]
  %v6941 = vld [vmem:[%s11 + $0x3e8] sm:$0xff]
  %v6942 = vld [vmem:[%s11 + $0x3f0] sm:$0xff]
  %v6943 = vld [vmem:[%s11 + $0x3f8] sm:$0xff]
  %v6944 = vld [vmem:[%s11 + $0x400] sm:$0xff]
  %v6945 = vld [vmem:[%s11 + $0x408] sm:$0xff]
  %v6946 = vld [vmem:[%s11 + $0x410] sm:$0xff]
  %v6947 = vld [vmem:[%s11 + $0x418] sm:$0xff]
  %v6948 = vld [vmem:[%s11 + $0x420] sm:$0xff]
  %v6949 = vld [vmem:[%s11 + $0x428] sm:$0xff]
  %v6950 = vld [vmem:[%s11 + $0x430] sm:$0xff]
  %v6951 = vld [vmem:[%s11 + $0x438] sm:$0xff]
  %v6952 = vld [vmem:[%s11 + $0x440] sm:$0xff]
  %v6953 = vld [vmem:[%s11 + $0x448] sm:$0xff]
  %v6954 = vld [vmem:[%s11 + $0x450] sm:$0xff]
  %v6955 = vld [vmem:[%s11 + $0x458] sm:$0xff]
  %v6956 = vld [vmem:[%s11 + $0x460] sm:$0xff]
  %v6957 = vld [vmem:[%s11 + $0x468] sm:$0xff]
  %v6958 = vld [vmem:[%s11 + $0x470] sm:$0xff]
  %v6959 = vld [vmem:[%s11 + $0x478] sm:$0xff]
  %v6960 = vld [vmem:[%s11 + $0x480] sm:$0xff]
  %v6961 = vld [vmem:[%s11 + $0x488] sm:$0xff]
  %v6962 = vld [vmem:[%s11 + $0x490] sm:$0xff]
  %v6963 = vld [vmem:[%s11 + $0x498] sm:$0xff]
  %v6964 = vld [vmem:[%s11 + $0x4a0] sm:$0xff]
  %v6965 = vld [vmem:[%s11 + $0x4a8] sm:$0xff]
  %v6966 = vld [vmem:[%s11 + $0x4b0] sm:$0xff]
  %v6967 = vld [vmem:[%s11 + $0x4b8] sm:$0xff]
  %v6968 = vld [vmem:[%s11 + $0x4c0] sm:$0xff]
  %v6969 = vld [vmem:[%s11 + $0x4c8] sm:$0xff]
  %v6970 = vld [vmem:[%s11 + $0x4d0] sm:$0xff]
  %v6971 = vld [vmem:[%s11 + $0x4d8] sm:$0xff]
  %v6972 = vld [vmem:[%s11 + $0x4e0] sm:$0xff]
  %v6973 = vld [vmem:[%s11 + $0x4e8] sm:$0xff]
  %v6974 = vld [vmem:[%s11 + $0x4f0] sm:$0xff]
  %v6975 = vld [vmem:[%s11 + $0x4f8] sm:$0xff]
  %v6976 = vld [vmem:[%s11 + $0x500] sm:$0xff]
  %v6977 = vld [vmem:[%s11 + $0x508] sm:$0xff]
  %v6978 = vld [vmem:[%s11 + $0x510] sm:$0xff]
  %v6979 = vld [vmem:[%s11 + $0x518] sm:$0xff]
  %v6980 = vld [vmem:[%s11 + $0x520] sm:$0xff]
  %v6981 = vld [vmem:[%s11 + $0x528] sm:$0xff]
  %v6982 = vld [vmem:[%s11 + $0x530] sm:$0xff]
  %v6983 = vld [vmem:[%s11 + $0x538] sm:$0xff]
  %v6984 = vld [vmem:[%s11 + $0x540] sm:$0xff]
  %v6985 = vld [vmem:[%s11 + $0x548] sm:$0xff]
  %v6986 = vld [vmem:[%s11 + $0x550] sm:$0xff]
  %v6987 = vld [vmem:[%s11 + $0x558] sm:$0xff]
  %v6988 = vld [vmem:[%s11 + $0x560] sm:$0xff]
  %v6989 = vld [vmem:[%s11 + $0x568] sm:$0xff]
  %v6990 = vld [vmem:[%s11 + $0x570] sm:$0xff]
  %v6991 = vld [vmem:[%s11 + $0x578] sm:$0xff]
  %v6992 = vld [vmem:[%s11 + $0x580] sm:$0xff]
  %v6993 = vld [vmem:[%s11 + $0x588] sm:$0xff]
  %v6994 = vld [vmem:[%s11 + $0x590] sm:$0xff]
  %v6995 = vld [vmem:[%s11 + $0x598] sm:$0xff]
  %v6996 = vld [vmem:[%s11 + $0x5a0] sm:$0xff]
  %v6997 = vld [vmem:[%s11 + $0x5a8] sm:$0xff]
  %v6998 = vld [vmem:[%s11 + $0x5b0] sm:$0xff]
  %v6999 = vld [vmem:[%s11 + $0x5b8] sm:$0xff]
  %v7000 = vld [vmem:[%s11 + $0x5c0] sm:$0xff]
  %v7001 = vld [vmem:[%s11 + $0x5c8] sm:$0xff]
  %v7002 = vld [vmem:[%s11 + $0x5d0] sm:$0xff]
  %v7003 = vld [vmem:[%s11 + $0x5d8] sm:$0xff]
  %v7004 = vld [vmem:[%s11 + $0x5e0] sm:$0xff]
  %v7005 = vld [vmem:[%s11 + $0x5e8] sm:$0xff]
  %v7006 = vld [vmem:[%s11 + $0x5f0] sm:$0xff]
  %v7007 = vld [vmem:[%s11 + $0x5f8] sm:$0xff]
  %v7008 = vld [vmem:[%s11 + $0x600] sm:$0xff]
  %v7009 = vld [vmem:[%s11 + $0x608] sm:$0xff]
  %v7010 = vld [vmem:[%s11 + $0x610] sm:$0xff]
  %v7011 = vld [vmem:[%s11 + $0x618] sm:$0xff]
  %v7012 = vld [vmem:[%s11 + $0x620] sm:$0xff]
  %v7013 = vld [vmem:[%s11 + $0x628] sm:$0xff]
  %v7014 = vld [vmem:[%s11 + $0x630] sm:$0xff]
  %v7015 = vld [vmem:[%s11 + $0x638] sm:$0xff]
  %v7016 = vld [vmem:[%s11 + $0x640] sm:$0xff]
  %v7017 = vld [vmem:[%s11 + $0x648] sm:$0xff]
  %v7018 = vld [vmem:[%s11 + $0x650] sm:$0xff]
  %v7019 = vld [vmem:[%s11 + $0x658] sm:$0xff]
  %v7020 = vld [vmem:[%s11 + $0x660] sm:$0xff]
  %v7021 = vld [vmem:[%s11 + $0x668] sm:$0xff]
  %v7022 = vld [vmem:[%s11 + $0x670] sm:$0xff]
  %v7023 = vld [vmem:[%s11 + $0x678] sm:$0xff]
  %v7024 = vld [vmem:[%s11 + $0x680] sm:$0xff]
  %v7025 = vld [vmem:[%s11 + $0x688] sm:$0xff]
  %v7026 = vld [vmem:[%s11 + $0x690] sm:$0xff]
  %v7027 = vld [vmem:[%s11 + $0x698] sm:$0xff]
  %v7028 = vld [vmem:[%s11 + $0x6a0] sm:$0xff]
  %v7029 = vld [vmem:[%s11 + $0x6a8] sm:$0xff]
  %v7030 = vld [vmem:[%s11 + $0x6b0] sm:$0xff]
  %v7031 = vld [vmem:[%s11 + $0x6b8] sm:$0xff]
  %v7032 = vld [vmem:[%s11 + $0x6c0] sm:$0xff]
  %v7033 = vld [vmem:[%s11 + $0x6c8] sm:$0xff]
  %v7034 = vld [vmem:[%s11 + $0x6d0] sm:$0xff]
  %v7035 = vld [vmem:[%s11 + $0x6d8] sm:$0xff]
  %v7036 = vld [vmem:[%s11 + $0x6e0] sm:$0xff]
  %v7037 = vld [vmem:[%s11 + $0x6e8] sm:$0xff]
  %v7038 = vld [vmem:[%s11 + $0x6f0] sm:$0xff]
  %v7039 = vld [vmem:[%s11 + $0x6f8] sm:$0xff]
  %v7040 = vld [vmem:[%s11 + $0x700] sm:$0xff]
  %v7041 = vld [vmem:[%s11 + $0x708] sm:$0xff]
  %v7042 = vld [vmem:[%s11 + $0x710] sm:$0xff]
  %v7043 = vld [vmem:[%s11 + $0x718] sm:$0xff]
  %v7044 = vld [vmem:[%s11 + $0x720] sm:$0xff]
  %v7045 = vld [vmem:[%s11 + $0x728] sm:$0xff]
  %v7046 = vld [vmem:[%s11 + $0x730] sm:$0xff]
  %v7047 = vld [vmem:[%s11 + $0x738] sm:$0xff]
  %v7048 = vld [vmem:[%s11 + $0x740] sm:$0xff]
  %v7049 = vld [vmem:[%s11 + $0x748] sm:$0xff]
  %v7050 = vld [vmem:[%s11 + $0x750] sm:$0xff]
  %v7051 = vld [vmem:[%s11 + $0x758] sm:$0xff]
  %v7052 = vld [vmem:[%s11 + $0x760] sm:$0xff]
  %v7053 = vld [vmem:[%s11 + $0x768] sm:$0xff]
  %v7054 = vld [vmem:[%s11 + $0x770] sm:$0xff]
  %v7055 = vld [vmem:[%s11 + $0x778] sm:$0xff]
  %v7056 = vld [vmem:[%s11 + $0x780] sm:$0xff]
  %v7057 = vld [vmem:[%s11 + $0x788] sm:$0xff]
  %v7058 = vld [vmem:[%s11 + $0x790] sm:$0xff]
  %v7059 = vld [vmem:[%s11 + $0x798] sm:$0xff]
  %v7060 = vld [vmem:[%s11 + $0x7a0] sm:$0xff]
  %v7061 = vld [vmem:[%s11 + $0x7a8] sm:$0xff]
  %v7062 = vld [vmem:[%s11 + $0x7b0] sm:$0xff]
  %v7063 = vld [vmem:[%s11 + $0x7b8] sm:$0xff]
  %v7064 = vld [vmem:[%s11 + $0x7c0] sm:$0xff]
  %v7065 = vld [vmem:[%s11 + $0x7c8] sm:$0xff]
  %v7066 = vld [vmem:[%s11 + $0x7d0] sm:$0xff]
  %v7067 = vld [vmem:[%s11 + $0x7d8] sm:$0xff]
  %v7068 = vld [vmem:[%s11 + $0x7e0] sm:$0xff]
  %v7069 = vld [vmem:[%s11 + $0x7e8] sm:$0xff]
  %v7070 = vld [vmem:[%s11 + $0x7f0] sm:$0xff]
  %v7071 = vld [vmem:[%s11 + $0x7f8] sm:$0xff]
  %v7072 = vld [vmem:[%s11 + $0x800] sm:$0xff]
  %v7073 = vld [vmem:[%s11 + $0x808] sm:$0xff]
  %v7074 = vld [vmem:[%s11 + $0x810] sm:$0xff]
  %v7075 = vld [vmem:[%s11 + $0x818] sm:$0xff]
  %v7076 = vld [vmem:[%s11 + $0x820] sm:$0xff]
  %v7077 = vld [vmem:[%s11 + $0x828] sm:$0xff]
  %v7078 = vld [vmem:[%s11 + $0x830] sm:$0xff]
  %v7079 = vld [vmem:[%s11 + $0x838] sm:$0xff]
  %v7080 = vld [vmem:[%s11 + $0x840] sm:$0xff]
  %v7081 = vld [vmem:[%s11 + $0x848] sm:$0xff]
  %v7082 = vld [vmem:[%s11 + $0x850] sm:$0xff]
  %v7083 = vld [vmem:[%s11 + $0x858] sm:$0xff]
  %v7084 = vld [vmem:[%s11 + $0x860] sm:$0xff]
  %v7085 = vld [vmem:[%s11 + $0x868] sm:$0xff]
  %v7086 = vld [vmem:[%s11 + $0x870] sm:$0xff]
  %v7087 = vld [vmem:[%s11 + $0x878] sm:$0xff]
  %v7088 = vld [vmem:[%s11 + $0x880] sm:$0xff]
  %v7089 = vld [vmem:[%s11 + $0x888] sm:$0xff]
  %v7090 = vld [vmem:[%s11 + $0x890] sm:$0xff]
  %v7091 = vld [vmem:[%s11 + $0x898] sm:$0xff]
  %v7092 = vld [vmem:[%s11 + $0x8a0] sm:$0xff]
  %v7093 = vld [vmem:[%s11 + $0x8a8] sm:$0xff]
  %v7094 = vld [vmem:[%s11 + $0x8b0] sm:$0xff]
  %v7095 = vld [vmem:[%s11 + $0x8b8] sm:$0xff]
  %v7096 = vld [vmem:[%s11 + $0x8c0] sm:$0xff]
  %v7097 = vld [vmem:[%s11 + $0x8c8] sm:$0xff]
  %v7098 = vld [vmem:[%s11 + $0x8d0] sm:$0xff]
  %v7099 = vld [vmem:[%s11 + $0x8d8] sm:$0xff]
  %v7100 = vld [vmem:[%s11 + $0x8e0] sm:$0xff]
  %v7101 = vld [vmem:[%s11 + $0x8e8] sm:$0xff]
  %v7102 = vld [vmem:[%s11 + $0x8f0] sm:$0xff]
  %v7103 = vld [vmem:[%s11 + $0x8f8] sm:$0xff]
  %v7104 = vld [vmem:[%s11 + $0x900] sm:$0xff]
  %v7105 = vld [vmem:[%s11 + $0x908] sm:$0xff]
  %v7106 = vld [vmem:[%s11 + $0x910] sm:$0xff]
  %v7107 = vld [vmem:[%s11 + $0x918] sm:$0xff]
  %v7108 = vld [vmem:[%s11 + $0x920] sm:$0xff]
  %v7109 = vld [vmem:[%s11 + $0x928] sm:$0xff]
  %v7110 = vld [vmem:[%s11 + $0x930] sm:$0xff]
  %v7111 = vld [vmem:[%s11 + $0x938] sm:$0xff]
  %v7112 = vld [vmem:[%s11 + $0x940] sm:$0xff]
  %v7113 = vld [vmem:[%s11 + $0x948] sm:$0xff]
  %v7114 = vld [vmem:[%s11 + $0x950] sm:$0xff]
  %v7115 = vld [vmem:[%s11 + $0x958] sm:$0xff]
  %v7116 = vld [vmem:[%s11 + $0x960] sm:$0xff]
  %v7117 = vld [vmem:[%s11 + $0x968] sm:$0xff]
  %v7118 = vld [vmem:[%s11 + $0x970] sm:$0xff]
  %v7119 = vld [vmem:[%s11 + $0x978] sm:$0xff]
  %v7120 = vld [vmem:[%s11 + $0x980] sm:$0xff]
  %v7121 = vld [vmem:[%s11 + $0x988] sm:$0xff]
  %v7122 = vld [vmem:[%s11 + $0x990] sm:$0xff]
  %v7123 = vld [vmem:[%s11 + $0x998] sm:$0xff]
  %v7124 = vld [vmem:[%s11 + $0x9a0] sm:$0xff]
  %v7125 = vld [vmem:[%s11 + $0x9a8] sm:$0xff]
  %v7126 = vld [vmem:[%s11 + $0x9b0] sm:$0xff]
  %v7127 = vld [vmem:[%s11 + $0x9b8] sm:$0xff]
  %v7128 = vld [vmem:[%s11 + $0x9c0] sm:$0xff]
  %v7129 = vld [vmem:[%s11 + $0x9c8] sm:$0xff]
  %v7130 = vld [vmem:[%s11 + $0x9d0] sm:$0xff]
  %v7131 = vld [vmem:[%s11 + $0x9d8] sm:$0xff]
  %v7132 = vld [vmem:[%s11 + $0x9e0] sm:$0xff]
  %v7133 = vld [vmem:[%s11 + $0x9e8] sm:$0xff]
  %v7134 = vld [vmem:[%s11 + $0x9f0] sm:$0xff]
  %v7135 = vld [vmem:[%s11 + $0x9f8] sm:$0xff]
  %v7136 = vld [vmem:[%s11 + $0xa00] sm:$0xff]
  %v7137 = vld [vmem:[%s11 + $0xa08] sm:$0xff]
  %v7138 = vld [vmem:[%s11 + $0xa10] sm:$0xff]
  %v7139 = vld [vmem:[%s11 + $0xa18] sm:$0xff]
  %v7140 = vld [vmem:[%s11 + $0xa20] sm:$0xff]
  %v7141 = vld [vmem:[%s11 + $0xa28] sm:$0xff]
  %v7142 = vld [vmem:[%s11 + $0xa30] sm:$0xff]
  %v7143 = vld [vmem:[%s11 + $0xa38] sm:$0xff]
  %v7144 = vld [vmem:[%s11 + $0xa40] sm:$0xff]
  %v7145 = vld [vmem:[%s11 + $0xa48] sm:$0xff]
  %v7146 = vld [vmem:[%s11 + $0xa50] sm:$0xff]
  %v7147 = vld [vmem:[%s11 + $0xa58] sm:$0xff]
  %v7148 = vld [vmem:[%s11 + $0xa60] sm:$0xff]
  %v7149 = vld [vmem:[%s11 + $0xa68] sm:$0xff]
  %v7150 = vld [vmem:[%s11 + $0xa70] sm:$0xff]
  %v7151 = vld [vmem:[%s11 + $0xa78] sm:$0xff]
  %v7152 = vld [vmem:[%s11 + $0xa80] sm:$0xff]
  %v7153 = vld [vmem:[%s11 + $0xa88] sm:$0xff]
  %v7154 = vld [vmem:[%s11 + $0xa90] sm:$0xff]
  %v7155 = vld [vmem:[%s11 + $0xa98] sm:$0xff]
  %v7156 = vld [vmem:[%s11 + $0xaa0] sm:$0xff]
  %v7157 = vld [vmem:[%s11 + $0xaa8] sm:$0xff]
  %v7158 = vld [vmem:[%s11 + $0xab0] sm:$0xff]
  %v7159 = vld [vmem:[%s11 + $0xab8] sm:$0xff]
  %v7160 = vld [vmem:[%s11 + $0xac0] sm:$0xff]
  %v7161 = vld [vmem:[%s11 + $0xac8] sm:$0xff]
  %v7162 = vld [vmem:[%s11 + $0xad0] sm:$0xff]
  %v7163 = vld [vmem:[%s11 + $0xad8] sm:$0xff]
  %v7164 = vld [vmem:[%s11 + $0xae0] sm:$0xff]
  %v7165 = vld [vmem:[%s11 + $0xae8] sm:$0xff]
  %v7166 = vld [vmem:[%s11 + $0xaf0] sm:$0xff]
  %v7167 = vld [vmem:[%s11 + $0xaf8] sm:$0xff]
  %v7168 = vld [vmem:[%s11 + $0xb00] sm:$0xff]
  %v7169 = vld [vmem:[%s11 + $0xb08] sm:$0xff]
  %v7170 = vld [vmem:[%s11 + $0xb10] sm:$0xff]
  %v7171 = vld [vmem:[%s11 + $0xb18] sm:$0xff]
  %v7172 = vld [vmem:[%s11 + $0xb20] sm:$0xff]
  %v7173 = vld [vmem:[%s11 + $0xb28] sm:$0xff]
  %v7174 = vld [vmem:[%s11 + $0xb30] sm:$0xff]
  %v7175 = vld [vmem:[%s11 + $0xb38] sm:$0xff]
  %v7176 = vld [vmem:[%s11 + $0xb40] sm:$0xff]
  %v7177 = vld [vmem:[%s11 + $0xb48] sm:$0xff]
  %v7178 = vld [vmem:[%s11 + $0xb50] sm:$0xff]
  %v7179 = vld [vmem:[%s11 + $0xb58] sm:$0xff]
  %v7180 = vld [vmem:[%s11 + $0xb60] sm:$0xff]
  %v7181 = vld [vmem:[%s11 + $0xb68] sm:$0xff]
  %v7182 = vld [vmem:[%s11 + $0xb70] sm:$0xff]
  %v7183 = vld [vmem:[%s11 + $0xb78] sm:$0xff]
  %v7184 = vld [vmem:[%s11 + $0xb80] sm:$0xff]
  %v7185 = vld [vmem:[%s11 + $0xb88] sm:$0xff]
  %v7186 = vld [vmem:[%s11 + $0xb90] sm:$0xff]
  %v7187 = vld [vmem:[%s11 + $0xb98] sm:$0xff]
  %v7188 = vld [vmem:[%s11 + $0xba0] sm:$0xff]
  %v7189 = vld [vmem:[%s11 + $0xba8] sm:$0xff]
  %v7190 = vld [vmem:[%s11 + $0xbb0] sm:$0xff]
  %v7191 = vld [vmem:[%s11 + $0xbb8] sm:$0xff]
  %v7192 = vld [vmem:[%s11 + $0xbc0] sm:$0xff]
  %v7193 = vld [vmem:[%s11 + $0xbc8] sm:$0xff]
  %v7194 = vld [vmem:[%s11 + $0xbd0] sm:$0xff]
  %v7195 = vld [vmem:[%s11 + $0xbd8] sm:$0xff]
  %v7196 = vld [vmem:[%s11 + $0xbe0] sm:$0xff]
  %v7197 = vld [vmem:[%s11 + $0xbe8] sm:$0xff]
  %v7198 = vld [vmem:[%s11 + $0xbf0] sm:$0xff]
  %v7199 = vld [vmem:[%s11 + $0xbf8] sm:$0xff]
  %v7200 = vld [vmem:[%s12] sm:$0x7]
  %v7202 = vlaneseq
  %v7203 = vshrl.u32 %v7202, 7
  %v7204 = vsub.s32 0, %v7203
  %v7205 = vrot.slane %v7200, %v7204
  %v7206 = vlaneseq
  %v7207 = vshrl.u32 %v7206, 7
  %v7208 = vsub.s32 1, %v7207
  %v7209 = vrot.slane %v7200, %v7208
  %v7210 = vlaneseq
  %v7211 = vshrl.u32 %v7210, 7
  %v7212 = vsub.s32 2, %v7211
  %v7213 = vrot.slane %v7200, %v7212
  %7217 = vmatprep.subr.mxu0 %v6862
  %7218 = vmatpush1.msra.mxu0 %v6861
  %7219 = vmatprep.subr.mxu0 %v6859
  %7220 = vmatpush1.msra.mxu0 %v6858
  %7221 = vmatprep.subr.mxu0 %v6856
  %7222 = vmatpush1.msra.mxu0 %v6855
  %7223 = vmatprep.subr.mxu0 %v6853
  %7224 = vmatpush1.msra.mxu0 %v6852
  %7225 = vmatprep.subr.mxu0 %v6850
  %7226 = vmatpush1.msra.mxu0 %v6849
  %7227 = vmatprep.subr.mxu0 %v6847
  %7228 = vmatpush1.msra.mxu0 %v6846
  %7229 = vmatprep.subr.mxu0 %v6844
  %7230 = vmatpush1.msra.mxu0 %v6843
  %7231 = vmatprep.subr.mxu0 %v6841
  %7232 = vmatpush1.msra.mxu0 %v6840
  %7233 = vmatprep.subr.mxu0 %v6838
  %7234 = vmatpush1.msra.mxu0 %v6837
  %7235 = vmatprep.subr.mxu0 %v6835
  %7236 = vmatpush1.msra.mxu0 %v6834
  %7237 = vmatprep.subr.mxu0 %v6832
  %7238 = vmatpush1.msra.mxu0 %v6831
  %7239 = vmatprep.subr.mxu0 %v6829
  %7240 = vmatpush1.msra.mxu0 %v6828
  %7241 = vmatprep.subr.mxu0 %v6826
  %7242 = vmatpush1.msra.mxu0 %v6825
  %7243 = vmatprep.subr.mxu0 %v6823
  %7244 = vmatpush1.msra.mxu0 %v6822
  %7245 = vmatprep.subr.mxu0 %v6820
  %7246 = vmatpush1.msra.mxu0 %v6819
  %7247 = vmatprep.subr.mxu0 %v6817
  %7248 = vmatpush1.msra.mxu0 %v6816
  %7249 = vmatprep.subr.mxu0 %v6910
  %7250 = vmatpush2.msra.mxu0 %v6909
  %7251 = vmatprep.subr.mxu0 %v6907
  %7252 = vmatpush2.msra.mxu0 %v6906
  %7253 = vmatprep.subr.mxu0 %v6904
  %7254 = vmatpush2.msra.mxu0 %v6903
  %7255 = vmatprep.subr.mxu0 %v6901
  %7256 = vmatpush2.msra.mxu0 %v6900
  %7257 = vmatprep.subr.mxu0 %v6898
  %7258 = vmatpush2.msra.mxu0 %v6897
  %7259 = vmatprep.subr.mxu0 %v6895
  %7260 = vmatpush2.msra.mxu0 %v6894
  %7261 = vmatprep.subr.mxu0 %v6892
  %7262 = vmatpush2.msra.mxu0 %v6891
  %7263 = vmatprep.subr.mxu0 %v6889
  %7264 = vmatpush2.msra.mxu0 %v6888
  %7265 = vmatprep.subr.mxu0 %v6886
  %7266 = vmatpush2.msra.mxu0 %v6885
  %7267 = vmatprep.subr.mxu0 %v6883
  %7268 = vmatpush2.msra.mxu0 %v6882
  %7269 = vmatprep.subr.mxu0 %v6880
  %7270 = vmatpush2.msra.mxu0 %v6879
  %7271 = vmatprep.subr.mxu0 %v6877
  %7272 = vmatpush2.msra.mxu0 %v6876
  %7273 = vmatprep.subr.mxu0 %v6874
  %7274 = vmatpush2.msra.mxu0 %v6873
  %7275 = vmatprep.subr.mxu0 %v6871
  %7276 = vmatpush2.msra.mxu0 %v6870
  %7277 = vmatprep.subr.mxu0 %v6868
  %7278 = vmatpush2.msra.mxu0 %v6867
  %7279 = vmatprep.subr.mxu0 %v6865
  %7280 = vmatpush2.msra.mxu0 %v6864
  %7281 = vmatprep.mubr.f32.mxu0 %v6809
  %7282 = vmatmul.mubr.f32.gmra.mxu0 %v6808
  %v7283 = vpop.f32.mrf.mxu0
  %v7284 = vadd.f32 %v7205, %v7283
  %v7285 = vpop.f32.mrf.mxu0
  %v7286 = vadd.f32 %v7209, %v7285
  %7287 = vdwg.mxu0
  %7288 = vmatprep.subr.mxu0 %v6958
  %7289 = vmatpush1.msra.mxu0 %v6957
  %7290 = vmatprep.subr.mxu0 %v6955
  %7291 = vmatpush1.msra.mxu0 %v6954
  %7292 = vmatprep.subr.mxu0 %v6952
  %7293 = vmatpush1.msra.mxu0 %v6951
  %7294 = vmatprep.subr.mxu0 %v6949
  %7295 = vmatpush1.msra.mxu0 %v6948
  %7296 = vmatprep.subr.mxu0 %v6946
  %7297 = vmatpush1.msra.mxu0 %v6945
  %7298 = vmatprep.subr.mxu0 %v6943
  %7299 = vmatpush1.msra.mxu0 %v6942
  %7300 = vmatprep.subr.mxu0 %v6940
  %7301 = vmatpush1.msra.mxu0 %v6939
  %7302 = vmatprep.subr.mxu0 %v6937
  %7303 = vmatpush1.msra.mxu0 %v6936
  %7304 = vmatprep.subr.mxu0 %v6934
  %7305 = vmatpush1.msra.mxu0 %v6933
  %7306 = vmatprep.subr.mxu0 %v6931
  %7307 = vmatpush1.msra.mxu0 %v6930
  %7308 = vmatprep.subr.mxu0 %v6928
  %7309 = vmatpush1.msra.mxu0 %v6927
  %7310 = vmatprep.subr.mxu0 %v6925
  %7311 = vmatpush1.msra.mxu0 %v6924
  %7312 = vmatprep.subr.mxu0 %v6922
  %7313 = vmatpush1.msra.mxu0 %v6921
  %7314 = vmatprep.subr.mxu0 %v6919
  %7315 = vmatpush1.msra.mxu0 %v6918
  %7316 = vmatprep.subr.mxu0 %v6916
  %7317 = vmatpush1.msra.mxu0 %v6915
  %7318 = vmatprep.subr.mxu0 %v6913
  %7319 = vmatpush1.msra.mxu0 %v6912
  %7320 = vmatprep.subr.mxu0 %v7006
  %7321 = vmatpush2.msra.mxu0 %v7005
  %7322 = vmatprep.subr.mxu0 %v7003
  %7323 = vmatpush2.msra.mxu0 %v7002
  %7324 = vmatprep.subr.mxu0 %v7000
  %7325 = vmatpush2.msra.mxu0 %v6999
  %7326 = vmatprep.subr.mxu0 %v6997
  %7327 = vmatpush2.msra.mxu0 %v6996
  %7328 = vmatprep.subr.mxu0 %v6994
  %7329 = vmatpush2.msra.mxu0 %v6993
  %7330 = vmatprep.subr.mxu0 %v6991
  %7331 = vmatpush2.msra.mxu0 %v6990
  %7332 = vmatprep.subr.mxu0 %v6988
  %7333 = vmatpush2.msra.mxu0 %v6987
  %7334 = vmatprep.subr.mxu0 %v6985
  %7335 = vmatpush2.msra.mxu0 %v6984
  %7336 = vmatprep.subr.mxu0 %v6982
  %7337 = vmatpush2.msra.mxu0 %v6981
  %7338 = vmatprep.subr.mxu0 %v6979
  %7339 = vmatpush2.msra.mxu0 %v6978
  %7340 = vmatprep.subr.mxu0 %v6976
  %7341 = vmatpush2.msra.mxu0 %v6975
  %7342 = vmatprep.subr.mxu0 %v6973
  %7343 = vmatpush2.msra.mxu0 %v6972
  %7344 = vmatprep.subr.mxu0 %v6970
  %7345 = vmatpush2.msra.mxu0 %v6969
  %7346 = vmatprep.subr.mxu0 %v6967
  %7347 = vmatpush2.msra.mxu0 %v6966
  %7348 = vmatprep.subr.mxu0 %v6964
  %7349 = vmatpush2.msra.mxu0 %v6963
  %7350 = vmatprep.subr.mxu0 %v6961
  %7351 = vmatpush2.msra.mxu0 %v6960
  %7352 = vmatprep.mubr.f32.mxu0 %v6811
  %7353 = vmatmul.mubr.f32.gmra.mxu0 %v6810
  %v7354 = vpop.f32.mrf.mxu0
  %v7355 = vadd.f32 %v7284, %v7354
  %v7356 = vpop.f32.mrf.mxu0
  %v7357 = vadd.f32 %v7286, %v7356
  %7358 = vdwg.mxu0
  %7359 = vmatprep.subr.mxu0 %v7054
  %7360 = vmatpush1.msra.mxu0 %v7053
  %7361 = vmatprep.subr.mxu0 %v7051
  %7362 = vmatpush1.msra.mxu0 %v7050
  %7363 = vmatprep.subr.mxu0 %v7048
  %7364 = vmatpush1.msra.mxu0 %v7047
  %7365 = vmatprep.subr.mxu0 %v7045
  %7366 = vmatpush1.msra.mxu0 %v7044
  %7367 = vmatprep.subr.mxu0 %v7042
  %7368 = vmatpush1.msra.mxu0 %v7041
  %7369 = vmatprep.subr.mxu0 %v7039
  %7370 = vmatpush1.msra.mxu0 %v7038
  %7371 = vmatprep.subr.mxu0 %v7036
  %7372 = vmatpush1.msra.mxu0 %v7035
  %7373 = vmatprep.subr.mxu0 %v7033
  %7374 = vmatpush1.msra.mxu0 %v7032
  %7375 = vmatprep.subr.mxu0 %v7030
  %7376 = vmatpush1.msra.mxu0 %v7029
  %7377 = vmatprep.subr.mxu0 %v7027
  %7378 = vmatpush1.msra.mxu0 %v7026
  %7379 = vmatprep.subr.mxu0 %v7024
  %7380 = vmatpush1.msra.mxu0 %v7023
  %7381 = vmatprep.subr.mxu0 %v7021
  %7382 = vmatpush1.msra.mxu0 %v7020
  %7383 = vmatprep.subr.mxu0 %v7018
  %7384 = vmatpush1.msra.mxu0 %v7017
  %7385 = vmatprep.subr.mxu0 %v7015
  %7386 = vmatpush1.msra.mxu0 %v7014
  %7387 = vmatprep.subr.mxu0 %v7012
  %7388 = vmatpush1.msra.mxu0 %v7011
  %7389 = vmatprep.subr.mxu0 %v7009
  %7390 = vmatpush1.msra.mxu0 %v7008
  %7391 = vmatprep.subr.mxu0 %v7102
  %7392 = vmatpush2.msra.mxu0 %v7101
  %7393 = vmatprep.subr.mxu0 %v7099
  %7394 = vmatpush2.msra.mxu0 %v7098
  %7395 = vmatprep.subr.mxu0 %v7096
  %7396 = vmatpush2.msra.mxu0 %v7095
  %7397 = vmatprep.subr.mxu0 %v7093
  %7398 = vmatpush2.msra.mxu0 %v7092
  %7399 = vmatprep.subr.mxu0 %v7090
  %7400 = vmatpush2.msra.mxu0 %v7089
  %7401 = vmatprep.subr.mxu0 %v7087
  %7402 = vmatpush2.msra.mxu0 %v7086
  %7403 = vmatprep.subr.mxu0 %v7084
  %7404 = vmatpush2.msra.mxu0 %v7083
  %7405 = vmatprep.subr.mxu0 %v7081
  %7406 = vmatpush2.msra.mxu0 %v7080
  %7407 = vmatprep.subr.mxu0 %v7078
  %7408 = vmatpush2.msra.mxu0 %v7077
  %7409 = vmatprep.subr.mxu0 %v7075
  %7410 = vmatpush2.msra.mxu0 %v7074
  %7411 = vmatprep.subr.mxu0 %v7072
  %7412 = vmatpush2.msra.mxu0 %v7071
  %7413 = vmatprep.subr.mxu0 %v7069
  %7414 = vmatpush2.msra.mxu0 %v7068
  %7415 = vmatprep.subr.mxu0 %v7066
  %7416 = vmatpush2.msra.mxu0 %v7065
  %7417 = vmatprep.subr.mxu0 %v7063
  %7418 = vmatpush2.msra.mxu0 %v7062
  %7419 = vmatprep.subr.mxu0 %v7060
  %7420 = vmatpush2.msra.mxu0 %v7059
  %7421 = vmatprep.subr.mxu0 %v7057
  %7422 = vmatpush2.msra.mxu0 %v7056
  %7423 = vmatprep.mubr.f32.mxu0 %v6813
  %7424 = vmatmul.mubr.f32.gmra.mxu0 %v6812
  %v7425 = vpop.f32.mrf.mxu0
  %v7426 = vadd.f32 %v7355, %v7425
  %v7427 = vpop.f32.mrf.mxu0
  %v7428 = vadd.f32 %v7357, %v7427
  %7429 = vdwg.mxu0
  %7430 = vmatprep.subr.mxu0 %v7150
  %7431 = vmatpush1.msra.mxu0 %v7149
  %7432 = vmatprep.subr.mxu0 %v7147
  %7433 = vmatpush1.msra.mxu0 %v7146
  %7434 = vmatprep.subr.mxu0 %v7144
  %7435 = vmatpush1.msra.mxu0 %v7143
  %7436 = vmatprep.subr.mxu0 %v7141
  %7437 = vmatpush1.msra.mxu0 %v7140
  %7438 = vmatprep.subr.mxu0 %v7138
  %7439 = vmatpush1.msra.mxu0 %v7137
  %7440 = vmatprep.subr.mxu0 %v7135
  %7441 = vmatpush1.msra.mxu0 %v7134
  %7442 = vmatprep.subr.mxu0 %v7132
  %7443 = vmatpush1.msra.mxu0 %v7131
  %7444 = vmatprep.subr.mxu0 %v7129
  %7445 = vmatpush1.msra.mxu0 %v7128
  %7446 = vmatprep.subr.mxu0 %v7126
  %7447 = vmatpush1.msra.mxu0 %v7125
  %7448 = vmatprep.subr.mxu0 %v7123
  %7449 = vmatpush1.msra.mxu0 %v7122
  %7450 = vmatprep.subr.mxu0 %v7120
  %7451 = vmatpush1.msra.mxu0 %v7119
  %7452 = vmatprep.subr.mxu0 %v7117
  %7453 = vmatpush1.msra.mxu0 %v7116
  %7454 = vmatprep.subr.mxu0 %v7114
  %7455 = vmatpush1.msra.mxu0 %v7113
  %7456 = vmatprep.subr.mxu0 %v7111
  %7457 = vmatpush1.msra.mxu0 %v7110
  %7458 = vmatprep.subr.mxu0 %v7108
  %7459 = vmatpush1.msra.mxu0 %v7107
  %7460 = vmatprep.subr.mxu0 %v7105
  %7461 = vmatpush1.msra.mxu0 %v7104
  %7462 = vmatprep.subr.mxu0 %v7198
  %7463 = vmatpush2.msra.mxu0 %v7197
  %7464 = vmatprep.subr.mxu0 %v7195
  %7465 = vmatpush2.msra.mxu0 %v7194
  %7466 = vmatprep.subr.mxu0 %v7192
  %7467 = vmatpush2.msra.mxu0 %v7191
  %7468 = vmatprep.subr.mxu0 %v7189
  %7469 = vmatpush2.msra.mxu0 %v7188
  %7470 = vmatprep.subr.mxu0 %v7186
  %7471 = vmatpush2.msra.mxu0 %v7185
  %7472 = vmatprep.subr.mxu0 %v7183
  %7473 = vmatpush2.msra.mxu0 %v7182
  %7474 = vmatprep.subr.mxu0 %v7180
  %7475 = vmatpush2.msra.mxu0 %v7179
  %7476 = vmatprep.subr.mxu0 %v7177
  %7477 = vmatpush2.msra.mxu0 %v7176
  %7478 = vmatprep.subr.mxu0 %v7174
  %7479 = vmatpush2.msra.mxu0 %v7173
  %7480 = vmatprep.subr.mxu0 %v7171
  %7481 = vmatpush2.msra.mxu0 %v7170
  %7482 = vmatprep.subr.mxu0 %v7168
  %7483 = vmatpush2.msra.mxu0 %v7167
  %7484 = vmatprep.subr.mxu0 %v7165
  %7485 = vmatpush2.msra.mxu0 %v7164
  %7486 = vmatprep.subr.mxu0 %v7162
  %7487 = vmatpush2.msra.mxu0 %v7161
  %7488 = vmatprep.subr.mxu0 %v7159
  %7489 = vmatpush2.msra.mxu0 %v7158
  %7490 = vmatprep.subr.mxu0 %v7156
  %7491 = vmatpush2.msra.mxu0 %v7155
  %7492 = vmatprep.subr.mxu0 %v7153
  %7493 = vmatpush2.msra.mxu0 %v7152
  %7494 = vmatprep.mubr.f32.mxu0 %v6815
  %7495 = vmatmul.mubr.f32.gmra.mxu0 %v6814
  %v7496 = vpop.f32.mrf.mxu0
  %v7497 = vadd.f32 %v7426, %v7496
  %v7498 = vpop.f32.mrf.mxu0
  %v7499 = vadd.f32 %v7428, %v7498
  %7500 = vdwg.mxu0
  %7501 = vmatprep.subr.mxu0 0.0
  %7502 = vmatpush1.msra.mxu0 %v6863
  %7503 = vmatprep.subr.mxu0 0.0
  %7504 = vmatpush1.msra.mxu0 %v6860
  %7505 = vmatprep.subr.mxu0 0.0
  %7506 = vmatpush1.msra.mxu0 %v6857
  %7507 = vmatprep.subr.mxu0 0.0
  %7508 = vmatpush1.msra.mxu0 %v6854
  %7509 = vmatprep.subr.mxu0 0.0
  %7510 = vmatpush1.msra.mxu0 %v6851
  %7511 = vmatprep.subr.mxu0 0.0
  %7512 = vmatpush1.msra.mxu0 %v6848
  %7513 = vmatprep.subr.mxu0 0.0
  %7514 = vmatpush1.msra.mxu0 %v6845
  %7515 = vmatprep.subr.mxu0 0.0
  %7516 = vmatpush1.msra.mxu0 %v6842
  %7517 = vmatprep.subr.mxu0 0.0
  %7518 = vmatpush1.msra.mxu0 %v6839
  %7519 = vmatprep.subr.mxu0 0.0
  %7520 = vmatpush1.msra.mxu0 %v6836
  %7521 = vmatprep.subr.mxu0 0.0
  %7522 = vmatpush1.msra.mxu0 %v6833
  %7523 = vmatprep.subr.mxu0 0.0
  %7524 = vmatpush1.msra.mxu0 %v6830
  %7525 = vmatprep.subr.mxu0 0.0
  %7526 = vmatpush1.msra.mxu0 %v6827
  %7527 = vmatprep.subr.mxu0 0.0
  %7528 = vmatpush1.msra.mxu0 %v6824
  %7529 = vmatprep.subr.mxu0 0.0
  %7530 = vmatpush1.msra.mxu0 %v6821
  %7531 = vmatprep.subr.mxu0 0.0
  %7532 = vmatpush1.msra.mxu0 %v6818
  %7533 = vmatprep.subr.mxu0 0.0
  %7534 = vmatpush2.msra.mxu0 %v6911
  %7535 = vmatprep.subr.mxu0 0.0
  %7536 = vmatpush2.msra.mxu0 %v6908
  %7537 = vmatprep.subr.mxu0 0.0
  %7538 = vmatpush2.msra.mxu0 %v6905
  %7539 = vmatprep.subr.mxu0 0.0
  %7540 = vmatpush2.msra.mxu0 %v6902
  %7541 = vmatprep.subr.mxu0 0.0
  %7542 = vmatpush2.msra.mxu0 %v6899
  %7543 = vmatprep.subr.mxu0 0.0
  %7544 = vmatpush2.msra.mxu0 %v6896
  %7545 = vmatprep.subr.mxu0 0.0
  %7546 = vmatpush2.msra.mxu0 %v6893
  %7547 = vmatprep.subr.mxu0 0.0
  %7548 = vmatpush2.msra.mxu0 %v6890
  %7549 = vmatprep.subr.mxu0 0.0
  %7550 = vmatpush2.msra.mxu0 %v6887
  %7551 = vmatprep.subr.mxu0 0.0
  %7552 = vmatpush2.msra.mxu0 %v6884
  %7553 = vmatprep.subr.mxu0 0.0
  %7554 = vmatpush2.msra.mxu0 %v6881
  %7555 = vmatprep.subr.mxu0 0.0
  %7556 = vmatpush2.msra.mxu0 %v6878
  %7557 = vmatprep.subr.mxu0 0.0
  %7558 = vmatpush2.msra.mxu0 %v6875
  %7559 = vmatprep.subr.mxu0 0.0
  %7560 = vmatpush2.msra.mxu0 %v6872
  %7561 = vmatprep.subr.mxu0 0.0
  %7562 = vmatpush2.msra.mxu0 %v6869
  %7563 = vmatprep.subr.mxu0 0.0
  %7564 = vmatpush2.msra.mxu0 %v6866
  %7565 = vmatprep.mubr.f32.mxu0 %v6809
  %7566 = vmatmul.mubr.f32.gmra.mxu0 %v6808
  %v7567 = vpop.f32.mrf.mxu0
  %v7568 = vadd.f32 %v7213, %v7567
  %v7569 = vpop.f32.mrf.mxu0
  %7570 = vdwg.mxu0
  %7571 = vmatprep.subr.mxu0 0.0
  %7572 = vmatpush1.msra.mxu0 %v6959
  %7573 = vmatprep.subr.mxu0 0.0
  %7574 = vmatpush1.msra.mxu0 %v6956
  %7575 = vmatprep.subr.mxu0 0.0
  %7576 = vmatpush1.msra.mxu0 %v6953
  %7577 = vmatprep.subr.mxu0 0.0
  %7578 = vmatpush1.msra.mxu0 %v6950
  %7579 = vmatprep.subr.mxu0 0.0
  %7580 = vmatpush1.msra.mxu0 %v6947
  %7581 = vmatprep.subr.mxu0 0.0
  %7582 = vmatpush1.msra.mxu0 %v6944
  %7583 = vmatprep.subr.mxu0 0.0
  %7584 = vmatpush1.msra.mxu0 %v6941
  %7585 = vmatprep.subr.mxu0 0.0
  %7586 = vmatpush1.msra.mxu0 %v6938
  %7587 = vmatprep.subr.mxu0 0.0
  %7588 = vmatpush1.msra.mxu0 %v6935
  %7589 = vmatprep.subr.mxu0 0.0
  %7590 = vmatpush1.msra.mxu0 %v6932
  %7591 = vmatprep.subr.mxu0 0.0
  %7592 = vmatpush1.msra.mxu0 %v6929
  %7593 = vmatprep.subr.mxu0 0.0
  %7594 = vmatpush1.msra.mxu0 %v6926
  %7595 = vmatprep.subr.mxu0 0.0
  %7596 = vmatpush1.msra.mxu0 %v6923
  %7597 = vmatprep.subr.mxu0 0.0
  %7598 = vmatpush1.msra.mxu0 %v6920
  %7599 = vmatprep.subr.mxu0 0.0
  %7600 = vmatpush1.msra.mxu0 %v6917
  %7601 = vmatprep.subr.mxu0 0.0
  %7602 = vmatpush1.msra.mxu0 %v6914
  %7603 = vmatprep.subr.mxu0 0.0
  %7604 = vmatpush2.msra.mxu0 %v7007
  %7605 = vmatprep.subr.mxu0 0.0
  %7606 = vmatpush2.msra.mxu0 %v7004
  %7607 = vmatprep.subr.mxu0 0.0
  %7608 = vmatpush2.msra.mxu0 %v7001
  %7609 = vmatprep.subr.mxu0 0.0
  %7610 = vmatpush2.msra.mxu0 %v6998
  %7611 = vmatprep.subr.mxu0 0.0
  %7612 = vmatpush2.msra.mxu0 %v6995
  %7613 = vmatprep.subr.mxu0 0.0
  %7614 = vmatpush2.msra.mxu0 %v6992
  %7615 = vmatprep.subr.mxu0 0.0
  %7616 = vmatpush2.msra.mxu0 %v6989
  %7617 = vmatprep.subr.mxu0 0.0
  %7618 = vmatpush2.msra.mxu0 %v6986
  %7619 = vmatprep.subr.mxu0 0.0
  %7620 = vmatpush2.msra.mxu0 %v6983
  %7621 = vmatprep.subr.mxu0 0.0
  %7622 = vmatpush2.msra.mxu0 %v6980
  %7623 = vmatprep.subr.mxu0 0.0
  %7624 = vmatpush2.msra.mxu0 %v6977
  %7625 = vmatprep.subr.mxu0 0.0
  %7626 = vmatpush2.msra.mxu0 %v6974
  %7627 = vmatprep.subr.mxu0 0.0
  %7628 = vmatpush2.msra.mxu0 %v6971
  %7629 = vmatprep.subr.mxu0 0.0
  %7630 = vmatpush2.msra.mxu0 %v6968
  %7631 = vmatprep.subr.mxu0 0.0
  %7632 = vmatpush2.msra.mxu0 %v6965
  %7633 = vmatprep.subr.mxu0 0.0
  %7634 = vmatpush2.msra.mxu0 %v6962
  %7635 = vmatprep.mubr.f32.mxu0 %v6811
  %7636 = vmatmul.mubr.f32.gmra.mxu0 %v6810
  %v7637 = vpop.f32.mrf.mxu0
  %v7638 = vadd.f32 %v7568, %v7637
  %v7639 = vpop.f32.mrf.mxu0
  %7640 = vdwg.mxu0
  %7641 = vmatprep.subr.mxu0 0.0
  %7642 = vmatpush1.msra.mxu0 %v7055
  %7643 = vmatprep.subr.mxu0 0.0
  %7644 = vmatpush1.msra.mxu0 %v7052
  %7645 = vmatprep.subr.mxu0 0.0
  %7646 = vmatpush1.msra.mxu0 %v7049
  %7647 = vmatprep.subr.mxu0 0.0
  %7648 = vmatpush1.msra.mxu0 %v7046
  %7649 = vmatprep.subr.mxu0 0.0
  %7650 = vmatpush1.msra.mxu0 %v7043
  %7651 = vmatprep.subr.mxu0 0.0
  %7652 = vmatpush1.msra.mxu0 %v7040
  %7653 = vmatprep.subr.mxu0 0.0
  %7654 = vmatpush1.msra.mxu0 %v7037
  %7655 = vmatprep.subr.mxu0 0.0
  %7656 = vmatpush1.msra.mxu0 %v7034
  %7657 = vmatprep.subr.mxu0 0.0
  %7658 = vmatpush1.msra.mxu0 %v7031
  %7659 = vmatprep.subr.mxu0 0.0
  %7660 = vmatpush1.msra.mxu0 %v7028
  %7661 = vmatprep.subr.mxu0 0.0
  %7662 = vmatpush1.msra.mxu0 %v7025
  %7663 = vmatprep.subr.mxu0 0.0
  %7664 = vmatpush1.msra.mxu0 %v7022
  %7665 = vmatprep.subr.mxu0 0.0
  %7666 = vmatpush1.msra.mxu0 %v7019
  %7667 = vmatprep.subr.mxu0 0.0
  %7668 = vmatpush1.msra.mxu0 %v7016
  %7669 = vmatprep.subr.mxu0 0.0
  %7670 = vmatpush1.msra.mxu0 %v7013
  %7671 = vmatprep.subr.mxu0 0.0
  %7672 = vmatpush1.msra.mxu0 %v7010
  %7673 = vmatprep.subr.mxu0 0.0
  %7674 = vmatpush2.msra.mxu0 %v7103
  %7675 = vmatprep.subr.mxu0 0.0
  %7676 = vmatpush2.msra.mxu0 %v7100
  %7677 = vmatprep.subr.mxu0 0.0
  %7678 = vmatpush2.msra.mxu0 %v7097
  %7679 = vmatprep.subr.mxu0 0.0
  %7680 = vmatpush2.msra.mxu0 %v7094
  %7681 = vmatprep.subr.mxu0 0.0
  %7682 = vmatpush2.msra.mxu0 %v7091
  %7683 = vmatprep.subr.mxu0 0.0
  %7684 = vmatpush2.msra.mxu0 %v7088
  %7685 = vmatprep.subr.mxu0 0.0
  %7686 = vmatpush2.msra.mxu0 %v7085
  %7687 = vmatprep.subr.mxu0 0.0
  %7688 = vmatpush2.msra.mxu0 %v7082
  %7689 = vmatprep.subr.mxu0 0.0
  %7690 = vmatpush2.msra.mxu0 %v7079
  %7691 = vmatprep.subr.mxu0 0.0
  %7692 = vmatpush2.msra.mxu0 %v7076
  %7693 = vmatprep.subr.mxu0 0.0
  %7694 = vmatpush2.msra.mxu0 %v7073
  %7695 = vmatprep.subr.mxu0 0.0
  %7696 = vmatpush2.msra.mxu0 %v7070
  %7697 = vmatprep.subr.mxu0 0.0
  %7698 = vmatpush2.msra.mxu0 %v7067
  %7699 = vmatprep.subr.mxu0 0.0
  %7700 = vmatpush2.msra.mxu0 %v7064
  %7701 = vmatprep.subr.mxu0 0.0
  %7702 = vmatpush2.msra.mxu0 %v7061
  %7703 = vmatprep.subr.mxu0 0.0
  %7704 = vmatpush2.msra.mxu0 %v7058
  %7705 = vmatprep.mubr.f32.mxu0 %v6813
  %7706 = vmatmul.mubr.f32.gmra.mxu0 %v6812
  %v7707 = vpop.f32.mrf.mxu0
  %v7708 = vadd.f32 %v7638, %v7707
  %v7709 = vpop.f32.mrf.mxu0
  %7710 = vdwg.mxu0
  %7711 = vmatprep.subr.mxu0 0.0
  %7712 = vmatpush1.msra.mxu0 %v7151
  %7713 = vmatprep.subr.mxu0 0.0
  %7714 = vmatpush1.msra.mxu0 %v7148
  %7715 = vmatprep.subr.mxu0 0.0
  %7716 = vmatpush1.msra.mxu0 %v7145
  %7717 = vmatprep.subr.mxu0 0.0
  %7718 = vmatpush1.msra.mxu0 %v7142
  %7719 = vmatprep.subr.mxu0 0.0
  %7720 = vmatpush1.msra.mxu0 %v7139
  %7721 = vmatprep.subr.mxu0 0.0
  %7722 = vmatpush1.msra.mxu0 %v7136
  %7723 = vmatprep.subr.mxu0 0.0
  %7724 = vmatpush1.msra.mxu0 %v7133
  %7725 = vmatprep.subr.mxu0 0.0
  %7726 = vmatpush1.msra.mxu0 %v7130
  %7727 = vmatprep.subr.mxu0 0.0
  %7728 = vmatpush1.msra.mxu0 %v7127
  %7729 = vmatprep.subr.mxu0 0.0
  %7730 = vmatpush1.msra.mxu0 %v7124
  %7731 = vmatprep.subr.mxu0 0.0
  %7732 = vmatpush1.msra.mxu0 %v7121
  %7733 = vmatprep.subr.mxu0 0.0
  %7734 = vmatpush1.msra.mxu0 %v7118
  %7735 = vmatprep.subr.mxu0 0.0
  %7736 = vmatpush1.msra.mxu0 %v7115
  %7737 = vmatprep.subr.mxu0 0.0
  %7738 = vmatpush1.msra.mxu0 %v7112
  %7739 = vmatprep.subr.mxu0 0.0
  %7740 = vmatpush1.msra.mxu0 %v7109
  %7741 = vmatprep.subr.mxu0 0.0
  %7742 = vmatpush1.msra.mxu0 %v7106
  %7743 = vmatprep.subr.mxu0 0.0
  %7744 = vmatpush2.msra.mxu0 %v7199
  %7745 = vmatprep.subr.mxu0 0.0
  %7746 = vmatpush2.msra.mxu0 %v7196
  %7747 = vmatprep.subr.mxu0 0.0
  %7748 = vmatpush2.msra.mxu0 %v7193
  %7749 = vmatprep.subr.mxu0 0.0
  %7750 = vmatpush2.msra.mxu0 %v7190
  %7751 = vmatprep.subr.mxu0 0.0
  %7752 = vmatpush2.msra.mxu0 %v7187
  %7753 = vmatprep.subr.mxu0 0.0
  %7754 = vmatpush2.msra.mxu0 %v7184
  %7755 = vmatprep.subr.mxu0 0.0
  %7756 = vmatpush2.msra.mxu0 %v7181
  %7757 = vmatprep.subr.mxu0 0.0
  %7758 = vmatpush2.msra.mxu0 %v7178
  %7759 = vmatprep.subr.mxu0 0.0
  %7760 = vmatpush2.msra.mxu0 %v7175
  %7761 = vmatprep.subr.mxu0 0.0
  %7762 = vmatpush2.msra.mxu0 %v7172
  %7763 = vmatprep.subr.mxu0 0.0
  %7764 = vmatpush2.msra.mxu0 %v7169
  %7765 = vmatprep.subr.mxu0 0.0
  %7766 = vmatpush2.msra.mxu0 %v7166
  %7767 = vmatprep.subr.mxu0 0.0
  %7768 = vmatpush2.msra.mxu0 %v7163
  %7769 = vmatprep.subr.mxu0 0.0
  %7770 = vmatpush2.msra.mxu0 %v7160
  %7771 = vmatprep.subr.mxu0 0.0
  %7772 = vmatpush2.msra.mxu0 %v7157
  %7773 = vmatprep.subr.mxu0 0.0
  %7774 = vmatpush2.msra.mxu0 %v7154
  %7775 = vmatprep.mubr.f32.mxu0 %v6815
  %7776 = vmatmul.mubr.f32.gmra.mxu0 %v6814
  %v7777 = vpop.f32.mrf.mxu0
  %v7778 = vadd.f32 %v7708, %v7777
  %v7779 = vpop.f32.mrf.mxu0
  %7780 = vdwg.mxu0
  %7783 = vrot.lane.b32.xlu0 %v7497, 77
  %v7784 = vpop.permute.xlu0 %7783
  %7785 = vrot.lane.b32.xlu0 %v7499, 77
  %v7786 = vpop.permute.xlu0 %7785
  %vm7787 = vcmask 629760
  %v7788 = vsel %vm7787, %v7784, %v7786
  %v7790 = vadd.f32 %v7497, %v7788
  %7791 = vrot.lane.b32.xlu0 %v7499, 26
  %v7792 = vpop.permute.xlu0 %7791
  %v7794 = vadd.f32 %v7790, %v7792
  %7795 = vrot.lane.b32.xlu0 %v7499, 103
  %v7796 = vpop.permute.xlu0 %7795
  %v7798 = vadd.f32 %v7794, %v7796
  %7800 = vrot.lane.b32.xlu0 %v7499, 52
  %v7801 = vpop.permute.xlu0 %7800
  %7802 = vrot.lane.b32.xlu0 %v7778, 52
  %v7803 = vpop.permute.xlu0 %7802
  %vm7804 = vcmask 424960
  %v7805 = vsel %vm7804, %v7801, %v7803
  %v7807 = vadd.f32 %v7798, %v7805
  %7808 = vrot.lane.b32.xlu0 %v7778, 1
  %v7809 = vpop.permute.xlu0 %7808
  %v7811 = vadd.f32 %v7807, %v7809
  %v7812 = vmul.f32 %v7811, 0.16666667
  %v7814 = vadd.f32 %v7497, %v7784
  %7816 = vrot.lane.b32.xlu0 %v7812, 77
  %v7817 = vpop.permute.xlu0 %7816
  %v7819 = vsub.f32 %v7814, %v7817
  %vm7820 = vcmask 410624
  %v7821 = vsel %vm7820, %v7819, -inf
  %7822 = vmax.xlane.f32.xlu0 %v7821
  %v7823 = vpop.xlane.xlu0 %7822
  %v7824 = vsub.f32 %v7819, %v7823
  %v7825 = vmul.f32 %v7824, 1.442695
  %v7826 = vpow.pop %v7825
  %v7827 = vsel %vm7820, %v7826, 0.0
  %7828 = vadd.xlane.f32.xlu0 %v7827
  %v7829 = vpop.xlane.xlu0 %7828
  %v7830 = vrcp.pop %v7829
  %v7831 = vmul.f32 %v7826, %v7830
  %7832 = vrot.lane.b32.xlu0 %v7497, 26
  %v7833 = vpop.permute.xlu0 %7832
  %vm7834 = vcmask 211968
  %v7835 = vsel %vm7834, %v7833, %v7792
  %v7837 = vadd.f32 %v7497, %v7835
  %v7838 = vsub.f32 %v7837, %v7817
  %v7839 = vsel %vm7820, %v7838, -inf
  %7840 = vmax.xlane.f32.xlu0 %v7839
  %v7841 = vpop.xlane.xlu0 %7840
  %v7842 = vsub.f32 %v7838, %v7841
  %v7843 = vmul.f32 %v7842, 1.442695
  %v7844 = vpow.pop %v7843
  %v7845 = vsel %vm7820, %v7844, 0.0
  %7846 = vadd.xlane.f32.xlu0 %v7845
  %v7847 = vpop.xlane.xlu0 %7846
  %v7848 = vrcp.pop %v7847
  %v7849 = vmul.f32 %v7844, %v7848
  %v7850 = vadd.f32 %v7497, %v7796
  %v7851 = vsub.f32 %v7850, %v7817
  %v7852 = vsel %vm7820, %v7851, -inf
  %7853 = vmax.xlane.f32.xlu0 %v7852
  %v7854 = vpop.xlane.xlu0 %7853
  %v7855 = vsub.f32 %v7851, %v7854
  %v7856 = vmul.f32 %v7855, 1.442695
  %v7857 = vpow.pop %v7856
  %v7858 = vsel %vm7820, %v7857, 0.0
  %7859 = vadd.xlane.f32.xlu0 %v7858
  %v7860 = vpop.xlane.xlu0 %7859
  %v7861 = vrcp.pop %v7860
  %v7862 = vmul.f32 %v7857, %v7861
  %v7864 = vadd.f32 %v7497, %v7801
  %v7865 = vsub.f32 %v7864, %v7817
  %v7866 = vsel %vm7820, %v7865, -inf
  %7867 = vmax.xlane.f32.xlu0 %v7866
  %v7868 = vpop.xlane.xlu0 %7867
  %v7869 = vsub.f32 %v7865, %v7868
  %v7870 = vmul.f32 %v7869, 1.442695
  %v7871 = vpow.pop %v7870
  %v7872 = vsel %vm7820, %v7871, 0.0
  %7873 = vadd.xlane.f32.xlu0 %v7872
  %v7874 = vpop.xlane.xlu0 %7873
  %v7875 = vrcp.pop %v7874
  %v7876 = vmul.f32 %v7871, %v7875
  %7877 = vrot.lane.b32.xlu0 %v7499, 1
  %v7878 = vpop.permute.xlu0 %7877
  %vm7879 = vcmask 7168
  %v7880 = vsel %vm7879, %v7878, %v7809
  %v7882 = vadd.f32 %v7497, %v7880
  %v7883 = vsub.f32 %v7882, %v7817
  %v7884 = vsel %vm7820, %v7883, -inf
  %7885 = vmax.xlane.f32.xlu0 %v7884
  %v7886 = vpop.xlane.xlu0 %7885
  %v7887 = vsub.f32 %v7883, %v7886
  %v7888 = vmul.f32 %v7887, 1.442695
  %v7889 = vpow.pop %v7888
  %v7890 = vsel %vm7820, %v7889, 0.0
  %7891 = vadd.xlane.f32.xlu0 %v7890
  %v7892 = vpop.xlane.xlu0 %7891
  %v7893 = vrcp.pop %v7892
  %v7894 = vmul.f32 %v7889, %v7893
  %7895 = vrot.lane.b32.xlu0 %v7778, 78
  %v7896 = vpop.permute.xlu0 %7895
  %v7898 = vadd.f32 %v7497, %v7896
  %v7899 = vsub.f32 %v7898, %v7817
  %v7900 = vsel %vm7820, %v7899, -inf
  %7901 = vmax.xlane.f32.xlu0 %v7900
  %v7902 = vpop.xlane.xlu0 %7901
  %v7903 = vsub.f32 %v7899, %v7902
  %v7904 = vmul.f32 %v7903, 1.442695
  %v7905 = vpow.pop %v7904
  %v7906 = vsel %vm7820, %v7905, 0.0
  %7907 = vadd.xlane.f32.xlu0 %v7906
  %v7908 = vpop.xlane.xlu0 %7907
  %v7909 = vrcp.pop %v7908
  %v7910 = vmul.f32 %v7905, %v7909
  %7912 = vrot.lane.b32.xlu0 %v7849, 51
  %v7913 = vpop.permute.xlu0 %7912
  %7916 = vrot.lane.b32.xlu0 %v7862, 102
  %v7917 = vpop.permute.xlu0 %7916
  %7920 = vrot.lane.b32.xlu0 %v7876, 25
  %v7921 = vpop.permute.xlu0 %7920
  %7924 = vrot.lane.b32.xlu0 %v7894, 76
  %v7925 = vpop.permute.xlu0 %7924
  %7928 = vrot.lane.b32.xlu0 %v7910, 127
  %v7929 = vpop.permute.xlu0 %7928
  %vm7931 = vcmask 416768
  %v7932 = vsel %vm7931, %v7831, %v7913
  %vm7933 = vcmask 834560
  %v7934 = vsel %vm7933, %v7932, %v7917
  %vm7935 = vcmask 203776
  %v7936 = vsel %vm7935, %v7917, %v7921
  %vm7937 = vcmask 621568
  %v7938 = vsel %vm7937, %v7936, %v7925
  %vm7939 = vcmask 1039360
  %v7940 = vsel %vm7939, %v7938, %v7929
  %v7943 = vcombine.low %v7934, %v7940
  %v7945 = vunpack.c.l.s4 1983009808
  %v7946 = vunpack.c.0.s8 %v7945
  %v7947 = vlaneseq
  %v7948 = vshrl.u32 %v7947, 7
  %v7949 = vsub.s32 %v7946, %v7948
  %v7950 = vrot.slane %v7943, %v7949
  %v7952 = vunpack.c.l.s4 1983009808
  %v7953 = vunpack.c.0.s8 %v7952
  %v7954 = vlaneseq
  %v7955 = vshrl.u32 %v7954, 7
  %v7956 = vsub.s32 %v7953, %v7955
  %v7957 = vrot.slane %v7929, %v7956
  %v7958 = vcombine.low %v7950, %v7957
  %vm7960 = vcmask 1043458
  %vm7961 = vmor %vm7960, %vm5037
  %vm7962 = vcmask 406532
  %vm7963 = vmor %vm7962, %vm7961
  %7964 = vst.msk [vmem:[%s13] sm:$0x3f] %vm7963, %v7958
  // Predicated region
  $region54: #{rainbow_forward.1} parent=0 // pred_check
    _
  $region55: #{rainbow_forward.1} parent=0 // pred_check_branch
    %7966 = sbr.rel (0) target = $region57
  $region56: #{rainbow_forward.1} parent=0 // pred_region
    _
  $region57: #{rainbow_forward.1} parent=0 // pred_fallthru
    _
  // Predicated region
  $region58: #{rainbow_forward.1} parent=0 // pred_check
    _
  $region59: #{rainbow_forward.1} parent=0 // pred_check_branch
    %7968 = sbr.rel (0) target = $region61
  $region60: #{rainbow_forward.1} parent=0 // pred_region
    _
  $region61: #{rainbow_forward.1} parent=0 // pred_fallthru
    _

</llo_original>
